<compile_context>
chip_gen: v5e
topology: v5e:2x2
jax: 0.10.0
libtpu: 0.0.40
codegen_flags: <defaults>
</compile_context>

<pallas_src>
import functools

import jax
import jax.numpy as jnp
from jax.experimental import pallas as pl
from jax.experimental.pallas import tpu as pltpu

NEG_SLOPE = 0.01   # F.leaky_relu default
BN_EPS = 1e-5      # nn.BatchNorm2d default
LANE = 128


def _leaky_relu(x):
    return jnp.where(x > 0, x, NEG_SLOPE * x)


def _round_up(x, m):
    return ((x + m - 1) // m) * m


def _vmem_limit_bytes():
    """Per-generation scoped-VMEM request with a safe fallback."""
    cap = 64 * 1024 * 1024
    try:
        info = pltpu.get_tpu_info()
        cap = int(getattr(info, "vmem_capacity_bytes", cap)) or cap
    except Exception:
        pass
    # Leave headroom below physical; never request more than 100 MiB.
    return max(32 * 1024 * 1024, min(cap - 16 * 1024 * 1024, 100 * 1024 * 1024))


def _pick_row_block(H, W, Cinp, Coutp, budget_bytes, max_th=64):
    """Largest divisor of H (<= max_th) whose per-step footprint fits VMEM."""
    Wp = W + 4
    best = 1
    for th in range(1, H + 1):
        if H % th or th > max_th:
            continue
        s = th + 5
        need = (2 * s * Wp * Cinp * 2                       # x strip (dbl-buffered)
                + 2 * 2 * th * Wp * Coutp * 2               # y2 + ident outputs
                + ((th + 2) * Wp + 8) * Coutp * 2           # h1 scratch
                + (th + 2) * Wp * Coutp * 4                 # acc1 value
                + th * Wp * Coutp * 4                       # acc2 value
                + 2 * (9 * Cinp * Coutp + 9 * Coutp * Coutp
                       + Cinp * Coutp) * 2)                 # weights (dbl-buffered)
        need = int(need * 1.5)                              # temporaries slack
        if need <= budget_bytes:
            best = th
    return best


# --------------------------------------------------------------------------
# Pass 1: conv1 -> leaky_relu -> conv2 (+bias), identity/projection tile,
#         per-tile mean-shifted BN statistics.
# --------------------------------------------------------------------------
def _pass1_kernel(x_ref, w1_ref, b1_ref, w2_ref, b2_ref, pw_ref, pb_ref,
                  y2_ref, ident_ref, stats_ref, h1_ref,
                  *, W, TH, has_projection):
    """One TH-row output tile of one image, on the width-padded flat raster.

    x_ref   : ((TH+5)*Wp, Cinp)  bf16   flat padded strip (Wp = W+4)
    w1_ref  : (3, 3, Cinp, Coutp) bf16 ; b1_ref : (1, Coutp) f32
    w2_ref  : (3, 3, Coutp, Coutp) bf16; b2_ref : (1, Coutp) f32
    pw_ref  : (Cinp, Coutp) bf16       ; pb_ref : (1, Coutp) f32
    y2_ref  : (TH*Wp, Coutp) bf16      pre-BN conv2 tile (cols >= W are garbage)
    ident_ref: (TH*Wp, Coutp) bf16     identity / projection tile
    stats_ref: (2, Coutp) f32          [channel sum, mean-shifted sum-of-squares]
    h1_ref  : ((TH+2)*Wp + 8, Coutp) bf16 scratch (tail zeroed)
    """
    Wp = W + 4
    Coutp = y2_ref.shape[-1]
    f32 = jnp.float32
    hb = pl.program_id(1)
    nhb = pl.num_programs(1)

    # ---- conv1: 9 taps as contiguous static row-offset views of the strip ----
    L1 = (TH + 2) * Wp                       # h1 halo raster (rows -1 .. TH)
    acc1 = jnp.zeros((L1, Coutp), f32)
    for dy in range(3):
        for dx in range(3):
            off = dy * Wp + dx
            acc1 = acc1 + jnp.dot(x_ref[pl.ds(off, L1), :], w1_ref[dy, dx],
                                  preferred_element_type=f32)
    h1 = _leaky_relu(acc1 + b1_ref[...])

    # conv2 SAME padding (columns): zero h1 at original cols -1 and >= W.
    col = jax.lax.broadcasted_iota(jnp.int32, (L1, 1), 0) % Wp
    h1 = jnp.where((col >= 1) & (col <= W), h1, 0.0).astype(jnp.bfloat16)
    h1_ref[pl.ds(0, L1), :] = h1
    h1_ref[pl.ds(L1, 8), :] = jnp.zeros((8, Coutp), jnp.bfloat16)

    # conv2 SAME padding (rows): only boundary tiles have an out-of-image row.
    @pl.when(hb == 0)
    def _():
        h1_ref[pl.ds(0, Wp), :] = jnp.zeros((Wp, Coutp), jnp.bfloat16)

    @pl.when(hb == nhb - 1)
    def _():
        h1_ref[pl.ds((TH + 1) * Wp, Wp), :] = jnp.zeros((Wp, Coutp), jnp.bfloat16)

    # ---- conv2: same zero-copy tap scheme on the h1 scratch ----
    L2 = TH * Wp
    acc2 = jnp.zeros((L2, Coutp), f32)
    for dy in range(3):
        for dx in range(3):
            off = dy * Wp + dx
            acc2 = acc2 + jnp.dot(h1_ref[pl.ds(off, L2), :], w2_ref[dy, dx],
                                  preferred_element_type=f32)
    acc2 = acc2 + b2_ref[...]
    y2_ref[...] = acc2.astype(jnp.bfloat16)

    # ---- identity / 1x1 projection tile (x strip already resident) ----
    x_tile = x_ref[pl.ds(2 * Wp + 2, L2), :]
    if has_projection:
        ident = jnp.dot(x_tile, pw_ref[...],
                        preferred_element_type=f32) + pb_ref[...]
        ident_ref[...] = ident.astype(jnp.bfloat16)
    else:
        ident_ref[...] = x_tile

    # ---- per-tile BN statistics (mean-shifted; garbage columns masked) ----
    ocol = jax.lax.broadcasted_iota(jnp.int32, (L2, 1), 0) % Wp
    ovalid = ocol < W
    inv_m = 1.0 / float(TH * W)
    masked = jnp.where(ovalid, acc2, 0.0)
    tsum = jnp.sum(masked, axis=0, keepdims=True)            # (1, Coutp)
    tmean = tsum * inv_m
    d = jnp.where(ovalid, acc2 - tmean, 0.0)
    tm2 = jnp.sum(d * d, axis=0, keepdims=True)
    stats_ref[pl.ds(0, 1), :] = tsum
    stats_ref[pl.ds(1, 1), :] = tm2


# --------------------------------------------------------------------------
# Pass 2: BatchNorm normalize -> leaky_relu -> + identity -> leaky_relu.
# Pure lane-dense streaming, no image input, no halo.
# --------------------------------------------------------------------------
def _pass2_kernel(y2_ref, ident_ref, mean_ref, inv_ref, gamma_ref, beta_ref,
                  o_ref):
    y2 = y2_ref[...].astype(jnp.float32)
    bn = (y2 - mean_ref[...]) * inv_ref[...]
    h2 = _leaky_relu(bn * gamma_ref[...] + beta_ref[...])
    out = h2 + ident_ref[...].astype(jnp.float32)
    o_ref[...] = _leaky_relu(out)


# --------------------------------------------------------------------------
# Wrapper: NCHW in / NCHW out.
# --------------------------------------------------------------------------
@functools.partial(jax.jit, static_argnames=("has_projection", "row_block"))
def residual_block(x_nchw, params, *, has_projection, row_block=None):
    N, Cin, H, W = x_nchw.shape
    Cout = params["w1"].shape[-1]
    if not has_projection:
        assert Cin == Cout, "identity path requires Cin == Cout"

    Cinp = _round_up(Cin, LANE)
    Coutp = _round_up(Cout, LANE)
    Wp, Hp = W + 4, H + 4

    vmem_limit = _vmem_limit_bytes()
    if row_block is None:
        TH = _pick_row_block(H, W, Cinp, Coutp, int(vmem_limit * 0.6))
    else:
        TH = row_block
    assert H % TH == 0, f"row_block {TH} must divide H={H}"
    nHB = H // TH
    S = TH + 5                      # strip rows: TH interior + halos + wrap slack

    # Fused layout transform (one HBM materialization under jit):
    # NCHW -> NHWC, bf16, 2-px spatial pad, 128-lane channel pad, overlapping
    # (TH+5)-row strips flattened to a lane-dense (S*Wp, Cinp) raster per tile.
    x_nhwc = jnp.transpose(x_nchw, (0, 2, 3, 1)).astype(jnp.bfloat16)
    x_pad = jnp.pad(x_nhwc, ((0, 0), (2, 2), (2, 2), (0, Cinp - Cin)))
    row_idx = jnp.minimum(
        jnp.arange(nHB)[:, None] * TH + jnp.arange(S)[None, :], Hp - 1)
    x_strips = x_pad[:, row_idx].reshape(N, nHB, S * Wp, Cinp)

    pad_w = lambda w, ci, co: jnp.pad(
        w, ((0, 0), (0, 0), (0, ci - w.shape[2]), (0, co - w.shape[3]))
    ).astype(jnp.bfloat16)
    pad_v = lambda v: jnp.pad(v.astype(jnp.float32),
                              ((0, 0), (0, Coutp - v.shape[-1])))

    w1 = pad_w(params["w1"], Cinp, Coutp)
    w2 = pad_w(params["w2"], Coutp, Coutp)
    b1, b2 = pad_v(params["b1"]), pad_v(params["b2"])
    gamma, beta = pad_v(params["gamma"]), pad_v(params["beta"])
    pw = jnp.pad(params["pw"],
                 ((0, Cinp - Cin), (0, Coutp - Cout))).astype(jnp.bfloat16)
    pb = pad_v(params["pb"])

    grid = (N, nHB)
    cparams = pltpu.CompilerParams(
        dimension_semantics=("parallel", "parallel"),
        vmem_limit_bytes=int(vmem_limit))

    # ---------------- pass 1: convs + identity + BN partial statistics -------
    p1_flops = 2 * N * nHB * ((TH + 2) * Wp * 9 * Cinp * Coutp
                              + TH * Wp * 9 * Coutp * Coutp
                              + (TH * Wp * Cinp * Coutp if has_projection else 0))
    p1_bytes = (x_strips.size * 2 + (w1.size + w2.size + pw.size) * 2
                + 2 * N * H * Wp * Coutp * 2 + N * nHB * 2 * Coutp * 4)

    y2, ident, stats = pl.pallas_call(
        functools.partial(_pass1_kernel, W=W, TH=TH,
                          has_projection=has_projection),
        grid=grid,
        in_specs=[
            pl.BlockSpec((None, None, S * Wp, Cinp), lambda n, hb: (n, hb, 0, 0)),
            pl.BlockSpec((3, 3, Cinp, Coutp), lambda n, hb: (0, 0, 0, 0)),
            pl.BlockSpec((1, Coutp), lambda n, hb: (0, 0)),
            pl.BlockSpec((3, 3, Coutp, Coutp), lambda n, hb: (0, 0, 0, 0)),
            pl.BlockSpec((1, Coutp), lambda n, hb: (0, 0)),
            pl.BlockSpec((Cinp, Coutp), lambda n, hb: (0, 0)),
            pl.BlockSpec((1, Coutp), lambda n, hb: (0, 0)),
        ],
        out_specs=(
            pl.BlockSpec((None, None, TH * Wp, Coutp), lambda n, hb: (n, hb, 0, 0)),
            pl.BlockSpec((None, None, TH * Wp, Coutp), lambda n, hb: (n, hb, 0, 0)),
            pl.BlockSpec((None, None, 2, Coutp), lambda n, hb: (n, hb, 0, 0)),
        ),
        out_shape=(
            jax.ShapeDtypeStruct((N, nHB, TH * Wp, Coutp), jnp.bfloat16),
            jax.ShapeDtypeStruct((N, nHB, TH * Wp, Coutp), jnp.bfloat16),
            jax.ShapeDtypeStruct((N, nHB, 2, Coutp), jnp.float32),
        ),
        scratch_shapes=[pltpu.VMEM(((TH + 2) * Wp + 8, Coutp), jnp.bfloat16)],
        compiler_params=cparams,
        cost_estimate=pl.CostEstimate(flops=int(p1_flops), transcendentals=0,
                                      bytes_accessed=int(p1_bytes)),
    )(x_strips, w1, b1, w2, b2, pw, pb)

    # Chan-style combine of per-tile (sum, mean-shifted M2): no E[x^2]-mean^2
    # cancellation.  Training-mode (biased) batch statistics.
    m = float(TH * W)
    count = jnp.float32(N * H * W)
    tsum = stats[:, :, 0, :]                       # (N, nHB, Coutp)
    tm2 = stats[:, :, 1, :]
    mean = jnp.sum(tsum, axis=(0, 1)) / count
    tmean = tsum / m
    m2 = jnp.sum(tm2, axis=(0, 1)) + jnp.sum(m * (tmean - mean) ** 2, axis=(0, 1))
    var = jnp.maximum(m2 / count, 0.0)
    inv_std = jax.lax.rsqrt(var + BN_EPS)
    mean = mean.reshape(1, Coutp)
    inv_std = inv_std.reshape(1, Coutp)

    # ---------------- pass 2: normalize + residual + activations -------------
    p2_flops = 10 * N * H * Wp * Coutp
    p2_bytes = (2 * N * H * Wp * Coutp * 2 + N * H * Wp * Coutp * 4
                + 4 * Coutp * 4)
    out = pl.pallas_call(
        _pass2_kernel,
        grid=grid,
        in_specs=[
            pl.BlockSpec((None, None, TH * Wp, Coutp), lambda n, hb: (n, hb, 0, 0)),
            pl.BlockSpec((None, None, TH * Wp, Coutp), lambda n, hb: (n, hb, 0, 0)),
            pl.BlockSpec((1, Coutp), lambda n, hb: (0, 0)),   # mean
            pl.BlockSpec((1, Coutp), lambda n, hb: (0, 0)),   # inv_std
            pl.BlockSpec((1, Coutp), lambda n, hb: (0, 0)),   # gamma
            pl.BlockSpec((1, Coutp), lambda n, hb: (0, 0)),   # beta
        ],
        out_specs=pl.BlockSpec((None, None, TH * Wp, Coutp),
                               lambda n, hb: (n, hb, 0, 0)),
        out_shape=jax.ShapeDtypeStruct((N, nHB, TH * Wp, Coutp), jnp.float32),
        compiler_params=cparams,
        cost_estimate=pl.CostEstimate(flops=int(p2_flops), transcendentals=0,
                                      bytes_accessed=int(p2_bytes)),
    )(y2, ident, mean, inv_std, gamma, beta)

    out = out.reshape(N, H, Wp, Coutp)[:, :, :W, :Cout]
    return jnp.transpose(out, (0, 3, 1, 2))


# --------------------------------------------------------------------------
# Parameters & pure-JAX reference (precision-matched: bf16 MXU operands,
# bf16 inter-pass activations).
# --------------------------------------------------------------------------
def init_params(key, in_channels, out_channels, ksize=3):
    ks = jax.random.split(key, 6)
    fan1 = in_channels * ksize * ksize
    fan2 = out_channels * ksize * ksize
    return {
        "w1": jax.random.normal(ks[0], (ksize, ksize, in_channels, out_channels),
                                jnp.float32) / jnp.sqrt(fan1),
        "b1": jax.random.normal(ks[1], (1, out_channels), jnp.float32) * 0.05,
        "w2": jax.random.normal(ks[2], (ksize, ksize, out_channels, out_channels),
                                jnp.float32) / jnp.sqrt(fan2),
        "b2": jax.random.normal(ks[3], (1, out_channels), jnp.float32) * 0.05,
        "gamma": jnp.ones((1, out_channels), jnp.float32),
        "beta": jnp.zeros((1, out_channels), jnp.float32),
        "pw": jax.random.normal(ks[4], (in_channels, out_channels),
                                jnp.float32) / jnp.sqrt(in_channels),
        "pb": jax.random.normal(ks[5], (1, out_channels), jnp.float32) * 0.05,
    }


def residual_block_reference(x_nchw, params, *, has_projection):
    f32 = jnp.float32
    bf = lambda a: a.astype(jnp.bfloat16).astype(f32)   # mirror bf16 rounding
    x = jnp.transpose(x_nchw, (0, 2, 3, 1)).astype(f32)

    def conv(inp, w, b):
        y = jax.lax.conv_general_dilated(
            bf(inp), bf(w), window_strides=(1, 1), padding="SAME",
            dimension_numbers=("NHWC", "HWIO", "NHWC"))
        return y + b.reshape(1, 1, 1, -1)

    h = bf(_leaky_relu(conv(x, params["w1"], params["b1"])))   # h1 stored bf16
    y2 = conv(h, params["w2"], params["b2"])
    mean = jnp.mean(y2, axis=(0, 1, 2), keepdims=True)
    var = jnp.mean((y2 - mean) ** 2, axis=(0, 1, 2), keepdims=True)
    y2q = bf(y2)                                               # y2 streamed bf16
    h2 = _leaky_relu((y2q - mean) * jax.lax.rsqrt(var + BN_EPS)
                     * params["gamma"].reshape(1, 1, 1, -1)
                     + params["beta"].reshape(1, 1, 1, -1))
    if has_projection:
        ident = bf(jnp.einsum("nhwc,co->nhwo", bf(x), bf(params["pw"]))
                   + params["pb"].reshape(1, 1, 1, -1))
    else:
        ident = bf(x)                                          # ident streamed bf16
    out = _leaky_relu(h2 + ident)
    return jnp.transpose(out, (0, 3, 1, 2))


if __name__ == "__main__":
    key = jax.random.PRNGKey(0)
    k_x1, k_p1, k_x2, k_p2 = jax.random.split(key, 4)

    # Case 1: Cin != Cout -> 1x1 projection identity.
    N, Cin, Cout, H, W = 2, 4, 8, 16, 16
    x1 = jax.random.normal(k_x1, (N, Cin, H, W), jnp.float32)
    p1 = init_params(k_p1, Cin, Cout)
    out1 = jax.block_until_ready(residual_block(x1, p1, has_projection=True))
    assert out1.shape == (N, Cout, H, W), out1.shape
    ref1 = residual_block_reference(x1, p1, has_projection=True)
    assert jnp.allclose(out1, ref1, atol=2e-2, rtol=2e-2), \
        float(jnp.max(jnp.abs(out1 - ref1)))

    # Case 2: Cin == Cout -> plain identity path.
    x2 = jax.random.normal(k_x2, (N, Cout, H, W), jnp.float32)
    p2 = init_params(k_p2, Cout, Cout)
    out2 = jax.block_until_ready(residual_block(x2, p2, has_projection=False))
    assert out2.shape == (N, Cout, H, W), out2.shape
    ref2 = residual_block_reference(x2, p2, has_projection=False)
    assert jnp.allclose(out2, ref2, atol=2e-2, rtol=2e-2), \
        float(jnp.max(jnp.abs(out2 - ref2)))

    print("KERNEL_OK")
</pallas_src>

<mosaic_0001>
module attributes {stable_mosaic.version = 11 : i64} {
  func.func @_pass1_kernel(%arg0: i32, %arg1: i32, %arg2: memref<1x1x420x128xbf16, #tpu.memory_space<vmem>>, %arg3: memref<3x3x128x128xbf16, #tpu.memory_space<vmem>>, %arg4: memref<1x128xf32, #tpu.memory_space<vmem>>, %arg5: memref<3x3x128x128xbf16, #tpu.memory_space<vmem>>, %arg6: memref<1x128xf32, #tpu.memory_space<vmem>>, %arg7: memref<128x128xbf16, #tpu.memory_space<vmem>>, %arg8: memref<1x128xf32, #tpu.memory_space<vmem>>, %arg9: memref<1x1x320x128xbf16, #tpu.memory_space<vmem>>, %arg10: memref<1x1x320x128xbf16, #tpu.memory_space<vmem>>, %arg11: memref<1x1x2x128xf32, #tpu.memory_space<vmem>>, %arg12: memref<368x128xbf16, #tpu.memory_space<vmem>>) attributes {dimension_semantics = [#tpu.dimension_semantics<parallel>, #tpu.dimension_semantics<parallel>], iteration_bounds = array<i64: 2, 1>, scalar_prefetch = 0 : i64, scratch_operands = 1 : i64, tpu.core_type = #tpu.core_type<tc>, window_params = [{transform_indices = @transform_0, window_bounds = array<i64: 1, 1, 420, 128>}, {pipeline_mode = #tpu.pipeline_mode<synchronous>, transform_indices = @transform_1, window_bounds = array<i64: 3, 3, 128, 128>}, {pipeline_mode = #tpu.pipeline_mode<synchronous>, transform_indices = @transform_2, window_bounds = array<i64: 1, 128>}, {pipeline_mode = #tpu.pipeline_mode<synchronous>, transform_indices = @transform_3, window_bounds = array<i64: 3, 3, 128, 128>}, {pipeline_mode = #tpu.pipeline_mode<synchronous>, transform_indices = @transform_4, window_bounds = array<i64: 1, 128>}, {pipeline_mode = #tpu.pipeline_mode<synchronous>, transform_indices = @transform_5, window_bounds = array<i64: 128, 128>}, {pipeline_mode = #tpu.pipeline_mode<synchronous>, transform_indices = @transform_6, window_bounds = array<i64: 1, 128>}, {transform_indices = @transform_7, window_bounds = array<i64: 1, 1, 320, 128>}, {transform_indices = @transform_8, window_bounds = array<i64: 1, 1, 320, 128>}, {transform_indices = @transform_9, window_bounds = array<i64: 1, 1, 2, 128>}]} {
    %cst = arith.constant 0.000000e+00 : f32
    %0 = vector.broadcast %cst : f32 to vector<360x128xf32>
    %c0 = arith.constant 0 : index
    %c0_0 = arith.constant 0 : index
    %c0_1 = arith.constant 0 : index
    %c0_2 = arith.constant 0 : index
    %1 = vector.load %arg2[%c0, %c0_0, %c0_1, %c0_2] : memref<1x1x420x128xbf16, #tpu.memory_space<vmem>>, vector<1x1x360x128xbf16>
    %2 = vector.shape_cast %1 : vector<1x1x360x128xbf16> to vector<360x128xbf16>
    %c0_3 = arith.constant 0 : index
    %c0_4 = arith.constant 0 : index
    %c0_5 = arith.constant 0 : index
    %c0_6 = arith.constant 0 : index
    %3 = vector.load %arg3[%c0_3, %c0_4, %c0_5, %c0_6] : memref<3x3x128x128xbf16, #tpu.memory_space<vmem>>, vector<1x1x128x128xbf16>
    %4 = vector.shape_cast %3 : vector<1x1x128x128xbf16> to vector<128x128xbf16>
    %cst_7 = arith.constant dense<0.000000e+00> : vector<360x128xf32>
    %5 = tpu.matmul %2, %4, %cst_7 {dimension_numbers = #tpu.dot_dimension_numbers<[1], [0], [0], [1], [0, 0, 1, 1], [], []>} : vector<360x128xbf16>, vector<128x128xbf16>, vector<360x128xf32> -> vector<360x128xf32>
    %6 = arith.addf %0, %5 : vector<360x128xf32>
    %c0_8 = arith.constant 0 : index
    %c0_9 = arith.constant 0 : index
    %c1 = arith.constant 1 : index
    %c0_10 = arith.constant 0 : index
    %7 = vector.load %arg2[%c0_8, %c0_9, %c1, %c0_10] : memref<1x1x420x128xbf16, #tpu.memory_space<vmem>>, vector<1x1x360x128xbf16>
    %8 = vector.shape_cast %7 : vector<1x1x360x128xbf16> to vector<360x128xbf16>
    %c0_11 = arith.constant 0 : index
    %c1_12 = arith.constant 1 : index
    %c0_13 = arith.constant 0 : index
    %c0_14 = arith.constant 0 : index
    %9 = vector.load %arg3[%c0_11, %c1_12, %c0_13, %c0_14] : memref<3x3x128x128xbf16, #tpu.memory_space<vmem>>, vector<1x1x128x128xbf16>
    %10 = vector.shape_cast %9 : vector<1x1x128x128xbf16> to vector<128x128xbf16>
    %cst_15 = arith.constant dense<0.000000e+00> : vector<360x128xf32>
    %11 = tpu.matmul %8, %10, %cst_15 {dimension_numbers = #tpu.dot_dimension_numbers<[1], [0], [0], [1], [0, 0, 1, 1], [], []>} : vector<360x128xbf16>, vector<128x128xbf16>, vector<360x128xf32> -> vector<360x128xf32>
    %12 = arith.addf %6, %11 : vector<360x128xf32>
    %c0_16 = arith.constant 0 : index
    %c0_17 = arith.constant 0 : index
    %c2 = arith.constant 2 : index
    %c0_18 = arith.constant 0 : index
    %13 = vector.load %arg2[%c0_16, %c0_17, %c2, %c0_18] : memref<1x1x420x128xbf16, #tpu.memory_space<vmem>>, vector<1x1x360x128xbf16>
    %14 = vector.shape_cast %13 : vector<1x1x360x128xbf16> to vector<360x128xbf16>
    %c0_19 = arith.constant 0 : index
    %c2_20 = arith.constant 2 : index
    %c0_21 = arith.constant 0 : index
    %c0_22 = arith.constant 0 : index
    %15 = vector.load %arg3[%c0_19, %c2_20, %c0_21, %c0_22] : memref<3x3x128x128xbf16, #tpu.memory_space<vmem>>, vector<1x1x128x128xbf16>
    %16 = vector.shape_cast %15 : vector<1x1x128x128xbf16> to vector<128x128xbf16>
    %cst_23 = arith.constant dense<0.000000e+00> : vector<360x128xf32>
    %17 = tpu.matmul %14, %16, %cst_23 {dimension_numbers = #tpu.dot_dimension_numbers<[1], [0], [0], [1], [0, 0, 1, 1], [], []>} : vector<360x128xbf16>, vector<128x128xbf16>, vector<360x128xf32> -> vector<360x128xf32>
    %18 = arith.addf %12, %17 : vector<360x128xf32>
    %c0_24 = arith.constant 0 : index
    %c0_25 = arith.constant 0 : index
    %c20 = arith.constant 20 : index
    %c0_26 = arith.constant 0 : index
    %19 = vector.load %arg2[%c0_24, %c0_25, %c20, %c0_26] : memref<1x1x420x128xbf16, #tpu.memory_space<vmem>>, vector<1x1x360x128xbf16>
    %20 = vector.shape_cast %19 : vector<1x1x360x128xbf16> to vector<360x128xbf16>
    %c1_27 = arith.constant 1 : index
    %c0_28 = arith.constant 0 : index
    %c0_29 = arith.constant 0 : index
    %c0_30 = arith.constant 0 : index
    %21 = vector.load %arg3[%c1_27, %c0_28, %c0_29, %c0_30] : memref<3x3x128x128xbf16, #tpu.memory_space<vmem>>, vector<1x1x128x128xbf16>
    %22 = vector.shape_cast %21 : vector<1x1x128x128xbf16> to vector<128x128xbf16>
    %cst_31 = arith.constant dense<0.000000e+00> : vector<360x128xf32>
    %23 = tpu.matmul %20, %22, %cst_31 {dimension_numbers = #tpu.dot_dimension_numbers<[1], [0], [0], [1], [0, 0, 1, 1], [], []>} : vector<360x128xbf16>, vector<128x128xbf16>, vector<360x128xf32> -> vector<360x128xf32>
    %24 = arith.addf %18, %23 : vector<360x128xf32>
    %c0_32 = arith.constant 0 : index
    %c0_33 = arith.constant 0 : index
    %c21 = arith.constant 21 : index
    %c0_34 = arith.constant 0 : index
    %25 = vector.load %arg2[%c0_32, %c0_33, %c21, %c0_34] : memref<1x1x420x128xbf16, #tpu.memory_space<vmem>>, vector<1x1x360x128xbf16>
    %26 = vector.shape_cast %25 : vector<1x1x360x128xbf16> to vector<360x128xbf16>
    %c1_35 = arith.constant 1 : index
    %c1_36 = arith.constant 1 : index
    %c0_37 = arith.constant 0 : index
    %c0_38 = arith.constant 0 : index
    %27 = vector.load %arg3[%c1_35, %c1_36, %c0_37, %c0_38] : memref<3x3x128x128xbf16, #tpu.memory_space<vmem>>, vector<1x1x128x128xbf16>
    %28 = vector.shape_cast %27 : vector<1x1x128x128xbf16> to vector<128x128xbf16>
    %cst_39 = arith.constant dense<0.000000e+00> : vector<360x128xf32>
    %29 = tpu.matmul %26, %28, %cst_39 {dimension_numbers = #tpu.dot_dimension_numbers<[1], [0], [0], [1], [0, 0, 1, 1], [], []>} : vector<360x128xbf16>, vector<128x128xbf16>, vector<360x128xf32> -> vector<360x128xf32>
    %30 = arith.addf %24, %29 : vector<360x128xf32>
    %c0_40 = arith.constant 0 : index
    %c0_41 = arith.constant 0 : index
    %c22 = arith.constant 22 : index
    %c0_42 = arith.constant 0 : index
    %31 = vector.load %arg2[%c0_40, %c0_41, %c22, %c0_42] : memref<1x1x420x128xbf16, #tpu.memory_space<vmem>>, vector<1x1x360x128xbf16>
    %32 = vector.shape_cast %31 : vector<1x1x360x128xbf16> to vector<360x128xbf16>
    %c1_43 = arith.constant 1 : index
    %c2_44 = arith.constant 2 : index
    %c0_45 = arith.constant 0 : index
    %c0_46 = arith.constant 0 : index
    %33 = vector.load %arg3[%c1_43, %c2_44, %c0_45, %c0_46] : memref<3x3x128x128xbf16, #tpu.memory_space<vmem>>, vector<1x1x128x128xbf16>
    %34 = vector.shape_cast %33 : vector<1x1x128x128xbf16> to vector<128x128xbf16>
    %cst_47 = arith.constant dense<0.000000e+00> : vector<360x128xf32>
    %35 = tpu.matmul %32, %34, %cst_47 {dimension_numbers = #tpu.dot_dimension_numbers<[1], [0], [0], [1], [0, 0, 1, 1], [], []>} : vector<360x128xbf16>, vector<128x128xbf16>, vector<360x128xf32> -> vector<360x128xf32>
    %36 = arith.addf %30, %35 : vector<360x128xf32>
    %c0_48 = arith.constant 0 : index
    %c0_49 = arith.constant 0 : index
    %c40 = arith.constant 40 : index
    %c0_50 = arith.constant 0 : index
    %37 = vector.load %arg2[%c0_48, %c0_49, %c40, %c0_50] : memref<1x1x420x128xbf16, #tpu.memory_space<vmem>>, vector<1x1x360x128xbf16>
    %38 = vector.shape_cast %37 : vector<1x1x360x128xbf16> to vector<360x128xbf16>
    %c2_51 = arith.constant 2 : index
    %c0_52 = arith.constant 0 : index
    %c0_53 = arith.constant 0 : index
    %c0_54 = arith.constant 0 : index
    %39 = vector.load %arg3[%c2_51, %c0_52, %c0_53, %c0_54] : memref<3x3x128x128xbf16, #tpu.memory_space<vmem>>, vector<1x1x128x128xbf16>
    %40 = vector.shape_cast %39 : vector<1x1x128x128xbf16> to vector<128x128xbf16>
    %cst_55 = arith.constant dense<0.000000e+00> : vector<360x128xf32>
    %41 = tpu.matmul %38, %40, %cst_55 {dimension_numbers = #tpu.dot_dimension_numbers<[1], [0], [0], [1], [0, 0, 1, 1], [], []>} : vector<360x128xbf16>, vector<128x128xbf16>, vector<360x128xf32> -> vector<360x128xf32>
    %42 = arith.addf %36, %41 : vector<360x128xf32>
    %c0_56 = arith.constant 0 : index
    %c0_57 = arith.constant 0 : index
    %c41 = arith.constant 41 : index
    %c0_58 = arith.constant 0 : index
    %43 = vector.load %arg2[%c0_56, %c0_57, %c41, %c0_58] : memref<1x1x420x128xbf16, #tpu.memory_space<vmem>>, vector<1x1x360x128xbf16>
    %44 = vector.shape_cast %43 : vector<1x1x360x128xbf16> to vector<360x128xbf16>
    %c2_59 = arith.constant 2 : index
    %c1_60 = arith.constant 1 : index
    %c0_61 = arith.constant 0 : index
    %c0_62 = arith.constant 0 : index
    %45 = vector.load %arg3[%c2_59, %c1_60, %c0_61, %c0_62] : memref<3x3x128x128xbf16, #tpu.memory_space<vmem>>, vector<1x1x128x128xbf16>
    %46 = vector.shape_cast %45 : vector<1x1x128x128xbf16> to vector<128x128xbf16>
    %cst_63 = arith.constant dense<0.000000e+00> : vector<360x128xf32>
    %47 = tpu.matmul %44, %46, %cst_63 {dimension_numbers = #tpu.dot_dimension_numbers<[1], [0], [0], [1], [0, 0, 1, 1], [], []>} : vector<360x128xbf16>, vector<128x128xbf16>, vector<360x128xf32> -> vector<360x128xf32>
    %48 = arith.addf %42, %47 : vector<360x128xf32>
    %c0_64 = arith.constant 0 : index
    %c0_65 = arith.constant 0 : index
    %c42 = arith.constant 42 : index
    %c0_66 = arith.constant 0 : index
    %49 = vector.load %arg2[%c0_64, %c0_65, %c42, %c0_66] : memref<1x1x420x128xbf16, #tpu.memory_space<vmem>>, vector<1x1x360x128xbf16>
    %50 = vector.shape_cast %49 : vector<1x1x360x128xbf16> to vector<360x128xbf16>
    %c2_67 = arith.constant 2 : index
    %c2_68 = arith.constant 2 : index
    %c0_69 = arith.constant 0 : index
    %c0_70 = arith.constant 0 : index
    %51 = vector.load %arg3[%c2_67, %c2_68, %c0_69, %c0_70] : memref<3x3x128x128xbf16, #tpu.memory_space<vmem>>, vector<1x1x128x128xbf16>
    %52 = vector.shape_cast %51 : vector<1x1x128x128xbf16> to vector<128x128xbf16>
    %cst_71 = arith.constant dense<0.000000e+00> : vector<360x128xf32>
    %53 = tpu.matmul %50, %52, %cst_71 {dimension_numbers = #tpu.dot_dimension_numbers<[1], [0], [0], [1], [0, 0, 1, 1], [], []>} : vector<360x128xbf16>, vector<128x128xbf16>, vector<360x128xf32> -> vector<360x128xf32>
    %54 = arith.addf %48, %53 : vector<360x128xf32>
    %c0_72 = arith.constant 0 : index
    %c0_73 = arith.constant 0 : index
    %55 = vector.load %arg4[%c0_72, %c0_73] : memref<1x128xf32, #tpu.memory_space<vmem>>, vector<1x128xf32>
    %56 = vector.broadcast %55 : vector<1x128xf32> to vector<360x128xf32>
    %57 = arith.addf %54, %56 : vector<360x128xf32>
    %cst_74 = arith.constant 0.000000e+00 : f32
    %58 = vector.broadcast %cst_74 : f32 to vector<360x128xf32>
    %59 = arith.cmpf ogt, %57, %58 : vector<360x128xf32>
    %cst_75 = arith.constant 0.00999999977 : f32
    %60 = vector.broadcast %cst_75 : f32 to vector<360x128xf32>
    %61 = arith.mulf %60, %57 : vector<360x128xf32>
    %62 = arith.select %59, %57, %61 : vector<360x128xi1>, vector<360x128xf32>
    %63 = tpu.iota {dimensions = array<i32: 0>} : vector<360x1xi32>
    %c20_i32 = arith.constant 20 : i32
    %c0_i32 = arith.constant 0 : i32
    %64 = arith.cmpi eq, %c20_i32, %c0_i32 : i32
    %c1_i32 = arith.constant 1 : i32
    %65 = arith.select %64, %c1_i32, %c20_i32 : i32
    %66 = vector.broadcast %65 : i32 to vector<360x1xi32>
    %67 = arith.remsi %63, %66 : vector<360x1xi32>
    %c0_i32_76 = arith.constant 0 : i32
    %68 = vector.broadcast %c0_i32_76 : i32 to vector<360x1xi32>
    %69 = arith.cmpi ne, %67, %68 : vector<360x1xi32>
    %c0_i32_77 = arith.constant 0 : i32
    %70 = vector.broadcast %c0_i32_77 : i32 to vector<360x1xi32>
    %71 = arith.cmpi slt, %67, %70 : vector<360x1xi32>
    %c0_i32_78 = arith.constant 0 : i32
    %72 = arith.cmpi slt, %65, %c0_i32_78 : i32
    %73 = vector.broadcast %72 : i1 to vector<360x1xi1>
    %74 = vector.broadcast %73 : vector<360x1xi1> to vector<360x1xi1>
    %75 = arith.xori %71, %74 : vector<360x1xi1>
    %76 = arith.andi %75, %69 : vector<360x1xi1>
    %77 = vector.broadcast %65 : i32 to vector<360x1xi32>
    %78 = arith.addi %67, %77 : vector<360x1xi32>
    %79 = arith.select %76, %78, %67 : vector<360x1xi1>, vector<360x1xi32>
    %c1_i32_79 = arith.constant 1 : i32
    %80 = vector.broadcast %c1_i32_79 : i32 to vector<360x1xi32>
    %81 = arith.cmpi sge, %79, %80 : vector<360x1xi32>
    %c16_i32 = arith.constant 16 : i32
    %82 = vector.broadcast %c16_i32 : i32 to vector<360x1xi32>
    %83 = arith.cmpi sle, %79, %82 : vector<360x1xi32>
    %84 = arith.andi %81, %83 : vector<360x1xi1>
    %cst_80 = arith.constant 0.000000e+00 : f32
    %85 = vector.shape_cast %84 : vector<360x1xi1> to vector<360x1xi1>
    %86 = vector.broadcast %85 : vector<360x1xi1> to vector<360x128xi1>
    %87 = vector.broadcast %cst_80 : f32 to vector<360x128xf32>
    %88 = arith.select %86, %62, %87 : vector<360x128xi1>, vector<360x128xf32>
    %89 = arith.truncf %88 : vector<360x128xf32> to vector<360x128xbf16>
    %c0_81 = arith.constant 0 : index
    %c0_82 = arith.constant 0 : index
    %90 = vector.load %arg12[%c0_81, %c0_82] : memref<368x128xbf16, #tpu.memory_space<vmem>>, vector<360x128xbf16>
    tpu.vector_store %arg12[%c0_81, %c0_82], %89 {strides = array<i32>} : memref<368x128xbf16, #tpu.memory_space<vmem>>, vector<360x128xbf16>,
    %cst_83 = arith.constant 0.000000e+00 : bf16
    %91 = vector.broadcast %cst_83 : bf16 to vector<8x128xbf16>
    %c360 = arith.constant 360 : index
    %c0_84 = arith.constant 0 : index
    %92 = vector.load %arg12[%c360, %c0_84] : memref<368x128xbf16, #tpu.memory_space<vmem>>, vector<8x128xbf16>
    tpu.vector_store %arg12[%c360, %c0_84], %91 {strides = array<i32>} : memref<368x128xbf16, #tpu.memory_space<vmem>>, vector<8x128xbf16>,
    %c0_i32_85 = arith.constant 0 : i32
    %93 = arith.cmpi eq, %arg1, %c0_i32_85 : i32
    %94 = arith.extui %93 : i1 to i32
    %c0_i32_86 = arith.constant 0 : i32
    %95 = arith.cmpi ne, %94, %c0_i32_86 : i32
    scf.if %95 {
      %cst_192 = arith.constant 0.000000e+00 : bf16
      %205 = vector.broadcast %cst_192 : bf16 to vector<20x128xbf16>
      %c0_193 = arith.constant 0 : index
      %c0_194 = arith.constant 0 : index
      %206 = vector.load %arg12[%c0_193, %c0_194] : memref<368x128xbf16, #tpu.memory_space<vmem>>, vector<20x128xbf16>
      tpu.vector_store %arg12[%c0_193, %c0_194], %205 {strides = array<i32>} : memref<368x128xbf16, #tpu.memory_space<vmem>>, vector<20x128xbf16>,
    } else {
    }
    %c0_i32_87 = arith.constant 0 : i32
    %96 = arith.cmpi eq, %arg1, %c0_i32_87 : i32
    %97 = arith.extui %96 : i1 to i32
    %c0_i32_88 = arith.constant 0 : i32
    %98 = arith.cmpi ne, %97, %c0_i32_88 : i32
    scf.if %98 {
      %cst_192 = arith.constant 0.000000e+00 : bf16
      %205 = vector.broadcast %cst_192 : bf16 to vector<20x128xbf16>
      %c340 = arith.constant 340 : index
      %c0_193 = arith.constant 0 : index
      %206 = vector.load %arg12[%c340, %c0_193] : memref<368x128xbf16, #tpu.memory_space<vmem>>, vector<20x128xbf16>
      tpu.vector_store %arg12[%c340, %c0_193], %205 {strides = array<i32>} : memref<368x128xbf16, #tpu.memory_space<vmem>>, vector<20x128xbf16>,
    } else {
    }
    %cst_89 = arith.constant 0.000000e+00 : f32
    %99 = vector.broadcast %cst_89 : f32 to vector<320x128xf32>
    %c0_90 = arith.constant 0 : index
    %c0_91 = arith.constant 0 : index
    %100 = vector.load %arg12[%c0_90, %c0_91] : memref<368x128xbf16, #tpu.memory_space<vmem>>, vector<320x128xbf16>
    %c0_92 = arith.constant 0 : index
    %c0_93 = arith.constant 0 : index
    %c0_94 = arith.constant 0 : index
    %c0_95 = arith.constant 0 : index
    %101 = vector.load %arg5[%c0_92, %c0_93, %c0_94, %c0_95] : memref<3x3x128x128xbf16, #tpu.memory_space<vmem>>, vector<1x1x128x128xbf16>
    %102 = vector.shape_cast %101 : vector<1x1x128x128xbf16> to vector<128x128xbf16>
    %cst_96 = arith.constant dense<0.000000e+00> : vector<320x128xf32>
    %103 = tpu.matmul %100, %102, %cst_96 {dimension_numbers = #tpu.dot_dimension_numbers<[1], [0], [0], [1], [0, 0, 1, 1], [], []>} : vector<320x128xbf16>, vector<128x128xbf16>, vector<320x128xf32> -> vector<320x128xf32>
    %104 = arith.addf %99, %103 : vector<320x128xf32>
    %c1_97 = arith.constant 1 : index
    %c0_98 = arith.constant 0 : index
    %105 = vector.load %arg12[%c1_97, %c0_98] : memref<368x128xbf16, #tpu.memory_space<vmem>>, vector<320x128xbf16>
    %c0_99 = arith.constant 0 : index
    %c1_100 = arith.constant 1 : index
    %c0_101 = arith.constant 0 : index
    %c0_102 = arith.constant 0 : index
    %106 = vector.load %arg5[%c0_99, %c1_100, %c0_101, %c0_102] : memref<3x3x128x128xbf16, #tpu.memory_space<vmem>>, vector<1x1x128x128xbf16>
    %107 = vector.shape_cast %106 : vector<1x1x128x128xbf16> to vector<128x128xbf16>
    %cst_103 = arith.constant dense<0.000000e+00> : vector<320x128xf32>
    %108 = tpu.matmul %105, %107, %cst_103 {dimension_numbers = #tpu.dot_dimension_numbers<[1], [0], [0], [1], [0, 0, 1, 1], [], []>} : vector<320x128xbf16>, vector<128x128xbf16>, vector<320x128xf32> -> vector<320x128xf32>
    %109 = arith.addf %104, %108 : vector<320x128xf32>
    %c2_104 = arith.constant 2 : index
    %c0_105 = arith.constant 0 : index
    %110 = vector.load %arg12[%c2_104, %c0_105] : memref<368x128xbf16, #tpu.memory_space<vmem>>, vector<320x128xbf16>
    %c0_106 = arith.constant 0 : index
    %c2_107 = arith.constant 2 : index
    %c0_108 = arith.constant 0 : index
    %c0_109 = arith.constant 0 : index
    %111 = vector.load %arg5[%c0_106, %c2_107, %c0_108, %c0_109] : memref<3x3x128x128xbf16, #tpu.memory_space<vmem>>, vector<1x1x128x128xbf16>
    %112 = vector.shape_cast %111 : vector<1x1x128x128xbf16> to vector<128x128xbf16>
    %cst_110 = arith.constant dense<0.000000e+00> : vector<320x128xf32>
    %113 = tpu.matmul %110, %112, %cst_110 {dimension_numbers = #tpu.dot_dimension_numbers<[1], [0], [0], [1], [0, 0, 1, 1], [], []>} : vector<320x128xbf16>, vector<128x128xbf16>, vector<320x128xf32> -> vector<320x128xf32>
    %114 = arith.addf %109, %113 : vector<320x128xf32>
    %c20_111 = arith.constant 20 : index
    %c0_112 = arith.constant 0 : index
    %115 = vector.load %arg12[%c20_111, %c0_112] : memref<368x128xbf16, #tpu.memory_space<vmem>>, vector<320x128xbf16>
    %c1_113 = arith.constant 1 : index
    %c0_114 = arith.constant 0 : index
    %c0_115 = arith.constant 0 : index
    %c0_116 = arith.constant 0 : index
    %116 = vector.load %arg5[%c1_113, %c0_114, %c0_115, %c0_116] : memref<3x3x128x128xbf16, #tpu.memory_space<vmem>>, vector<1x1x128x128xbf16>
    %117 = vector.shape_cast %116 : vector<1x1x128x128xbf16> to vector<128x128xbf16>
    %cst_117 = arith.constant dense<0.000000e+00> : vector<320x128xf32>
    %118 = tpu.matmul %115, %117, %cst_117 {dimension_numbers = #tpu.dot_dimension_numbers<[1], [0], [0], [1], [0, 0, 1, 1], [], []>} : vector<320x128xbf16>, vector<128x128xbf16>, vector<320x128xf32> -> vector<320x128xf32>
    %119 = arith.addf %114, %118 : vector<320x128xf32>
    %c21_118 = arith.constant 21 : index
    %c0_119 = arith.constant 0 : index
    %120 = vector.load %arg12[%c21_118, %c0_119] : memref<368x128xbf16, #tpu.memory_space<vmem>>, vector<320x128xbf16>
    %c1_120 = arith.constant 1 : index
    %c1_121 = arith.constant 1 : index
    %c0_122 = arith.constant 0 : index
    %c0_123 = arith.constant 0 : index
    %121 = vector.load %arg5[%c1_120, %c1_121, %c0_122, %c0_123] : memref<3x3x128x128xbf16, #tpu.memory_space<vmem>>, vector<1x1x128x128xbf16>
    %122 = vector.shape_cast %121 : vector<1x1x128x128xbf16> to vector<128x128xbf16>
    %cst_124 = arith.constant dense<0.000000e+00> : vector<320x128xf32>
    %123 = tpu.matmul %120, %122, %cst_124 {dimension_numbers = #tpu.dot_dimension_numbers<[1], [0], [0], [1], [0, 0, 1, 1], [], []>} : vector<320x128xbf16>, vector<128x128xbf16>, vector<320x128xf32> -> vector<320x128xf32>
    %124 = arith.addf %119, %123 : vector<320x128xf32>
    %c22_125 = arith.constant 22 : index
    %c0_126 = arith.constant 0 : index
    %125 = vector.load %arg12[%c22_125, %c0_126] : memref<368x128xbf16, #tpu.memory_space<vmem>>, vector<320x128xbf16>
    %c1_127 = arith.constant 1 : index
    %c2_128 = arith.constant 2 : index
    %c0_129 = arith.constant 0 : index
    %c0_130 = arith.constant 0 : index
    %126 = vector.load %arg5[%c1_127, %c2_128, %c0_129, %c0_130] : memref<3x3x128x128xbf16, #tpu.memory_space<vmem>>, vector<1x1x128x128xbf16>
    %127 = vector.shape_cast %126 : vector<1x1x128x128xbf16> to vector<128x128xbf16>
    %cst_131 = arith.constant dense<0.000000e+00> : vector<320x128xf32>
    %128 = tpu.matmul %125, %127, %cst_131 {dimension_numbers = #tpu.dot_dimension_numbers<[1], [0], [0], [1], [0, 0, 1, 1], [], []>} : vector<320x128xbf16>, vector<128x128xbf16>, vector<320x128xf32> -> vector<320x128xf32>
    %129 = arith.addf %124, %128 : vector<320x128xf32>
    %c40_132 = arith.constant 40 : index
    %c0_133 = arith.constant 0 : index
    %130 = vector.load %arg12[%c40_132, %c0_133] : memref<368x128xbf16, #tpu.memory_space<vmem>>, vector<320x128xbf16>
    %c2_134 = arith.constant 2 : index
    %c0_135 = arith.constant 0 : index
    %c0_136 = arith.constant 0 : index
    %c0_137 = arith.constant 0 : index
    %131 = vector.load %arg5[%c2_134, %c0_135, %c0_136, %c0_137] : memref<3x3x128x128xbf16, #tpu.memory_space<vmem>>, vector<1x1x128x128xbf16>
    %132 = vector.shape_cast %131 : vector<1x1x128x128xbf16> to vector<128x128xbf16>
    %cst_138 = arith.constant dense<0.000000e+00> : vector<320x128xf32>
    %133 = tpu.matmul %130, %132, %cst_138 {dimension_numbers = #tpu.dot_dimension_numbers<[1], [0], [0], [1], [0, 0, 1, 1], [], []>} : vector<320x128xbf16>, vector<128x128xbf16>, vector<320x128xf32> -> vector<320x128xf32>
    %134 = arith.addf %129, %133 : vector<320x128xf32>
    %c41_139 = arith.constant 41 : index
    %c0_140 = arith.constant 0 : index
    %135 = vector.load %arg12[%c41_139, %c0_140] : memref<368x128xbf16, #tpu.memory_space<vmem>>, vector<320x128xbf16>
    %c2_141 = arith.constant 2 : index
    %c1_142 = arith.constant 1 : index
    %c0_143 = arith.constant 0 : index
    %c0_144 = arith.constant 0 : index
    %136 = vector.load %arg5[%c2_141, %c1_142, %c0_143, %c0_144] : memref<3x3x128x128xbf16, #tpu.memory_space<vmem>>, vector<1x1x128x128xbf16>
    %137 = vector.shape_cast %136 : vector<1x1x128x128xbf16> to vector<128x128xbf16>
    %cst_145 = arith.constant dense<0.000000e+00> : vector<320x128xf32>
    %138 = tpu.matmul %135, %137, %cst_145 {dimension_numbers = #tpu.dot_dimension_numbers<[1], [0], [0], [1], [0, 0, 1, 1], [], []>} : vector<320x128xbf16>, vector<128x128xbf16>, vector<320x128xf32> -> vector<320x128xf32>
    %139 = arith.addf %134, %138 : vector<320x128xf32>
    %c42_146 = arith.constant 42 : index
    %c0_147 = arith.constant 0 : index
    %140 = vector.load %arg12[%c42_146, %c0_147] : memref<368x128xbf16, #tpu.memory_space<vmem>>, vector<320x128xbf16>
    %c2_148 = arith.constant 2 : index
    %c2_149 = arith.constant 2 : index
    %c0_150 = arith.constant 0 : index
    %c0_151 = arith.constant 0 : index
    %141 = vector.load %arg5[%c2_148, %c2_149, %c0_150, %c0_151] : memref<3x3x128x128xbf16, #tpu.memory_space<vmem>>, vector<1x1x128x128xbf16>
    %142 = vector.shape_cast %141 : vector<1x1x128x128xbf16> to vector<128x128xbf16>
    %cst_152 = arith.constant dense<0.000000e+00> : vector<320x128xf32>
    %143 = tpu.matmul %140, %142, %cst_152 {dimension_numbers = #tpu.dot_dimension_numbers<[1], [0], [0], [1], [0, 0, 1, 1], [], []>} : vector<320x128xbf16>, vector<128x128xbf16>, vector<320x128xf32> -> vector<320x128xf32>
    %144 = arith.addf %139, %143 : vector<320x128xf32>
    %c0_153 = arith.constant 0 : index
    %c0_154 = arith.constant 0 : index
    %145 = vector.load %arg6[%c0_153, %c0_154] : memref<1x128xf32, #tpu.memory_space<vmem>>, vector<1x128xf32>
    %146 = vector.broadcast %145 : vector<1x128xf32> to vector<320x128xf32>
    %147 = arith.addf %144, %146 : vector<320x128xf32>
    %148 = arith.truncf %147 : vector<320x128xf32> to vector<320x128xbf16>
    %c0_155 = arith.constant 0 : index
    %c0_156 = arith.constant 0 : index
    %c0_157 = arith.constant 0 : index
    %c0_158 = arith.constant 0 : index
    %149 = vector.load %arg9[%c0_155, %c0_156, %c0_157, %c0_158] : memref<1x1x320x128xbf16, #tpu.memory_space<vmem>>, vector<1x1x320x128xbf16>
    %150 = vector.shape_cast %149 : vector<1x1x320x128xbf16> to vector<320x128xbf16>
    %151 = vector.shape_cast %148 : vector<320x128xbf16> to vector<1x1x320x128xbf16>
    tpu.vector_store %arg9[%c0_155, %c0_156, %c0_157, %c0_158], %151 {strides = array<i32>} : memref<1x1x320x128xbf16, #tpu.memory_space<vmem>>, vector<1x1x320x128xbf16>,
    %c0_159 = arith.constant 0 : index
    %c0_160 = arith.constant 0 : index
    %c42_161 = arith.constant 42 : index
    %c0_162 = arith.constant 0 : index
    %152 = vector.load %arg2[%c0_159, %c0_160, %c42_161, %c0_162] : memref<1x1x420x128xbf16, #tpu.memory_space<vmem>>, vector<1x1x320x128xbf16>
    %153 = vector.shape_cast %152 : vector<1x1x320x128xbf16> to vector<320x128xbf16>
    %c0_163 = arith.constant 0 : index
    %c0_164 = arith.constant 0 : index
    %154 = vector.load %arg7[%c0_163, %c0_164] : memref<128x128xbf16, #tpu.memory_space<vmem>>, vector<128x128xbf16>
    %cst_165 = arith.constant dense<0.000000e+00> : vector<320x128xf32>
    %155 = tpu.matmul %153, %154, %cst_165 {dimension_numbers = #tpu.dot_dimension_numbers<[1], [0], [0], [1], [0, 0, 1, 1], [], []>} : vector<320x128xbf16>, vector<128x128xbf16>, vector<320x128xf32> -> vector<320x128xf32>
    %c0_166 = arith.constant 0 : index
    %c0_167 = arith.constant 0 : index
    %156 = vector.load %arg8[%c0_166, %c0_167] : memref<1x128xf32, #tpu.memory_space<vmem>>, vector<1x128xf32>
    %157 = vector.broadcast %156 : vector<1x128xf32> to vector<320x128xf32>
    %158 = arith.addf %155, %157 : vector<320x128xf32>
    %159 = arith.truncf %158 : vector<320x128xf32> to vector<320x128xbf16>
    %c0_168 = arith.constant 0 : index
    %c0_169 = arith.constant 0 : index
    %c0_170 = arith.constant 0 : index
    %c0_171 = arith.constant 0 : index
    %160 = vector.load %arg10[%c0_168, %c0_169, %c0_170, %c0_171] : memref<1x1x320x128xbf16, #tpu.memory_space<vmem>>, vector<1x1x320x128xbf16>
    %161 = vector.shape_cast %160 : vector<1x1x320x128xbf16> to vector<320x128xbf16>
    %162 = vector.shape_cast %159 : vector<320x128xbf16> to vector<1x1x320x128xbf16>
    tpu.vector_store %arg10[%c0_168, %c0_169, %c0_170, %c0_171], %162 {strides = array<i32>} : memref<1x1x320x128xbf16, #tpu.memory_space<vmem>>, vector<1x1x320x128xbf16>,
    %163 = tpu.iota {dimensions = array<i32: 0>} : vector<320x1xi32>
    %c20_i32_172 = arith.constant 20 : i32
    %c0_i32_173 = arith.constant 0 : i32
    %164 = arith.cmpi eq, %c20_i32_172, %c0_i32_173 : i32
    %c1_i32_174 = arith.constant 1 : i32
    %165 = arith.select %164, %c1_i32_174, %c20_i32_172 : i32
    %166 = vector.broadcast %165 : i32 to vector<320x1xi32>
    %167 = arith.remsi %163, %166 : vector<320x1xi32>
    %c0_i32_175 = arith.constant 0 : i32
    %168 = vector.broadcast %c0_i32_175 : i32 to vector<320x1xi32>
    %169 = arith.cmpi ne, %167, %168 : vector<320x1xi32>
    %c0_i32_176 = arith.constant 0 : i32
    %170 = vector.broadcast %c0_i32_176 : i32 to vector<320x1xi32>
    %171 = arith.cmpi slt, %167, %170 : vector<320x1xi32>
    %c0_i32_177 = arith.constant 0 : i32
    %172 = arith.cmpi slt, %165, %c0_i32_177 : i32
    %173 = vector.broadcast %172 : i1 to vector<320x1xi1>
    %174 = vector.broadcast %173 : vector<320x1xi1> to vector<320x1xi1>
    %175 = arith.xori %171, %174 : vector<320x1xi1>
    %176 = arith.andi %175, %169 : vector<320x1xi1>
    %177 = vector.broadcast %165 : i32 to vector<320x1xi32>
    %178 = arith.addi %167, %177 : vector<320x1xi32>
    %179 = arith.select %176, %178, %167 : vector<320x1xi1>, vector<320x1xi32>
    %c16_i32_178 = arith.constant 16 : i32
    %180 = vector.broadcast %c16_i32_178 : i32 to vector<320x1xi32>
    %181 = arith.cmpi slt, %179, %180 : vector<320x1xi32>
    %cst_179 = arith.constant 0.000000e+00 : f32
    %182 = vector.shape_cast %181 : vector<320x1xi1> to vector<320x1xi1>
    %183 = vector.broadcast %182 : vector<320x1xi1> to vector<320x128xi1>
    %184 = vector.broadcast %cst_179 : f32 to vector<320x128xf32>
    %185 = arith.select %183, %147, %184 : vector<320x128xi1>, vector<320x128xf32>
    %cst_180 = arith.constant dense<0.000000e+00> : vector<128xf32>
    %186 = vector.multi_reduction <add>, %185, %cst_180 [0] : vector<320x128xf32> to vector<128xf32>
    %187 = vector.shape_cast %186 : vector<128xf32> to vector<1x128xf32>
    %cst_181 = arith.constant 3.906250e-03 : f32
    %188 = vector.broadcast %cst_181 : f32 to vector<1x128xf32>
    %189 = arith.mulf %187, %188 : vector<1x128xf32>
    %190 = vector.broadcast %189 : vector<1x128xf32> to vector<320x128xf32>
    %191 = arith.subf %147, %190 : vector<320x128xf32>
    %cst_182 = arith.constant 0.000000e+00 : f32
    %192 = vector.shape_cast %181 : vector<320x1xi1> to vector<320x1xi1>
    %193 = vector.broadcast %192 : vector<320x1xi1> to vector<320x128xi1>
    %194 = vector.broadcast %cst_182 : f32 to vector<320x128xf32>
    %195 = arith.select %193, %191, %194 : vector<320x128xi1>, vector<320x128xf32>
    %196 = arith.mulf %195, %195 : vector<320x128xf32>
    %cst_183 = arith.constant dense<0.000000e+00> : vector<128xf32>
    %197 = vector.multi_reduction <add>, %196, %cst_183 [0] : vector<320x128xf32> to vector<128xf32>
    %198 = vector.shape_cast %197 : vector<128xf32> to vector<1x128xf32>
    %c0_184 = arith.constant 0 : index
    %c0_185 = arith.constant 0 : index
    %c0_186 = arith.constant 0 : index
    %c0_187 = arith.constant 0 : index
    %199 = vector.load %arg11[%c0_184, %c0_185, %c0_186, %c0_187] : memref<1x1x2x128xf32, #tpu.memory_space<vmem>>, vector<1x1x1x128xf32>
    %200 = vector.shape_cast %199 : vector<1x1x1x128xf32> to vector<1x128xf32>
    %201 = vector.shape_cast %187 : vector<1x128xf32> to vector<1x1x1x128xf32>
    tpu.vector_store %arg11[%c0_184, %c0_185, %c0_186, %c0_187], %201 {strides = array<i32>} : memref<1x1x2x128xf32, #tpu.memory_space<vmem>>, vector<1x1x1x128xf32>,
    %c0_188 = arith.constant 0 : index
    %c0_189 = arith.constant 0 : index
    %c1_190 = arith.constant 1 : index
    %c0_191 = arith.constant 0 : index
    %202 = vector.load %arg11[%c0_188, %c0_189, %c1_190, %c0_191] : memref<1x1x2x128xf32, #tpu.memory_space<vmem>>, vector<1x1x1x128xf32>
    %203 = vector.shape_cast %202 : vector<1x1x1x128xf32> to vector<1x128xf32>
    %204 = vector.shape_cast %198 : vector<1x128xf32> to vector<1x1x1x128xf32>
    tpu.vector_store %arg11[%c0_188, %c0_189, %c1_190, %c0_191], %204 {strides = array<i32>} : memref<1x1x2x128xf32, #tpu.memory_space<vmem>>, vector<1x1x1x128xf32>,
    return
  }
  func.func @transform_0(%arg0: i32, %arg1: i32) -> (i32, i32, i32, i32) {
    %c0_i32 = arith.constant 0 : i32
    %c0_i32_0 = arith.constant 0 : i32
    %c0_i32_1 = arith.constant 0 : i32
    return %arg0, %arg1, %c0_i32, %c0_i32_0 : i32, i32, i32, i32
  }
  func.func @transform_1(%arg0: i32, %arg1: i32) -> (i32, i32, i32, i32) {
    %c0_i32 = arith.constant 0 : i32
    %c0_i32_0 = arith.constant 0 : i32
    %c0_i32_1 = arith.constant 0 : i32
    %c0_i32_2 = arith.constant 0 : i32
    %c0_i32_3 = arith.constant 0 : i32
    return %c0_i32, %c0_i32_0, %c0_i32_1, %c0_i32_2 : i32, i32, i32, i32
  }
  func.func @transform_2(%arg0: i32, %arg1: i32) -> (i32, i32) {
    %c0_i32 = arith.constant 0 : i32
    %c0_i32_0 = arith.constant 0 : i32
    %c0_i32_1 = arith.constant 0 : i32
    return %c0_i32, %c0_i32_0 : i32, i32
  }
  func.func @transform_3(%arg0: i32, %arg1: i32) -> (i32, i32, i32, i32) {
    %c0_i32 = arith.constant 0 : i32
    %c0_i32_0 = arith.constant 0 : i32
    %c0_i32_1 = arith.constant 0 : i32
    %c0_i32_2 = arith.constant 0 : i32
    %c0_i32_3 = arith.constant 0 : i32
    return %c0_i32, %c0_i32_0, %c0_i32_1, %c0_i32_2 : i32, i32, i32, i32
  }
  func.func @transform_4(%arg0: i32, %arg1: i32) -> (i32, i32) {
    %c0_i32 = arith.constant 0 : i32
    %c0_i32_0 = arith.constant 0 : i32
    %c0_i32_1 = arith.constant 0 : i32
    return %c0_i32, %c0_i32_0 : i32, i32
  }
  func.func @transform_5(%arg0: i32, %arg1: i32) -> (i32, i32) {
    %c0_i32 = arith.constant 0 : i32
    %c0_i32_0 = arith.constant 0 : i32
    %c0_i32_1 = arith.constant 0 : i32
    return %c0_i32, %c0_i32_0 : i32, i32
  }
  func.func @transform_6(%arg0: i32, %arg1: i32) -> (i32, i32) {
    %c0_i32 = arith.constant 0 : i32
    %c0_i32_0 = arith.constant 0 : i32
    %c0_i32_1 = arith.constant 0 : i32
    return %c0_i32, %c0_i32_0 : i32, i32
  }
  func.func @transform_7(%arg0: i32, %arg1: i32) -> (i32, i32, i32, i32) {
    %c0_i32 = arith.constant 0 : i32
    %c0_i32_0 = arith.constant 0 : i32
    %c0_i32_1 = arith.constant 0 : i32
    return %arg0, %arg1, %c0_i32, %c0_i32_0 : i32, i32, i32, i32
  }
  func.func @transform_8(%arg0: i32, %arg1: i32) -> (i32, i32, i32, i32) {
    %c0_i32 = arith.constant 0 : i32
    %c0_i32_0 = arith.constant 0 : i32
    %c0_i32_1 = arith.constant 0 : i32
    return %arg0, %arg1, %c0_i32, %c0_i32_0 : i32, i32, i32, i32
  }
  func.func @transform_9(%arg0: i32, %arg1: i32) -> (i32, i32, i32, i32) {
    %c0_i32 = arith.constant 0 : i32
    %c0_i32_0 = arith.constant 0 : i32
    %c0_i32_1 = arith.constant 0 : i32
    return %arg0, %arg1, %c0_i32, %c0_i32_0 : i32, i32, i32, i32
  }
}

module attributes {stable_mosaic.version = 11 : i64} {
  func.func @_pass2_kernel(%arg0: i32, %arg1: i32, %arg2: memref<1x1x320x128xbf16, #tpu.memory_space<vmem>>, %arg3: memref<1x1x320x128xbf16, #tpu.memory_space<vmem>>, %arg4: memref<1x128xf32, #tpu.memory_space<vmem>>, %arg5: memref<1x128xf32, #tpu.memory_space<vmem>>, %arg6: memref<1x128xf32, #tpu.memory_space<vmem>>, %arg7: memref<1x128xf32, #tpu.memory_space<vmem>>, %arg8: memref<1x1x320x128xf32, #tpu.memory_space<vmem>>) attributes {dimension_semantics = [#tpu.dimension_semantics<parallel>, #tpu.dimension_semantics<parallel>], iteration_bounds = array<i64: 2, 1>, scalar_prefetch = 0 : i64, scratch_operands = 0 : i64, tpu.core_type = #tpu.core_type<tc>, window_params = [{transform_indices = @transform_0, window_bounds = array<i64: 1, 1, 320, 128>}, {transform_indices = @transform_1, window_bounds = array<i64: 1, 1, 320, 128>}, {pipeline_mode = #tpu.pipeline_mode<synchronous>, transform_indices = @transform_2, window_bounds = array<i64: 1, 128>}, {pipeline_mode = #tpu.pipeline_mode<synchronous>, transform_indices = @transform_3, window_bounds = array<i64: 1, 128>}, {pipeline_mode = #tpu.pipeline_mode<synchronous>, transform_indices = @transform_4, window_bounds = array<i64: 1, 128>}, {pipeline_mode = #tpu.pipeline_mode<synchronous>, transform_indices = @transform_5, window_bounds = array<i64: 1, 128>}, {transform_indices = @transform_6, window_bounds = array<i64: 1, 1, 320, 128>}]} {
    %c0 = arith.constant 0 : index
    %c0_0 = arith.constant 0 : index
    %c0_1 = arith.constant 0 : index
    %c0_2 = arith.constant 0 : index
    %0 = vector.load %arg2[%c0, %c0_0, %c0_1, %c0_2] : memref<1x1x320x128xbf16, #tpu.memory_space<vmem>>, vector<1x1x320x128xbf16>
    %1 = vector.shape_cast %0 : vector<1x1x320x128xbf16> to vector<320x128xbf16>
    %2 = arith.extf %1 : vector<320x128xbf16> to vector<320x128xf32>
    %c0_3 = arith.constant 0 : index
    %c0_4 = arith.constant 0 : index
    %3 = vector.load %arg4[%c0_3, %c0_4] : memref<1x128xf32, #tpu.memory_space<vmem>>, vector<1x128xf32>
    %4 = vector.broadcast %3 : vector<1x128xf32> to vector<320x128xf32>
    %5 = arith.subf %2, %4 : vector<320x128xf32>
    %c0_5 = arith.constant 0 : index
    %c0_6 = arith.constant 0 : index
    %6 = vector.load %arg5[%c0_5, %c0_6] : memref<1x128xf32, #tpu.memory_space<vmem>>, vector<1x128xf32>
    %7 = vector.broadcast %6 : vector<1x128xf32> to vector<320x128xf32>
    %8 = arith.mulf %5, %7 : vector<320x128xf32>
    %c0_7 = arith.constant 0 : index
    %c0_8 = arith.constant 0 : index
    %9 = vector.load %arg6[%c0_7, %c0_8] : memref<1x128xf32, #tpu.memory_space<vmem>>, vector<1x128xf32>
    %10 = vector.broadcast %9 : vector<1x128xf32> to vector<320x128xf32>
    %11 = arith.mulf %8, %10 : vector<320x128xf32>
    %c0_9 = arith.constant 0 : index
    %c0_10 = arith.constant 0 : index
    %12 = vector.load %arg7[%c0_9, %c0_10] : memref<1x128xf32, #tpu.memory_space<vmem>>, vector<1x128xf32>
    %13 = vector.broadcast %12 : vector<1x128xf32> to vector<320x128xf32>
    %14 = arith.addf %11, %13 : vector<320x128xf32>
    %cst = arith.constant 0.000000e+00 : f32
    %15 = vector.broadcast %cst : f32 to vector<320x128xf32>
    %16 = arith.cmpf ogt, %14, %15 : vector<320x128xf32>
    %cst_11 = arith.constant 0.00999999977 : f32
    %17 = vector.broadcast %cst_11 : f32 to vector<320x128xf32>
    %18 = arith.mulf %17, %14 : vector<320x128xf32>
    %19 = arith.select %16, %14, %18 : vector<320x128xi1>, vector<320x128xf32>
    %c0_12 = arith.constant 0 : index
    %c0_13 = arith.constant 0 : index
    %c0_14 = arith.constant 0 : index
    %c0_15 = arith.constant 0 : index
    %20 = vector.load %arg3[%c0_12, %c0_13, %c0_14, %c0_15] : memref<1x1x320x128xbf16, #tpu.memory_space<vmem>>, vector<1x1x320x128xbf16>
    %21 = vector.shape_cast %20 : vector<1x1x320x128xbf16> to vector<320x128xbf16>
    %22 = arith.extf %21 : vector<320x128xbf16> to vector<320x128xf32>
    %23 = arith.addf %19, %22 : vector<320x128xf32>
    %cst_16 = arith.constant 0.000000e+00 : f32
    %24 = vector.broadcast %cst_16 : f32 to vector<320x128xf32>
    %25 = arith.cmpf ogt, %23, %24 : vector<320x128xf32>
    %cst_17 = arith.constant 0.00999999977 : f32
    %26 = vector.broadcast %cst_17 : f32 to vector<320x128xf32>
    %27 = arith.mulf %26, %23 : vector<320x128xf32>
    %28 = arith.select %25, %23, %27 : vector<320x128xi1>, vector<320x128xf32>
    %c0_18 = arith.constant 0 : index
    %c0_19 = arith.constant 0 : index
    %c0_20 = arith.constant 0 : index
    %c0_21 = arith.constant 0 : index
    %29 = vector.load %arg8[%c0_18, %c0_19, %c0_20, %c0_21] : memref<1x1x320x128xf32, #tpu.memory_space<vmem>>, vector<1x1x320x128xf32>
    %30 = vector.shape_cast %29 : vector<1x1x320x128xf32> to vector<320x128xf32>
    %31 = vector.shape_cast %28 : vector<320x128xf32> to vector<1x1x320x128xf32>
    tpu.vector_store %arg8[%c0_18, %c0_19, %c0_20, %c0_21], %31 {strides = array<i32>} : memref<1x1x320x128xf32, #tpu.memory_space<vmem>>, vector<1x1x320x128xf32>,
    return
  }
  func.func @transform_0(%arg0: i32, %arg1: i32) -> (i32, i32, i32, i32) {
    %c0_i32 = arith.constant 0 : i32
    %c0_i32_0 = arith.constant 0 : i32
    %c0_i32_1 = arith.constant 0 : i32
    return %arg0, %arg1, %c0_i32, %c0_i32_0 : i32, i32, i32, i32
  }
  func.func @transform_1(%arg0: i32, %arg1: i32) -> (i32, i32, i32, i32) {
    %c0_i32 = arith.constant 0 : i32
    %c0_i32_0 = arith.constant 0 : i32
    %c0_i32_1 = arith.constant 0 : i32
    return %arg0, %arg1, %c0_i32, %c0_i32_0 : i32, i32, i32, i32
  }
  func.func @transform_2(%arg0: i32, %arg1: i32) -> (i32, i32) {
    %c0_i32 = arith.constant 0 : i32
    %c0_i32_0 = arith.constant 0 : i32
    %c0_i32_1 = arith.constant 0 : i32
    return %c0_i32, %c0_i32_0 : i32, i32
  }
  func.func @transform_3(%arg0: i32, %arg1: i32) -> (i32, i32) {
    %c0_i32 = arith.constant 0 : i32
    %c0_i32_0 = arith.constant 0 : i32
    %c0_i32_1 = arith.constant 0 : i32
    return %c0_i32, %c0_i32_0 : i32, i32
  }
  func.func @transform_4(%arg0: i32, %arg1: i32) -> (i32, i32) {
    %c0_i32 = arith.constant 0 : i32
    %c0_i32_0 = arith.constant 0 : i32
    %c0_i32_1 = arith.constant 0 : i32
    return %c0_i32, %c0_i32_0 : i32, i32
  }
  func.func @transform_5(%arg0: i32, %arg1: i32) -> (i32, i32) {
    %c0_i32 = arith.constant 0 : i32
    %c0_i32_0 = arith.constant 0 : i32
    %c0_i32_1 = arith.constant 0 : i32
    return %c0_i32, %c0_i32_0 : i32, i32
  }
  func.func @transform_6(%arg0: i32, %arg1: i32) -> (i32, i32, i32, i32) {
    %c0_i32 = arith.constant 0 : i32
    %c0_i32_0 = arith.constant 0 : i32
    %c0_i32_1 = arith.constant 0 : i32
    return %arg0, %arg1, %c0_i32, %c0_i32_0 : i32, i32, i32, i32
  }
}

</mosaic_0001>

<llo_original>
// kernel: residual_block.3
$region0: #{residual_block.3}
  #allocation0 [shape = 'u32[]', space=smem, size = 0x4, offset = 0x4, fixed_abs, tag = 'smem constant byte address 0x4 - core index']
  #allocation1 [shape = 'u32[72,128]{1,0:T(1,128)}', space=vmem, size = 0x9000, scoped, tag = 'internal scratch']
  %s0 = inlined_call_operand.vmem [shape: bf16[2,1,320,128], index: 0, kind: input, shape index: {}]
  %s1 = inlined_call_operand.vmem [shape: bf16[2,1,320,128], index: 1, kind: input, shape index: {}]
  %s2 = inlined_call_operand.vmem [shape: f32[1,128], index: 2, kind: input, shape index: {}]
  %s3 = inlined_call_operand.vmem [shape: f32[1,128], index: 3, kind: input, shape index: {}]
  %s4 = inlined_call_operand.vmem [shape: f32[1,128], index: 4, kind: input, shape index: {}]
  %s5 = inlined_call_operand.vmem [shape: f32[1,128], index: 5, kind: input, shape index: {}]
  %s6 = inlined_call_operand.vmem [shape: f32[2,1,320,128], index: 6, kind: output, shape index: {}]
  %s7 = sld [smem:[#allocation0]]
  $region57: #{residual_block.3} parent=0
    _
  %s9 = ssub.s32 1, %s7
  %s10 = scalar_select 0, %s9, %s7
  loop: start=0, step=1, limit=4
  $region2: #{residual_block.3} parent=0 // loop_pre_header
    _
  $region3: #{residual_block.3} parent=0 // loop_header
    %s12 = sphi 0, %s16
    %p13 = scmp.ge.s32.totalorder %s12, 4
    %s19 = sphi 0, %s31
    %s20 = sphi 0, %s27
    %s21 = sphi 0, %s19
    %s22 = sphi 0, %s20
    %s23 = sphi 0, %s21
    %s24 = sphi 0, %s22
    %s36 = sphi 0, %s38
    %s39 = sphi 0, %s36
    %s40 = sphi 0, %s39
    %s56 = sphi 0, %s40
    %s64 = sphi 0, %s66
    %s67 = sphi 0, %s64
    %s68 = sphi 0, %s67
    %s84 = sphi 0, %s68
    %s88 = sphi 0, %s88
    %s90 = sphi 0, %s88
    %s91 = sphi 0, %s90
    %s105 = sphi 0, %s91
    %s109 = sphi 0, %s109
    %s111 = sphi 0, %s109
    %s112 = sphi 0, %s111
    %s126 = sphi 0, %s112
    %s130 = sphi 0, %s130
    %s132 = sphi 0, %s130
    %s133 = sphi 0, %s132
    %s147 = sphi 0, %s133
    %s151 = sphi 0, %s151
    %s153 = sphi 0, %s151
    %s154 = sphi 0, %s153
    %s168 = sphi 0, %s154
    %s176 = sphi 0, %s178
    %s179 = sphi 0, %s176
    %s180 = sphi 0, %s179
    %s196 = sphi 0, %s180
  $region4: #{residual_block.3} parent=0 // loop_header_branch
    %15 = sbr.rel (%p13) target = $region8
  $region5: #{residual_block.3} parent=0 // loop_body
    %s17 = ssub.s32 %s12, 1
    %s18 = ssub.s32 %s12, 2
    %s25 = sadd.s32 1, %s20
    %p26 = scmp.ge.s32.totalorder %s25, 1
    %s27 = scalar_select %p26, 0, %s25
    %s28 = sadd.s32 1, %s19
    %s29 = scalar_select %p26, %s28, %s19
    %p30 = scmp.ge.s32.totalorder %s29, 2
    %s31 = scalar_select %p30, 0, %s29
    %s32 = ssub.s32 %s19, %s31
    %s33 = ssub.s32 %s20, %s27
    %s34 = sor.u32 %s32, %s33
    %p35 = scmp.eq.s32.totalorder %s34, 0
    %s37 = sadd.s32 %s36, 1
    %s38 = scalar_select %p35, %s36, %s37
    %p41 = pneg %p35
    %p42 = scmp.eq.s32.totalorder %s12, 1
    %p43 = por %p41, %p42
    %p44 = scmp.ne.s32.totalorder %s36, %s39
    %p45 = scmp.eq.s32.totalorder %s12, 0
    %p46 = por %p44, %p45
    %p47 = scmp.ne.s32.totalorder %s36, %s39
    %p48 = scmp.eq.s32.totalorder %s17, 1
    %p49 = por %p47, %p48
    %p50 = scmp.ne.s32.totalorder %s39, %s40
    %p51 = scmp.eq.s32.totalorder %s17, 0
    %p52 = por %p50, %p51
    %p53 = scmp.ne.s32.totalorder %s39, %s40
    %p54 = scmp.eq.s32.totalorder %s18, 1
    %p55 = por %p53, %p54
    %p57 = scmp.ne.s32.totalorder %s40, %s56
    %p58 = scmp.eq.s32.totalorder %s18, 0
    %p59 = por %p57, %p58
    %s60 = ssub.s32 %s19, %s31
    %s61 = ssub.s32 %s20, %s27
    %s62 = sor.u32 %s60, %s61
    %p63 = scmp.eq.s32.totalorder %s62, 0
    %s65 = sadd.s32 %s64, 1
    %s66 = scalar_select %p63, %s64, %s65
    %p69 = pneg %p63
    %p70 = scmp.eq.s32.totalorder %s12, 1
    %p71 = por %p69, %p70
    %p72 = scmp.ne.s32.totalorder %s64, %s67
    %p73 = scmp.eq.s32.totalorder %s12, 0
    %p74 = por %p72, %p73
    %p75 = scmp.ne.s32.totalorder %s64, %s67
    %p76 = scmp.eq.s32.totalorder %s17, 1
    %p77 = por %p75, %p76
    %p78 = scmp.ne.s32.totalorder %s67, %s68
    %p79 = scmp.eq.s32.totalorder %s17, 0
    %p80 = por %p78, %p79
    %p81 = scmp.ne.s32.totalorder %s67, %s68
    %p82 = scmp.eq.s32.totalorder %s18, 1
    %p83 = por %p81, %p82
    %p85 = scmp.ne.s32.totalorder %s68, %s84
    %p86 = scmp.eq.s32.totalorder %s18, 0
    %p87 = por %p85, %p86
    %s89 = sadd.s32 %s88, 1
    %p92 = scmp.eq.s32.totalorder %s12, 1
    %p93 = scmp.ne.s32.totalorder %s88, %s90
    %p94 = scmp.eq.s32.totalorder %s12, 0
    %p95 = por %p93, %p94
    %p96 = scmp.ne.s32.totalorder %s88, %s90
    %p97 = scmp.eq.s32.totalorder %s17, 1
    %p98 = por %p96, %p97
    %p99 = scmp.ne.s32.totalorder %s90, %s91
    %p100 = scmp.eq.s32.totalorder %s17, 0
    %p101 = por %p99, %p100
    %p102 = scmp.ne.s32.totalorder %s90, %s91
    %p103 = scmp.eq.s32.totalorder %s18, 1
    %p104 = por %p102, %p103
    %p106 = scmp.ne.s32.totalorder %s91, %s105
    %p107 = scmp.eq.s32.totalorder %s18, 0
    %p108 = por %p106, %p107
    %s110 = sadd.s32 %s109, 1
    %p113 = scmp.eq.s32.totalorder %s12, 1
    %p114 = scmp.ne.s32.totalorder %s109, %s111
    %p115 = scmp.eq.s32.totalorder %s12, 0
    %p116 = por %p114, %p115
    %p117 = scmp.ne.s32.totalorder %s109, %s111
    %p118 = scmp.eq.s32.totalorder %s17, 1
    %p119 = por %p117, %p118
    %p120 = scmp.ne.s32.totalorder %s111, %s112
    %p121 = scmp.eq.s32.totalorder %s17, 0
    %p122 = por %p120, %p121
    %p123 = scmp.ne.s32.totalorder %s111, %s112
    %p124 = scmp.eq.s32.totalorder %s18, 1
    %p125 = por %p123, %p124
    %p127 = scmp.ne.s32.totalorder %s112, %s126
    %p128 = scmp.eq.s32.totalorder %s18, 0
    %p129 = por %p127, %p128
    %s131 = sadd.s32 %s130, 1
    %p134 = scmp.eq.s32.totalorder %s12, 1
    %p135 = scmp.ne.s32.totalorder %s130, %s132
    %p136 = scmp.eq.s32.totalorder %s12, 0
    %p137 = por %p135, %p136
    %p138 = scmp.ne.s32.totalorder %s130, %s132
    %p139 = scmp.eq.s32.totalorder %s17, 1
    %p140 = por %p138, %p139
    %p141 = scmp.ne.s32.totalorder %s132, %s133
    %p142 = scmp.eq.s32.totalorder %s17, 0
    %p143 = por %p141, %p142
    %p144 = scmp.ne.s32.totalorder %s132, %s133
    %p145 = scmp.eq.s32.totalorder %s18, 1
    %p146 = por %p144, %p145
    %p148 = scmp.ne.s32.totalorder %s133, %s147
    %p149 = scmp.eq.s32.totalorder %s18, 0
    %p150 = por %p148, %p149
    %s152 = sadd.s32 %s151, 1
    %p155 = scmp.eq.s32.totalorder %s12, 1
    %p156 = scmp.ne.s32.totalorder %s151, %s153
    %p157 = scmp.eq.s32.totalorder %s12, 0
    %p158 = por %p156, %p157
    %p159 = scmp.ne.s32.totalorder %s151, %s153
    %p160 = scmp.eq.s32.totalorder %s17, 1
    %p161 = por %p159, %p160
    %p162 = scmp.ne.s32.totalorder %s153, %s154
    %p163 = scmp.eq.s32.totalorder %s17, 0
    %p164 = por %p162, %p163
    %p165 = scmp.ne.s32.totalorder %s153, %s154
    %p166 = scmp.eq.s32.totalorder %s18, 1
    %p167 = por %p165, %p166
    %p169 = scmp.ne.s32.totalorder %s154, %s168
    %p170 = scmp.eq.s32.totalorder %s18, 0
    %p171 = por %p169, %p170
    %s172 = ssub.s32 %s19, %s31
    %s173 = ssub.s32 %s20, %s27
    %s174 = sor.u32 %s172, %s173
    %p175 = scmp.eq.s32.totalorder %s174, 0
    %s177 = sadd.s32 %s176, 1
    %s178 = scalar_select %p175, %s176, %s177
    %p181 = pneg %p175
    %p182 = scmp.eq.s32.totalorder %s12, 1
    %p183 = por %p181, %p182
    %p184 = scmp.ne.s32.totalorder %s176, %s179
    %p185 = scmp.eq.s32.totalorder %s12, 0
    %p186 = por %p184, %p185
    %p187 = scmp.ne.s32.totalorder %s176, %s179
    %p188 = scmp.eq.s32.totalorder %s17, 1
    %p189 = por %p187, %p188
    %p190 = scmp.ne.s32.totalorder %s179, %s180
    %p191 = scmp.eq.s32.totalorder %s17, 0
    %p192 = por %p190, %p191
    %p193 = scmp.ne.s32.totalorder %s179, %s180
    %p194 = scmp.eq.s32.totalorder %s18, 1
    %p195 = por %p193, %p194
    %p197 = scmp.ne.s32.totalorder %s180, %s196
    %p198 = scmp.eq.s32.totalorder %s18, 0
    %p199 = por %p197, %p198
    %p200 = scmp.le.s32.totalorder 1, %s12
    %p201 = scmp.lt.s32.totalorder %s12, 3
    %p202 = pnand %p200, %p201
    %p203 = pneg %p202
    // Predicated region
    $region9: #{residual_block.3} parent=5 // pred_check
      _
    $region10: #{residual_block.3} parent=5 // pred_check_branch
      %205 = sbr.rel (%p202) target = $region12
    $region11: #{residual_block.3} parent=5 // pred_region
      %s206 = ssub.s32 %s12, 1
      // Predicated region
      $region13: #{residual_block.3} parent=11 // pred_check
        %p207 = pneg %p101
      $region14: #{residual_block.3} parent=11 // pred_check_branch
        %209 = sbr.rel (%p207) target = $region16
      $region15: #{residual_block.3} parent=11 // pred_region
        _
      $region16: #{residual_block.3} parent=11 // pred_fallthru
        _
      // Predicated region
      $region17: #{residual_block.3} parent=11 // pred_check
        %p210 = pneg %p122
      $region18: #{residual_block.3} parent=11 // pred_check_branch
        %212 = sbr.rel (%p210) target = $region20
      $region19: #{residual_block.3} parent=11 // pred_region
        _
      $region20: #{residual_block.3} parent=11 // pred_fallthru
        _
      // Predicated region
      $region21: #{residual_block.3} parent=11 // pred_check
        %p213 = pneg %p143
      $region22: #{residual_block.3} parent=11 // pred_check_branch
        %215 = sbr.rel (%p213) target = $region24
      $region23: #{residual_block.3} parent=11 // pred_region
        _
      $region24: #{residual_block.3} parent=11 // pred_fallthru
        _
      // Predicated region
      $region25: #{residual_block.3} parent=11 // pred_check
        %p216 = pneg %p164
      $region26: #{residual_block.3} parent=11 // pred_check_branch
        %218 = sbr.rel (%p216) target = $region28
      $region27: #{residual_block.3} parent=11 // pred_region
        _
      $region28: #{residual_block.3} parent=11 // pred_fallthru
        _
    $region12: #{residual_block.3} parent=5 // pred_fallthru
      _
    %p219 = scmp.lt.s32.totalorder %s12, 2
    // Predicated region
    $region29: #{residual_block.3} parent=5 // pred_check
      %p220 = pneg %p219
    $region30: #{residual_block.3} parent=5 // pred_check_branch
      %222 = sbr.rel (%p220) target = $region32
    $region31: #{residual_block.3} parent=5 // pred_region
      // Predicated region
      $region33: #{residual_block.3} parent=31 // pred_check
        %p223 = pneg %p46
      $region34: #{residual_block.3} parent=31 // pred_check_branch
        %225 = sbr.rel (%p223) target = $region36
      $region35: #{residual_block.3} parent=31 // pred_region
        %p226 = scmp.lt.s32.totalorder %s19, 1
        %s227 = scalar_select %p226, %s19, 1
        %p228 = scmp.lt.s32.totalorder %s20, 0
        %s229 = scalar_select %p228, %s20, 0
        %s230 = smul.addr %s229, 40
        %s231 = smul.addr %s227, 40
        %s232 = sadd.s32 %s230, %s231
        %s233 = smul.addr %s232, 4
        %s234 = scalar_lea.vmem %s0, %s233
      $region36: #{residual_block.3} parent=31 // pred_fallthru
        _
      // Predicated region
      $region37: #{residual_block.3} parent=31 // pred_check
        %p235 = pneg %p74
      $region38: #{residual_block.3} parent=31 // pred_check_branch
        %237 = sbr.rel (%p235) target = $region40
      $region39: #{residual_block.3} parent=31 // pred_region
        %p238 = scmp.lt.s32.totalorder %s19, 1
        %s239 = scalar_select %p238, %s19, 1
        %p240 = scmp.lt.s32.totalorder %s20, 0
        %s241 = scalar_select %p240, %s20, 0
        %s242 = smul.addr %s241, 40
        %s243 = smul.addr %s239, 40
        %s244 = sadd.s32 %s242, %s243
        %s245 = smul.addr %s244, 4
        %s246 = scalar_lea.vmem %s1, %s245
      $region40: #{residual_block.3} parent=31 // pred_fallthru
        _
    $region32: #{residual_block.3} parent=5 // pred_fallthru
      _
    %p247 = scmp.le.s32.totalorder 1, %s12
    %p248 = scmp.lt.s32.totalorder %s12, 3
    %p249 = pnand %p247, %p248
    %p250 = pneg %p249
    // Predicated region
    $region41: #{residual_block.3} parent=5 // pred_check
      _
    $region42: #{residual_block.3} parent=5 // pred_check_branch
      %252 = sbr.rel (%p249) target = $region44
    $region43: #{residual_block.3} parent=5 // pred_region
      %s253 = ssub.s32 %s12, 1
      %p254 = scmp.lt.s32.totalorder %s21, 1
      %s255 = scalar_select %p254, %s21, 1
      %p256 = scmp.lt.s32.totalorder %s22, 0
      %s257 = scalar_select %p256, %s22, 0
      %s258 = smul.addr %s257, 40
      %s259 = smul.addr %s255, 40
      %s260 = sadd.s32 %s258, %s259
      %s261 = smul.addr %s260, 4
      %s262 = scalar_lea.vmem %s0, %s261
      %p263 = pneg %p52
      %p264 = pneg %p49
      %p265 = scmp.lt.s32.totalorder %s21, 1
      %s266 = scalar_select %p265, %s21, 1
      %p267 = scmp.lt.s32.totalorder %s22, 0
      %s268 = scalar_select %p267, %s22, 0
      %s269 = smul.addr %s268, 40
      %s270 = smul.addr %s266, 40
      %s271 = sadd.s32 %s269, %s270
      %s272 = smul.addr %s271, 4
      %s273 = scalar_lea.vmem %s1, %s272
      %p274 = pneg %p80
      %p275 = pneg %p77
      %p276 = pneg %p101
      %p277 = pneg %p98
      %p278 = pneg %p122
      %p279 = pneg %p119
      %p280 = pneg %p143
      %p281 = pneg %p140
      %p282 = pneg %p164
      %p283 = pneg %p161
      %p284 = pneg %p192
      %p285 = pneg %p189
      %p286 = scmp.lt.s32.totalorder %s21, 1
      %s287 = scalar_select %p286, %s21, 1
      %p288 = scmp.lt.s32.totalorder %s22, 0
      %s289 = scalar_select %p288, %s22, 0
      %s290 = smul.addr %s289, 40
      %s291 = smul.addr %s287, 40
      %s292 = sadd.s32 %s290, %s291
      %s293 = smul.addr %s292, 8
      %s294 = scalar_lea.vmem %s6, %s293
      %p295 = scmp.lt.s32.totalorder %s21, 1
      %s296 = scalar_select %p295, %s21, 1
      %p297 = scmp.lt.s32.totalorder %s22, 0
      %s298 = scalar_select %p297, %s22, 0
      %s299 = smul.addr %s298, 40
      %s300 = smul.addr %s296, 40
      %s301 = sadd.s32 %s299, %s300
      %s302 = smul.addr %s301, 4
      %s303 = scalar_lea.vmem %s0, %s302
      %p304 = scmp.lt.s32.totalorder %s21, 1
      %s305 = scalar_select %p304, %s21, 1
      %p306 = scmp.lt.s32.totalorder %s22, 0
      %s307 = scalar_select %p306, %s22, 0
      %s308 = smul.addr %s307, 40
      %s309 = smul.addr %s305, 40
      %s310 = sadd.s32 %s308, %s309
      %s311 = smul.addr %s310, 4
      %s312 = scalar_lea.vmem %s1, %s311
      %p313 = scmp.lt.s32.totalorder %s21, 1
      %s314 = scalar_select %p313, %s21, 1
      %p315 = scmp.lt.s32.totalorder %s22, 0
      %s316 = scalar_select %p315, %s22, 0
      %s317 = smul.addr %s316, 40
      %s318 = smul.addr %s314, 40
      %s319 = sadd.s32 %s317, %s318
      %s320 = smul.addr %s319, 8
      %s321 = scalar_lea.vmem %s6, %s320
      %v322 = vld [vmem:[%s303] sm:$0xf]
      %v323 = vld [vmem:[%s303 + $0x4] sm:$0xf]
      %v324 = vld [vmem:[%s303 + $0x8] sm:$0xf]
      %v325 = vld [vmem:[%s303 + $0xc] sm:$0xf]
      %v326 = vld [vmem:[%s303 + $0x10] sm:$0xf]
      %v327 = vld [vmem:[%s303 + $0x14] sm:$0xf]
      %v328 = vld [vmem:[%s303 + $0x18] sm:$0xf]
      %v329 = vld [vmem:[%s303 + $0x1c] sm:$0xf]
      %v330 = vld [vmem:[%s303 + $0x20] sm:$0xf]
      %v331 = vld [vmem:[%s303 + $0x24] sm:$0xf]
      %v332 = vld [vmem:[%s303 + $0x28] sm:$0xf]
      %v333 = vld [vmem:[%s303 + $0x2c] sm:$0xf]
      %v334 = vld [vmem:[%s303 + $0x30] sm:$0xf]
      %v335 = vld [vmem:[%s303 + $0x34] sm:$0xf]
      %v336 = vld [vmem:[%s303 + $0x38] sm:$0xf]
      %v337 = vld [vmem:[%s303 + $0x3c] sm:$0xf]
      %v338 = vld [vmem:[%s303 + $0x40] sm:$0xf]
      %v339 = vld [vmem:[%s303 + $0x44] sm:$0xf]
      %v340 = vld [vmem:[%s303 + $0x48] sm:$0xf]
      %v341 = vld [vmem:[%s303 + $0x4c] sm:$0xf]
      %v342 = vld [vmem:[%s303 + $0x50] sm:$0xf]
      %v343 = vld [vmem:[%s303 + $0x54] sm:$0xf]
      %v344 = vld [vmem:[%s303 + $0x58] sm:$0xf]
      %v345 = vld [vmem:[%s303 + $0x5c] sm:$0xf]
      %v346 = vld [vmem:[%s303 + $0x60] sm:$0xf]
      %v347 = vld [vmem:[%s303 + $0x64] sm:$0xf]
      %v348 = vld [vmem:[%s303 + $0x68] sm:$0xf]
      %v349 = vld [vmem:[%s303 + $0x6c] sm:$0xf]
      %v350 = vld [vmem:[%s303 + $0x70] sm:$0xf]
      %v351 = vld [vmem:[%s303 + $0x74] sm:$0xf]
      %v352 = vld [vmem:[%s303 + $0x78] sm:$0xf]
      %v353 = vld [vmem:[%s303 + $0x7c] sm:$0xf]
      %v354 = vld [vmem:[%s303 + $0x80] sm:$0xf]
      %v355 = vld [vmem:[%s303 + $0x84] sm:$0xf]
      %v356 = vld [vmem:[%s303 + $0x88] sm:$0xf]
      %v357 = vld [vmem:[%s303 + $0x8c] sm:$0xf]
      %v358 = vld [vmem:[%s303 + $0x90] sm:$0xf]
      %v359 = vld [vmem:[%s303 + $0x94] sm:$0xf]
      %v360 = vld [vmem:[%s303 + $0x98] sm:$0xf]
      %v361 = vld [vmem:[%s303 + $0x9c] sm:$0xf]
      %v362 = vunpack.c.l.bf16 %v322
      %v363 = vunpack.c.l.bf16 %v323
      %v364 = vunpack.c.l.bf16 %v324
      %v365 = vunpack.c.l.bf16 %v325
      %v366 = vunpack.c.l.bf16 %v326
      %v367 = vunpack.c.l.bf16 %v327
      %v368 = vunpack.c.l.bf16 %v328
      %v369 = vunpack.c.l.bf16 %v329
      %v370 = vunpack.c.l.bf16 %v330
      %v371 = vunpack.c.l.bf16 %v331
      %v372 = vunpack.c.l.bf16 %v332
      %v373 = vunpack.c.l.bf16 %v333
      %v374 = vunpack.c.l.bf16 %v334
      %v375 = vunpack.c.l.bf16 %v335
      %v376 = vunpack.c.l.bf16 %v336
      %v377 = vunpack.c.l.bf16 %v337
      %v378 = vunpack.c.l.bf16 %v338
      %v379 = vunpack.c.l.bf16 %v339
      %v380 = vunpack.c.l.bf16 %v340
      %v381 = vunpack.c.l.bf16 %v341
      %v382 = vunpack.c.l.bf16 %v342
      %v383 = vunpack.c.l.bf16 %v343
      %v384 = vunpack.c.l.bf16 %v344
      %v385 = vunpack.c.l.bf16 %v345
      %v386 = vunpack.c.l.bf16 %v346
      %v387 = vunpack.c.l.bf16 %v347
      %v388 = vunpack.c.l.bf16 %v348
      %v389 = vunpack.c.l.bf16 %v349
      %v390 = vunpack.c.l.bf16 %v350
      %v391 = vunpack.c.l.bf16 %v351
      %v392 = vunpack.c.l.bf16 %v352
      %v393 = vunpack.c.l.bf16 %v353
      %v394 = vunpack.c.l.bf16 %v354
      %v395 = vunpack.c.l.bf16 %v355
      %v396 = vunpack.c.l.bf16 %v356
      %v397 = vunpack.c.l.bf16 %v357
      %v398 = vunpack.c.l.bf16 %v358
      %v399 = vunpack.c.l.bf16 %v359
      %v400 = vunpack.c.l.bf16 %v360
      %v401 = vunpack.c.l.bf16 %v361
      %v402 = vld [vmem:[%s2] sm:$0x1]
      %v404 = vperm.slane %v402, 0
      %v406 = vsub.f32 %v362, %v404
      %v407 = vsub.f32 %v363, %v404
      %v408 = vsub.f32 %v364, %v404
      %v409 = vsub.f32 %v365, %v404
      %v410 = vsub.f32 %v366, %v404
      %v411 = vsub.f32 %v367, %v404
      %v412 = vsub.f32 %v368, %v404
      %v413 = vsub.f32 %v369, %v404
      %v414 = vsub.f32 %v370, %v404
      %v415 = vsub.f32 %v371, %v404
      %v416 = vsub.f32 %v372, %v404
      %v417 = vsub.f32 %v373, %v404
      %v418 = vsub.f32 %v374, %v404
      %v419 = vsub.f32 %v375, %v404
      %v420 = vsub.f32 %v376, %v404
      %v421 = vsub.f32 %v377, %v404
      %v422 = vsub.f32 %v378, %v404
      %v423 = vsub.f32 %v379, %v404
      %v424 = vsub.f32 %v380, %v404
      %v425 = vsub.f32 %v381, %v404
      %v426 = vsub.f32 %v382, %v404
      %v427 = vsub.f32 %v383, %v404
      %v428 = vsub.f32 %v384, %v404
      %v429 = vsub.f32 %v385, %v404
      %v430 = vsub.f32 %v386, %v404
      %v431 = vsub.f32 %v387, %v404
      %v432 = vsub.f32 %v388, %v404
      %v433 = vsub.f32 %v389, %v404
      %v434 = vsub.f32 %v390, %v404
      %v435 = vsub.f32 %v391, %v404
      %v436 = vsub.f32 %v392, %v404
      %v437 = vsub.f32 %v393, %v404
      %v438 = vsub.f32 %v394, %v404
      %v439 = vsub.f32 %v395, %v404
      %v440 = vsub.f32 %v396, %v404
      %v441 = vsub.f32 %v397, %v404
      %v442 = vsub.f32 %v398, %v404
      %v443 = vsub.f32 %v399, %v404
      %v444 = vsub.f32 %v400, %v404
      %v445 = vsub.f32 %v401, %v404
      %v446 = vld [vmem:[%s3] sm:$0x1]
      %v448 = vperm.slane %v446, 0
      %v450 = vmul.f32 %v406, %v448
      %v451 = vmul.f32 %v407, %v448
      %v452 = vmul.f32 %v408, %v448
      %v453 = vmul.f32 %v409, %v448
      %v454 = vmul.f32 %v410, %v448
      %v455 = vmul.f32 %v411, %v448
      %v456 = vmul.f32 %v412, %v448
      %v457 = vmul.f32 %v413, %v448
      %v458 = vmul.f32 %v414, %v448
      %v459 = vmul.f32 %v415, %v448
      %v460 = vmul.f32 %v416, %v448
      %v461 = vmul.f32 %v417, %v448
      %v462 = vmul.f32 %v418, %v448
      %v463 = vmul.f32 %v419, %v448
      %v464 = vmul.f32 %v420, %v448
      %v465 = vmul.f32 %v421, %v448
      %v466 = vmul.f32 %v422, %v448
      %v467 = vmul.f32 %v423, %v448
      %v468 = vmul.f32 %v424, %v448
      %v469 = vmul.f32 %v425, %v448
      %v470 = vmul.f32 %v426, %v448
      %v471 = vmul.f32 %v427, %v448
      %v472 = vmul.f32 %v428, %v448
      %v473 = vmul.f32 %v429, %v448
      %v474 = vmul.f32 %v430, %v448
      %v475 = vmul.f32 %v431, %v448
      %v476 = vmul.f32 %v432, %v448
      %v477 = vmul.f32 %v433, %v448
      %v478 = vmul.f32 %v434, %v448
      %v479 = vmul.f32 %v435, %v448
      %v480 = vmul.f32 %v436, %v448
      %v481 = vmul.f32 %v437, %v448
      %v482 = vmul.f32 %v438, %v448
      %v483 = vmul.f32 %v439, %v448
      %v484 = vmul.f32 %v440, %v448
      %v485 = vmul.f32 %v441, %v448
      %v486 = vmul.f32 %v442, %v448
      %v487 = vmul.f32 %v443, %v448
      %v488 = vmul.f32 %v444, %v448
      %v489 = vmul.f32 %v445, %v448
      %v490 = vld [vmem:[%s4] sm:$0x1]
      %v492 = vperm.slane %v490, 0
      %v494 = vmul.f32 %v450, %v492
      %v495 = vmul.f32 %v451, %v492
      %v496 = vmul.f32 %v452, %v492
      %v497 = vmul.f32 %v453, %v492
      %v498 = vmul.f32 %v454, %v492
      %v499 = vmul.f32 %v455, %v492
      %v500 = vmul.f32 %v456, %v492
      %v501 = vmul.f32 %v457, %v492
      %v502 = vmul.f32 %v458, %v492
      %v503 = vmul.f32 %v459, %v492
      %v504 = vmul.f32 %v460, %v492
      %v505 = vmul.f32 %v461, %v492
      %v506 = vmul.f32 %v462, %v492
      %v507 = vmul.f32 %v463, %v492
      %v508 = vmul.f32 %v464, %v492
      %v509 = vmul.f32 %v465, %v492
      %v510 = vmul.f32 %v466, %v492
      %v511 = vmul.f32 %v467, %v492
      %v512 = vmul.f32 %v468, %v492
      %v513 = vmul.f32 %v469, %v492
      %v514 = vmul.f32 %v470, %v492
      %v515 = vmul.f32 %v471, %v492
      %v516 = vmul.f32 %v472, %v492
      %v517 = vmul.f32 %v473, %v492
      %v518 = vmul.f32 %v474, %v492
      %v519 = vmul.f32 %v475, %v492
      %v520 = vmul.f32 %v476, %v492
      %v521 = vmul.f32 %v477, %v492
      %v522 = vmul.f32 %v478, %v492
      %v523 = vmul.f32 %v479, %v492
      %v524 = vmul.f32 %v480, %v492
      %v525 = vmul.f32 %v481, %v492
      %v526 = vmul.f32 %v482, %v492
      %v527 = vmul.f32 %v483, %v492
      %v528 = vmul.f32 %v484, %v492
      %v529 = vmul.f32 %v485, %v492
      %v530 = vmul.f32 %v486, %v492
      %v531 = vmul.f32 %v487, %v492
      %v532 = vmul.f32 %v488, %v492
      %v533 = vmul.f32 %v489, %v492
      %v534 = vld [vmem:[%s5] sm:$0x1]
      %v536 = vperm.slane %v534, 0
      %v538 = vadd.f32 %v494, %v536
      %v539 = vadd.f32 %v495, %v536
      %v540 = vadd.f32 %v496, %v536
      %v541 = vadd.f32 %v497, %v536
      %v542 = vadd.f32 %v498, %v536
      %v543 = vadd.f32 %v499, %v536
      %v544 = vadd.f32 %v500, %v536
      %v545 = vadd.f32 %v501, %v536
      %v546 = vadd.f32 %v502, %v536
      %v547 = vadd.f32 %v503, %v536
      %v548 = vadd.f32 %v504, %v536
      %v549 = vadd.f32 %v505, %v536
      %v550 = vadd.f32 %v506, %v536
      %v551 = vadd.f32 %v507, %v536
      %v552 = vadd.f32 %v508, %v536
      %v553 = vadd.f32 %v509, %v536
      %v554 = vadd.f32 %v510, %v536
      %v555 = vadd.f32 %v511, %v536
      %v556 = vadd.f32 %v512, %v536
      %v557 = vadd.f32 %v513, %v536
      %v558 = vadd.f32 %v514, %v536
      %v559 = vadd.f32 %v515, %v536
      %v560 = vadd.f32 %v516, %v536
      %v561 = vadd.f32 %v517, %v536
      %v562 = vadd.f32 %v518, %v536
      %v563 = vadd.f32 %v519, %v536
      %v564 = vadd.f32 %v520, %v536
      %v565 = vadd.f32 %v521, %v536
      %v566 = vadd.f32 %v522, %v536
      %v567 = vadd.f32 %v523, %v536
      %v568 = vadd.f32 %v524, %v536
      %v569 = vadd.f32 %v525, %v536
      %v570 = vadd.f32 %v526, %v536
      %v571 = vadd.f32 %v527, %v536
      %v572 = vadd.f32 %v528, %v536
      %v573 = vadd.f32 %v529, %v536
      %v574 = vadd.f32 %v530, %v536
      %v575 = vadd.f32 %v531, %v536
      %v576 = vadd.f32 %v532, %v536
      %v577 = vadd.f32 %v533, %v536
      %vm578 = vcmp.gt.f32.partialorder %v538, 0.0
      %vm579 = vcmp.gt.f32.partialorder %v539, 0.0
      %vm580 = vcmp.gt.f32.partialorder %v540, 0.0
      %vm581 = vcmp.gt.f32.partialorder %v541, 0.0
      %vm582 = vcmp.gt.f32.partialorder %v542, 0.0
      %vm583 = vcmp.gt.f32.partialorder %v543, 0.0
      %vm584 = vcmp.gt.f32.partialorder %v544, 0.0
      %vm585 = vcmp.gt.f32.partialorder %v545, 0.0
      %vm586 = vcmp.gt.f32.partialorder %v546, 0.0
      %vm587 = vcmp.gt.f32.partialorder %v547, 0.0
      %vm588 = vcmp.gt.f32.partialorder %v548, 0.0
      %vm589 = vcmp.gt.f32.partialorder %v549, 0.0
      %vm590 = vcmp.gt.f32.partialorder %v550, 0.0
      %vm591 = vcmp.gt.f32.partialorder %v551, 0.0
      %vm592 = vcmp.gt.f32.partialorder %v552, 0.0
      %vm593 = vcmp.gt.f32.partialorder %v553, 0.0
      %vm594 = vcmp.gt.f32.partialorder %v554, 0.0
      %vm595 = vcmp.gt.f32.partialorder %v555, 0.0
      %vm596 = vcmp.gt.f32.partialorder %v556, 0.0
      %vm597 = vcmp.gt.f32.partialorder %v557, 0.0
      %vm598 = vcmp.gt.f32.partialorder %v558, 0.0
      %vm599 = vcmp.gt.f32.partialorder %v559, 0.0
      %vm600 = vcmp.gt.f32.partialorder %v560, 0.0
      %vm601 = vcmp.gt.f32.partialorder %v561, 0.0
      %vm602 = vcmp.gt.f32.partialorder %v562, 0.0
      %vm603 = vcmp.gt.f32.partialorder %v563, 0.0
      %vm604 = vcmp.gt.f32.partialorder %v564, 0.0
      %vm605 = vcmp.gt.f32.partialorder %v565, 0.0
      %vm606 = vcmp.gt.f32.partialorder %v566, 0.0
      %vm607 = vcmp.gt.f32.partialorder %v567, 0.0
      %vm608 = vcmp.gt.f32.partialorder %v568, 0.0
      %vm609 = vcmp.gt.f32.partialorder %v569, 0.0
      %vm610 = vcmp.gt.f32.partialorder %v570, 0.0
      %vm611 = vcmp.gt.f32.partialorder %v571, 0.0
      %vm612 = vcmp.gt.f32.partialorder %v572, 0.0
      %vm613 = vcmp.gt.f32.partialorder %v573, 0.0
      %vm614 = vcmp.gt.f32.partialorder %v574, 0.0
      %vm615 = vcmp.gt.f32.partialorder %v575, 0.0
      %vm616 = vcmp.gt.f32.partialorder %v576, 0.0
      %vm617 = vcmp.gt.f32.partialorder %v577, 0.0
      %v618 = vmul.f32 %v538, 0.01
      %v619 = vmul.f32 %v539, 0.01
      %v620 = vmul.f32 %v540, 0.01
      %v621 = vmul.f32 %v541, 0.01
      %v622 = vmul.f32 %v542, 0.01
      %v623 = vmul.f32 %v543, 0.01
      %v624 = vmul.f32 %v544, 0.01
      %v625 = vmul.f32 %v545, 0.01
      %v626 = vmul.f32 %v546, 0.01
      %v627 = vmul.f32 %v547, 0.01
      %v628 = vmul.f32 %v548, 0.01
      %v629 = vmul.f32 %v549, 0.01
      %v630 = vmul.f32 %v550, 0.01
      %v631 = vmul.f32 %v551, 0.01
      %v632 = vmul.f32 %v552, 0.01
      %v633 = vmul.f32 %v553, 0.01
      %v634 = vmul.f32 %v554, 0.01
      %v635 = vmul.f32 %v555, 0.01
      %v636 = vmul.f32 %v556, 0.01
      %v637 = vmul.f32 %v557, 0.01
      %v638 = vmul.f32 %v558, 0.01
      %v639 = vmul.f32 %v559, 0.01
      %v640 = vmul.f32 %v560, 0.01
      %v641 = vmul.f32 %v561, 0.01
      %v642 = vmul.f32 %v562, 0.01
      %v643 = vmul.f32 %v563, 0.01
      %v644 = vmul.f32 %v564, 0.01
      %v645 = vmul.f32 %v565, 0.01
      %v646 = vmul.f32 %v566, 0.01
      %v647 = vmul.f32 %v567, 0.01
      %v648 = vmul.f32 %v568, 0.01
      %v649 = vmul.f32 %v569, 0.01
      %v650 = vmul.f32 %v570, 0.01
      %v651 = vmul.f32 %v571, 0.01
      %v652 = vmul.f32 %v572, 0.01
      %v653 = vmul.f32 %v573, 0.01
      %v654 = vmul.f32 %v574, 0.01
      %v655 = vmul.f32 %v575, 0.01
      %v656 = vmul.f32 %v576, 0.01
      %v657 = vmul.f32 %v577, 0.01
      %v658 = vsel %vm578, %v538, %v618
      %v659 = vsel %vm579, %v539, %v619
      %v660 = vsel %vm580, %v540, %v620
      %v661 = vsel %vm581, %v541, %v621
      %v662 = vsel %vm582, %v542, %v622
      %v663 = vsel %vm583, %v543, %v623
      %v664 = vsel %vm584, %v544, %v624
      %v665 = vsel %vm585, %v545, %v625
      %v666 = vsel %vm586, %v546, %v626
      %v667 = vsel %vm587, %v547, %v627
      %v668 = vsel %vm588, %v548, %v628
      %v669 = vsel %vm589, %v549, %v629
      %v670 = vsel %vm590, %v550, %v630
      %v671 = vsel %vm591, %v551, %v631
      %v672 = vsel %vm592, %v552, %v632
      %v673 = vsel %vm593, %v553, %v633
      %v674 = vsel %vm594, %v554, %v634
      %v675 = vsel %vm595, %v555, %v635
      %v676 = vsel %vm596, %v556, %v636
      %v677 = vsel %vm597, %v557, %v637
      %v678 = vsel %vm598, %v558, %v638
      %v679 = vsel %vm599, %v559, %v639
      %v680 = vsel %vm600, %v560, %v640
      %v681 = vsel %vm601, %v561, %v641
      %v682 = vsel %vm602, %v562, %v642
      %v683 = vsel %vm603, %v563, %v643
      %v684 = vsel %vm604, %v564, %v644
      %v685 = vsel %vm605, %v565, %v645
      %v686 = vsel %vm606, %v566, %v646
      %v687 = vsel %vm607, %v567, %v647
      %v688 = vsel %vm608, %v568, %v648
      %v689 = vsel %vm609, %v569, %v649
      %v690 = vsel %vm610, %v570, %v650
      %v691 = vsel %vm611, %v571, %v651
      %v692 = vsel %vm612, %v572, %v652
      %v693 = vsel %vm613, %v573, %v653
      %v694 = vsel %vm614, %v574, %v654
      %v695 = vsel %vm615, %v575, %v655
      %v696 = vsel %vm616, %v576, %v656
      %v697 = vsel %vm617, %v577, %v657
      %v698 = vld [vmem:[%s312] sm:$0xf]
      %v699 = vld [vmem:[%s312 + $0x4] sm:$0xf]
      %v700 = vld [vmem:[%s312 + $0x8] sm:$0xf]
      %v701 = vld [vmem:[%s312 + $0xc] sm:$0xf]
      %v702 = vld [vmem:[%s312 + $0x10] sm:$0xf]
      %v703 = vld [vmem:[%s312 + $0x14] sm:$0xf]
      %v704 = vld [vmem:[%s312 + $0x18] sm:$0xf]
      %v705 = vld [vmem:[%s312 + $0x1c] sm:$0xf]
      %v706 = vld [vmem:[%s312 + $0x20] sm:$0xf]
      %v707 = vld [vmem:[%s312 + $0x24] sm:$0xf]
      %v708 = vld [vmem:[%s312 + $0x28] sm:$0xf]
      %v709 = vld [vmem:[%s312 + $0x2c] sm:$0xf]
      %v710 = vld [vmem:[%s312 + $0x30] sm:$0xf]
      %v711 = vld [vmem:[%s312 + $0x34] sm:$0xf]
      %v712 = vld [vmem:[%s312 + $0x38] sm:$0xf]
      %v713 = vld [vmem:[%s312 + $0x3c] sm:$0xf]
      %v714 = vld [vmem:[%s312 + $0x40] sm:$0xf]
      %v715 = vld [vmem:[%s312 + $0x44] sm:$0xf]
      %v716 = vld [vmem:[%s312 + $0x48] sm:$0xf]
      %v717 = vld [vmem:[%s312 + $0x4c] sm:$0xf]
      %v718 = vld [vmem:[%s312 + $0x50] sm:$0xf]
      %v719 = vld [vmem:[%s312 + $0x54] sm:$0xf]
      %v720 = vld [vmem:[%s312 + $0x58] sm:$0xf]
      %v721 = vld [vmem:[%s312 + $0x5c] sm:$0xf]
      %v722 = vld [vmem:[%s312 + $0x60] sm:$0xf]
      %v723 = vld [vmem:[%s312 + $0x64] sm:$0xf]
      %v724 = vld [vmem:[%s312 + $0x68] sm:$0xf]
      %v725 = vld [vmem:[%s312 + $0x6c] sm:$0xf]
      %v726 = vld [vmem:[%s312 + $0x70] sm:$0xf]
      %v727 = vld [vmem:[%s312 + $0x74] sm:$0xf]
      %v728 = vld [vmem:[%s312 + $0x78] sm:$0xf]
      %v729 = vld [vmem:[%s312 + $0x7c] sm:$0xf]
      %v730 = vld [vmem:[%s312 + $0x80] sm:$0xf]
      %v731 = vld [vmem:[%s312 + $0x84] sm:$0xf]
      %v732 = vld [vmem:[%s312 + $0x88] sm:$0xf]
      %v733 = vld [vmem:[%s312 + $0x8c] sm:$0xf]
      %v734 = vld [vmem:[%s312 + $0x90] sm:$0xf]
      %v735 = vld [vmem:[%s312 + $0x94] sm:$0xf]
      %v736 = vld [vmem:[%s312 + $0x98] sm:$0xf]
      %v737 = vld [vmem:[%s312 + $0x9c] sm:$0xf]
      %v738 = vunpack.c.l.bf16 %v698
      %v739 = vunpack.c.l.bf16 %v699
      %v740 = vunpack.c.l.bf16 %v700
      %v741 = vunpack.c.l.bf16 %v701
      %v742 = vunpack.c.l.bf16 %v702
      %v743 = vunpack.c.l.bf16 %v703
      %v744 = vunpack.c.l.bf16 %v704
      %v745 = vunpack.c.l.bf16 %v705
      %v746 = vunpack.c.l.bf16 %v706
      %v747 = vunpack.c.l.bf16 %v707
      %v748 = vunpack.c.l.bf16 %v708
      %v749 = vunpack.c.l.bf16 %v709
      %v750 = vunpack.c.l.bf16 %v710
      %v751 = vunpack.c.l.bf16 %v711
      %v752 = vunpack.c.l.bf16 %v712
      %v753 = vunpack.c.l.bf16 %v713
      %v754 = vunpack.c.l.bf16 %v714
      %v755 = vunpack.c.l.bf16 %v715
      %v756 = vunpack.c.l.bf16 %v716
      %v757 = vunpack.c.l.bf16 %v717
      %v758 = vunpack.c.l.bf16 %v718
      %v759 = vunpack.c.l.bf16 %v719
      %v760 = vunpack.c.l.bf16 %v720
      %v761 = vunpack.c.l.bf16 %v721
      %v762 = vunpack.c.l.bf16 %v722
      %v763 = vunpack.c.l.bf16 %v723
      %v764 = vunpack.c.l.bf16 %v724
      %v765 = vunpack.c.l.bf16 %v725
      %v766 = vunpack.c.l.bf16 %v726
      %v767 = vunpack.c.l.bf16 %v727
      %v768 = vunpack.c.l.bf16 %v728
      %v769 = vunpack.c.l.bf16 %v729
      %v770 = vunpack.c.l.bf16 %v730
      %v771 = vunpack.c.l.bf16 %v731
      %v772 = vunpack.c.l.bf16 %v732
      %v773 = vunpack.c.l.bf16 %v733
      %v774 = vunpack.c.l.bf16 %v734
      %v775 = vunpack.c.l.bf16 %v735
      %v776 = vunpack.c.l.bf16 %v736
      %v777 = vunpack.c.l.bf16 %v737
      %v778 = vadd.f32 %v658, %v738
      %v779 = vadd.f32 %v659, %v739
      %v780 = vadd.f32 %v660, %v740
      %v781 = vadd.f32 %v661, %v741
      %v782 = vadd.f32 %v662, %v742
      %v783 = vadd.f32 %v663, %v743
      %v784 = vadd.f32 %v664, %v744
      %v785 = vadd.f32 %v665, %v745
      %v786 = vadd.f32 %v666, %v746
      %v787 = vadd.f32 %v667, %v747
      %v788 = vadd.f32 %v668, %v748
      %v789 = vadd.f32 %v669, %v749
      %v790 = vadd.f32 %v670, %v750
      %v791 = vadd.f32 %v671, %v751
      %v792 = vadd.f32 %v672, %v752
      %v793 = vadd.f32 %v673, %v753
      %v794 = vadd.f32 %v674, %v754
      %v795 = vadd.f32 %v675, %v755
      %v796 = vadd.f32 %v676, %v756
      %v797 = vadd.f32 %v677, %v757
      %v798 = vadd.f32 %v678, %v758
      %v799 = vadd.f32 %v679, %v759
      %v800 = vadd.f32 %v680, %v760
      %v801 = vadd.f32 %v681, %v761
      %v802 = vadd.f32 %v682, %v762
      %v803 = vadd.f32 %v683, %v763
      %v804 = vadd.f32 %v684, %v764
      %v805 = vadd.f32 %v685, %v765
      %v806 = vadd.f32 %v686, %v766
      %v807 = vadd.f32 %v687, %v767
      %v808 = vadd.f32 %v688, %v768
      %v809 = vadd.f32 %v689, %v769
      %v810 = vadd.f32 %v690, %v770
      %v811 = vadd.f32 %v691, %v771
      %v812 = vadd.f32 %v692, %v772
      %v813 = vadd.f32 %v693, %v773
      %v814 = vadd.f32 %v694, %v774
      %v815 = vadd.f32 %v695, %v775
      %v816 = vadd.f32 %v696, %v776
      %v817 = vadd.f32 %v697, %v777
      %vm818 = vcmp.gt.f32.partialorder %v778, 0.0
      %vm819 = vcmp.gt.f32.partialorder %v779, 0.0
      %vm820 = vcmp.gt.f32.partialorder %v780, 0.0
      %vm821 = vcmp.gt.f32.partialorder %v781, 0.0
      %vm822 = vcmp.gt.f32.partialorder %v782, 0.0
      %vm823 = vcmp.gt.f32.partialorder %v783, 0.0
      %vm824 = vcmp.gt.f32.partialorder %v784, 0.0
      %vm825 = vcmp.gt.f32.partialorder %v785, 0.0
      %vm826 = vcmp.gt.f32.partialorder %v786, 0.0
      %vm827 = vcmp.gt.f32.partialorder %v787, 0.0
      %vm828 = vcmp.gt.f32.partialorder %v788, 0.0
      %vm829 = vcmp.gt.f32.partialorder %v789, 0.0
      %vm830 = vcmp.gt.f32.partialorder %v790, 0.0
      %vm831 = vcmp.gt.f32.partialorder %v791, 0.0
      %vm832 = vcmp.gt.f32.partialorder %v792, 0.0
      %vm833 = vcmp.gt.f32.partialorder %v793, 0.0
      %vm834 = vcmp.gt.f32.partialorder %v794, 0.0
      %vm835 = vcmp.gt.f32.partialorder %v795, 0.0
      %vm836 = vcmp.gt.f32.partialorder %v796, 0.0
      %vm837 = vcmp.gt.f32.partialorder %v797, 0.0
      %vm838 = vcmp.gt.f32.partialorder %v798, 0.0
      %vm839 = vcmp.gt.f32.partialorder %v799, 0.0
      %vm840 = vcmp.gt.f32.partialorder %v800, 0.0
      %vm841 = vcmp.gt.f32.partialorder %v801, 0.0
      %vm842 = vcmp.gt.f32.partialorder %v802, 0.0
      %vm843 = vcmp.gt.f32.partialorder %v803, 0.0
      %vm844 = vcmp.gt.f32.partialorder %v804, 0.0
      %vm845 = vcmp.gt.f32.partialorder %v805, 0.0
      %vm846 = vcmp.gt.f32.partialorder %v806, 0.0
      %vm847 = vcmp.gt.f32.partialorder %v807, 0.0
      %vm848 = vcmp.gt.f32.partialorder %v808, 0.0
      %vm849 = vcmp.gt.f32.partialorder %v809, 0.0
      %vm850 = vcmp.gt.f32.partialorder %v810, 0.0
      %vm851 = vcmp.gt.f32.partialorder %v811, 0.0
      %vm852 = vcmp.gt.f32.partialorder %v812, 0.0
      %vm853 = vcmp.gt.f32.partialorder %v813, 0.0
      %vm854 = vcmp.gt.f32.partialorder %v814, 0.0
      %vm855 = vcmp.gt.f32.partialorder %v815, 0.0
      %vm856 = vcmp.gt.f32.partialorder %v816, 0.0
      %vm857 = vcmp.gt.f32.partialorder %v817, 0.0
      %v858 = vmul.f32 %v778, 0.01
      %v859 = vmul.f32 %v779, 0.01
      %v860 = vmul.f32 %v780, 0.01
      %v861 = vmul.f32 %v781, 0.01
      %v862 = vmul.f32 %v782, 0.01
      %v863 = vmul.f32 %v783, 0.01
      %v864 = vmul.f32 %v784, 0.01
      %v865 = vmul.f32 %v785, 0.01
      %v866 = vmul.f32 %v786, 0.01
      %v867 = vmul.f32 %v787, 0.01
      %v868 = vmul.f32 %v788, 0.01
      %v869 = vmul.f32 %v789, 0.01
      %v870 = vmul.f32 %v790, 0.01
      %v871 = vmul.f32 %v791, 0.01
      %v872 = vmul.f32 %v792, 0.01
      %v873 = vmul.f32 %v793, 0.01
      %v874 = vmul.f32 %v794, 0.01
      %v875 = vmul.f32 %v795, 0.01
      %v876 = vmul.f32 %v796, 0.01
      %v877 = vmul.f32 %v797, 0.01
      %v878 = vmul.f32 %v798, 0.01
      %v879 = vmul.f32 %v799, 0.01
      %v880 = vmul.f32 %v800, 0.01
      %v881 = vmul.f32 %v801, 0.01
      %v882 = vmul.f32 %v802, 0.01
      %v883 = vmul.f32 %v803, 0.01
      %v884 = vmul.f32 %v804, 0.01
      %v885 = vmul.f32 %v805, 0.01
      %v886 = vmul.f32 %v806, 0.01
      %v887 = vmul.f32 %v807, 0.01
      %v888 = vmul.f32 %v808, 0.01
      %v889 = vmul.f32 %v809, 0.01
      %v890 = vmul.f32 %v810, 0.01
      %v891 = vmul.f32 %v811, 0.01
      %v892 = vmul.f32 %v812, 0.01
      %v893 = vmul.f32 %v813, 0.01
      %v894 = vmul.f32 %v814, 0.01
      %v895 = vmul.f32 %v815, 0.01
      %v896 = vmul.f32 %v816, 0.01
      %v897 = vmul.f32 %v817, 0.01
      %v898 = vsel %vm818, %v778, %v858
      %v899 = vsel %vm819, %v779, %v859
      %v900 = vsel %vm820, %v780, %v860
      %v901 = vsel %vm821, %v781, %v861
      %v902 = vsel %vm822, %v782, %v862
      %v903 = vsel %vm823, %v783, %v863
      %v904 = vsel %vm824, %v784, %v864
      %v905 = vsel %vm825, %v785, %v865
      %v906 = vsel %vm826, %v786, %v866
      %v907 = vsel %vm827, %v787, %v867
      %v908 = vsel %vm828, %v788, %v868
      %v909 = vsel %vm829, %v789, %v869
      %v910 = vsel %vm830, %v790, %v870
      %v911 = vsel %vm831, %v791, %v871
      %v912 = vsel %vm832, %v792, %v872
      %v913 = vsel %vm833, %v793, %v873
      %v914 = vsel %vm834, %v794, %v874
      %v915 = vsel %vm835, %v795, %v875
      %v916 = vsel %vm836, %v796, %v876
      %v917 = vsel %vm837, %v797, %v877
      %v918 = vsel %vm838, %v798, %v878
      %v919 = vsel %vm839, %v799, %v879
      %v920 = vsel %vm840, %v800, %v880
      %v921 = vsel %vm841, %v801, %v881
      %v922 = vsel %vm842, %v802, %v882
      %v923 = vsel %vm843, %v803, %v883
      %v924 = vsel %vm844, %v804, %v884
      %v925 = vsel %vm845, %v805, %v885
      %v926 = vsel %vm846, %v806, %v886
      %v927 = vsel %vm847, %v807, %v887
      %v928 = vsel %vm848, %v808, %v888
      %v929 = vsel %vm849, %v809, %v889
      %v930 = vsel %vm850, %v810, %v890
      %v931 = vsel %vm851, %v811, %v891
      %v932 = vsel %vm852, %v812, %v892
      %v933 = vsel %vm853, %v813, %v893
      %v934 = vsel %vm854, %v814, %v894
      %v935 = vsel %vm855, %v815, %v895
      %v936 = vsel %vm856, %v816, %v896
      %v937 = vsel %vm857, %v817, %v897
      %938 = vst [vmem:[%s321] sm:$0xff] %v898
      %939 = vst [vmem:[%s321 + $0x8] sm:$0xff] %v899
      %940 = vst [vmem:[%s321 + $0x10] sm:$0xff] %v900
      %941 = vst [vmem:[%s321 + $0x18] sm:$0xff] %v901
      %942 = vst [vmem:[%s321 + $0x20] sm:$0xff] %v902
      %943 = vst [vmem:[%s321 + $0x28] sm:$0xff] %v903
      %944 = vst [vmem:[%s321 + $0x30] sm:$0xff] %v904
      %945 = vst [vmem:[%s321 + $0x38] sm:$0xff] %v905
      %946 = vst [vmem:[%s321 + $0x40] sm:$0xff] %v906
      %947 = vst [vmem:[%s321 + $0x48] sm:$0xff] %v907
      %948 = vst [vmem:[%s321 + $0x50] sm:$0xff] %v908
      %949 = vst [vmem:[%s321 + $0x58] sm:$0xff] %v909
      %950 = vst [vmem:[%s321 + $0x60] sm:$0xff] %v910
      %951 = vst [vmem:[%s321 + $0x68] sm:$0xff] %v911
      %952 = vst [vmem:[%s321 + $0x70] sm:$0xff] %v912
      %953 = vst [vmem:[%s321 + $0x78] sm:$0xff] %v913
      %954 = vst [vmem:[%s321 + $0x80] sm:$0xff] %v914
      %955 = vst [vmem:[%s321 + $0x88] sm:$0xff] %v915
      %956 = vst [vmem:[%s321 + $0x90] sm:$0xff] %v916
      %957 = vst [vmem:[%s321 + $0x98] sm:$0xff] %v917
      %958 = vst [vmem:[%s321 + $0xa0] sm:$0xff] %v918
      %959 = vst [vmem:[%s321 + $0xa8] sm:$0xff] %v919
      %960 = vst [vmem:[%s321 + $0xb0] sm:$0xff] %v920
      %961 = vst [vmem:[%s321 + $0xb8] sm:$0xff] %v921
      %962 = vst [vmem:[%s321 + $0xc0] sm:$0xff] %v922
      %963 = vst [vmem:[%s321 + $0xc8] sm:$0xff] %v923
      %964 = vst [vmem:[%s321 + $0xd0] sm:$0xff] %v924
      %965 = vst [vmem:[%s321 + $0xd8] sm:$0xff] %v925
      %966 = vst [vmem:[%s321 + $0xe0] sm:$0xff] %v926
      %967 = vst [vmem:[%s321 + $0xe8] sm:$0xff] %v927
      %968 = vst [vmem:[%s321 + $0xf0] sm:$0xff] %v928
      %969 = vst [vmem:[%s321 + $0xf8] sm:$0xff] %v929
      %970 = vst [vmem:[%s321 + $0x100] sm:$0xff] %v930
      %971 = vst [vmem:[%s321 + $0x108] sm:$0xff] %v931
      %972 = vst [vmem:[%s321 + $0x110] sm:$0xff] %v932
      %973 = vst [vmem:[%s321 + $0x118] sm:$0xff] %v933
      %974 = vst [vmem:[%s321 + $0x120] sm:$0xff] %v934
      %975 = vst [vmem:[%s321 + $0x128] sm:$0xff] %v935
      %976 = vst [vmem:[%s321 + $0x130] sm:$0xff] %v936
      %977 = vst [vmem:[%s321 + $0x138] sm:$0xff] %v937
      %p978 = scmp.lt.s32.totalorder %s21, 1
      %s979 = scalar_select %p978, %s21, 1
      %p980 = scmp.lt.s32.totalorder %s22, 0
      %s981 = scalar_select %p980, %s22, 0
      %s982 = smul.addr %s981, 40
      %s983 = smul.addr %s979, 40
      %s984 = sadd.s32 %s982, %s983
      %s985 = smul.addr %s984, 8
      %s986 = scalar_lea.vmem %s6, %s985
      // Predicated region
      $region45: #{residual_block.3} parent=43 // pred_check
        %p987 = pneg %p189
      $region46: #{residual_block.3} parent=43 // pred_check_branch
        %989 = sbr.rel (%p987) target = $region48
      $region47: #{residual_block.3} parent=43 // pred_region
        _
      $region48: #{residual_block.3} parent=43 // pred_fallthru
        _
    $region44: #{residual_block.3} parent=5 // pred_fallthru
      _
    %p990 = scmp.le.s32.totalorder 2, %s12
    // Predicated region
    $region49: #{residual_block.3} parent=5 // pred_check
      %p991 = pneg %p990
    $region50: #{residual_block.3} parent=5 // pred_check_branch
      %993 = sbr.rel (%p991) target = $region52
    $region51: #{residual_block.3} parent=5 // pred_region
      %s994 = ssub.s32 %s12, 2
      // Predicated region
      $region53: #{residual_block.3} parent=51 // pred_check
        %p995 = pneg %p195
      $region54: #{residual_block.3} parent=51 // pred_check_branch
        %997 = sbr.rel (%p995) target = $region56
      $region55: #{residual_block.3} parent=51 // pred_region
        %p998 = scmp.lt.s32.totalorder %s23, 1
        %s999 = scalar_select %p998, %s23, 1
        %p1000 = scmp.lt.s32.totalorder %s24, 0
        %s1001 = scalar_select %p1000, %s24, 0
        %s1002 = smul.addr %s1001, 40
        %s1003 = smul.addr %s999, 40
        %s1004 = sadd.s32 %s1002, %s1003
        %s1005 = smul.addr %s1004, 8
        %s1006 = scalar_lea.vmem %s6, %s1005
      $region56: #{residual_block.3} parent=51 // pred_fallthru
        _
    $region52: #{residual_block.3} parent=5 // pred_fallthru
      _
  $region6: #{residual_block.3} parent=0 // loop_footer
    %s16 = sadd.s32 1, %s12
  $region7: #{residual_block.3} parent=0 // loop_footer_branch
    %11 = sbr.rel target = $region3
  $region8: #{residual_block.3} parent=0 // loop_exit
    _

// kernel: residual_block.2
$region0: #{residual_block.2}
  #allocation0 [shape = 'u32[]', space=smem, size = 0x4, offset = 0x4, fixed_abs, tag = 'smem constant byte address 0x4 - core index']
  #allocation1 [shape = 'u32[72,128]{1,0:T(1,128)}', space=vmem, size = 0x9000, scoped, tag = 'internal scratch']
  #allocation2 [shape = 'bf16[368,128]{1,0:T(8,128)(2,1)}', space=vmem, size = 0x17000, scoped, tag = 'scratch operand']
  %s0 = inlined_call_operand.vmem [shape: bf16[2,1,420,128], index: 0, kind: input, shape index: {}]
  %s1 = inlined_call_operand.vmem [shape: bf16[3,3,128,128], index: 1, kind: input, shape index: {}]
  %s2 = inlined_call_operand.vmem [shape: f32[1,128], index: 2, kind: input, shape index: {}]
  %s3 = inlined_call_operand.vmem [shape: bf16[3,3,128,128], index: 3, kind: input, shape index: {}]
  %s4 = inlined_call_operand.vmem [shape: f32[1,128], index: 4, kind: input, shape index: {}]
  %s5 = inlined_call_operand.vmem [shape: bf16[128,128], index: 5, kind: input, shape index: {}]
  %s6 = inlined_call_operand.vmem [shape: f32[1,128], index: 6, kind: input, shape index: {}]
  %s7 = inlined_call_operand.vmem [shape: bf16[2,1,320,128], index: 7, kind: output, shape index: {0}]
  %s8 = inlined_call_operand.vmem [shape: bf16[2,1,320,128], index: 8, kind: output, shape index: {1}]
  %s9 = inlined_call_operand.vmem [shape: f32[2,1,2,128], index: 9, kind: output, shape index: {2}]
  %10 = xla_tuple %s7, %s8, %s9
  %s11 = sld [smem:[#allocation0]]
  $region81: #{residual_block.2} parent=0
    _
  %s13 = ssub.s32 1, %s11
  %s14 = scalar_select 0, %s13, %s11
  loop: start=0, step=1, limit=4
  $region2: #{residual_block.2} parent=0 // loop_pre_header
    _
  $region3: #{residual_block.2} parent=0 // loop_header
    %s16 = sphi 0, %s20
    %p17 = scmp.ge.s32.totalorder %s16, 4
    %s23 = sphi 0, %s35
    %s24 = sphi 0, %s31
    %s25 = sphi 0, %s23
    %s26 = sphi 0, %s24
    %s27 = sphi 0, %s25
    %s28 = sphi 0, %s26
    %s40 = sphi 0, %s42
    %s43 = sphi 0, %s40
    %s44 = sphi 0, %s43
    %s60 = sphi 0, %s44
    %s64 = sphi 0, %s64
    %s66 = sphi 0, %s64
    %s67 = sphi 0, %s66
    %s81 = sphi 0, %s67
    %s85 = sphi 0, %s85
    %s87 = sphi 0, %s85
    %s88 = sphi 0, %s87
    %s102 = sphi 0, %s88
    %s106 = sphi 0, %s106
    %s108 = sphi 0, %s106
    %s109 = sphi 0, %s108
    %s123 = sphi 0, %s109
    %s127 = sphi 0, %s127
    %s129 = sphi 0, %s127
    %s130 = sphi 0, %s129
    %s144 = sphi 0, %s130
    %s148 = sphi 0, %s148
    %s150 = sphi 0, %s148
    %s151 = sphi 0, %s150
    %s165 = sphi 0, %s151
    %s169 = sphi 0, %s169
    %s171 = sphi 0, %s169
    %s172 = sphi 0, %s171
    %s186 = sphi 0, %s172
    %s194 = sphi 0, %s196
    %s197 = sphi 0, %s194
    %s198 = sphi 0, %s197
    %s214 = sphi 0, %s198
    %s222 = sphi 0, %s224
    %s225 = sphi 0, %s222
    %s226 = sphi 0, %s225
    %s242 = sphi 0, %s226
    %s250 = sphi 0, %s252
    %s253 = sphi 0, %s250
    %s254 = sphi 0, %s253
    %s270 = sphi 0, %s254
  $region4: #{residual_block.2} parent=0 // loop_header_branch
    %19 = sbr.rel (%p17) target = $region8
  $region5: #{residual_block.2} parent=0 // loop_body
    %s21 = ssub.s32 %s16, 1
    %s22 = ssub.s32 %s16, 2
    %s29 = sadd.s32 1, %s24
    %p30 = scmp.ge.s32.totalorder %s29, 1
    %s31 = scalar_select %p30, 0, %s29
    %s32 = sadd.s32 1, %s23
    %s33 = scalar_select %p30, %s32, %s23
    %p34 = scmp.ge.s32.totalorder %s33, 2
    %s35 = scalar_select %p34, 0, %s33
    %s36 = ssub.s32 %s23, %s35
    %s37 = ssub.s32 %s24, %s31
    %s38 = sor.u32 %s36, %s37
    %p39 = scmp.eq.s32.totalorder %s38, 0
    %s41 = sadd.s32 %s40, 1
    %s42 = scalar_select %p39, %s40, %s41
    %p45 = pneg %p39
    %p46 = scmp.eq.s32.totalorder %s16, 1
    %p47 = por %p45, %p46
    %p48 = scmp.ne.s32.totalorder %s40, %s43
    %p49 = scmp.eq.s32.totalorder %s16, 0
    %p50 = por %p48, %p49
    %p51 = scmp.ne.s32.totalorder %s40, %s43
    %p52 = scmp.eq.s32.totalorder %s21, 1
    %p53 = por %p51, %p52
    %p54 = scmp.ne.s32.totalorder %s43, %s44
    %p55 = scmp.eq.s32.totalorder %s21, 0
    %p56 = por %p54, %p55
    %p57 = scmp.ne.s32.totalorder %s43, %s44
    %p58 = scmp.eq.s32.totalorder %s22, 1
    %p59 = por %p57, %p58
    %p61 = scmp.ne.s32.totalorder %s44, %s60
    %p62 = scmp.eq.s32.totalorder %s22, 0
    %p63 = por %p61, %p62
    %s65 = sadd.s32 %s64, 1
    %p68 = scmp.eq.s32.totalorder %s16, 1
    %p69 = scmp.ne.s32.totalorder %s64, %s66
    %p70 = scmp.eq.s32.totalorder %s16, 0
    %p71 = por %p69, %p70
    %p72 = scmp.ne.s32.totalorder %s64, %s66
    %p73 = scmp.eq.s32.totalorder %s21, 1
    %p74 = por %p72, %p73
    %p75 = scmp.ne.s32.totalorder %s66, %s67
    %p76 = scmp.eq.s32.totalorder %s21, 0
    %p77 = por %p75, %p76
    %p78 = scmp.ne.s32.totalorder %s66, %s67
    %p79 = scmp.eq.s32.totalorder %s22, 1
    %p80 = por %p78, %p79
    %p82 = scmp.ne.s32.totalorder %s67, %s81
    %p83 = scmp.eq.s32.totalorder %s22, 0
    %p84 = por %p82, %p83
    %s86 = sadd.s32 %s85, 1
    %p89 = scmp.eq.s32.totalorder %s16, 1
    %p90 = scmp.ne.s32.totalorder %s85, %s87
    %p91 = scmp.eq.s32.totalorder %s16, 0
    %p92 = por %p90, %p91
    %p93 = scmp.ne.s32.totalorder %s85, %s87
    %p94 = scmp.eq.s32.totalorder %s21, 1
    %p95 = por %p93, %p94
    %p96 = scmp.ne.s32.totalorder %s87, %s88
    %p97 = scmp.eq.s32.totalorder %s21, 0
    %p98 = por %p96, %p97
    %p99 = scmp.ne.s32.totalorder %s87, %s88
    %p100 = scmp.eq.s32.totalorder %s22, 1
    %p101 = por %p99, %p100
    %p103 = scmp.ne.s32.totalorder %s88, %s102
    %p104 = scmp.eq.s32.totalorder %s22, 0
    %p105 = por %p103, %p104
    %s107 = sadd.s32 %s106, 1
    %p110 = scmp.eq.s32.totalorder %s16, 1
    %p111 = scmp.ne.s32.totalorder %s106, %s108
    %p112 = scmp.eq.s32.totalorder %s16, 0
    %p113 = por %p111, %p112
    %p114 = scmp.ne.s32.totalorder %s106, %s108
    %p115 = scmp.eq.s32.totalorder %s21, 1
    %p116 = por %p114, %p115
    %p117 = scmp.ne.s32.totalorder %s108, %s109
    %p118 = scmp.eq.s32.totalorder %s21, 0
    %p119 = por %p117, %p118
    %p120 = scmp.ne.s32.totalorder %s108, %s109
    %p121 = scmp.eq.s32.totalorder %s22, 1
    %p122 = por %p120, %p121
    %p124 = scmp.ne.s32.totalorder %s109, %s123
    %p125 = scmp.eq.s32.totalorder %s22, 0
    %p126 = por %p124, %p125
    %s128 = sadd.s32 %s127, 1
    %p131 = scmp.eq.s32.totalorder %s16, 1
    %p132 = scmp.ne.s32.totalorder %s127, %s129
    %p133 = scmp.eq.s32.totalorder %s16, 0
    %p134 = por %p132, %p133
    %p135 = scmp.ne.s32.totalorder %s127, %s129
    %p136 = scmp.eq.s32.totalorder %s21, 1
    %p137 = por %p135, %p136
    %p138 = scmp.ne.s32.totalorder %s129, %s130
    %p139 = scmp.eq.s32.totalorder %s21, 0
    %p140 = por %p138, %p139
    %p141 = scmp.ne.s32.totalorder %s129, %s130
    %p142 = scmp.eq.s32.totalorder %s22, 1
    %p143 = por %p141, %p142
    %p145 = scmp.ne.s32.totalorder %s130, %s144
    %p146 = scmp.eq.s32.totalorder %s22, 0
    %p147 = por %p145, %p146
    %s149 = sadd.s32 %s148, 1
    %p152 = scmp.eq.s32.totalorder %s16, 1
    %p153 = scmp.ne.s32.totalorder %s148, %s150
    %p154 = scmp.eq.s32.totalorder %s16, 0
    %p155 = por %p153, %p154
    %p156 = scmp.ne.s32.totalorder %s148, %s150
    %p157 = scmp.eq.s32.totalorder %s21, 1
    %p158 = por %p156, %p157
    %p159 = scmp.ne.s32.totalorder %s150, %s151
    %p160 = scmp.eq.s32.totalorder %s21, 0
    %p161 = por %p159, %p160
    %p162 = scmp.ne.s32.totalorder %s150, %s151
    %p163 = scmp.eq.s32.totalorder %s22, 1
    %p164 = por %p162, %p163
    %p166 = scmp.ne.s32.totalorder %s151, %s165
    %p167 = scmp.eq.s32.totalorder %s22, 0
    %p168 = por %p166, %p167
    %s170 = sadd.s32 %s169, 1
    %p173 = scmp.eq.s32.totalorder %s16, 1
    %p174 = scmp.ne.s32.totalorder %s169, %s171
    %p175 = scmp.eq.s32.totalorder %s16, 0
    %p176 = por %p174, %p175
    %p177 = scmp.ne.s32.totalorder %s169, %s171
    %p178 = scmp.eq.s32.totalorder %s21, 1
    %p179 = por %p177, %p178
    %p180 = scmp.ne.s32.totalorder %s171, %s172
    %p181 = scmp.eq.s32.totalorder %s21, 0
    %p182 = por %p180, %p181
    %p183 = scmp.ne.s32.totalorder %s171, %s172
    %p184 = scmp.eq.s32.totalorder %s22, 1
    %p185 = por %p183, %p184
    %p187 = scmp.ne.s32.totalorder %s172, %s186
    %p188 = scmp.eq.s32.totalorder %s22, 0
    %p189 = por %p187, %p188
    %s190 = ssub.s32 %s23, %s35
    %s191 = ssub.s32 %s24, %s31
    %s192 = sor.u32 %s190, %s191
    %p193 = scmp.eq.s32.totalorder %s192, 0
    %s195 = sadd.s32 %s194, 1
    %s196 = scalar_select %p193, %s194, %s195
    %p199 = pneg %p193
    %p200 = scmp.eq.s32.totalorder %s16, 1
    %p201 = por %p199, %p200
    %p202 = scmp.ne.s32.totalorder %s194, %s197
    %p203 = scmp.eq.s32.totalorder %s16, 0
    %p204 = por %p202, %p203
    %p205 = scmp.ne.s32.totalorder %s194, %s197
    %p206 = scmp.eq.s32.totalorder %s21, 1
    %p207 = por %p205, %p206
    %p208 = scmp.ne.s32.totalorder %s197, %s198
    %p209 = scmp.eq.s32.totalorder %s21, 0
    %p210 = por %p208, %p209
    %p211 = scmp.ne.s32.totalorder %s197, %s198
    %p212 = scmp.eq.s32.totalorder %s22, 1
    %p213 = por %p211, %p212
    %p215 = scmp.ne.s32.totalorder %s198, %s214
    %p216 = scmp.eq.s32.totalorder %s22, 0
    %p217 = por %p215, %p216
    %s218 = ssub.s32 %s23, %s35
    %s219 = ssub.s32 %s24, %s31
    %s220 = sor.u32 %s218, %s219
    %p221 = scmp.eq.s32.totalorder %s220, 0
    %s223 = sadd.s32 %s222, 1
    %s224 = scalar_select %p221, %s222, %s223
    %p227 = pneg %p221
    %p228 = scmp.eq.s32.totalorder %s16, 1
    %p229 = por %p227, %p228
    %p230 = scmp.ne.s32.totalorder %s222, %s225
    %p231 = scmp.eq.s32.totalorder %s16, 0
    %p232 = por %p230, %p231
    %p233 = scmp.ne.s32.totalorder %s222, %s225
    %p234 = scmp.eq.s32.totalorder %s21, 1
    %p235 = por %p233, %p234
    %p236 = scmp.ne.s32.totalorder %s225, %s226
    %p237 = scmp.eq.s32.totalorder %s21, 0
    %p238 = por %p236, %p237
    %p239 = scmp.ne.s32.totalorder %s225, %s226
    %p240 = scmp.eq.s32.totalorder %s22, 1
    %p241 = por %p239, %p240
    %p243 = scmp.ne.s32.totalorder %s226, %s242
    %p244 = scmp.eq.s32.totalorder %s22, 0
    %p245 = por %p243, %p244
    %s246 = ssub.s32 %s23, %s35
    %s247 = ssub.s32 %s24, %s31
    %s248 = sor.u32 %s246, %s247
    %p249 = scmp.eq.s32.totalorder %s248, 0
    %s251 = sadd.s32 %s250, 1
    %s252 = scalar_select %p249, %s250, %s251
    %p255 = pneg %p249
    %p256 = scmp.eq.s32.totalorder %s16, 1
    %p257 = por %p255, %p256
    %p258 = scmp.ne.s32.totalorder %s250, %s253
    %p259 = scmp.eq.s32.totalorder %s16, 0
    %p260 = por %p258, %p259
    %p261 = scmp.ne.s32.totalorder %s250, %s253
    %p262 = scmp.eq.s32.totalorder %s21, 1
    %p263 = por %p261, %p262
    %p264 = scmp.ne.s32.totalorder %s253, %s254
    %p265 = scmp.eq.s32.totalorder %s21, 0
    %p266 = por %p264, %p265
    %p267 = scmp.ne.s32.totalorder %s253, %s254
    %p268 = scmp.eq.s32.totalorder %s22, 1
    %p269 = por %p267, %p268
    %p271 = scmp.ne.s32.totalorder %s254, %s270
    %p272 = scmp.eq.s32.totalorder %s22, 0
    %p273 = por %p271, %p272
    %p274 = scmp.le.s32.totalorder 1, %s16
    %p275 = scmp.lt.s32.totalorder %s16, 3
    %p276 = pnand %p274, %p275
    %p277 = pneg %p276
    // Predicated region
    $region9: #{residual_block.2} parent=5 // pred_check
      _
    $region10: #{residual_block.2} parent=5 // pred_check_branch
      %279 = sbr.rel (%p276) target = $region12
    $region11: #{residual_block.2} parent=5 // pred_region
      %s280 = ssub.s32 %s16, 1
      // Predicated region
      $region13: #{residual_block.2} parent=11 // pred_check
        %p281 = pneg %p77
      $region14: #{residual_block.2} parent=11 // pred_check_branch
        %283 = sbr.rel (%p281) target = $region16
      $region15: #{residual_block.2} parent=11 // pred_region
        _
      $region16: #{residual_block.2} parent=11 // pred_fallthru
        _
      // Predicated region
      $region17: #{residual_block.2} parent=11 // pred_check
        %p284 = pneg %p98
      $region18: #{residual_block.2} parent=11 // pred_check_branch
        %286 = sbr.rel (%p284) target = $region20
      $region19: #{residual_block.2} parent=11 // pred_region
        _
      $region20: #{residual_block.2} parent=11 // pred_fallthru
        _
      // Predicated region
      $region21: #{residual_block.2} parent=11 // pred_check
        %p287 = pneg %p119
      $region22: #{residual_block.2} parent=11 // pred_check_branch
        %289 = sbr.rel (%p287) target = $region24
      $region23: #{residual_block.2} parent=11 // pred_region
        _
      $region24: #{residual_block.2} parent=11 // pred_fallthru
        _
      // Predicated region
      $region25: #{residual_block.2} parent=11 // pred_check
        %p290 = pneg %p140
      $region26: #{residual_block.2} parent=11 // pred_check_branch
        %292 = sbr.rel (%p290) target = $region28
      $region27: #{residual_block.2} parent=11 // pred_region
        _
      $region28: #{residual_block.2} parent=11 // pred_fallthru
        _
      // Predicated region
      $region29: #{residual_block.2} parent=11 // pred_check
        %p293 = pneg %p161
      $region30: #{residual_block.2} parent=11 // pred_check_branch
        %295 = sbr.rel (%p293) target = $region32
      $region31: #{residual_block.2} parent=11 // pred_region
        _
      $region32: #{residual_block.2} parent=11 // pred_fallthru
        _
      // Predicated region
      $region33: #{residual_block.2} parent=11 // pred_check
        %p296 = pneg %p182
      $region34: #{residual_block.2} parent=11 // pred_check_branch
        %298 = sbr.rel (%p296) target = $region36
      $region35: #{residual_block.2} parent=11 // pred_region
        _
      $region36: #{residual_block.2} parent=11 // pred_fallthru
        _
    $region12: #{residual_block.2} parent=5 // pred_fallthru
      _
    %p299 = scmp.lt.s32.totalorder %s16, 2
    // Predicated region
    $region37: #{residual_block.2} parent=5 // pred_check
      %p300 = pneg %p299
    $region38: #{residual_block.2} parent=5 // pred_check_branch
      %302 = sbr.rel (%p300) target = $region40
    $region39: #{residual_block.2} parent=5 // pred_region
      // Predicated region
      $region41: #{residual_block.2} parent=39 // pred_check
        %p303 = pneg %p50
      $region42: #{residual_block.2} parent=39 // pred_check_branch
        %305 = sbr.rel (%p303) target = $region44
      $region43: #{residual_block.2} parent=39 // pred_region
        %p306 = scmp.lt.s32.totalorder %s23, 1
        %s307 = scalar_select %p306, %s23, 1
        %p308 = scmp.lt.s32.totalorder %s24, 0
        %s309 = scalar_select %p308, %s24, 0
        %s310 = smul.addr %s309, 53
        %s311 = smul.addr %s307, 53
        %s312 = sadd.s32 %s310, %s311
        %s313 = smul.addr %s312, 4
        %s314 = scalar_lea.vmem %s0, %s313
      $region44: #{residual_block.2} parent=39 // pred_fallthru
        _
    $region40: #{residual_block.2} parent=5 // pred_fallthru
      _
    %p315 = scmp.le.s32.totalorder 1, %s16
    %p316 = scmp.lt.s32.totalorder %s16, 3
    %p317 = pnand %p315, %p316
    %p318 = pneg %p317
    // Predicated region
    $region45: #{residual_block.2} parent=5 // pred_check
      _
    $region46: #{residual_block.2} parent=5 // pred_check_branch
      %320 = sbr.rel (%p317) target = $region48
    $region47: #{residual_block.2} parent=5 // pred_region
      %s321 = ssub.s32 %s16, 1
      %p322 = scmp.lt.s32.totalorder %s25, 1
      %s323 = scalar_select %p322, %s25, 1
      %p324 = scmp.lt.s32.totalorder %s26, 0
      %s325 = scalar_select %p324, %s26, 0
      %s326 = smul.addr %s325, 53
      %s327 = smul.addr %s323, 53
      %s328 = sadd.s32 %s326, %s327
      %s329 = smul.addr %s328, 4
      %s330 = scalar_lea.vmem %s0, %s329
      %p331 = pneg %p56
      %p332 = pneg %p53
      %p333 = pneg %p77
      %p334 = pneg %p74
      %p335 = pneg %p98
      %p336 = pneg %p95
      %p337 = pneg %p119
      %p338 = pneg %p116
      %p339 = pneg %p140
      %p340 = pneg %p137
      %p341 = pneg %p161
      %p342 = pneg %p158
      %p343 = pneg %p182
      %p344 = pneg %p179
      %p345 = pneg %p210
      %p346 = pneg %p207
      %p347 = scmp.lt.s32.totalorder %s25, 1
      %s348 = scalar_select %p347, %s25, 1
      %p349 = scmp.lt.s32.totalorder %s26, 0
      %s350 = scalar_select %p349, %s26, 0
      %s351 = smul.addr %s350, 40
      %s352 = smul.addr %s348, 40
      %s353 = sadd.s32 %s351, %s352
      %s354 = smul.addr %s353, 4
      %s355 = scalar_lea.vmem %s7, %s354
      %p356 = pneg %p238
      %p357 = pneg %p235
      %p358 = scmp.lt.s32.totalorder %s25, 1
      %s359 = scalar_select %p358, %s25, 1
      %p360 = scmp.lt.s32.totalorder %s26, 0
      %s361 = scalar_select %p360, %s26, 0
      %s362 = smul.addr %s361, 40
      %s363 = smul.addr %s359, 40
      %s364 = sadd.s32 %s362, %s363
      %s365 = smul.addr %s364, 4
      %s366 = scalar_lea.vmem %s8, %s365
      %p367 = pneg %p266
      %p368 = pneg %p263
      %p369 = scmp.lt.s32.totalorder %s25, 1
      %s370 = scalar_select %p369, %s25, 1
      %p371 = scmp.lt.s32.totalorder %s26, 0
      %s372 = scalar_select %p371, %s26, 0
      %s373 = sadd.s32 %s372, %s370
      %s374 = smul.addr %s373, 2
      %s375 = scalar_lea.vmem %s9, %s374
      %p376 = scmp.lt.s32.totalorder %s25, 1
      %s377 = scalar_select %p376, %s25, 1
      %p378 = scmp.lt.s32.totalorder %s26, 0
      %s379 = scalar_select %p378, %s26, 0
      %s380 = smul.addr %s379, 53
      %s381 = smul.addr %s377, 53
      %s382 = sadd.s32 %s380, %s381
      %s383 = smul.addr %s382, 4
      %s384 = scalar_lea.vmem %s0, %s383
      %p385 = scmp.lt.s32.totalorder %s25, 1
      %s386 = scalar_select %p385, %s25, 1
      %p387 = scmp.lt.s32.totalorder %s26, 0
      %s388 = scalar_select %p387, %s26, 0
      %s389 = smul.addr %s388, 40
      %s390 = smul.addr %s386, 40
      %s391 = sadd.s32 %s389, %s390
      %s392 = smul.addr %s391, 4
      %s393 = scalar_lea.vmem %s7, %s392
      %p394 = scmp.lt.s32.totalorder %s25, 1
      %s395 = scalar_select %p394, %s25, 1
      %p396 = scmp.lt.s32.totalorder %s26, 0
      %s397 = scalar_select %p396, %s26, 0
      %s398 = smul.addr %s397, 40
      %s399 = smul.addr %s395, 40
      %s400 = sadd.s32 %s398, %s399
      %s401 = smul.addr %s400, 4
      %s402 = scalar_lea.vmem %s8, %s401
      %p403 = scmp.lt.s32.totalorder %s25, 1
      %s404 = scalar_select %p403, %s25, 1
      %p405 = scmp.lt.s32.totalorder %s26, 0
      %s406 = scalar_select %p405, %s26, 0
      %s407 = sadd.s32 %s406, %s404
      %s408 = smul.addr %s407, 2
      %s409 = scalar_lea.vmem %s9, %s408
      %v411 = vld [vmem:[%s384] sm:$0xf]
      %v412 = vld [vmem:[%s384 + $0x4] sm:$0xf]
      %v413 = vld [vmem:[%s384 + $0x8] sm:$0xf]
      %v414 = vld [vmem:[%s384 + $0xc] sm:$0xf]
      %v415 = vld [vmem:[%s384 + $0x10] sm:$0xf]
      %v416 = vld [vmem:[%s384 + $0x14] sm:$0xf]
      %v417 = vld [vmem:[%s384 + $0x18] sm:$0xf]
      %v418 = vld [vmem:[%s384 + $0x1c] sm:$0xf]
      %v419 = vld [vmem:[%s384 + $0x20] sm:$0xf]
      %v420 = vld [vmem:[%s384 + $0x24] sm:$0xf]
      %v421 = vld [vmem:[%s384 + $0x28] sm:$0xf]
      %v422 = vld [vmem:[%s384 + $0x2c] sm:$0xf]
      %v423 = vld [vmem:[%s384 + $0x30] sm:$0xf]
      %v424 = vld [vmem:[%s384 + $0x34] sm:$0xf]
      %v425 = vld [vmem:[%s384 + $0x38] sm:$0xf]
      %v426 = vld [vmem:[%s384 + $0x3c] sm:$0xf]
      %v427 = vld [vmem:[%s384 + $0x40] sm:$0xf]
      %v428 = vld [vmem:[%s384 + $0x44] sm:$0xf]
      %v429 = vld [vmem:[%s384 + $0x48] sm:$0xf]
      %v430 = vld [vmem:[%s384 + $0x4c] sm:$0xf]
      %v431 = vld [vmem:[%s384 + $0x50] sm:$0xf]
      %v432 = vld [vmem:[%s384 + $0x54] sm:$0xf]
      %v433 = vld [vmem:[%s384 + $0x58] sm:$0xf]
      %v434 = vld [vmem:[%s384 + $0x5c] sm:$0xf]
      %v435 = vld [vmem:[%s384 + $0x60] sm:$0xf]
      %v436 = vld [vmem:[%s384 + $0x64] sm:$0xf]
      %v437 = vld [vmem:[%s384 + $0x68] sm:$0xf]
      %v438 = vld [vmem:[%s384 + $0x6c] sm:$0xf]
      %v439 = vld [vmem:[%s384 + $0x70] sm:$0xf]
      %v440 = vld [vmem:[%s384 + $0x74] sm:$0xf]
      %v441 = vld [vmem:[%s384 + $0x78] sm:$0xf]
      %v442 = vld [vmem:[%s384 + $0x7c] sm:$0xf]
      %v443 = vld [vmem:[%s384 + $0x80] sm:$0xf]
      %v444 = vld [vmem:[%s384 + $0x84] sm:$0xf]
      %v445 = vld [vmem:[%s384 + $0x88] sm:$0xf]
      %v446 = vld [vmem:[%s384 + $0x8c] sm:$0xf]
      %v447 = vld [vmem:[%s384 + $0x90] sm:$0xf]
      %v448 = vld [vmem:[%s384 + $0x94] sm:$0xf]
      %v449 = vld [vmem:[%s384 + $0x98] sm:$0xf]
      %v450 = vld [vmem:[%s384 + $0x9c] sm:$0xf]
      %v451 = vld [vmem:[%s384 + $0xa0] sm:$0xf]
      %v452 = vld [vmem:[%s384 + $0xa4] sm:$0xf]
      %v453 = vld [vmem:[%s384 + $0xa8] sm:$0xf]
      %v454 = vld [vmem:[%s384 + $0xac] sm:$0xf]
      %v455 = vld [vmem:[%s384 + $0xb0] sm:$0xf]
      %v456 = vld [vmem:[%s1] sm:$0xf]
      %v457 = vld [vmem:[%s1 + $0x4] sm:$0xf]
      %v458 = vld [vmem:[%s1 + $0x8] sm:$0xf]
      %v459 = vld [vmem:[%s1 + $0xc] sm:$0xf]
      %v460 = vld [vmem:[%s1 + $0x10] sm:$0xf]
      %v461 = vld [vmem:[%s1 + $0x14] sm:$0xf]
      %v462 = vld [vmem:[%s1 + $0x18] sm:$0xf]
      %v463 = vld [vmem:[%s1 + $0x1c] sm:$0xf]
      %v464 = vld [vmem:[%s1 + $0x20] sm:$0xf]
      %v465 = vld [vmem:[%s1 + $0x24] sm:$0xf]
      %v466 = vld [vmem:[%s1 + $0x28] sm:$0xf]
      %v467 = vld [vmem:[%s1 + $0x2c] sm:$0xf]
      %v468 = vld [vmem:[%s1 + $0x30] sm:$0xf]
      %v469 = vld [vmem:[%s1 + $0x34] sm:$0xf]
      %v470 = vld [vmem:[%s1 + $0x38] sm:$0xf]
      %v471 = vld [vmem:[%s1 + $0x3c] sm:$0xf]
      %v472 = vld [vmem:[%s384 + $0xb4] sm:$0x1]
      %s473 = scalar_lea.vmem %s1, 64
      %v474 = vld [vmem:[%s473] sm:$0xf]
      %v475 = vld [vmem:[%s473 + $0x4] sm:$0xf]
      %v476 = vld [vmem:[%s473 + $0x8] sm:$0xf]
      %v477 = vld [vmem:[%s473 + $0xc] sm:$0xf]
      %v478 = vld [vmem:[%s473 + $0x10] sm:$0xf]
      %v479 = vld [vmem:[%s473 + $0x14] sm:$0xf]
      %v480 = vld [vmem:[%s473 + $0x18] sm:$0xf]
      %v481 = vld [vmem:[%s473 + $0x1c] sm:$0xf]
      %v482 = vld [vmem:[%s473 + $0x20] sm:$0xf]
      %v483 = vld [vmem:[%s473 + $0x24] sm:$0xf]
      %v484 = vld [vmem:[%s473 + $0x28] sm:$0xf]
      %v485 = vld [vmem:[%s473 + $0x2c] sm:$0xf]
      %v486 = vld [vmem:[%s473 + $0x30] sm:$0xf]
      %v487 = vld [vmem:[%s473 + $0x34] sm:$0xf]
      %v488 = vld [vmem:[%s473 + $0x38] sm:$0xf]
      %v489 = vld [vmem:[%s473 + $0x3c] sm:$0xf]
      %v536 = vunpack.c.l.b16 %v411
      %v537 = vunpack.c.l.b16 %v412
      %v538 = vunpack.c.l.b16 %v413
      %v539 = vunpack.c.l.b16 %v414
      %v540 = vunpack.c.l.b16 %v415
      %v541 = vunpack.c.l.b16 %v416
      %v542 = vunpack.c.l.b16 %v417
      %v543 = vunpack.c.l.b16 %v418
      %v544 = vunpack.c.l.b16 %v419
      %v545 = vunpack.c.l.b16 %v420
      %v546 = vunpack.c.l.b16 %v421
      %v547 = vunpack.c.l.b16 %v422
      %v548 = vunpack.c.l.b16 %v423
      %v549 = vunpack.c.l.b16 %v424
      %v550 = vunpack.c.l.b16 %v425
      %v551 = vunpack.c.l.b16 %v426
      %v552 = vunpack.c.l.b16 %v427
      %v553 = vunpack.c.l.b16 %v428
      %v554 = vunpack.c.l.b16 %v429
      %v555 = vunpack.c.l.b16 %v430
      %v556 = vunpack.c.l.b16 %v431
      %v557 = vunpack.c.l.b16 %v432
      %v558 = vunpack.c.l.b16 %v433
      %v559 = vunpack.c.l.b16 %v434
      %v560 = vunpack.c.l.b16 %v435
      %v561 = vunpack.c.l.b16 %v436
      %v562 = vunpack.c.l.b16 %v437
      %v563 = vunpack.c.l.b16 %v438
      %v564 = vunpack.c.l.b16 %v439
      %v565 = vunpack.c.l.b16 %v440
      %v566 = vunpack.c.l.b16 %v441
      %v567 = vunpack.c.l.b16 %v442
      %v568 = vunpack.c.l.b16 %v443
      %v569 = vunpack.c.l.b16 %v444
      %v570 = vunpack.c.l.b16 %v445
      %v571 = vunpack.c.l.b16 %v446
      %v572 = vunpack.c.l.b16 %v447
      %v573 = vunpack.c.l.b16 %v448
      %v574 = vunpack.c.l.b16 %v449
      %v575 = vunpack.c.l.b16 %v450
      %v576 = vunpack.c.l.b16 %v451
      %v577 = vunpack.c.l.b16 %v452
      %v578 = vunpack.c.l.b16 %v453
      %v579 = vunpack.c.l.b16 %v454
      %v580 = vunpack.c.l.b16 %v455
      %v581 = vunpack.c.l.b16 %v472
      %v582 = vpack.c.b16 %v537, %v536
      %v583 = vpack.c.b16 %v539, %v538
      %v584 = vpack.c.b16 %v541, %v540
      %v585 = vpack.c.b16 %v543, %v542
      %v586 = vpack.c.b16 %v545, %v544
      %v587 = vpack.c.b16 %v547, %v546
      %v588 = vpack.c.b16 %v549, %v548
      %v589 = vpack.c.b16 %v551, %v550
      %v590 = vpack.c.b16 %v553, %v552
      %v591 = vpack.c.b16 %v555, %v554
      %v592 = vpack.c.b16 %v557, %v556
      %v593 = vpack.c.b16 %v559, %v558
      %v594 = vpack.c.b16 %v561, %v560
      %v595 = vpack.c.b16 %v563, %v562
      %v596 = vpack.c.b16 %v565, %v564
      %v597 = vpack.c.b16 %v567, %v566
      %v598 = vpack.c.b16 %v569, %v568
      %v599 = vpack.c.b16 %v571, %v570
      %v600 = vpack.c.b16 %v573, %v572
      %v601 = vpack.c.b16 %v575, %v574
      %v602 = vpack.c.b16 %v577, %v576
      %v603 = vpack.c.b16 %v579, %v578
      %v604 = vpack.c.b16 %v581, %v580
      %vm605 = vsmask.f32 7424
      %v607 = vshrl.u32 %v582, 16
      %v609 = vshll.u32 %v582, 16
      %v611 = vrot.slane %v609, 1
      %v612 = vor.u32 %v607, %v611
      %v614 = vshll.u32 %v583, 16
      %v616 = vrot.slane %v614, 1
      %v617 = vsel %vm605, %v612, %v616
      %v618 = vshrl.u32 %v583, 16
      %v620 = vor.u32 %v618, %v616
      %v622 = vshll.u32 %v584, 16
      %v624 = vrot.slane %v622, 1
      %v625 = vsel %vm605, %v620, %v624
      %v626 = vshrl.u32 %v584, 16
      %v628 = vor.u32 %v626, %v624
      %v630 = vshll.u32 %v585, 16
      %v632 = vrot.slane %v630, 1
      %v633 = vsel %vm605, %v628, %v632
      %v634 = vshrl.u32 %v585, 16
      %v636 = vor.u32 %v634, %v632
      %v638 = vshll.u32 %v586, 16
      %v640 = vrot.slane %v638, 1
      %v641 = vsel %vm605, %v636, %v640
      %v642 = vshrl.u32 %v586, 16
      %v644 = vor.u32 %v642, %v640
      %v646 = vshll.u32 %v587, 16
      %v648 = vrot.slane %v646, 1
      %v649 = vsel %vm605, %v644, %v648
      %v650 = vshrl.u32 %v587, 16
      %v652 = vor.u32 %v650, %v648
      %v654 = vshll.u32 %v588, 16
      %v656 = vrot.slane %v654, 1
      %v657 = vsel %vm605, %v652, %v656
      %v658 = vshrl.u32 %v588, 16
      %v660 = vor.u32 %v658, %v656
      %v662 = vshll.u32 %v589, 16
      %v664 = vrot.slane %v662, 1
      %v665 = vsel %vm605, %v660, %v664
      %v666 = vshrl.u32 %v589, 16
      %v668 = vor.u32 %v666, %v664
      %v670 = vshll.u32 %v590, 16
      %v672 = vrot.slane %v670, 1
      %v673 = vsel %vm605, %v668, %v672
      %v674 = vshrl.u32 %v590, 16
      %v676 = vor.u32 %v674, %v672
      %v678 = vshll.u32 %v591, 16
      %v680 = vrot.slane %v678, 1
      %v681 = vsel %vm605, %v676, %v680
      %v682 = vshrl.u32 %v591, 16
      %v684 = vor.u32 %v682, %v680
      %v686 = vshll.u32 %v592, 16
      %v688 = vrot.slane %v686, 1
      %v689 = vsel %vm605, %v684, %v688
      %v690 = vshrl.u32 %v592, 16
      %v692 = vor.u32 %v690, %v688
      %v694 = vshll.u32 %v593, 16
      %v696 = vrot.slane %v694, 1
      %v697 = vsel %vm605, %v692, %v696
      %v698 = vshrl.u32 %v593, 16
      %v700 = vor.u32 %v698, %v696
      %v702 = vshll.u32 %v594, 16
      %v704 = vrot.slane %v702, 1
      %v705 = vsel %vm605, %v700, %v704
      %v706 = vshrl.u32 %v594, 16
      %v708 = vor.u32 %v706, %v704
      %v710 = vshll.u32 %v595, 16
      %v712 = vrot.slane %v710, 1
      %v713 = vsel %vm605, %v708, %v712
      %v714 = vshrl.u32 %v595, 16
      %v716 = vor.u32 %v714, %v712
      %v718 = vshll.u32 %v596, 16
      %v720 = vrot.slane %v718, 1
      %v721 = vsel %vm605, %v716, %v720
      %v722 = vshrl.u32 %v596, 16
      %v724 = vor.u32 %v722, %v720
      %v726 = vshll.u32 %v597, 16
      %v728 = vrot.slane %v726, 1
      %v729 = vsel %vm605, %v724, %v728
      %v730 = vshrl.u32 %v597, 16
      %v732 = vor.u32 %v730, %v728
      %v734 = vshll.u32 %v598, 16
      %v736 = vrot.slane %v734, 1
      %v737 = vsel %vm605, %v732, %v736
      %v738 = vshrl.u32 %v598, 16
      %v740 = vor.u32 %v738, %v736
      %v742 = vshll.u32 %v599, 16
      %v744 = vrot.slane %v742, 1
      %v745 = vsel %vm605, %v740, %v744
      %v746 = vshrl.u32 %v599, 16
      %v748 = vor.u32 %v746, %v744
      %v750 = vshll.u32 %v600, 16
      %v752 = vrot.slane %v750, 1
      %v753 = vsel %vm605, %v748, %v752
      %v754 = vshrl.u32 %v600, 16
      %v756 = vor.u32 %v754, %v752
      %v758 = vshll.u32 %v601, 16
      %v760 = vrot.slane %v758, 1
      %v761 = vsel %vm605, %v756, %v760
      %v762 = vshrl.u32 %v601, 16
      %v764 = vor.u32 %v762, %v760
      %v766 = vshll.u32 %v602, 16
      %v768 = vrot.slane %v766, 1
      %v769 = vsel %vm605, %v764, %v768
      %v770 = vshrl.u32 %v602, 16
      %v772 = vor.u32 %v770, %v768
      %v774 = vshll.u32 %v603, 16
      %v776 = vrot.slane %v774, 1
      %v777 = vsel %vm605, %v772, %v776
      %v778 = vshrl.u32 %v603, 16
      %v780 = vor.u32 %v778, %v776
      %v782 = vshll.u32 %v604, 16
      %v784 = vrot.slane %v782, 1
      %v785 = vsel %vm605, %v780, %v784
      %v786 = vshrl.u32 %v604, 16
      %v788 = vor.u32 %v786, %v784
      %v828 = vunpack.c.l.b16 %v474
      %v829 = vunpack.c.l.b16 %v475
      %v830 = vunpack.c.l.b16 %v476
      %v831 = vunpack.c.l.b16 %v477
      %v832 = vunpack.c.l.b16 %v478
      %v833 = vunpack.c.l.b16 %v479
      %v834 = vunpack.c.l.b16 %v480
      %v835 = vunpack.c.l.b16 %v481
      %v836 = vunpack.c.l.b16 %v482
      %v837 = vunpack.c.l.b16 %v483
      %v838 = vunpack.c.l.b16 %v484
      %v839 = vunpack.c.l.b16 %v485
      %v840 = vunpack.c.l.b16 %v486
      %v841 = vunpack.c.l.b16 %v487
      %v842 = vunpack.c.l.b16 %v488
      %v843 = vunpack.c.l.b16 %v489
      %v844 = vpack.c.b16 %v829, %v828
      %v845 = vpack.c.b16 %v831, %v830
      %v846 = vpack.c.b16 %v833, %v832
      %v847 = vpack.c.b16 %v835, %v834
      %v848 = vpack.c.b16 %v837, %v836
      %v849 = vpack.c.b16 %v839, %v838
      %v850 = vpack.c.b16 %v841, %v840
      %v851 = vpack.c.b16 %v843, %v842
      %860 = vmatpush.bf16.msra.mxu0 %v851
      %861 = vmatpush.bf16.msra.mxu0 %v850
      %862 = vmatpush.bf16.msra.mxu0 %v849
      %863 = vmatpush.bf16.msra.mxu0 %v848
      %864 = vmatpush.bf16.msra.mxu0 %v847
      %865 = vmatpush.bf16.msra.mxu0 %v846
      %866 = vmatpush.bf16.msra.mxu0 %v845
      %867 = vmatpush.bf16.msra.mxu0 %v844
      %868 = vmatmul.bf16.gmra.mxu0 %v617
      %v869 = vpop.f32.mrf.mxu0
      %v870 = vadd.f32 0.0, %v869
      %v871 = vpop.f32.mrf.mxu0
      %v872 = vadd.f32 0.0, %v871
      %873 = vmatmul.bf16.gmra.mxu0 %v625
      %v874 = vpop.f32.mrf.mxu0
      %v875 = vadd.f32 0.0, %v874
      %v876 = vpop.f32.mrf.mxu0
      %v877 = vadd.f32 0.0, %v876
      %878 = vmatmul.bf16.gmra.mxu0 %v633
      %v879 = vpop.f32.mrf.mxu0
      %v880 = vadd.f32 0.0, %v879
      %v881 = vpop.f32.mrf.mxu0
      %v882 = vadd.f32 0.0, %v881
      %883 = vmatmul.bf16.gmra.mxu0 %v641
      %v884 = vpop.f32.mrf.mxu0
      %v885 = vadd.f32 0.0, %v884
      %v886 = vpop.f32.mrf.mxu0
      %v887 = vadd.f32 0.0, %v886
      %888 = vmatmul.bf16.gmra.mxu0 %v649
      %v889 = vpop.f32.mrf.mxu0
      %v890 = vadd.f32 0.0, %v889
      %v891 = vpop.f32.mrf.mxu0
      %v892 = vadd.f32 0.0, %v891
      %893 = vmatmul.bf16.gmra.mxu0 %v657
      %v894 = vpop.f32.mrf.mxu0
      %v895 = vadd.f32 0.0, %v894
      %v896 = vpop.f32.mrf.mxu0
      %v897 = vadd.f32 0.0, %v896
      %898 = vmatmul.bf16.gmra.mxu0 %v665
      %v899 = vpop.f32.mrf.mxu0
      %v900 = vadd.f32 0.0, %v899
      %v901 = vpop.f32.mrf.mxu0
      %v902 = vadd.f32 0.0, %v901
      %903 = vmatmul.bf16.gmra.mxu0 %v673
      %v904 = vpop.f32.mrf.mxu0
      %v905 = vadd.f32 0.0, %v904
      %v906 = vpop.f32.mrf.mxu0
      %v907 = vadd.f32 0.0, %v906
      %908 = vmatmul.bf16.gmra.mxu0 %v681
      %v909 = vpop.f32.mrf.mxu0
      %v910 = vadd.f32 0.0, %v909
      %v911 = vpop.f32.mrf.mxu0
      %v912 = vadd.f32 0.0, %v911
      %913 = vmatmul.bf16.gmra.mxu0 %v689
      %v914 = vpop.f32.mrf.mxu0
      %v915 = vadd.f32 0.0, %v914
      %v916 = vpop.f32.mrf.mxu0
      %v917 = vadd.f32 0.0, %v916
      %918 = vmatmul.bf16.gmra.mxu0 %v697
      %v919 = vpop.f32.mrf.mxu0
      %v920 = vadd.f32 0.0, %v919
      %v921 = vpop.f32.mrf.mxu0
      %v922 = vadd.f32 0.0, %v921
      %923 = vmatmul.bf16.gmra.mxu0 %v705
      %v924 = vpop.f32.mrf.mxu0
      %v925 = vadd.f32 0.0, %v924
      %v926 = vpop.f32.mrf.mxu0
      %v927 = vadd.f32 0.0, %v926
      %928 = vmatmul.bf16.gmra.mxu0 %v713
      %v929 = vpop.f32.mrf.mxu0
      %v930 = vadd.f32 0.0, %v929
      %v931 = vpop.f32.mrf.mxu0
      %v932 = vadd.f32 0.0, %v931
      %933 = vmatmul.bf16.gmra.mxu0 %v721
      %v934 = vpop.f32.mrf.mxu0
      %v935 = vadd.f32 0.0, %v934
      %v936 = vpop.f32.mrf.mxu0
      %v937 = vadd.f32 0.0, %v936
      %938 = vmatmul.bf16.gmra.mxu0 %v729
      %v939 = vpop.f32.mrf.mxu0
      %v940 = vadd.f32 0.0, %v939
      %v941 = vpop.f32.mrf.mxu0
      %v942 = vadd.f32 0.0, %v941
      %943 = vmatmul.bf16.gmra.mxu0 %v737
      %v944 = vpop.f32.mrf.mxu0
      %v945 = vadd.f32 0.0, %v944
      %v946 = vpop.f32.mrf.mxu0
      %v947 = vadd.f32 0.0, %v946
      %948 = vmatmul.bf16.gmra.mxu0 %v745
      %v949 = vpop.f32.mrf.mxu0
      %v950 = vadd.f32 0.0, %v949
      %v951 = vpop.f32.mrf.mxu0
      %v952 = vadd.f32 0.0, %v951
      %953 = vmatmul.bf16.gmra.mxu0 %v753
      %v954 = vpop.f32.mrf.mxu0
      %v955 = vadd.f32 0.0, %v954
      %v956 = vpop.f32.mrf.mxu0
      %v957 = vadd.f32 0.0, %v956
      %958 = vmatmul.bf16.gmra.mxu0 %v761
      %v959 = vpop.f32.mrf.mxu0
      %v960 = vadd.f32 0.0, %v959
      %v961 = vpop.f32.mrf.mxu0
      %v962 = vadd.f32 0.0, %v961
      %963 = vmatmul.bf16.gmra.mxu0 %v769
      %v964 = vpop.f32.mrf.mxu0
      %v965 = vadd.f32 0.0, %v964
      %v966 = vpop.f32.mrf.mxu0
      %v967 = vadd.f32 0.0, %v966
      %968 = vmatmul.bf16.gmra.mxu0 %v777
      %v969 = vpop.f32.mrf.mxu0
      %v970 = vadd.f32 0.0, %v969
      %v971 = vpop.f32.mrf.mxu0
      %v972 = vadd.f32 0.0, %v971
      %973 = vmatmul.bf16.gmra.mxu0 %v785
      %v974 = vpop.f32.mrf.mxu0
      %v975 = vadd.f32 0.0, %v974
      %v976 = vpop.f32.mrf.mxu0
      %v977 = vadd.f32 0.0, %v976
      %978 = vmatmul.bf16.gmra.mxu0 %v788
      %v979 = vpop.f32.mrf.mxu0
      %v980 = vadd.f32 0.0, %v979
      %v981 = vpop.f32.mrf.mxu0
      %982 = vdwg.mxu0
      %v983 = vpack.c.b16 %v580, %v580
      %v1023 = vunpack.c.l.b16 %v456
      %v1024 = vunpack.c.l.b16 %v457
      %v1025 = vunpack.c.l.b16 %v458
      %v1026 = vunpack.c.l.b16 %v459
      %v1027 = vunpack.c.l.b16 %v460
      %v1028 = vunpack.c.l.b16 %v461
      %v1029 = vunpack.c.l.b16 %v462
      %v1030 = vunpack.c.l.b16 %v463
      %v1031 = vunpack.c.l.b16 %v464
      %v1032 = vunpack.c.l.b16 %v465
      %v1033 = vunpack.c.l.b16 %v466
      %v1034 = vunpack.c.l.b16 %v467
      %v1035 = vunpack.c.l.b16 %v468
      %v1036 = vunpack.c.l.b16 %v469
      %v1037 = vunpack.c.l.b16 %v470
      %v1038 = vunpack.c.l.b16 %v471
      %v1039 = vpack.c.b16 %v1024, %v1023
      %v1040 = vpack.c.b16 %v1026, %v1025
      %v1041 = vpack.c.b16 %v1028, %v1027
      %v1042 = vpack.c.b16 %v1030, %v1029
      %v1043 = vpack.c.b16 %v1032, %v1031
      %v1044 = vpack.c.b16 %v1034, %v1033
      %v1045 = vpack.c.b16 %v1036, %v1035
      %v1046 = vpack.c.b16 %v1038, %v1037
      %1055 = vmatpush.bf16.msra.mxu0 %v1046
      %1056 = vmatpush.bf16.msra.mxu0 %v1045
      %1057 = vmatpush.bf16.msra.mxu0 %v1044
      %1058 = vmatpush.bf16.msra.mxu0 %v1043
      %1059 = vmatpush.bf16.msra.mxu0 %v1042
      %1060 = vmatpush.bf16.msra.mxu0 %v1041
      %1061 = vmatpush.bf16.msra.mxu0 %v1040
      %1062 = vmatpush.bf16.msra.mxu0 %v1039
      %1063 = vmatmul.bf16.gmra.mxu0 %v582
      %v1064 = vpop.f32.mrf.mxu0
      %v1065 = vadd.f32 %v870, %v1064
      %v1066 = vpop.f32.mrf.mxu0
      %v1067 = vadd.f32 %v872, %v1066
      %1068 = vmatmul.bf16.gmra.mxu0 %v583
      %v1069 = vpop.f32.mrf.mxu0
      %v1070 = vadd.f32 %v875, %v1069
      %v1071 = vpop.f32.mrf.mxu0
      %v1072 = vadd.f32 %v877, %v1071
      %1073 = vmatmul.bf16.gmra.mxu0 %v584
      %v1074 = vpop.f32.mrf.mxu0
      %v1075 = vadd.f32 %v880, %v1074
      %v1076 = vpop.f32.mrf.mxu0
      %v1077 = vadd.f32 %v882, %v1076
      %1078 = vmatmul.bf16.gmra.mxu0 %v585
      %v1079 = vpop.f32.mrf.mxu0
      %v1080 = vadd.f32 %v885, %v1079
      %v1081 = vpop.f32.mrf.mxu0
      %v1082 = vadd.f32 %v887, %v1081
      %1083 = vmatmul.bf16.gmra.mxu0 %v586
      %v1084 = vpop.f32.mrf.mxu0
      %v1085 = vadd.f32 %v890, %v1084
      %v1086 = vpop.f32.mrf.mxu0
      %v1087 = vadd.f32 %v892, %v1086
      %1088 = vmatmul.bf16.gmra.mxu0 %v587
      %v1089 = vpop.f32.mrf.mxu0
      %v1090 = vadd.f32 %v895, %v1089
      %v1091 = vpop.f32.mrf.mxu0
      %v1092 = vadd.f32 %v897, %v1091
      %1093 = vmatmul.bf16.gmra.mxu0 %v588
      %v1094 = vpop.f32.mrf.mxu0
      %v1095 = vadd.f32 %v900, %v1094
      %v1096 = vpop.f32.mrf.mxu0
      %v1097 = vadd.f32 %v902, %v1096
      %1098 = vmatmul.bf16.gmra.mxu0 %v589
      %v1099 = vpop.f32.mrf.mxu0
      %v1100 = vadd.f32 %v905, %v1099
      %v1101 = vpop.f32.mrf.mxu0
      %v1102 = vadd.f32 %v907, %v1101
      %1103 = vmatmul.bf16.gmra.mxu0 %v590
      %v1104 = vpop.f32.mrf.mxu0
      %v1105 = vadd.f32 %v910, %v1104
      %v1106 = vpop.f32.mrf.mxu0
      %v1107 = vadd.f32 %v912, %v1106
      %1108 = vmatmul.bf16.gmra.mxu0 %v591
      %v1109 = vpop.f32.mrf.mxu0
      %v1110 = vadd.f32 %v915, %v1109
      %v1111 = vpop.f32.mrf.mxu0
      %v1112 = vadd.f32 %v917, %v1111
      %1113 = vmatmul.bf16.gmra.mxu0 %v592
      %v1114 = vpop.f32.mrf.mxu0
      %v1115 = vadd.f32 %v920, %v1114
      %v1116 = vpop.f32.mrf.mxu0
      %v1117 = vadd.f32 %v922, %v1116
      %1118 = vmatmul.bf16.gmra.mxu0 %v593
      %v1119 = vpop.f32.mrf.mxu0
      %v1120 = vadd.f32 %v925, %v1119
      %v1121 = vpop.f32.mrf.mxu0
      %v1122 = vadd.f32 %v927, %v1121
      %1123 = vmatmul.bf16.gmra.mxu0 %v594
      %v1124 = vpop.f32.mrf.mxu0
      %v1125 = vadd.f32 %v930, %v1124
      %v1126 = vpop.f32.mrf.mxu0
      %v1127 = vadd.f32 %v932, %v1126
      %1128 = vmatmul.bf16.gmra.mxu0 %v595
      %v1129 = vpop.f32.mrf.mxu0
      %v1130 = vadd.f32 %v935, %v1129
      %v1131 = vpop.f32.mrf.mxu0
      %v1132 = vadd.f32 %v937, %v1131
      %1133 = vmatmul.bf16.gmra.mxu0 %v596
      %v1134 = vpop.f32.mrf.mxu0
      %v1135 = vadd.f32 %v940, %v1134
      %v1136 = vpop.f32.mrf.mxu0
      %v1137 = vadd.f32 %v942, %v1136
      %1138 = vmatmul.bf16.gmra.mxu0 %v597
      %v1139 = vpop.f32.mrf.mxu0
      %v1140 = vadd.f32 %v945, %v1139
      %v1141 = vpop.f32.mrf.mxu0
      %v1142 = vadd.f32 %v947, %v1141
      %1143 = vmatmul.bf16.gmra.mxu0 %v598
      %v1144 = vpop.f32.mrf.mxu0
      %v1145 = vadd.f32 %v950, %v1144
      %v1146 = vpop.f32.mrf.mxu0
      %v1147 = vadd.f32 %v952, %v1146
      %1148 = vmatmul.bf16.gmra.mxu0 %v599
      %v1149 = vpop.f32.mrf.mxu0
      %v1150 = vadd.f32 %v955, %v1149
      %v1151 = vpop.f32.mrf.mxu0
      %v1152 = vadd.f32 %v957, %v1151
      %1153 = vmatmul.bf16.gmra.mxu0 %v600
      %v1154 = vpop.f32.mrf.mxu0
      %v1155 = vadd.f32 %v960, %v1154
      %v1156 = vpop.f32.mrf.mxu0
      %v1157 = vadd.f32 %v962, %v1156
      %1158 = vmatmul.bf16.gmra.mxu0 %v601
      %v1159 = vpop.f32.mrf.mxu0
      %v1160 = vadd.f32 %v965, %v1159
      %v1161 = vpop.f32.mrf.mxu0
      %v1162 = vadd.f32 %v967, %v1161
      %1163 = vmatmul.bf16.gmra.mxu0 %v602
      %v1164 = vpop.f32.mrf.mxu0
      %v1165 = vadd.f32 %v970, %v1164
      %v1166 = vpop.f32.mrf.mxu0
      %v1167 = vadd.f32 %v972, %v1166
      %1168 = vmatmul.bf16.gmra.mxu0 %v603
      %v1169 = vpop.f32.mrf.mxu0
      %v1170 = vadd.f32 %v975, %v1169
      %v1171 = vpop.f32.mrf.mxu0
      %v1172 = vadd.f32 %v977, %v1171
      %1173 = vmatmul.bf16.gmra.mxu0 %v983
      %v1174 = vpop.f32.mrf.mxu0
      %v1175 = vadd.f32 %v980, %v1174
      %v1176 = vpop.f32.mrf.mxu0
      %1177 = vdwg.mxu0
      %v1178 = vld [vmem:[%s384] sm:$0xe]
      %s1179 = scalar_lea.vmem %s1, 128
      %v1180 = vld [vmem:[%s1179] sm:$0xf]
      %v1181 = vld [vmem:[%s1179 + $0x4] sm:$0xf]
      %v1182 = vld [vmem:[%s1179 + $0x8] sm:$0xf]
      %v1183 = vld [vmem:[%s1179 + $0xc] sm:$0xf]
      %v1184 = vld [vmem:[%s1179 + $0x10] sm:$0xf]
      %v1185 = vld [vmem:[%s1179 + $0x14] sm:$0xf]
      %v1186 = vld [vmem:[%s1179 + $0x18] sm:$0xf]
      %v1187 = vld [vmem:[%s1179 + $0x1c] sm:$0xf]
      %v1188 = vld [vmem:[%s1179 + $0x20] sm:$0xf]
      %v1189 = vld [vmem:[%s1179 + $0x24] sm:$0xf]
      %v1190 = vld [vmem:[%s1179 + $0x28] sm:$0xf]
      %v1191 = vld [vmem:[%s1179 + $0x2c] sm:$0xf]
      %v1192 = vld [vmem:[%s1179 + $0x30] sm:$0xf]
      %v1193 = vld [vmem:[%s1179 + $0x34] sm:$0xf]
      %v1194 = vld [vmem:[%s1179 + $0x38] sm:$0xf]
      %v1195 = vld [vmem:[%s1179 + $0x3c] sm:$0xf]
      %v1197 = vunpack.c.l.b16 %v1178
      %v1198 = vpack.c.b16 %v537, %v1197
      %vm1199 = vcmask 1046528
      %v1200 = vrot.slane %v1198, 1
      %v1201 = vrot.slane %v583, 1
      %v1202 = vsel %vm1199, %v1200, %v1201
      %v1203 = vrot.slane %v584, 1
      %v1204 = vsel %vm1199, %v1201, %v1203
      %v1205 = vrot.slane %v585, 1
      %v1206 = vsel %vm1199, %v1203, %v1205
      %v1207 = vrot.slane %v586, 1
      %v1208 = vsel %vm1199, %v1205, %v1207
      %v1209 = vrot.slane %v587, 1
      %v1210 = vsel %vm1199, %v1207, %v1209
      %v1211 = vrot.slane %v588, 1
      %v1212 = vsel %vm1199, %v1209, %v1211
      %v1213 = vrot.slane %v589, 1
      %v1214 = vsel %vm1199, %v1211, %v1213
      %v1215 = vrot.slane %v590, 1
      %v1216 = vsel %vm1199, %v1213, %v1215
      %v1217 = vrot.slane %v591, 1
      %v1218 = vsel %vm1199, %v1215, %v1217
      %v1219 = vrot.slane %v592, 1
      %v1220 = vsel %vm1199, %v1217, %v1219
      %v1221 = vrot.slane %v593, 1
      %v1222 = vsel %vm1199, %v1219, %v1221
      %v1223 = vrot.slane %v594, 1
      %v1224 = vsel %vm1199, %v1221, %v1223
      %v1225 = vrot.slane %v595, 1
      %v1226 = vsel %vm1199, %v1223, %v1225
      %v1227 = vrot.slane %v596, 1
      %v1228 = vsel %vm1199, %v1225, %v1227
      %v1229 = vrot.slane %v597, 1
      %v1230 = vsel %vm1199, %v1227, %v1229
      %v1231 = vrot.slane %v598, 1
      %v1232 = vsel %vm1199, %v1229, %v1231
      %v1233 = vrot.slane %v599, 1
      %v1234 = vsel %vm1199, %v1231, %v1233
      %v1235 = vrot.slane %v600, 1
      %v1236 = vsel %vm1199, %v1233, %v1235
      %v1237 = vrot.slane %v601, 1
      %v1238 = vsel %vm1199, %v1235, %v1237
      %v1239 = vrot.slane %v602, 1
      %v1240 = vsel %vm1199, %v1237, %v1239
      %v1241 = vrot.slane %v603, 1
      %v1242 = vsel %vm1199, %v1239, %v1241
      %v1243 = vrot.slane %v604, 1
      %v1244 = vsel %vm1199, %v1241, %v1243
      %v1284 = vunpack.c.l.b16 %v1180
      %v1285 = vunpack.c.l.b16 %v1181
      %v1286 = vunpack.c.l.b16 %v1182
      %v1287 = vunpack.c.l.b16 %v1183
      %v1288 = vunpack.c.l.b16 %v1184
      %v1289 = vunpack.c.l.b16 %v1185
      %v1290 = vunpack.c.l.b16 %v1186
      %v1291 = vunpack.c.l.b16 %v1187
      %v1292 = vunpack.c.l.b16 %v1188
      %v1293 = vunpack.c.l.b16 %v1189
      %v1294 = vunpack.c.l.b16 %v1190
      %v1295 = vunpack.c.l.b16 %v1191
      %v1296 = vunpack.c.l.b16 %v1192
      %v1297 = vunpack.c.l.b16 %v1193
      %v1298 = vunpack.c.l.b16 %v1194
      %v1299 = vunpack.c.l.b16 %v1195
      %v1300 = vpack.c.b16 %v1285, %v1284
      %v1301 = vpack.c.b16 %v1287, %v1286
      %v1302 = vpack.c.b16 %v1289, %v1288
      %v1303 = vpack.c.b16 %v1291, %v1290
      %v1304 = vpack.c.b16 %v1293, %v1292
      %v1305 = vpack.c.b16 %v1295, %v1294
      %v1306 = vpack.c.b16 %v1297, %v1296
      %v1307 = vpack.c.b16 %v1299, %v1298
      %1316 = vmatpush.bf16.msra.mxu0 %v1307
      %1317 = vmatpush.bf16.msra.mxu0 %v1306
      %1318 = vmatpush.bf16.msra.mxu0 %v1305
      %1319 = vmatpush.bf16.msra.mxu0 %v1304
      %1320 = vmatpush.bf16.msra.mxu0 %v1303
      %1321 = vmatpush.bf16.msra.mxu0 %v1302
      %1322 = vmatpush.bf16.msra.mxu0 %v1301
      %1323 = vmatpush.bf16.msra.mxu0 %v1300
      %1324 = vmatmul.bf16.gmra.mxu0 %v1202
      %v1325 = vpop.f32.mrf.mxu0
      %v1326 = vadd.f32 0.0, %v1325
      %v1327 = vpop.f32.mrf.mxu0
      %v1328 = vadd.f32 0.0, %v1327
      %1329 = vmatmul.bf16.gmra.mxu0 %v1204
      %v1330 = vpop.f32.mrf.mxu0
      %v1331 = vadd.f32 0.0, %v1330
      %v1332 = vpop.f32.mrf.mxu0
      %v1333 = vadd.f32 0.0, %v1332
      %1334 = vmatmul.bf16.gmra.mxu0 %v1206
      %v1335 = vpop.f32.mrf.mxu0
      %v1336 = vadd.f32 0.0, %v1335
      %v1337 = vpop.f32.mrf.mxu0
      %v1338 = vadd.f32 0.0, %v1337
      %1339 = vmatmul.bf16.gmra.mxu0 %v1208
      %v1340 = vpop.f32.mrf.mxu0
      %v1341 = vadd.f32 0.0, %v1340
      %v1342 = vpop.f32.mrf.mxu0
      %v1343 = vadd.f32 0.0, %v1342
      %1344 = vmatmul.bf16.gmra.mxu0 %v1210
      %v1345 = vpop.f32.mrf.mxu0
      %v1346 = vadd.f32 0.0, %v1345
      %v1347 = vpop.f32.mrf.mxu0
      %v1348 = vadd.f32 0.0, %v1347
      %1349 = vmatmul.bf16.gmra.mxu0 %v1212
      %v1350 = vpop.f32.mrf.mxu0
      %v1351 = vadd.f32 0.0, %v1350
      %v1352 = vpop.f32.mrf.mxu0
      %v1353 = vadd.f32 0.0, %v1352
      %1354 = vmatmul.bf16.gmra.mxu0 %v1214
      %v1355 = vpop.f32.mrf.mxu0
      %v1356 = vadd.f32 0.0, %v1355
      %v1357 = vpop.f32.mrf.mxu0
      %v1358 = vadd.f32 0.0, %v1357
      %1359 = vmatmul.bf16.gmra.mxu0 %v1216
      %v1360 = vpop.f32.mrf.mxu0
      %v1361 = vadd.f32 0.0, %v1360
      %v1362 = vpop.f32.mrf.mxu0
      %v1363 = vadd.f32 0.0, %v1362
      %1364 = vmatmul.bf16.gmra.mxu0 %v1218
      %v1365 = vpop.f32.mrf.mxu0
      %v1366 = vadd.f32 0.0, %v1365
      %v1367 = vpop.f32.mrf.mxu0
      %v1368 = vadd.f32 0.0, %v1367
      %1369 = vmatmul.bf16.gmra.mxu0 %v1220
      %v1370 = vpop.f32.mrf.mxu0
      %v1371 = vadd.f32 0.0, %v1370
      %v1372 = vpop.f32.mrf.mxu0
      %v1373 = vadd.f32 0.0, %v1372
      %1374 = vmatmul.bf16.gmra.mxu0 %v1222
      %v1375 = vpop.f32.mrf.mxu0
      %v1376 = vadd.f32 0.0, %v1375
      %v1377 = vpop.f32.mrf.mxu0
      %v1378 = vadd.f32 0.0, %v1377
      %1379 = vmatmul.bf16.gmra.mxu0 %v1224
      %v1380 = vpop.f32.mrf.mxu0
      %v1381 = vadd.f32 0.0, %v1380
      %v1382 = vpop.f32.mrf.mxu0
      %v1383 = vadd.f32 0.0, %v1382
      %1384 = vmatmul.bf16.gmra.mxu0 %v1226
      %v1385 = vpop.f32.mrf.mxu0
      %v1386 = vadd.f32 0.0, %v1385
      %v1387 = vpop.f32.mrf.mxu0
      %v1388 = vadd.f32 0.0, %v1387
      %1389 = vmatmul.bf16.gmra.mxu0 %v1228
      %v1390 = vpop.f32.mrf.mxu0
      %v1391 = vadd.f32 0.0, %v1390
      %v1392 = vpop.f32.mrf.mxu0
      %v1393 = vadd.f32 0.0, %v1392
      %1394 = vmatmul.bf16.gmra.mxu0 %v1230
      %v1395 = vpop.f32.mrf.mxu0
      %v1396 = vadd.f32 0.0, %v1395
      %v1397 = vpop.f32.mrf.mxu0
      %v1398 = vadd.f32 0.0, %v1397
      %1399 = vmatmul.bf16.gmra.mxu0 %v1232
      %v1400 = vpop.f32.mrf.mxu0
      %v1401 = vadd.f32 0.0, %v1400
      %v1402 = vpop.f32.mrf.mxu0
      %v1403 = vadd.f32 0.0, %v1402
      %1404 = vmatmul.bf16.gmra.mxu0 %v1234
      %v1405 = vpop.f32.mrf.mxu0
      %v1406 = vadd.f32 0.0, %v1405
      %v1407 = vpop.f32.mrf.mxu0
      %v1408 = vadd.f32 0.0, %v1407
      %1409 = vmatmul.bf16.gmra.mxu0 %v1236
      %v1410 = vpop.f32.mrf.mxu0
      %v1411 = vadd.f32 0.0, %v1410
      %v1412 = vpop.f32.mrf.mxu0
      %v1413 = vadd.f32 0.0, %v1412
      %1414 = vmatmul.bf16.gmra.mxu0 %v1238
      %v1415 = vpop.f32.mrf.mxu0
      %v1416 = vadd.f32 0.0, %v1415
      %v1417 = vpop.f32.mrf.mxu0
      %v1418 = vadd.f32 0.0, %v1417
      %1419 = vmatmul.bf16.gmra.mxu0 %v1240
      %v1420 = vpop.f32.mrf.mxu0
      %v1421 = vadd.f32 0.0, %v1420
      %v1422 = vpop.f32.mrf.mxu0
      %v1423 = vadd.f32 0.0, %v1422
      %1424 = vmatmul.bf16.gmra.mxu0 %v1242
      %v1425 = vpop.f32.mrf.mxu0
      %v1426 = vadd.f32 0.0, %v1425
      %v1427 = vpop.f32.mrf.mxu0
      %v1428 = vadd.f32 0.0, %v1427
      %1429 = vmatmul.bf16.gmra.mxu0 %v1244
      %v1430 = vpop.f32.mrf.mxu0
      %v1431 = vadd.f32 0.0, %v1430
      %v1432 = vpop.f32.mrf.mxu0
      %v1433 = vadd.f32 0.0, %v1432
      %1434 = vmatmul.bf16.gmra.mxu0 %v1243
      %v1435 = vpop.f32.mrf.mxu0
      %v1436 = vadd.f32 0.0, %v1435
      %v1437 = vpop.f32.mrf.mxu0
      %1438 = vdwg.mxu0
      %v1439 = vadd.f32 %v1065, %v1326
      %v1440 = vadd.f32 %v1067, %v1328
      %v1441 = vadd.f32 %v1070, %v1331
      %v1442 = vadd.f32 %v1072, %v1333
      %v1443 = vadd.f32 %v1075, %v1336
      %v1444 = vadd.f32 %v1077, %v1338
      %v1445 = vadd.f32 %v1080, %v1341
      %v1446 = vadd.f32 %v1082, %v1343
      %v1447 = vadd.f32 %v1085, %v1346
      %v1448 = vadd.f32 %v1087, %v1348
      %v1449 = vadd.f32 %v1090, %v1351
      %v1450 = vadd.f32 %v1092, %v1353
      %v1451 = vadd.f32 %v1095, %v1356
      %v1452 = vadd.f32 %v1097, %v1358
      %v1453 = vadd.f32 %v1100, %v1361
      %v1454 = vadd.f32 %v1102, %v1363
      %v1455 = vadd.f32 %v1105, %v1366
      %v1456 = vadd.f32 %v1107, %v1368
      %v1457 = vadd.f32 %v1110, %v1371
      %v1458 = vadd.f32 %v1112, %v1373
      %v1459 = vadd.f32 %v1115, %v1376
      %v1460 = vadd.f32 %v1117, %v1378
      %v1461 = vadd.f32 %v1120, %v1381
      %v1462 = vadd.f32 %v1122, %v1383
      %v1463 = vadd.f32 %v1125, %v1386
      %v1464 = vadd.f32 %v1127, %v1388
      %v1465 = vadd.f32 %v1130, %v1391
      %v1466 = vadd.f32 %v1132, %v1393
      %v1467 = vadd.f32 %v1135, %v1396
      %v1468 = vadd.f32 %v1137, %v1398
      %v1469 = vadd.f32 %v1140, %v1401
      %v1470 = vadd.f32 %v1142, %v1403
      %v1471 = vadd.f32 %v1145, %v1406
      %v1472 = vadd.f32 %v1147, %v1408
      %v1473 = vadd.f32 %v1150, %v1411
      %v1474 = vadd.f32 %v1152, %v1413
      %v1475 = vadd.f32 %v1155, %v1416
      %v1476 = vadd.f32 %v1157, %v1418
      %v1477 = vadd.f32 %v1160, %v1421
      %v1478 = vadd.f32 %v1162, %v1423
      %v1479 = vadd.f32 %v1165, %v1426
      %v1480 = vadd.f32 %v1167, %v1428
      %v1481 = vadd.f32 %v1170, %v1431
      %v1482 = vadd.f32 %v1172, %v1433
      %v1483 = vadd.f32 %v1175, %v1436
      %v1484 = vld [vmem:[%s384 + $0x8] sm:$0xc]
      %v1485 = vld [vmem:[%s384 + $0xc] sm:$0xf]
      %v1486 = vld [vmem:[%s384 + $0x10] sm:$0xf]
      %v1487 = vld [vmem:[%s384 + $0x14] sm:$0xf]
      %v1488 = vld [vmem:[%s384 + $0x18] sm:$0xf]
      %v1489 = vld [vmem:[%s384 + $0x1c] sm:$0xf]
      %v1490 = vld [vmem:[%s384 + $0x20] sm:$0xf]
      %v1491 = vld [vmem:[%s384 + $0x24] sm:$0xf]
      %v1492 = vld [vmem:[%s384 + $0x28] sm:$0xf]
      %v1493 = vld [vmem:[%s384 + $0x2c] sm:$0xf]
      %v1494 = vld [vmem:[%s384 + $0x30] sm:$0xf]
      %v1495 = vld [vmem:[%s384 + $0x34] sm:$0xf]
      %v1496 = vld [vmem:[%s384 + $0x38] sm:$0xf]
      %v1497 = vld [vmem:[%s384 + $0x3c] sm:$0xf]
      %v1498 = vld [vmem:[%s384 + $0x40] sm:$0xf]
      %v1499 = vld [vmem:[%s384 + $0x44] sm:$0xf]
      %v1500 = vld [vmem:[%s384 + $0x48] sm:$0xf]
      %v1501 = vld [vmem:[%s384 + $0x4c] sm:$0xf]
      %v1502 = vld [vmem:[%s384 + $0x50] sm:$0xf]
      %v1503 = vld [vmem:[%s384 + $0x54] sm:$0xf]
      %v1504 = vld [vmem:[%s384 + $0x58] sm:$0xf]
      %v1505 = vld [vmem:[%s384 + $0x5c] sm:$0xf]
      %v1506 = vld [vmem:[%s384 + $0x60] sm:$0xf]
      %v1507 = vld [vmem:[%s384 + $0x64] sm:$0xf]
      %v1508 = vld [vmem:[%s384 + $0x68] sm:$0xf]
      %v1509 = vld [vmem:[%s384 + $0x6c] sm:$0xf]
      %v1510 = vld [vmem:[%s384 + $0x70] sm:$0xf]
      %v1511 = vld [vmem:[%s384 + $0x74] sm:$0xf]
      %v1512 = vld [vmem:[%s384 + $0x78] sm:$0xf]
      %v1513 = vld [vmem:[%s384 + $0x7c] sm:$0xf]
      %v1514 = vld [vmem:[%s384 + $0x80] sm:$0xf]
      %v1515 = vld [vmem:[%s384 + $0x84] sm:$0xf]
      %v1516 = vld [vmem:[%s384 + $0x88] sm:$0xf]
      %v1517 = vld [vmem:[%s384 + $0x8c] sm:$0xf]
      %v1518 = vld [vmem:[%s384 + $0x90] sm:$0xf]
      %v1519 = vld [vmem:[%s384 + $0x94] sm:$0xf]
      %v1520 = vld [vmem:[%s384 + $0x98] sm:$0xf]
      %v1521 = vld [vmem:[%s384 + $0x9c] sm:$0xf]
      %v1522 = vld [vmem:[%s384 + $0xa0] sm:$0xf]
      %v1523 = vld [vmem:[%s384 + $0xa4] sm:$0xf]
      %v1524 = vld [vmem:[%s384 + $0xa8] sm:$0xf]
      %v1525 = vld [vmem:[%s384 + $0xac] sm:$0xf]
      %v1526 = vld [vmem:[%s384 + $0xb0] sm:$0xf]
      %v1527 = vld [vmem:[%s384 + $0xb4] sm:$0xf]
      %v1528 = vld [vmem:[%s384 + $0xb8] sm:$0xf]
      %v1529 = vld [vmem:[%s384 + $0xbc] sm:$0x3]
      %s1530 = scalar_lea.vmem %s1, 192
      %v1531 = vld [vmem:[%s1530] sm:$0xf]
      %v1532 = vld [vmem:[%s1530 + $0x4] sm:$0xf]
      %v1533 = vld [vmem:[%s1530 + $0x8] sm:$0xf]
      %v1534 = vld [vmem:[%s1530 + $0xc] sm:$0xf]
      %v1535 = vld [vmem:[%s1530 + $0x10] sm:$0xf]
      %v1536 = vld [vmem:[%s1530 + $0x14] sm:$0xf]
      %v1537 = vld [vmem:[%s1530 + $0x18] sm:$0xf]
      %v1538 = vld [vmem:[%s1530 + $0x1c] sm:$0xf]
      %v1539 = vld [vmem:[%s1530 + $0x20] sm:$0xf]
      %v1540 = vld [vmem:[%s1530 + $0x24] sm:$0xf]
      %v1541 = vld [vmem:[%s1530 + $0x28] sm:$0xf]
      %v1542 = vld [vmem:[%s1530 + $0x2c] sm:$0xf]
      %v1543 = vld [vmem:[%s1530 + $0x30] sm:$0xf]
      %v1544 = vld [vmem:[%s1530 + $0x34] sm:$0xf]
      %v1545 = vld [vmem:[%s1530 + $0x38] sm:$0xf]
      %v1546 = vld [vmem:[%s1530 + $0x3c] sm:$0xf]
      %v1593 = vunpack.c.l.b16 %v1484
      %v1594 = vunpack.c.l.b16 %v1485
      %v1595 = vunpack.c.l.b16 %v1486
      %v1596 = vunpack.c.l.b16 %v1487
      %v1597 = vunpack.c.l.b16 %v1488
      %v1598 = vunpack.c.l.b16 %v1489
      %v1599 = vunpack.c.l.b16 %v1490
      %v1600 = vunpack.c.l.b16 %v1491
      %v1601 = vunpack.c.l.b16 %v1492
      %v1602 = vunpack.c.l.b16 %v1493
      %v1603 = vunpack.c.l.b16 %v1494
      %v1604 = vunpack.c.l.b16 %v1495
      %v1605 = vunpack.c.l.b16 %v1496
      %v1606 = vunpack.c.l.b16 %v1497
      %v1607 = vunpack.c.l.b16 %v1498
      %v1608 = vunpack.c.l.b16 %v1499
      %v1609 = vunpack.c.l.b16 %v1500
      %v1610 = vunpack.c.l.b16 %v1501
      %v1611 = vunpack.c.l.b16 %v1502
      %v1612 = vunpack.c.l.b16 %v1503
      %v1613 = vunpack.c.l.b16 %v1504
      %v1614 = vunpack.c.l.b16 %v1505
      %v1615 = vunpack.c.l.b16 %v1506
      %v1616 = vunpack.c.l.b16 %v1507
      %v1617 = vunpack.c.l.b16 %v1508
      %v1618 = vunpack.c.l.b16 %v1509
      %v1619 = vunpack.c.l.b16 %v1510
      %v1620 = vunpack.c.l.b16 %v1511
      %v1621 = vunpack.c.l.b16 %v1512
      %v1622 = vunpack.c.l.b16 %v1513
      %v1623 = vunpack.c.l.b16 %v1514
      %v1624 = vunpack.c.l.b16 %v1515
      %v1625 = vunpack.c.l.b16 %v1516
      %v1626 = vunpack.c.l.b16 %v1517
      %v1627 = vunpack.c.l.b16 %v1518
      %v1628 = vunpack.c.l.b16 %v1519
      %v1629 = vunpack.c.l.b16 %v1520
      %v1630 = vunpack.c.l.b16 %v1521
      %v1631 = vunpack.c.l.b16 %v1522
      %v1632 = vunpack.c.l.b16 %v1523
      %v1633 = vunpack.c.l.b16 %v1524
      %v1634 = vunpack.c.l.b16 %v1525
      %v1635 = vunpack.c.l.b16 %v1526
      %v1636 = vunpack.c.l.b16 %v1527
      %v1637 = vunpack.c.l.b16 %v1528
      %v1638 = vunpack.c.l.b16 %v1529
      %v1639 = vpack.c.b16 %v1594, %v1593
      %v1640 = vpack.c.b16 %v1596, %v1595
      %v1641 = vpack.c.b16 %v1598, %v1597
      %v1642 = vpack.c.b16 %v1600, %v1599
      %v1643 = vpack.c.b16 %v1602, %v1601
      %v1644 = vpack.c.b16 %v1604, %v1603
      %v1645 = vpack.c.b16 %v1606, %v1605
      %v1646 = vpack.c.b16 %v1608, %v1607
      %v1647 = vpack.c.b16 %v1610, %v1609
      %v1648 = vpack.c.b16 %v1612, %v1611
      %v1649 = vpack.c.b16 %v1614, %v1613
      %v1650 = vpack.c.b16 %v1616, %v1615
      %v1651 = vpack.c.b16 %v1618, %v1617
      %v1652 = vpack.c.b16 %v1620, %v1619
      %v1653 = vpack.c.b16 %v1622, %v1621
      %v1654 = vpack.c.b16 %v1624, %v1623
      %v1655 = vpack.c.b16 %v1626, %v1625
      %v1656 = vpack.c.b16 %v1628, %v1627
      %v1657 = vpack.c.b16 %v1630, %v1629
      %v1658 = vpack.c.b16 %v1632, %v1631
      %v1659 = vpack.c.b16 %v1634, %v1633
      %v1660 = vpack.c.b16 %v1636, %v1635
      %v1661 = vpack.c.b16 %v1638, %v1637
      %vm1662 = vcmask 1045504
      %v1663 = vrot.slane %v1639, 2
      %v1664 = vrot.slane %v1640, 2
      %v1665 = vsel %vm1662, %v1663, %v1664
      %v1666 = vrot.slane %v1641, 2
      %v1667 = vsel %vm1662, %v1664, %v1666
      %v1668 = vrot.slane %v1642, 2
      %v1669 = vsel %vm1662, %v1666, %v1668
      %v1670 = vrot.slane %v1643, 2
      %v1671 = vsel %vm1662, %v1668, %v1670
      %v1672 = vrot.slane %v1644, 2
      %v1673 = vsel %vm1662, %v1670, %v1672
      %v1674 = vrot.slane %v1645, 2
      %v1675 = vsel %vm1662, %v1672, %v1674
      %v1676 = vrot.slane %v1646, 2
      %v1677 = vsel %vm1662, %v1674, %v1676
      %v1678 = vrot.slane %v1647, 2
      %v1679 = vsel %vm1662, %v1676, %v1678
      %v1680 = vrot.slane %v1648, 2
      %v1681 = vsel %vm1662, %v1678, %v1680
      %v1682 = vrot.slane %v1649, 2
      %v1683 = vsel %vm1662, %v1680, %v1682
      %v1684 = vrot.slane %v1650, 2
      %v1685 = vsel %vm1662, %v1682, %v1684
      %v1686 = vrot.slane %v1651, 2
      %v1687 = vsel %vm1662, %v1684, %v1686
      %v1688 = vrot.slane %v1652, 2
      %v1689 = vsel %vm1662, %v1686, %v1688
      %v1690 = vrot.slane %v1653, 2
      %v1691 = vsel %vm1662, %v1688, %v1690
      %v1692 = vrot.slane %v1654, 2
      %v1693 = vsel %vm1662, %v1690, %v1692
      %v1694 = vrot.slane %v1655, 2
      %v1695 = vsel %vm1662, %v1692, %v1694
      %v1696 = vrot.slane %v1656, 2
      %v1697 = vsel %vm1662, %v1694, %v1696
      %v1698 = vrot.slane %v1657, 2
      %v1699 = vsel %vm1662, %v1696, %v1698
      %v1700 = vrot.slane %v1658, 2
      %v1701 = vsel %vm1662, %v1698, %v1700
      %v1702 = vrot.slane %v1659, 2
      %v1703 = vsel %vm1662, %v1700, %v1702
      %v1704 = vrot.slane %v1660, 2
      %v1705 = vsel %vm1662, %v1702, %v1704
      %v1706 = vrot.slane %v1661, 2
      %v1707 = vsel %vm1662, %v1704, %v1706
      %v1747 = vunpack.c.l.b16 %v1531
      %v1748 = vunpack.c.l.b16 %v1532
      %v1749 = vunpack.c.l.b16 %v1533
      %v1750 = vunpack.c.l.b16 %v1534
      %v1751 = vunpack.c.l.b16 %v1535
      %v1752 = vunpack.c.l.b16 %v1536
      %v1753 = vunpack.c.l.b16 %v1537
      %v1754 = vunpack.c.l.b16 %v1538
      %v1755 = vunpack.c.l.b16 %v1539
      %v1756 = vunpack.c.l.b16 %v1540
      %v1757 = vunpack.c.l.b16 %v1541
      %v1758 = vunpack.c.l.b16 %v1542
      %v1759 = vunpack.c.l.b16 %v1543
      %v1760 = vunpack.c.l.b16 %v1544
      %v1761 = vunpack.c.l.b16 %v1545
      %v1762 = vunpack.c.l.b16 %v1546
      %v1763 = vpack.c.b16 %v1748, %v1747
      %v1764 = vpack.c.b16 %v1750, %v1749
      %v1765 = vpack.c.b16 %v1752, %v1751
      %v1766 = vpack.c.b16 %v1754, %v1753
      %v1767 = vpack.c.b16 %v1756, %v1755
      %v1768 = vpack.c.b16 %v1758, %v1757
      %v1769 = vpack.c.b16 %v1760, %v1759
      %v1770 = vpack.c.b16 %v1762, %v1761
      %1779 = vmatpush.bf16.msra.mxu0 %v1770
      %1780 = vmatpush.bf16.msra.mxu0 %v1769
      %1781 = vmatpush.bf16.msra.mxu0 %v1768
      %1782 = vmatpush.bf16.msra.mxu0 %v1767
      %1783 = vmatpush.bf16.msra.mxu0 %v1766
      %1784 = vmatpush.bf16.msra.mxu0 %v1765
      %1785 = vmatpush.bf16.msra.mxu0 %v1764
      %1786 = vmatpush.bf16.msra.mxu0 %v1763
      %1787 = vmatmul.bf16.gmra.mxu0 %v1665
      %v1788 = vpop.f32.mrf.mxu0
      %v1789 = vadd.f32 0.0, %v1788
      %v1790 = vpop.f32.mrf.mxu0
      %v1791 = vadd.f32 0.0, %v1790
      %1792 = vmatmul.bf16.gmra.mxu0 %v1667
      %v1793 = vpop.f32.mrf.mxu0
      %v1794 = vadd.f32 0.0, %v1793
      %v1795 = vpop.f32.mrf.mxu0
      %v1796 = vadd.f32 0.0, %v1795
      %1797 = vmatmul.bf16.gmra.mxu0 %v1669
      %v1798 = vpop.f32.mrf.mxu0
      %v1799 = vadd.f32 0.0, %v1798
      %v1800 = vpop.f32.mrf.mxu0
      %v1801 = vadd.f32 0.0, %v1800
      %1802 = vmatmul.bf16.gmra.mxu0 %v1671
      %v1803 = vpop.f32.mrf.mxu0
      %v1804 = vadd.f32 0.0, %v1803
      %v1805 = vpop.f32.mrf.mxu0
      %v1806 = vadd.f32 0.0, %v1805
      %1807 = vmatmul.bf16.gmra.mxu0 %v1673
      %v1808 = vpop.f32.mrf.mxu0
      %v1809 = vadd.f32 0.0, %v1808
      %v1810 = vpop.f32.mrf.mxu0
      %v1811 = vadd.f32 0.0, %v1810
      %1812 = vmatmul.bf16.gmra.mxu0 %v1675
      %v1813 = vpop.f32.mrf.mxu0
      %v1814 = vadd.f32 0.0, %v1813
      %v1815 = vpop.f32.mrf.mxu0
      %v1816 = vadd.f32 0.0, %v1815
      %1817 = vmatmul.bf16.gmra.mxu0 %v1677
      %v1818 = vpop.f32.mrf.mxu0
      %v1819 = vadd.f32 0.0, %v1818
      %v1820 = vpop.f32.mrf.mxu0
      %v1821 = vadd.f32 0.0, %v1820
      %1822 = vmatmul.bf16.gmra.mxu0 %v1679
      %v1823 = vpop.f32.mrf.mxu0
      %v1824 = vadd.f32 0.0, %v1823
      %v1825 = vpop.f32.mrf.mxu0
      %v1826 = vadd.f32 0.0, %v1825
      %1827 = vmatmul.bf16.gmra.mxu0 %v1681
      %v1828 = vpop.f32.mrf.mxu0
      %v1829 = vadd.f32 0.0, %v1828
      %v1830 = vpop.f32.mrf.mxu0
      %v1831 = vadd.f32 0.0, %v1830
      %1832 = vmatmul.bf16.gmra.mxu0 %v1683
      %v1833 = vpop.f32.mrf.mxu0
      %v1834 = vadd.f32 0.0, %v1833
      %v1835 = vpop.f32.mrf.mxu0
      %v1836 = vadd.f32 0.0, %v1835
      %1837 = vmatmul.bf16.gmra.mxu0 %v1685
      %v1838 = vpop.f32.mrf.mxu0
      %v1839 = vadd.f32 0.0, %v1838
      %v1840 = vpop.f32.mrf.mxu0
      %v1841 = vadd.f32 0.0, %v1840
      %1842 = vmatmul.bf16.gmra.mxu0 %v1687
      %v1843 = vpop.f32.mrf.mxu0
      %v1844 = vadd.f32 0.0, %v1843
      %v1845 = vpop.f32.mrf.mxu0
      %v1846 = vadd.f32 0.0, %v1845
      %1847 = vmatmul.bf16.gmra.mxu0 %v1689
      %v1848 = vpop.f32.mrf.mxu0
      %v1849 = vadd.f32 0.0, %v1848
      %v1850 = vpop.f32.mrf.mxu0
      %v1851 = vadd.f32 0.0, %v1850
      %1852 = vmatmul.bf16.gmra.mxu0 %v1691
      %v1853 = vpop.f32.mrf.mxu0
      %v1854 = vadd.f32 0.0, %v1853
      %v1855 = vpop.f32.mrf.mxu0
      %v1856 = vadd.f32 0.0, %v1855
      %1857 = vmatmul.bf16.gmra.mxu0 %v1693
      %v1858 = vpop.f32.mrf.mxu0
      %v1859 = vadd.f32 0.0, %v1858
      %v1860 = vpop.f32.mrf.mxu0
      %v1861 = vadd.f32 0.0, %v1860
      %1862 = vmatmul.bf16.gmra.mxu0 %v1695
      %v1863 = vpop.f32.mrf.mxu0
      %v1864 = vadd.f32 0.0, %v1863
      %v1865 = vpop.f32.mrf.mxu0
      %v1866 = vadd.f32 0.0, %v1865
      %1867 = vmatmul.bf16.gmra.mxu0 %v1697
      %v1868 = vpop.f32.mrf.mxu0
      %v1869 = vadd.f32 0.0, %v1868
      %v1870 = vpop.f32.mrf.mxu0
      %v1871 = vadd.f32 0.0, %v1870
      %1872 = vmatmul.bf16.gmra.mxu0 %v1699
      %v1873 = vpop.f32.mrf.mxu0
      %v1874 = vadd.f32 0.0, %v1873
      %v1875 = vpop.f32.mrf.mxu0
      %v1876 = vadd.f32 0.0, %v1875
      %1877 = vmatmul.bf16.gmra.mxu0 %v1701
      %v1878 = vpop.f32.mrf.mxu0
      %v1879 = vadd.f32 0.0, %v1878
      %v1880 = vpop.f32.mrf.mxu0
      %v1881 = vadd.f32 0.0, %v1880
      %1882 = vmatmul.bf16.gmra.mxu0 %v1703
      %v1883 = vpop.f32.mrf.mxu0
      %v1884 = vadd.f32 0.0, %v1883
      %v1885 = vpop.f32.mrf.mxu0
      %v1886 = vadd.f32 0.0, %v1885
      %1887 = vmatmul.bf16.gmra.mxu0 %v1705
      %v1888 = vpop.f32.mrf.mxu0
      %v1889 = vadd.f32 0.0, %v1888
      %v1890 = vpop.f32.mrf.mxu0
      %v1891 = vadd.f32 0.0, %v1890
      %1892 = vmatmul.bf16.gmra.mxu0 %v1707
      %v1893 = vpop.f32.mrf.mxu0
      %v1894 = vadd.f32 0.0, %v1893
      %v1895 = vpop.f32.mrf.mxu0
      %v1896 = vadd.f32 0.0, %v1895
      %1897 = vmatmul.bf16.gmra.mxu0 %v1706
      %v1898 = vpop.f32.mrf.mxu0
      %v1899 = vadd.f32 0.0, %v1898
      %v1900 = vpop.f32.mrf.mxu0
      %1901 = vdwg.mxu0
      %v1902 = vadd.f32 %v1439, %v1789
      %v1903 = vadd.f32 %v1440, %v1791
      %v1904 = vadd.f32 %v1441, %v1794
      %v1905 = vadd.f32 %v1442, %v1796
      %v1906 = vadd.f32 %v1443, %v1799
      %v1907 = vadd.f32 %v1444, %v1801
      %v1908 = vadd.f32 %v1445, %v1804
      %v1909 = vadd.f32 %v1446, %v1806
      %v1910 = vadd.f32 %v1447, %v1809
      %v1911 = vadd.f32 %v1448, %v1811
      %v1912 = vadd.f32 %v1449, %v1814
      %v1913 = vadd.f32 %v1450, %v1816
      %v1914 = vadd.f32 %v1451, %v1819
      %v1915 = vadd.f32 %v1452, %v1821
      %v1916 = vadd.f32 %v1453, %v1824
      %v1917 = vadd.f32 %v1454, %v1826
      %v1918 = vadd.f32 %v1455, %v1829
      %v1919 = vadd.f32 %v1456, %v1831
      %v1920 = vadd.f32 %v1457, %v1834
      %v1921 = vadd.f32 %v1458, %v1836
      %v1922 = vadd.f32 %v1459, %v1839
      %v1923 = vadd.f32 %v1460, %v1841
      %v1924 = vadd.f32 %v1461, %v1844
      %v1925 = vadd.f32 %v1462, %v1846
      %v1926 = vadd.f32 %v1463, %v1849
      %v1927 = vadd.f32 %v1464, %v1851
      %v1928 = vadd.f32 %v1465, %v1854
      %v1929 = vadd.f32 %v1466, %v1856
      %v1930 = vadd.f32 %v1467, %v1859
      %v1931 = vadd.f32 %v1468, %v1861
      %v1932 = vadd.f32 %v1469, %v1864
      %v1933 = vadd.f32 %v1470, %v1866
      %v1934 = vadd.f32 %v1471, %v1869
      %v1935 = vadd.f32 %v1472, %v1871
      %v1936 = vadd.f32 %v1473, %v1874
      %v1937 = vadd.f32 %v1474, %v1876
      %v1938 = vadd.f32 %v1475, %v1879
      %v1939 = vadd.f32 %v1476, %v1881
      %v1940 = vadd.f32 %v1477, %v1884
      %v1941 = vadd.f32 %v1478, %v1886
      %v1942 = vadd.f32 %v1479, %v1889
      %v1943 = vadd.f32 %v1480, %v1891
      %v1944 = vadd.f32 %v1481, %v1894
      %v1945 = vadd.f32 %v1482, %v1896
      %v1946 = vadd.f32 %v1483, %v1899
      %v1947 = vld [vmem:[%s384 + $0xbc] sm:$0x7]
      %s1948 = scalar_lea.vmem %s1, 256
      %v1949 = vld [vmem:[%s1948] sm:$0xf]
      %v1950 = vld [vmem:[%s1948 + $0x4] sm:$0xf]
      %v1951 = vld [vmem:[%s1948 + $0x8] sm:$0xf]
      %v1952 = vld [vmem:[%s1948 + $0xc] sm:$0xf]
      %v1953 = vld [vmem:[%s1948 + $0x10] sm:$0xf]
      %v1954 = vld [vmem:[%s1948 + $0x14] sm:$0xf]
      %v1955 = vld [vmem:[%s1948 + $0x18] sm:$0xf]
      %v1956 = vld [vmem:[%s1948 + $0x1c] sm:$0xf]
      %v1957 = vld [vmem:[%s1948 + $0x20] sm:$0xf]
      %v1958 = vld [vmem:[%s1948 + $0x24] sm:$0xf]
      %v1959 = vld [vmem:[%s1948 + $0x28] sm:$0xf]
      %v1960 = vld [vmem:[%s1948 + $0x2c] sm:$0xf]
      %v1961 = vld [vmem:[%s1948 + $0x30] sm:$0xf]
      %v1962 = vld [vmem:[%s1948 + $0x34] sm:$0xf]
      %v1963 = vld [vmem:[%s1948 + $0x38] sm:$0xf]
      %v1964 = vld [vmem:[%s1948 + $0x3c] sm:$0xf]
      %v1966 = vunpack.c.l.b16 %v1947
      %v1967 = vpack.c.b16 %v1966, %v1637
      %vm1968 = vsmask.f32 5376
      %v1970 = vshrl.u32 %v1639, 16
      %v1972 = vrot.slane %v1970, 2
      %v1973 = vshll.u32 %v1639, 16
      %v1975 = vrot.slane %v1973, 3
      %v1976 = vor.u32 %v1972, %v1975
      %v1978 = vshrl.u32 %v1640, 16
      %v1980 = vrot.slane %v1978, 2
      %v1981 = vshll.u32 %v1640, 16
      %v1983 = vrot.slane %v1981, 3
      %v1984 = vor.u32 %v1980, %v1983
      %v1985 = vsel %vm1968, %v1976, %v1984
      %v1987 = vshrl.u32 %v1641, 16
      %v1989 = vrot.slane %v1987, 2
      %v1990 = vshll.u32 %v1641, 16
      %v1992 = vrot.slane %v1990, 3
      %v1993 = vor.u32 %v1989, %v1992
      %v1994 = vsel %vm1968, %v1984, %v1993
      %v1996 = vshrl.u32 %v1642, 16
      %v1998 = vrot.slane %v1996, 2
      %v1999 = vshll.u32 %v1642, 16
      %v2001 = vrot.slane %v1999, 3
      %v2002 = vor.u32 %v1998, %v2001
      %v2003 = vsel %vm1968, %v1993, %v2002
      %v2005 = vshrl.u32 %v1643, 16
      %v2007 = vrot.slane %v2005, 2
      %v2008 = vshll.u32 %v1643, 16
      %v2010 = vrot.slane %v2008, 3
      %v2011 = vor.u32 %v2007, %v2010
      %v2012 = vsel %vm1968, %v2002, %v2011
      %v2014 = vshrl.u32 %v1644, 16
      %v2016 = vrot.slane %v2014, 2
      %v2017 = vshll.u32 %v1644, 16
      %v2019 = vrot.slane %v2017, 3
      %v2020 = vor.u32 %v2016, %v2019
      %v2021 = vsel %vm1968, %v2011, %v2020
      %v2023 = vshrl.u32 %v1645, 16
      %v2025 = vrot.slane %v2023, 2
      %v2026 = vshll.u32 %v1645, 16
      %v2028 = vrot.slane %v2026, 3
      %v2029 = vor.u32 %v2025, %v2028
      %v2030 = vsel %vm1968, %v2020, %v2029
      %v2032 = vshrl.u32 %v1646, 16
      %v2034 = vrot.slane %v2032, 2
      %v2035 = vshll.u32 %v1646, 16
      %v2037 = vrot.slane %v2035, 3
      %v2038 = vor.u32 %v2034, %v2037
      %v2039 = vsel %vm1968, %v2029, %v2038
      %v2041 = vshrl.u32 %v1647, 16
      %v2043 = vrot.slane %v2041, 2
      %v2044 = vshll.u32 %v1647, 16
      %v2046 = vrot.slane %v2044, 3
      %v2047 = vor.u32 %v2043, %v2046
      %v2048 = vsel %vm1968, %v2038, %v2047
      %v2050 = vshrl.u32 %v1648, 16
      %v2052 = vrot.slane %v2050, 2
      %v2053 = vshll.u32 %v1648, 16
      %v2055 = vrot.slane %v2053, 3
      %v2056 = vor.u32 %v2052, %v2055
      %v2057 = vsel %vm1968, %v2047, %v2056
      %v2059 = vshrl.u32 %v1649, 16
      %v2061 = vrot.slane %v2059, 2
      %v2062 = vshll.u32 %v1649, 16
      %v2064 = vrot.slane %v2062, 3
      %v2065 = vor.u32 %v2061, %v2064
      %v2066 = vsel %vm1968, %v2056, %v2065
      %v2068 = vshrl.u32 %v1650, 16
      %v2070 = vrot.slane %v2068, 2
      %v2071 = vshll.u32 %v1650, 16
      %v2073 = vrot.slane %v2071, 3
      %v2074 = vor.u32 %v2070, %v2073
      %v2075 = vsel %vm1968, %v2065, %v2074
      %v2077 = vshrl.u32 %v1651, 16
      %v2079 = vrot.slane %v2077, 2
      %v2080 = vshll.u32 %v1651, 16
      %v2082 = vrot.slane %v2080, 3
      %v2083 = vor.u32 %v2079, %v2082
      %v2084 = vsel %vm1968, %v2074, %v2083
      %v2086 = vshrl.u32 %v1652, 16
      %v2088 = vrot.slane %v2086, 2
      %v2089 = vshll.u32 %v1652, 16
      %v2091 = vrot.slane %v2089, 3
      %v2092 = vor.u32 %v2088, %v2091
      %v2093 = vsel %vm1968, %v2083, %v2092
      %v2095 = vshrl.u32 %v1653, 16
      %v2097 = vrot.slane %v2095, 2
      %v2098 = vshll.u32 %v1653, 16
      %v2100 = vrot.slane %v2098, 3
      %v2101 = vor.u32 %v2097, %v2100
      %v2102 = vsel %vm1968, %v2092, %v2101
      %v2104 = vshrl.u32 %v1654, 16
      %v2106 = vrot.slane %v2104, 2
      %v2107 = vshll.u32 %v1654, 16
      %v2109 = vrot.slane %v2107, 3
      %v2110 = vor.u32 %v2106, %v2109
      %v2111 = vsel %vm1968, %v2101, %v2110
      %v2113 = vshrl.u32 %v1655, 16
      %v2115 = vrot.slane %v2113, 2
      %v2116 = vshll.u32 %v1655, 16
      %v2118 = vrot.slane %v2116, 3
      %v2119 = vor.u32 %v2115, %v2118
      %v2120 = vsel %vm1968, %v2110, %v2119
      %v2122 = vshrl.u32 %v1656, 16
      %v2124 = vrot.slane %v2122, 2
      %v2125 = vshll.u32 %v1656, 16
      %v2127 = vrot.slane %v2125, 3
      %v2128 = vor.u32 %v2124, %v2127
      %v2129 = vsel %vm1968, %v2119, %v2128
      %v2131 = vshrl.u32 %v1657, 16
      %v2133 = vrot.slane %v2131, 2
      %v2134 = vshll.u32 %v1657, 16
      %v2136 = vrot.slane %v2134, 3
      %v2137 = vor.u32 %v2133, %v2136
      %v2138 = vsel %vm1968, %v2128, %v2137
      %v2140 = vshrl.u32 %v1658, 16
      %v2142 = vrot.slane %v2140, 2
      %v2143 = vshll.u32 %v1658, 16
      %v2145 = vrot.slane %v2143, 3
      %v2146 = vor.u32 %v2142, %v2145
      %v2147 = vsel %vm1968, %v2137, %v2146
      %v2149 = vshrl.u32 %v1659, 16
      %v2151 = vrot.slane %v2149, 2
      %v2152 = vshll.u32 %v1659, 16
      %v2154 = vrot.slane %v2152, 3
      %v2155 = vor.u32 %v2151, %v2154
      %v2156 = vsel %vm1968, %v2146, %v2155
      %v2158 = vshrl.u32 %v1660, 16
      %v2160 = vrot.slane %v2158, 2
      %v2161 = vshll.u32 %v1660, 16
      %v2163 = vrot.slane %v2161, 3
      %v2164 = vor.u32 %v2160, %v2163
      %v2165 = vsel %vm1968, %v2155, %v2164
      %v2167 = vshrl.u32 %v1967, 16
      %v2169 = vrot.slane %v2167, 2
      %v2170 = vshll.u32 %v1967, 16
      %v2172 = vrot.slane %v2170, 3
      %v2173 = vor.u32 %v2169, %v2172
      %v2174 = vsel %vm1968, %v2164, %v2173
      %v2214 = vunpack.c.l.b16 %v1949
      %v2215 = vunpack.c.l.b16 %v1950
      %v2216 = vunpack.c.l.b16 %v1951
      %v2217 = vunpack.c.l.b16 %v1952
      %v2218 = vunpack.c.l.b16 %v1953
      %v2219 = vunpack.c.l.b16 %v1954
      %v2220 = vunpack.c.l.b16 %v1955
      %v2221 = vunpack.c.l.b16 %v1956
      %v2222 = vunpack.c.l.b16 %v1957
      %v2223 = vunpack.c.l.b16 %v1958
      %v2224 = vunpack.c.l.b16 %v1959
      %v2225 = vunpack.c.l.b16 %v1960
      %v2226 = vunpack.c.l.b16 %v1961
      %v2227 = vunpack.c.l.b16 %v1962
      %v2228 = vunpack.c.l.b16 %v1963
      %v2229 = vunpack.c.l.b16 %v1964
      %v2230 = vpack.c.b16 %v2215, %v2214
      %v2231 = vpack.c.b16 %v2217, %v2216
      %v2232 = vpack.c.b16 %v2219, %v2218
      %v2233 = vpack.c.b16 %v2221, %v2220
      %v2234 = vpack.c.b16 %v2223, %v2222
      %v2235 = vpack.c.b16 %v2225, %v2224
      %v2236 = vpack.c.b16 %v2227, %v2226
      %v2237 = vpack.c.b16 %v2229, %v2228
      %2246 = vmatpush.bf16.msra.mxu0 %v2237
      %2247 = vmatpush.bf16.msra.mxu0 %v2236
      %2248 = vmatpush.bf16.msra.mxu0 %v2235
      %2249 = vmatpush.bf16.msra.mxu0 %v2234
      %2250 = vmatpush.bf16.msra.mxu0 %v2233
      %2251 = vmatpush.bf16.msra.mxu0 %v2232
      %2252 = vmatpush.bf16.msra.mxu0 %v2231
      %2253 = vmatpush.bf16.msra.mxu0 %v2230
      %2254 = vmatmul.bf16.gmra.mxu0 %v1985
      %v2255 = vpop.f32.mrf.mxu0
      %v2256 = vadd.f32 0.0, %v2255
      %v2257 = vpop.f32.mrf.mxu0
      %v2258 = vadd.f32 0.0, %v2257
      %2259 = vmatmul.bf16.gmra.mxu0 %v1994
      %v2260 = vpop.f32.mrf.mxu0
      %v2261 = vadd.f32 0.0, %v2260
      %v2262 = vpop.f32.mrf.mxu0
      %v2263 = vadd.f32 0.0, %v2262
      %2264 = vmatmul.bf16.gmra.mxu0 %v2003
      %v2265 = vpop.f32.mrf.mxu0
      %v2266 = vadd.f32 0.0, %v2265
      %v2267 = vpop.f32.mrf.mxu0
      %v2268 = vadd.f32 0.0, %v2267
      %2269 = vmatmul.bf16.gmra.mxu0 %v2012
      %v2270 = vpop.f32.mrf.mxu0
      %v2271 = vadd.f32 0.0, %v2270
      %v2272 = vpop.f32.mrf.mxu0
      %v2273 = vadd.f32 0.0, %v2272
      %2274 = vmatmul.bf16.gmra.mxu0 %v2021
      %v2275 = vpop.f32.mrf.mxu0
      %v2276 = vadd.f32 0.0, %v2275
      %v2277 = vpop.f32.mrf.mxu0
      %v2278 = vadd.f32 0.0, %v2277
      %2279 = vmatmul.bf16.gmra.mxu0 %v2030
      %v2280 = vpop.f32.mrf.mxu0
      %v2281 = vadd.f32 0.0, %v2280
      %v2282 = vpop.f32.mrf.mxu0
      %v2283 = vadd.f32 0.0, %v2282
      %2284 = vmatmul.bf16.gmra.mxu0 %v2039
      %v2285 = vpop.f32.mrf.mxu0
      %v2286 = vadd.f32 0.0, %v2285
      %v2287 = vpop.f32.mrf.mxu0
      %v2288 = vadd.f32 0.0, %v2287
      %2289 = vmatmul.bf16.gmra.mxu0 %v2048
      %v2290 = vpop.f32.mrf.mxu0
      %v2291 = vadd.f32 0.0, %v2290
      %v2292 = vpop.f32.mrf.mxu0
      %v2293 = vadd.f32 0.0, %v2292
      %2294 = vmatmul.bf16.gmra.mxu0 %v2057
      %v2295 = vpop.f32.mrf.mxu0
      %v2296 = vadd.f32 0.0, %v2295
      %v2297 = vpop.f32.mrf.mxu0
      %v2298 = vadd.f32 0.0, %v2297
      %2299 = vmatmul.bf16.gmra.mxu0 %v2066
      %v2300 = vpop.f32.mrf.mxu0
      %v2301 = vadd.f32 0.0, %v2300
      %v2302 = vpop.f32.mrf.mxu0
      %v2303 = vadd.f32 0.0, %v2302
      %2304 = vmatmul.bf16.gmra.mxu0 %v2075
      %v2305 = vpop.f32.mrf.mxu0
      %v2306 = vadd.f32 0.0, %v2305
      %v2307 = vpop.f32.mrf.mxu0
      %v2308 = vadd.f32 0.0, %v2307
      %2309 = vmatmul.bf16.gmra.mxu0 %v2084
      %v2310 = vpop.f32.mrf.mxu0
      %v2311 = vadd.f32 0.0, %v2310
      %v2312 = vpop.f32.mrf.mxu0
      %v2313 = vadd.f32 0.0, %v2312
      %2314 = vmatmul.bf16.gmra.mxu0 %v2093
      %v2315 = vpop.f32.mrf.mxu0
      %v2316 = vadd.f32 0.0, %v2315
      %v2317 = vpop.f32.mrf.mxu0
      %v2318 = vadd.f32 0.0, %v2317
      %2319 = vmatmul.bf16.gmra.mxu0 %v2102
      %v2320 = vpop.f32.mrf.mxu0
      %v2321 = vadd.f32 0.0, %v2320
      %v2322 = vpop.f32.mrf.mxu0
      %v2323 = vadd.f32 0.0, %v2322
      %2324 = vmatmul.bf16.gmra.mxu0 %v2111
      %v2325 = vpop.f32.mrf.mxu0
      %v2326 = vadd.f32 0.0, %v2325
      %v2327 = vpop.f32.mrf.mxu0
      %v2328 = vadd.f32 0.0, %v2327
      %2329 = vmatmul.bf16.gmra.mxu0 %v2120
      %v2330 = vpop.f32.mrf.mxu0
      %v2331 = vadd.f32 0.0, %v2330
      %v2332 = vpop.f32.mrf.mxu0
      %v2333 = vadd.f32 0.0, %v2332
      %2334 = vmatmul.bf16.gmra.mxu0 %v2129
      %v2335 = vpop.f32.mrf.mxu0
      %v2336 = vadd.f32 0.0, %v2335
      %v2337 = vpop.f32.mrf.mxu0
      %v2338 = vadd.f32 0.0, %v2337
      %2339 = vmatmul.bf16.gmra.mxu0 %v2138
      %v2340 = vpop.f32.mrf.mxu0
      %v2341 = vadd.f32 0.0, %v2340
      %v2342 = vpop.f32.mrf.mxu0
      %v2343 = vadd.f32 0.0, %v2342
      %2344 = vmatmul.bf16.gmra.mxu0 %v2147
      %v2345 = vpop.f32.mrf.mxu0
      %v2346 = vadd.f32 0.0, %v2345
      %v2347 = vpop.f32.mrf.mxu0
      %v2348 = vadd.f32 0.0, %v2347
      %2349 = vmatmul.bf16.gmra.mxu0 %v2156
      %v2350 = vpop.f32.mrf.mxu0
      %v2351 = vadd.f32 0.0, %v2350
      %v2352 = vpop.f32.mrf.mxu0
      %v2353 = vadd.f32 0.0, %v2352
      %2354 = vmatmul.bf16.gmra.mxu0 %v2165
      %v2355 = vpop.f32.mrf.mxu0
      %v2356 = vadd.f32 0.0, %v2355
      %v2357 = vpop.f32.mrf.mxu0
      %v2358 = vadd.f32 0.0, %v2357
      %2359 = vmatmul.bf16.gmra.mxu0 %v2174
      %v2360 = vpop.f32.mrf.mxu0
      %v2361 = vadd.f32 0.0, %v2360
      %v2362 = vpop.f32.mrf.mxu0
      %v2363 = vadd.f32 0.0, %v2362
      %2364 = vmatmul.bf16.gmra.mxu0 %v2173
      %v2365 = vpop.f32.mrf.mxu0
      %v2366 = vadd.f32 0.0, %v2365
      %v2367 = vpop.f32.mrf.mxu0
      %2368 = vdwg.mxu0
      %v2369 = vadd.f32 %v1902, %v2256
      %v2370 = vadd.f32 %v1903, %v2258
      %v2371 = vadd.f32 %v1904, %v2261
      %v2372 = vadd.f32 %v1905, %v2263
      %v2373 = vadd.f32 %v1906, %v2266
      %v2374 = vadd.f32 %v1907, %v2268
      %v2375 = vadd.f32 %v1908, %v2271
      %v2376 = vadd.f32 %v1909, %v2273
      %v2377 = vadd.f32 %v1910, %v2276
      %v2378 = vadd.f32 %v1911, %v2278
      %v2379 = vadd.f32 %v1912, %v2281
      %v2380 = vadd.f32 %v1913, %v2283
      %v2381 = vadd.f32 %v1914, %v2286
      %v2382 = vadd.f32 %v1915, %v2288
      %v2383 = vadd.f32 %v1916, %v2291
      %v2384 = vadd.f32 %v1917, %v2293
      %v2385 = vadd.f32 %v1918, %v2296
      %v2386 = vadd.f32 %v1919, %v2298
      %v2387 = vadd.f32 %v1920, %v2301
      %v2388 = vadd.f32 %v1921, %v2303
      %v2389 = vadd.f32 %v1922, %v2306
      %v2390 = vadd.f32 %v1923, %v2308
      %v2391 = vadd.f32 %v1924, %v2311
      %v2392 = vadd.f32 %v1925, %v2313
      %v2393 = vadd.f32 %v1926, %v2316
      %v2394 = vadd.f32 %v1927, %v2318
      %v2395 = vadd.f32 %v1928, %v2321
      %v2396 = vadd.f32 %v1929, %v2323
      %v2397 = vadd.f32 %v1930, %v2326
      %v2398 = vadd.f32 %v1931, %v2328
      %v2399 = vadd.f32 %v1932, %v2331
      %v2400 = vadd.f32 %v1933, %v2333
      %v2401 = vadd.f32 %v1934, %v2336
      %v2402 = vadd.f32 %v1935, %v2338
      %v2403 = vadd.f32 %v1936, %v2341
      %v2404 = vadd.f32 %v1937, %v2343
      %v2405 = vadd.f32 %v1938, %v2346
      %v2406 = vadd.f32 %v1939, %v2348
      %v2407 = vadd.f32 %v1940, %v2351
      %v2408 = vadd.f32 %v1941, %v2353
      %v2409 = vadd.f32 %v1942, %v2356
      %v2410 = vadd.f32 %v1943, %v2358
      %v2411 = vadd.f32 %v1944, %v2361
      %v2412 = vadd.f32 %v1945, %v2363
      %v2413 = vadd.f32 %v1946, %v2366
      %v2414 = vld [vmem:[%s384 + $0x8] sm:$0x8]
      %s2415 = scalar_lea.vmem %s1, 320
      %v2416 = vld [vmem:[%s2415] sm:$0xf]
      %v2417 = vld [vmem:[%s2415 + $0x4] sm:$0xf]
      %v2418 = vld [vmem:[%s2415 + $0x8] sm:$0xf]
      %v2419 = vld [vmem:[%s2415 + $0xc] sm:$0xf]
      %v2420 = vld [vmem:[%s2415 + $0x10] sm:$0xf]
      %v2421 = vld [vmem:[%s2415 + $0x14] sm:$0xf]
      %v2422 = vld [vmem:[%s2415 + $0x18] sm:$0xf]
      %v2423 = vld [vmem:[%s2415 + $0x1c] sm:$0xf]
      %v2424 = vld [vmem:[%s2415 + $0x20] sm:$0xf]
      %v2425 = vld [vmem:[%s2415 + $0x24] sm:$0xf]
      %v2426 = vld [vmem:[%s2415 + $0x28] sm:$0xf]
      %v2427 = vld [vmem:[%s2415 + $0x2c] sm:$0xf]
      %v2428 = vld [vmem:[%s2415 + $0x30] sm:$0xf]
      %v2429 = vld [vmem:[%s2415 + $0x34] sm:$0xf]
      %v2430 = vld [vmem:[%s2415 + $0x38] sm:$0xf]
      %v2431 = vld [vmem:[%s2415 + $0x3c] sm:$0xf]
      %v2433 = vunpack.c.l.b16 %v2414
      %v2434 = vpack.c.b16 %v1594, %v2433
      %vm2435 = vcmask 1044480
      %v2436 = vrot.slane %v2434, 3
      %v2437 = vrot.slane %v1640, 3
      %v2438 = vsel %vm2435, %v2436, %v2437
      %v2439 = vrot.slane %v1641, 3
      %v2440 = vsel %vm2435, %v2437, %v2439
      %v2441 = vrot.slane %v1642, 3
      %v2442 = vsel %vm2435, %v2439, %v2441
      %v2443 = vrot.slane %v1643, 3
      %v2444 = vsel %vm2435, %v2441, %v2443
      %v2445 = vrot.slane %v1644, 3
      %v2446 = vsel %vm2435, %v2443, %v2445
      %v2447 = vrot.slane %v1645, 3
      %v2448 = vsel %vm2435, %v2445, %v2447
      %v2449 = vrot.slane %v1646, 3
      %v2450 = vsel %vm2435, %v2447, %v2449
      %v2451 = vrot.slane %v1647, 3
      %v2452 = vsel %vm2435, %v2449, %v2451
      %v2453 = vrot.slane %v1648, 3
      %v2454 = vsel %vm2435, %v2451, %v2453
      %v2455 = vrot.slane %v1649, 3
      %v2456 = vsel %vm2435, %v2453, %v2455
      %v2457 = vrot.slane %v1650, 3
      %v2458 = vsel %vm2435, %v2455, %v2457
      %v2459 = vrot.slane %v1651, 3
      %v2460 = vsel %vm2435, %v2457, %v2459
      %v2461 = vrot.slane %v1652, 3
      %v2462 = vsel %vm2435, %v2459, %v2461
      %v2463 = vrot.slane %v1653, 3
      %v2464 = vsel %vm2435, %v2461, %v2463
      %v2465 = vrot.slane %v1654, 3
      %v2466 = vsel %vm2435, %v2463, %v2465
      %v2467 = vrot.slane %v1655, 3
      %v2468 = vsel %vm2435, %v2465, %v2467
      %v2469 = vrot.slane %v1656, 3
      %v2470 = vsel %vm2435, %v2467, %v2469
      %v2471 = vrot.slane %v1657, 3
      %v2472 = vsel %vm2435, %v2469, %v2471
      %v2473 = vrot.slane %v1658, 3
      %v2474 = vsel %vm2435, %v2471, %v2473
      %v2475 = vrot.slane %v1659, 3
      %v2476 = vsel %vm2435, %v2473, %v2475
      %v2477 = vrot.slane %v1660, 3
      %v2478 = vsel %vm2435, %v2475, %v2477
      %v2479 = vrot.slane %v1967, 3
      %v2480 = vsel %vm2435, %v2477, %v2479
      %v2520 = vunpack.c.l.b16 %v2416
      %v2521 = vunpack.c.l.b16 %v2417
      %v2522 = vunpack.c.l.b16 %v2418
      %v2523 = vunpack.c.l.b16 %v2419
      %v2524 = vunpack.c.l.b16 %v2420
      %v2525 = vunpack.c.l.b16 %v2421
      %v2526 = vunpack.c.l.b16 %v2422
      %v2527 = vunpack.c.l.b16 %v2423
      %v2528 = vunpack.c.l.b16 %v2424
      %v2529 = vunpack.c.l.b16 %v2425
      %v2530 = vunpack.c.l.b16 %v2426
      %v2531 = vunpack.c.l.b16 %v2427
      %v2532 = vunpack.c.l.b16 %v2428
      %v2533 = vunpack.c.l.b16 %v2429
      %v2534 = vunpack.c.l.b16 %v2430
      %v2535 = vunpack.c.l.b16 %v2431
      %v2536 = vpack.c.b16 %v2521, %v2520
      %v2537 = vpack.c.b16 %v2523, %v2522
      %v2538 = vpack.c.b16 %v2525, %v2524
      %v2539 = vpack.c.b16 %v2527, %v2526
      %v2540 = vpack.c.b16 %v2529, %v2528
      %v2541 = vpack.c.b16 %v2531, %v2530
      %v2542 = vpack.c.b16 %v2533, %v2532
      %v2543 = vpack.c.b16 %v2535, %v2534
      %2552 = vmatpush.bf16.msra.mxu0 %v2543
      %2553 = vmatpush.bf16.msra.mxu0 %v2542
      %2554 = vmatpush.bf16.msra.mxu0 %v2541
      %2555 = vmatpush.bf16.msra.mxu0 %v2540
      %2556 = vmatpush.bf16.msra.mxu0 %v2539
      %2557 = vmatpush.bf16.msra.mxu0 %v2538
      %2558 = vmatpush.bf16.msra.mxu0 %v2537
      %2559 = vmatpush.bf16.msra.mxu0 %v2536
      %2560 = vmatmul.bf16.gmra.mxu0 %v2438
      %v2561 = vpop.f32.mrf.mxu0
      %v2562 = vadd.f32 0.0, %v2561
      %v2563 = vpop.f32.mrf.mxu0
      %v2564 = vadd.f32 0.0, %v2563
      %2565 = vmatmul.bf16.gmra.mxu0 %v2440
      %v2566 = vpop.f32.mrf.mxu0
      %v2567 = vadd.f32 0.0, %v2566
      %v2568 = vpop.f32.mrf.mxu0
      %v2569 = vadd.f32 0.0, %v2568
      %2570 = vmatmul.bf16.gmra.mxu0 %v2442
      %v2571 = vpop.f32.mrf.mxu0
      %v2572 = vadd.f32 0.0, %v2571
      %v2573 = vpop.f32.mrf.mxu0
      %v2574 = vadd.f32 0.0, %v2573
      %2575 = vmatmul.bf16.gmra.mxu0 %v2444
      %v2576 = vpop.f32.mrf.mxu0
      %v2577 = vadd.f32 0.0, %v2576
      %v2578 = vpop.f32.mrf.mxu0
      %v2579 = vadd.f32 0.0, %v2578
      %2580 = vmatmul.bf16.gmra.mxu0 %v2446
      %v2581 = vpop.f32.mrf.mxu0
      %v2582 = vadd.f32 0.0, %v2581
      %v2583 = vpop.f32.mrf.mxu0
      %v2584 = vadd.f32 0.0, %v2583
      %2585 = vmatmul.bf16.gmra.mxu0 %v2448
      %v2586 = vpop.f32.mrf.mxu0
      %v2587 = vadd.f32 0.0, %v2586
      %v2588 = vpop.f32.mrf.mxu0
      %v2589 = vadd.f32 0.0, %v2588
      %2590 = vmatmul.bf16.gmra.mxu0 %v2450
      %v2591 = vpop.f32.mrf.mxu0
      %v2592 = vadd.f32 0.0, %v2591
      %v2593 = vpop.f32.mrf.mxu0
      %v2594 = vadd.f32 0.0, %v2593
      %2595 = vmatmul.bf16.gmra.mxu0 %v2452
      %v2596 = vpop.f32.mrf.mxu0
      %v2597 = vadd.f32 0.0, %v2596
      %v2598 = vpop.f32.mrf.mxu0
      %v2599 = vadd.f32 0.0, %v2598
      %2600 = vmatmul.bf16.gmra.mxu0 %v2454
      %v2601 = vpop.f32.mrf.mxu0
      %v2602 = vadd.f32 0.0, %v2601
      %v2603 = vpop.f32.mrf.mxu0
      %v2604 = vadd.f32 0.0, %v2603
      %2605 = vmatmul.bf16.gmra.mxu0 %v2456
      %v2606 = vpop.f32.mrf.mxu0
      %v2607 = vadd.f32 0.0, %v2606
      %v2608 = vpop.f32.mrf.mxu0
      %v2609 = vadd.f32 0.0, %v2608
      %2610 = vmatmul.bf16.gmra.mxu0 %v2458
      %v2611 = vpop.f32.mrf.mxu0
      %v2612 = vadd.f32 0.0, %v2611
      %v2613 = vpop.f32.mrf.mxu0
      %v2614 = vadd.f32 0.0, %v2613
      %2615 = vmatmul.bf16.gmra.mxu0 %v2460
      %v2616 = vpop.f32.mrf.mxu0
      %v2617 = vadd.f32 0.0, %v2616
      %v2618 = vpop.f32.mrf.mxu0
      %v2619 = vadd.f32 0.0, %v2618
      %2620 = vmatmul.bf16.gmra.mxu0 %v2462
      %v2621 = vpop.f32.mrf.mxu0
      %v2622 = vadd.f32 0.0, %v2621
      %v2623 = vpop.f32.mrf.mxu0
      %v2624 = vadd.f32 0.0, %v2623
      %2625 = vmatmul.bf16.gmra.mxu0 %v2464
      %v2626 = vpop.f32.mrf.mxu0
      %v2627 = vadd.f32 0.0, %v2626
      %v2628 = vpop.f32.mrf.mxu0
      %v2629 = vadd.f32 0.0, %v2628
      %2630 = vmatmul.bf16.gmra.mxu0 %v2466
      %v2631 = vpop.f32.mrf.mxu0
      %v2632 = vadd.f32 0.0, %v2631
      %v2633 = vpop.f32.mrf.mxu0
      %v2634 = vadd.f32 0.0, %v2633
      %2635 = vmatmul.bf16.gmra.mxu0 %v2468
      %v2636 = vpop.f32.mrf.mxu0
      %v2637 = vadd.f32 0.0, %v2636
      %v2638 = vpop.f32.mrf.mxu0
      %v2639 = vadd.f32 0.0, %v2638
      %2640 = vmatmul.bf16.gmra.mxu0 %v2470
      %v2641 = vpop.f32.mrf.mxu0
      %v2642 = vadd.f32 0.0, %v2641
      %v2643 = vpop.f32.mrf.mxu0
      %v2644 = vadd.f32 0.0, %v2643
      %2645 = vmatmul.bf16.gmra.mxu0 %v2472
      %v2646 = vpop.f32.mrf.mxu0
      %v2647 = vadd.f32 0.0, %v2646
      %v2648 = vpop.f32.mrf.mxu0
      %v2649 = vadd.f32 0.0, %v2648
      %2650 = vmatmul.bf16.gmra.mxu0 %v2474
      %v2651 = vpop.f32.mrf.mxu0
      %v2652 = vadd.f32 0.0, %v2651
      %v2653 = vpop.f32.mrf.mxu0
      %v2654 = vadd.f32 0.0, %v2653
      %2655 = vmatmul.bf16.gmra.mxu0 %v2476
      %v2656 = vpop.f32.mrf.mxu0
      %v2657 = vadd.f32 0.0, %v2656
      %v2658 = vpop.f32.mrf.mxu0
      %v2659 = vadd.f32 0.0, %v2658
      %2660 = vmatmul.bf16.gmra.mxu0 %v2478
      %v2661 = vpop.f32.mrf.mxu0
      %v2662 = vadd.f32 0.0, %v2661
      %v2663 = vpop.f32.mrf.mxu0
      %v2664 = vadd.f32 0.0, %v2663
      %2665 = vmatmul.bf16.gmra.mxu0 %v2480
      %v2666 = vpop.f32.mrf.mxu0
      %v2667 = vadd.f32 0.0, %v2666
      %v2668 = vpop.f32.mrf.mxu0
      %v2669 = vadd.f32 0.0, %v2668
      %2670 = vmatmul.bf16.gmra.mxu0 %v2479
      %v2671 = vpop.f32.mrf.mxu0
      %v2672 = vadd.f32 0.0, %v2671
      %v2673 = vpop.f32.mrf.mxu0
      %2674 = vdwg.mxu0
      %v2675 = vadd.f32 %v2369, %v2562
      %v2676 = vadd.f32 %v2370, %v2564
      %v2677 = vadd.f32 %v2371, %v2567
      %v2678 = vadd.f32 %v2372, %v2569
      %v2679 = vadd.f32 %v2373, %v2572
      %v2680 = vadd.f32 %v2374, %v2574
      %v2681 = vadd.f32 %v2375, %v2577
      %v2682 = vadd.f32 %v2376, %v2579
      %v2683 = vadd.f32 %v2377, %v2582
      %v2684 = vadd.f32 %v2378, %v2584
      %v2685 = vadd.f32 %v2379, %v2587
      %v2686 = vadd.f32 %v2380, %v2589
      %v2687 = vadd.f32 %v2381, %v2592
      %v2688 = vadd.f32 %v2382, %v2594
      %v2689 = vadd.f32 %v2383, %v2597
      %v2690 = vadd.f32 %v2384, %v2599
      %v2691 = vadd.f32 %v2385, %v2602
      %v2692 = vadd.f32 %v2386, %v2604
      %v2693 = vadd.f32 %v2387, %v2607
      %v2694 = vadd.f32 %v2388, %v2609
      %v2695 = vadd.f32 %v2389, %v2612
      %v2696 = vadd.f32 %v2390, %v2614
      %v2697 = vadd.f32 %v2391, %v2617
      %v2698 = vadd.f32 %v2392, %v2619
      %v2699 = vadd.f32 %v2393, %v2622
      %v2700 = vadd.f32 %v2394, %v2624
      %v2701 = vadd.f32 %v2395, %v2627
      %v2702 = vadd.f32 %v2396, %v2629
      %v2703 = vadd.f32 %v2397, %v2632
      %v2704 = vadd.f32 %v2398, %v2634
      %v2705 = vadd.f32 %v2399, %v2637
      %v2706 = vadd.f32 %v2400, %v2639
      %v2707 = vadd.f32 %v2401, %v2642
      %v2708 = vadd.f32 %v2402, %v2644
      %v2709 = vadd.f32 %v2403, %v2647
      %v2710 = vadd.f32 %v2404, %v2649
      %v2711 = vadd.f32 %v2405, %v2652
      %v2712 = vadd.f32 %v2406, %v2654
      %v2713 = vadd.f32 %v2407, %v2657
      %v2714 = vadd.f32 %v2408, %v2659
      %v2715 = vadd.f32 %v2409, %v2662
      %v2716 = vadd.f32 %v2410, %v2664
      %v2717 = vadd.f32 %v2411, %v2667
      %v2718 = vadd.f32 %v2412, %v2669
      %v2719 = vadd.f32 %v2413, %v2672
      %v2720 = vld [vmem:[%s384 + $0x14] sm:$0xf]
      %v2721 = vld [vmem:[%s384 + $0x18] sm:$0xf]
      %v2722 = vld [vmem:[%s384 + $0x1c] sm:$0xf]
      %v2723 = vld [vmem:[%s384 + $0x20] sm:$0xf]
      %v2724 = vld [vmem:[%s384 + $0x24] sm:$0xf]
      %v2725 = vld [vmem:[%s384 + $0x28] sm:$0xf]
      %v2726 = vld [vmem:[%s384 + $0x2c] sm:$0xf]
      %v2727 = vld [vmem:[%s384 + $0x30] sm:$0xf]
      %v2728 = vld [vmem:[%s384 + $0x34] sm:$0xf]
      %v2729 = vld [vmem:[%s384 + $0x38] sm:$0xf]
      %v2730 = vld [vmem:[%s384 + $0x3c] sm:$0xf]
      %v2731 = vld [vmem:[%s384 + $0x40] sm:$0xf]
      %v2732 = vld [vmem:[%s384 + $0x44] sm:$0xf]
      %v2733 = vld [vmem:[%s384 + $0x48] sm:$0xf]
      %v2734 = vld [vmem:[%s384 + $0x4c] sm:$0xf]
      %v2735 = vld [vmem:[%s384 + $0x50] sm:$0xf]
      %v2736 = vld [vmem:[%s384 + $0x54] sm:$0xf]
      %v2737 = vld [vmem:[%s384 + $0x58] sm:$0xf]
      %v2738 = vld [vmem:[%s384 + $0x5c] sm:$0xf]
      %v2739 = vld [vmem:[%s384 + $0x60] sm:$0xf]
      %v2740 = vld [vmem:[%s384 + $0x64] sm:$0xf]
      %v2741 = vld [vmem:[%s384 + $0x68] sm:$0xf]
      %v2742 = vld [vmem:[%s384 + $0x6c] sm:$0xf]
      %v2743 = vld [vmem:[%s384 + $0x70] sm:$0xf]
      %v2744 = vld [vmem:[%s384 + $0x74] sm:$0xf]
      %v2745 = vld [vmem:[%s384 + $0x78] sm:$0xf]
      %v2746 = vld [vmem:[%s384 + $0x7c] sm:$0xf]
      %v2747 = vld [vmem:[%s384 + $0x80] sm:$0xf]
      %v2748 = vld [vmem:[%s384 + $0x84] sm:$0xf]
      %v2749 = vld [vmem:[%s384 + $0x88] sm:$0xf]
      %v2750 = vld [vmem:[%s384 + $0x8c] sm:$0xf]
      %v2751 = vld [vmem:[%s384 + $0x90] sm:$0xf]
      %v2752 = vld [vmem:[%s384 + $0x94] sm:$0xf]
      %v2753 = vld [vmem:[%s384 + $0x98] sm:$0xf]
      %v2754 = vld [vmem:[%s384 + $0x9c] sm:$0xf]
      %v2755 = vld [vmem:[%s384 + $0xa0] sm:$0xf]
      %v2756 = vld [vmem:[%s384 + $0xa4] sm:$0xf]
      %v2757 = vld [vmem:[%s384 + $0xa8] sm:$0xf]
      %v2758 = vld [vmem:[%s384 + $0xac] sm:$0xf]
      %v2759 = vld [vmem:[%s384 + $0xb0] sm:$0xf]
      %v2760 = vld [vmem:[%s384 + $0xb4] sm:$0xf]
      %v2761 = vld [vmem:[%s384 + $0xb8] sm:$0xf]
      %v2762 = vld [vmem:[%s384 + $0xbc] sm:$0xf]
      %v2763 = vld [vmem:[%s384 + $0xc0] sm:$0xf]
      %v2764 = vld [vmem:[%s384 + $0xc4] sm:$0xf]
      %s2765 = scalar_lea.vmem %s1, 384
      %v2766 = vld [vmem:[%s2765] sm:$0xf]
      %v2767 = vld [vmem:[%s2765 + $0x4] sm:$0xf]
      %v2768 = vld [vmem:[%s2765 + $0x8] sm:$0xf]
      %v2769 = vld [vmem:[%s2765 + $0xc] sm:$0xf]
      %v2770 = vld [vmem:[%s2765 + $0x10] sm:$0xf]
      %v2771 = vld [vmem:[%s2765 + $0x14] sm:$0xf]
      %v2772 = vld [vmem:[%s2765 + $0x18] sm:$0xf]
      %v2773 = vld [vmem:[%s2765 + $0x1c] sm:$0xf]
      %v2774 = vld [vmem:[%s2765 + $0x20] sm:$0xf]
      %v2775 = vld [vmem:[%s2765 + $0x24] sm:$0xf]
      %v2776 = vld [vmem:[%s2765 + $0x28] sm:$0xf]
      %v2777 = vld [vmem:[%s2765 + $0x2c] sm:$0xf]
      %v2778 = vld [vmem:[%s2765 + $0x30] sm:$0xf]
      %v2779 = vld [vmem:[%s2765 + $0x34] sm:$0xf]
      %v2780 = vld [vmem:[%s2765 + $0x38] sm:$0xf]
      %v2781 = vld [vmem:[%s2765 + $0x3c] sm:$0xf]
      %v2827 = vunpack.c.l.b16 %v2720
      %v2828 = vunpack.c.l.b16 %v2721
      %v2829 = vunpack.c.l.b16 %v2722
      %v2830 = vunpack.c.l.b16 %v2723
      %v2831 = vunpack.c.l.b16 %v2724
      %v2832 = vunpack.c.l.b16 %v2725
      %v2833 = vunpack.c.l.b16 %v2726
      %v2834 = vunpack.c.l.b16 %v2727
      %v2835 = vunpack.c.l.b16 %v2728
      %v2836 = vunpack.c.l.b16 %v2729
      %v2837 = vunpack.c.l.b16 %v2730
      %v2838 = vunpack.c.l.b16 %v2731
      %v2839 = vunpack.c.l.b16 %v2732
      %v2840 = vunpack.c.l.b16 %v2733
      %v2841 = vunpack.c.l.b16 %v2734
      %v2842 = vunpack.c.l.b16 %v2735
      %v2843 = vunpack.c.l.b16 %v2736
      %v2844 = vunpack.c.l.b16 %v2737
      %v2845 = vunpack.c.l.b16 %v2738
      %v2846 = vunpack.c.l.b16 %v2739
      %v2847 = vunpack.c.l.b16 %v2740
      %v2848 = vunpack.c.l.b16 %v2741
      %v2849 = vunpack.c.l.b16 %v2742
      %v2850 = vunpack.c.l.b16 %v2743
      %v2851 = vunpack.c.l.b16 %v2744
      %v2852 = vunpack.c.l.b16 %v2745
      %v2853 = vunpack.c.l.b16 %v2746
      %v2854 = vunpack.c.l.b16 %v2747
      %v2855 = vunpack.c.l.b16 %v2748
      %v2856 = vunpack.c.l.b16 %v2749
      %v2857 = vunpack.c.l.b16 %v2750
      %v2858 = vunpack.c.l.b16 %v2751
      %v2859 = vunpack.c.l.b16 %v2752
      %v2860 = vunpack.c.l.b16 %v2753
      %v2861 = vunpack.c.l.b16 %v2754
      %v2862 = vunpack.c.l.b16 %v2755
      %v2863 = vunpack.c.l.b16 %v2756
      %v2864 = vunpack.c.l.b16 %v2757
      %v2865 = vunpack.c.l.b16 %v2758
      %v2866 = vunpack.c.l.b16 %v2759
      %v2867 = vunpack.c.l.b16 %v2760
      %v2868 = vunpack.c.l.b16 %v2761
      %v2869 = vunpack.c.l.b16 %v2762
      %v2870 = vunpack.c.l.b16 %v2763
      %v2871 = vunpack.c.l.b16 %v2764
      %v2872 = vpack.c.b16 %v2828, %v2827
      %v2873 = vpack.c.b16 %v2830, %v2829
      %v2874 = vpack.c.b16 %v2832, %v2831
      %v2875 = vpack.c.b16 %v2834, %v2833
      %v2876 = vpack.c.b16 %v2836, %v2835
      %v2877 = vpack.c.b16 %v2838, %v2837
      %v2878 = vpack.c.b16 %v2840, %v2839
      %v2879 = vpack.c.b16 %v2842, %v2841
      %v2880 = vpack.c.b16 %v2844, %v2843
      %v2881 = vpack.c.b16 %v2846, %v2845
      %v2882 = vpack.c.b16 %v2848, %v2847
      %v2883 = vpack.c.b16 %v2850, %v2849
      %v2884 = vpack.c.b16 %v2852, %v2851
      %v2885 = vpack.c.b16 %v2854, %v2853
      %v2886 = vpack.c.b16 %v2856, %v2855
      %v2887 = vpack.c.b16 %v2858, %v2857
      %v2888 = vpack.c.b16 %v2860, %v2859
      %v2889 = vpack.c.b16 %v2862, %v2861
      %v2890 = vpack.c.b16 %v2864, %v2863
      %v2891 = vpack.c.b16 %v2866, %v2865
      %v2892 = vpack.c.b16 %v2868, %v2867
      %v2893 = vpack.c.b16 %v2870, %v2869
      %v2894 = vpack.c.b16 %v2871, %v2871
      %v2934 = vunpack.c.l.b16 %v2766
      %v2935 = vunpack.c.l.b16 %v2767
      %v2936 = vunpack.c.l.b16 %v2768
      %v2937 = vunpack.c.l.b16 %v2769
      %v2938 = vunpack.c.l.b16 %v2770
      %v2939 = vunpack.c.l.b16 %v2771
      %v2940 = vunpack.c.l.b16 %v2772
      %v2941 = vunpack.c.l.b16 %v2773
      %v2942 = vunpack.c.l.b16 %v2774
      %v2943 = vunpack.c.l.b16 %v2775
      %v2944 = vunpack.c.l.b16 %v2776
      %v2945 = vunpack.c.l.b16 %v2777
      %v2946 = vunpack.c.l.b16 %v2778
      %v2947 = vunpack.c.l.b16 %v2779
      %v2948 = vunpack.c.l.b16 %v2780
      %v2949 = vunpack.c.l.b16 %v2781
      %v2950 = vpack.c.b16 %v2935, %v2934
      %v2951 = vpack.c.b16 %v2937, %v2936
      %v2952 = vpack.c.b16 %v2939, %v2938
      %v2953 = vpack.c.b16 %v2941, %v2940
      %v2954 = vpack.c.b16 %v2943, %v2942
      %v2955 = vpack.c.b16 %v2945, %v2944
      %v2956 = vpack.c.b16 %v2947, %v2946
      %v2957 = vpack.c.b16 %v2949, %v2948
      %2966 = vmatpush.bf16.msra.mxu0 %v2957
      %2967 = vmatpush.bf16.msra.mxu0 %v2956
      %2968 = vmatpush.bf16.msra.mxu0 %v2955
      %2969 = vmatpush.bf16.msra.mxu0 %v2954
      %2970 = vmatpush.bf16.msra.mxu0 %v2953
      %2971 = vmatpush.bf16.msra.mxu0 %v2952
      %2972 = vmatpush.bf16.msra.mxu0 %v2951
      %2973 = vmatpush.bf16.msra.mxu0 %v2950
      %2974 = vmatmul.bf16.gmra.mxu0 %v2872
      %v2975 = vpop.f32.mrf.mxu0
      %v2976 = vadd.f32 0.0, %v2975
      %v2977 = vpop.f32.mrf.mxu0
      %v2978 = vadd.f32 0.0, %v2977
      %2979 = vmatmul.bf16.gmra.mxu0 %v2873
      %v2980 = vpop.f32.mrf.mxu0
      %v2981 = vadd.f32 0.0, %v2980
      %v2982 = vpop.f32.mrf.mxu0
      %v2983 = vadd.f32 0.0, %v2982
      %2984 = vmatmul.bf16.gmra.mxu0 %v2874
      %v2985 = vpop.f32.mrf.mxu0
      %v2986 = vadd.f32 0.0, %v2985
      %v2987 = vpop.f32.mrf.mxu0
      %v2988 = vadd.f32 0.0, %v2987
      %2989 = vmatmul.bf16.gmra.mxu0 %v2875
      %v2990 = vpop.f32.mrf.mxu0
      %v2991 = vadd.f32 0.0, %v2990
      %v2992 = vpop.f32.mrf.mxu0
      %v2993 = vadd.f32 0.0, %v2992
      %2994 = vmatmul.bf16.gmra.mxu0 %v2876
      %v2995 = vpop.f32.mrf.mxu0
      %v2996 = vadd.f32 0.0, %v2995
      %v2997 = vpop.f32.mrf.mxu0
      %v2998 = vadd.f32 0.0, %v2997
      %2999 = vmatmul.bf16.gmra.mxu0 %v2877
      %v3000 = vpop.f32.mrf.mxu0
      %v3001 = vadd.f32 0.0, %v3000
      %v3002 = vpop.f32.mrf.mxu0
      %v3003 = vadd.f32 0.0, %v3002
      %3004 = vmatmul.bf16.gmra.mxu0 %v2878
      %v3005 = vpop.f32.mrf.mxu0
      %v3006 = vadd.f32 0.0, %v3005
      %v3007 = vpop.f32.mrf.mxu0
      %v3008 = vadd.f32 0.0, %v3007
      %3009 = vmatmul.bf16.gmra.mxu0 %v2879
      %v3010 = vpop.f32.mrf.mxu0
      %v3011 = vadd.f32 0.0, %v3010
      %v3012 = vpop.f32.mrf.mxu0
      %v3013 = vadd.f32 0.0, %v3012
      %3014 = vmatmul.bf16.gmra.mxu0 %v2880
      %v3015 = vpop.f32.mrf.mxu0
      %v3016 = vadd.f32 0.0, %v3015
      %v3017 = vpop.f32.mrf.mxu0
      %v3018 = vadd.f32 0.0, %v3017
      %3019 = vmatmul.bf16.gmra.mxu0 %v2881
      %v3020 = vpop.f32.mrf.mxu0
      %v3021 = vadd.f32 0.0, %v3020
      %v3022 = vpop.f32.mrf.mxu0
      %v3023 = vadd.f32 0.0, %v3022
      %3024 = vmatmul.bf16.gmra.mxu0 %v2882
      %v3025 = vpop.f32.mrf.mxu0
      %v3026 = vadd.f32 0.0, %v3025
      %v3027 = vpop.f32.mrf.mxu0
      %v3028 = vadd.f32 0.0, %v3027
      %3029 = vmatmul.bf16.gmra.mxu0 %v2883
      %v3030 = vpop.f32.mrf.mxu0
      %v3031 = vadd.f32 0.0, %v3030
      %v3032 = vpop.f32.mrf.mxu0
      %v3033 = vadd.f32 0.0, %v3032
      %3034 = vmatmul.bf16.gmra.mxu0 %v2884
      %v3035 = vpop.f32.mrf.mxu0
      %v3036 = vadd.f32 0.0, %v3035
      %v3037 = vpop.f32.mrf.mxu0
      %v3038 = vadd.f32 0.0, %v3037
      %3039 = vmatmul.bf16.gmra.mxu0 %v2885
      %v3040 = vpop.f32.mrf.mxu0
      %v3041 = vadd.f32 0.0, %v3040
      %v3042 = vpop.f32.mrf.mxu0
      %v3043 = vadd.f32 0.0, %v3042
      %3044 = vmatmul.bf16.gmra.mxu0 %v2886
      %v3045 = vpop.f32.mrf.mxu0
      %v3046 = vadd.f32 0.0, %v3045
      %v3047 = vpop.f32.mrf.mxu0
      %v3048 = vadd.f32 0.0, %v3047
      %3049 = vmatmul.bf16.gmra.mxu0 %v2887
      %v3050 = vpop.f32.mrf.mxu0
      %v3051 = vadd.f32 0.0, %v3050
      %v3052 = vpop.f32.mrf.mxu0
      %v3053 = vadd.f32 0.0, %v3052
      %3054 = vmatmul.bf16.gmra.mxu0 %v2888
      %v3055 = vpop.f32.mrf.mxu0
      %v3056 = vadd.f32 0.0, %v3055
      %v3057 = vpop.f32.mrf.mxu0
      %v3058 = vadd.f32 0.0, %v3057
      %3059 = vmatmul.bf16.gmra.mxu0 %v2889
      %v3060 = vpop.f32.mrf.mxu0
      %v3061 = vadd.f32 0.0, %v3060
      %v3062 = vpop.f32.mrf.mxu0
      %v3063 = vadd.f32 0.0, %v3062
      %3064 = vmatmul.bf16.gmra.mxu0 %v2890
      %v3065 = vpop.f32.mrf.mxu0
      %v3066 = vadd.f32 0.0, %v3065
      %v3067 = vpop.f32.mrf.mxu0
      %v3068 = vadd.f32 0.0, %v3067
      %3069 = vmatmul.bf16.gmra.mxu0 %v2891
      %v3070 = vpop.f32.mrf.mxu0
      %v3071 = vadd.f32 0.0, %v3070
      %v3072 = vpop.f32.mrf.mxu0
      %v3073 = vadd.f32 0.0, %v3072
      %3074 = vmatmul.bf16.gmra.mxu0 %v2892
      %v3075 = vpop.f32.mrf.mxu0
      %v3076 = vadd.f32 0.0, %v3075
      %v3077 = vpop.f32.mrf.mxu0
      %v3078 = vadd.f32 0.0, %v3077
      %3079 = vmatmul.bf16.gmra.mxu0 %v2893
      %v3080 = vpop.f32.mrf.mxu0
      %v3081 = vadd.f32 0.0, %v3080
      %v3082 = vpop.f32.mrf.mxu0
      %v3083 = vadd.f32 0.0, %v3082
      %3084 = vmatmul.bf16.gmra.mxu0 %v2894
      %v3085 = vpop.f32.mrf.mxu0
      %v3086 = vadd.f32 0.0, %v3085
      %v3087 = vpop.f32.mrf.mxu0
      %3088 = vdwg.mxu0
      %v3089 = vadd.f32 %v2675, %v2976
      %v3090 = vadd.f32 %v2676, %v2978
      %v3091 = vadd.f32 %v2677, %v2981
      %v3092 = vadd.f32 %v2678, %v2983
      %v3093 = vadd.f32 %v2679, %v2986
      %v3094 = vadd.f32 %v2680, %v2988
      %v3095 = vadd.f32 %v2681, %v2991
      %v3096 = vadd.f32 %v2682, %v2993
      %v3097 = vadd.f32 %v2683, %v2996
      %v3098 = vadd.f32 %v2684, %v2998
      %v3099 = vadd.f32 %v2685, %v3001
      %v3100 = vadd.f32 %v2686, %v3003
      %v3101 = vadd.f32 %v2687, %v3006
      %v3102 = vadd.f32 %v2688, %v3008
      %v3103 = vadd.f32 %v2689, %v3011
      %v3104 = vadd.f32 %v2690, %v3013
      %v3105 = vadd.f32 %v2691, %v3016
      %v3106 = vadd.f32 %v2692, %v3018
      %v3107 = vadd.f32 %v2693, %v3021
      %v3108 = vadd.f32 %v2694, %v3023
      %v3109 = vadd.f32 %v2695, %v3026
      %v3110 = vadd.f32 %v2696, %v3028
      %v3111 = vadd.f32 %v2697, %v3031
      %v3112 = vadd.f32 %v2698, %v3033
      %v3113 = vadd.f32 %v2699, %v3036
      %v3114 = vadd.f32 %v2700, %v3038
      %v3115 = vadd.f32 %v2701, %v3041
      %v3116 = vadd.f32 %v2702, %v3043
      %v3117 = vadd.f32 %v2703, %v3046
      %v3118 = vadd.f32 %v2704, %v3048
      %v3119 = vadd.f32 %v2705, %v3051
      %v3120 = vadd.f32 %v2706, %v3053
      %v3121 = vadd.f32 %v2707, %v3056
      %v3122 = vadd.f32 %v2708, %v3058
      %v3123 = vadd.f32 %v2709, %v3061
      %v3124 = vadd.f32 %v2710, %v3063
      %v3125 = vadd.f32 %v2711, %v3066
      %v3126 = vadd.f32 %v2712, %v3068
      %v3127 = vadd.f32 %v2713, %v3071
      %v3128 = vadd.f32 %v2714, %v3073
      %v3129 = vadd.f32 %v2715, %v3076
      %v3130 = vadd.f32 %v2716, %v3078
      %v3131 = vadd.f32 %v2717, %v3081
      %v3132 = vadd.f32 %v2718, %v3083
      %v3133 = vadd.f32 %v2719, %v3086
      %v3134 = vld [vmem:[%s384 + $0x14] sm:$0xf]
      %v3135 = vld [vmem:[%s384 + $0x18] sm:$0xf]
      %v3136 = vld [vmem:[%s384 + $0x1c] sm:$0xf]
      %v3137 = vld [vmem:[%s384 + $0x20] sm:$0xf]
      %v3138 = vld [vmem:[%s384 + $0x24] sm:$0xf]
      %v3139 = vld [vmem:[%s384 + $0x28] sm:$0xf]
      %v3140 = vld [vmem:[%s384 + $0x2c] sm:$0xf]
      %v3141 = vld [vmem:[%s384 + $0x30] sm:$0xf]
      %v3142 = vld [vmem:[%s384 + $0x34] sm:$0xf]
      %v3143 = vld [vmem:[%s384 + $0x38] sm:$0xf]
      %v3144 = vld [vmem:[%s384 + $0x3c] sm:$0xf]
      %v3145 = vld [vmem:[%s384 + $0x40] sm:$0xf]
      %v3146 = vld [vmem:[%s384 + $0x44] sm:$0xf]
      %v3147 = vld [vmem:[%s384 + $0x48] sm:$0xf]
      %v3148 = vld [vmem:[%s384 + $0x4c] sm:$0xf]
      %v3149 = vld [vmem:[%s384 + $0x50] sm:$0xf]
      %v3150 = vld [vmem:[%s384 + $0x54] sm:$0xf]
      %v3151 = vld [vmem:[%s384 + $0x58] sm:$0xf]
      %v3152 = vld [vmem:[%s384 + $0x5c] sm:$0xf]
      %v3153 = vld [vmem:[%s384 + $0x60] sm:$0xf]
      %v3154 = vld [vmem:[%s384 + $0x64] sm:$0xf]
      %v3155 = vld [vmem:[%s384 + $0x68] sm:$0xf]
      %v3156 = vld [vmem:[%s384 + $0x6c] sm:$0xf]
      %v3157 = vld [vmem:[%s384 + $0x70] sm:$0xf]
      %v3158 = vld [vmem:[%s384 + $0x74] sm:$0xf]
      %v3159 = vld [vmem:[%s384 + $0x78] sm:$0xf]
      %v3160 = vld [vmem:[%s384 + $0x7c] sm:$0xf]
      %v3161 = vld [vmem:[%s384 + $0x80] sm:$0xf]
      %v3162 = vld [vmem:[%s384 + $0x84] sm:$0xf]
      %v3163 = vld [vmem:[%s384 + $0x88] sm:$0xf]
      %v3164 = vld [vmem:[%s384 + $0x8c] sm:$0xf]
      %v3165 = vld [vmem:[%s384 + $0x90] sm:$0xf]
      %v3166 = vld [vmem:[%s384 + $0x94] sm:$0xf]
      %v3167 = vld [vmem:[%s384 + $0x98] sm:$0xf]
      %v3168 = vld [vmem:[%s384 + $0x9c] sm:$0xf]
      %v3169 = vld [vmem:[%s384 + $0xa0] sm:$0xf]
      %v3170 = vld [vmem:[%s384 + $0xa4] sm:$0xf]
      %v3171 = vld [vmem:[%s384 + $0xa8] sm:$0xf]
      %v3172 = vld [vmem:[%s384 + $0xac] sm:$0xf]
      %v3173 = vld [vmem:[%s384 + $0xb0] sm:$0xf]
      %v3174 = vld [vmem:[%s384 + $0xb4] sm:$0xf]
      %v3175 = vld [vmem:[%s384 + $0xb8] sm:$0xf]
      %v3176 = vld [vmem:[%s384 + $0xbc] sm:$0xf]
      %v3177 = vld [vmem:[%s384 + $0xc0] sm:$0xf]
      %v3178 = vld [vmem:[%s384 + $0xc4] sm:$0xf]
      %v3179 = vld [vmem:[%s384 + $0xc8] sm:$0x1]
      %s3180 = scalar_lea.vmem %s1, 448
      %v3181 = vld [vmem:[%s3180] sm:$0xf]
      %v3182 = vld [vmem:[%s3180 + $0x4] sm:$0xf]
      %v3183 = vld [vmem:[%s3180 + $0x8] sm:$0xf]
      %v3184 = vld [vmem:[%s3180 + $0xc] sm:$0xf]
      %v3185 = vld [vmem:[%s3180 + $0x10] sm:$0xf]
      %v3186 = vld [vmem:[%s3180 + $0x14] sm:$0xf]
      %v3187 = vld [vmem:[%s3180 + $0x18] sm:$0xf]
      %v3188 = vld [vmem:[%s3180 + $0x1c] sm:$0xf]
      %v3189 = vld [vmem:[%s3180 + $0x20] sm:$0xf]
      %v3190 = vld [vmem:[%s3180 + $0x24] sm:$0xf]
      %v3191 = vld [vmem:[%s3180 + $0x28] sm:$0xf]
      %v3192 = vld [vmem:[%s3180 + $0x2c] sm:$0xf]
      %v3193 = vld [vmem:[%s3180 + $0x30] sm:$0xf]
      %v3194 = vld [vmem:[%s3180 + $0x34] sm:$0xf]
      %v3195 = vld [vmem:[%s3180 + $0x38] sm:$0xf]
      %v3196 = vld [vmem:[%s3180 + $0x3c] sm:$0xf]
      %v3243 = vunpack.c.l.b16 %v3134
      %v3244 = vunpack.c.l.b16 %v3135
      %v3245 = vunpack.c.l.b16 %v3136
      %v3246 = vunpack.c.l.b16 %v3137
      %v3247 = vunpack.c.l.b16 %v3138
      %v3248 = vunpack.c.l.b16 %v3139
      %v3249 = vunpack.c.l.b16 %v3140
      %v3250 = vunpack.c.l.b16 %v3141
      %v3251 = vunpack.c.l.b16 %v3142
      %v3252 = vunpack.c.l.b16 %v3143
      %v3253 = vunpack.c.l.b16 %v3144
      %v3254 = vunpack.c.l.b16 %v3145
      %v3255 = vunpack.c.l.b16 %v3146
      %v3256 = vunpack.c.l.b16 %v3147
      %v3257 = vunpack.c.l.b16 %v3148
      %v3258 = vunpack.c.l.b16 %v3149
      %v3259 = vunpack.c.l.b16 %v3150
      %v3260 = vunpack.c.l.b16 %v3151
      %v3261 = vunpack.c.l.b16 %v3152
      %v3262 = vunpack.c.l.b16 %v3153
      %v3263 = vunpack.c.l.b16 %v3154
      %v3264 = vunpack.c.l.b16 %v3155
      %v3265 = vunpack.c.l.b16 %v3156
      %v3266 = vunpack.c.l.b16 %v3157
      %v3267 = vunpack.c.l.b16 %v3158
      %v3268 = vunpack.c.l.b16 %v3159
      %v3269 = vunpack.c.l.b16 %v3160
      %v3270 = vunpack.c.l.b16 %v3161
      %v3271 = vunpack.c.l.b16 %v3162
      %v3272 = vunpack.c.l.b16 %v3163
      %v3273 = vunpack.c.l.b16 %v3164
      %v3274 = vunpack.c.l.b16 %v3165
      %v3275 = vunpack.c.l.b16 %v3166
      %v3276 = vunpack.c.l.b16 %v3167
      %v3277 = vunpack.c.l.b16 %v3168
      %v3278 = vunpack.c.l.b16 %v3169
      %v3279 = vunpack.c.l.b16 %v3170
      %v3280 = vunpack.c.l.b16 %v3171
      %v3281 = vunpack.c.l.b16 %v3172
      %v3282 = vunpack.c.l.b16 %v3173
      %v3283 = vunpack.c.l.b16 %v3174
      %v3284 = vunpack.c.l.b16 %v3175
      %v3285 = vunpack.c.l.b16 %v3176
      %v3286 = vunpack.c.l.b16 %v3177
      %v3287 = vunpack.c.l.b16 %v3178
      %v3288 = vunpack.c.l.b16 %v3179
      %v3289 = vpack.c.b16 %v3244, %v3243
      %v3290 = vpack.c.b16 %v3246, %v3245
      %v3291 = vpack.c.b16 %v3248, %v3247
      %v3292 = vpack.c.b16 %v3250, %v3249
      %v3293 = vpack.c.b16 %v3252, %v3251
      %v3294 = vpack.c.b16 %v3254, %v3253
      %v3295 = vpack.c.b16 %v3256, %v3255
      %v3296 = vpack.c.b16 %v3258, %v3257
      %v3297 = vpack.c.b16 %v3260, %v3259
      %v3298 = vpack.c.b16 %v3262, %v3261
      %v3299 = vpack.c.b16 %v3264, %v3263
      %v3300 = vpack.c.b16 %v3266, %v3265
      %v3301 = vpack.c.b16 %v3268, %v3267
      %v3302 = vpack.c.b16 %v3270, %v3269
      %v3303 = vpack.c.b16 %v3272, %v3271
      %v3304 = vpack.c.b16 %v3274, %v3273
      %v3305 = vpack.c.b16 %v3276, %v3275
      %v3306 = vpack.c.b16 %v3278, %v3277
      %v3307 = vpack.c.b16 %v3280, %v3279
      %v3308 = vpack.c.b16 %v3282, %v3281
      %v3309 = vpack.c.b16 %v3284, %v3283
      %v3310 = vpack.c.b16 %v3286, %v3285
      %v3311 = vpack.c.b16 %v3288, %v3287
      %v3313 = vshrl.u32 %v3289, 16
      %v3315 = vshll.u32 %v3289, 16
      %v3317 = vrot.slane %v3315, 1
      %v3318 = vor.u32 %v3313, %v3317
      %v3320 = vshll.u32 %v3290, 16
      %v3322 = vrot.slane %v3320, 1
      %v3323 = vsel %vm605, %v3318, %v3322
      %v3324 = vshrl.u32 %v3290, 16
      %v3326 = vor.u32 %v3324, %v3322
      %v3328 = vshll.u32 %v3291, 16
      %v3330 = vrot.slane %v3328, 1
      %v3331 = vsel %vm605, %v3326, %v3330
      %v3332 = vshrl.u32 %v3291, 16
      %v3334 = vor.u32 %v3332, %v3330
      %v3336 = vshll.u32 %v3292, 16
      %v3338 = vrot.slane %v3336, 1
      %v3339 = vsel %vm605, %v3334, %v3338
      %v3340 = vshrl.u32 %v3292, 16
      %v3342 = vor.u32 %v3340, %v3338
      %v3344 = vshll.u32 %v3293, 16
      %v3346 = vrot.slane %v3344, 1
      %v3347 = vsel %vm605, %v3342, %v3346
      %v3348 = vshrl.u32 %v3293, 16
      %v3350 = vor.u32 %v3348, %v3346
      %v3352 = vshll.u32 %v3294, 16
      %v3354 = vrot.slane %v3352, 1
      %v3355 = vsel %vm605, %v3350, %v3354
      %v3356 = vshrl.u32 %v3294, 16
      %v3358 = vor.u32 %v3356, %v3354
      %v3360 = vshll.u32 %v3295, 16
      %v3362 = vrot.slane %v3360, 1
      %v3363 = vsel %vm605, %v3358, %v3362
      %v3364 = vshrl.u32 %v3295, 16
      %v3366 = vor.u32 %v3364, %v3362
      %v3368 = vshll.u32 %v3296, 16
      %v3370 = vrot.slane %v3368, 1
      %v3371 = vsel %vm605, %v3366, %v3370
      %v3372 = vshrl.u32 %v3296, 16
      %v3374 = vor.u32 %v3372, %v3370
      %v3376 = vshll.u32 %v3297, 16
      %v3378 = vrot.slane %v3376, 1
      %v3379 = vsel %vm605, %v3374, %v3378
      %v3380 = vshrl.u32 %v3297, 16
      %v3382 = vor.u32 %v3380, %v3378
      %v3384 = vshll.u32 %v3298, 16
      %v3386 = vrot.slane %v3384, 1
      %v3387 = vsel %vm605, %v3382, %v3386
      %v3388 = vshrl.u32 %v3298, 16
      %v3390 = vor.u32 %v3388, %v3386
      %v3392 = vshll.u32 %v3299, 16
      %v3394 = vrot.slane %v3392, 1
      %v3395 = vsel %vm605, %v3390, %v3394
      %v3396 = vshrl.u32 %v3299, 16
      %v3398 = vor.u32 %v3396, %v3394
      %v3400 = vshll.u32 %v3300, 16
      %v3402 = vrot.slane %v3400, 1
      %v3403 = vsel %vm605, %v3398, %v3402
      %v3404 = vshrl.u32 %v3300, 16
      %v3406 = vor.u32 %v3404, %v3402
      %v3408 = vshll.u32 %v3301, 16
      %v3410 = vrot.slane %v3408, 1
      %v3411 = vsel %vm605, %v3406, %v3410
      %v3412 = vshrl.u32 %v3301, 16
      %v3414 = vor.u32 %v3412, %v3410
      %v3416 = vshll.u32 %v3302, 16
      %v3418 = vrot.slane %v3416, 1
      %v3419 = vsel %vm605, %v3414, %v3418
      %v3420 = vshrl.u32 %v3302, 16
      %v3422 = vor.u32 %v3420, %v3418
      %v3424 = vshll.u32 %v3303, 16
      %v3426 = vrot.slane %v3424, 1
      %v3427 = vsel %vm605, %v3422, %v3426
      %v3428 = vshrl.u32 %v3303, 16
      %v3430 = vor.u32 %v3428, %v3426
      %v3432 = vshll.u32 %v3304, 16
      %v3434 = vrot.slane %v3432, 1
      %v3435 = vsel %vm605, %v3430, %v3434
      %v3436 = vshrl.u32 %v3304, 16
      %v3438 = vor.u32 %v3436, %v3434
      %v3440 = vshll.u32 %v3305, 16
      %v3442 = vrot.slane %v3440, 1
      %v3443 = vsel %vm605, %v3438, %v3442
      %v3444 = vshrl.u32 %v3305, 16
      %v3446 = vor.u32 %v3444, %v3442
      %v3448 = vshll.u32 %v3306, 16
      %v3450 = vrot.slane %v3448, 1
      %v3451 = vsel %vm605, %v3446, %v3450
      %v3452 = vshrl.u32 %v3306, 16
      %v3454 = vor.u32 %v3452, %v3450
      %v3456 = vshll.u32 %v3307, 16
      %v3458 = vrot.slane %v3456, 1
      %v3459 = vsel %vm605, %v3454, %v3458
      %v3460 = vshrl.u32 %v3307, 16
      %v3462 = vor.u32 %v3460, %v3458
      %v3464 = vshll.u32 %v3308, 16
      %v3466 = vrot.slane %v3464, 1
      %v3467 = vsel %vm605, %v3462, %v3466
      %v3468 = vshrl.u32 %v3308, 16
      %v3470 = vor.u32 %v3468, %v3466
      %v3472 = vshll.u32 %v3309, 16
      %v3474 = vrot.slane %v3472, 1
      %v3475 = vsel %vm605, %v3470, %v3474
      %v3476 = vshrl.u32 %v3309, 16
      %v3478 = vor.u32 %v3476, %v3474
      %v3480 = vshll.u32 %v3310, 16
      %v3482 = vrot.slane %v3480, 1
      %v3483 = vsel %vm605, %v3478, %v3482
      %v3484 = vshrl.u32 %v3310, 16
      %v3486 = vor.u32 %v3484, %v3482
      %v3488 = vshll.u32 %v3311, 16
      %v3490 = vrot.slane %v3488, 1
      %v3491 = vsel %vm605, %v3486, %v3490
      %v3492 = vshrl.u32 %v3311, 16
      %v3494 = vor.u32 %v3492, %v3490
      %v3534 = vunpack.c.l.b16 %v3181
      %v3535 = vunpack.c.l.b16 %v3182
      %v3536 = vunpack.c.l.b16 %v3183
      %v3537 = vunpack.c.l.b16 %v3184
      %v3538 = vunpack.c.l.b16 %v3185
      %v3539 = vunpack.c.l.b16 %v3186
      %v3540 = vunpack.c.l.b16 %v3187
      %v3541 = vunpack.c.l.b16 %v3188
      %v3542 = vunpack.c.l.b16 %v3189
      %v3543 = vunpack.c.l.b16 %v3190
      %v3544 = vunpack.c.l.b16 %v3191
      %v3545 = vunpack.c.l.b16 %v3192
      %v3546 = vunpack.c.l.b16 %v3193
      %v3547 = vunpack.c.l.b16 %v3194
      %v3548 = vunpack.c.l.b16 %v3195
      %v3549 = vunpack.c.l.b16 %v3196
      %v3550 = vpack.c.b16 %v3535, %v3534
      %v3551 = vpack.c.b16 %v3537, %v3536
      %v3552 = vpack.c.b16 %v3539, %v3538
      %v3553 = vpack.c.b16 %v3541, %v3540
      %v3554 = vpack.c.b16 %v3543, %v3542
      %v3555 = vpack.c.b16 %v3545, %v3544
      %v3556 = vpack.c.b16 %v3547, %v3546
      %v3557 = vpack.c.b16 %v3549, %v3548
      %3566 = vmatpush.bf16.msra.mxu0 %v3557
      %3567 = vmatpush.bf16.msra.mxu0 %v3556
      %3568 = vmatpush.bf16.msra.mxu0 %v3555
      %3569 = vmatpush.bf16.msra.mxu0 %v3554
      %3570 = vmatpush.bf16.msra.mxu0 %v3553
      %3571 = vmatpush.bf16.msra.mxu0 %v3552
      %3572 = vmatpush.bf16.msra.mxu0 %v3551
      %3573 = vmatpush.bf16.msra.mxu0 %v3550
      %3574 = vmatmul.bf16.gmra.mxu0 %v3323
      %v3575 = vpop.f32.mrf.mxu0
      %v3576 = vadd.f32 0.0, %v3575
      %v3577 = vpop.f32.mrf.mxu0
      %v3578 = vadd.f32 0.0, %v3577
      %3579 = vmatmul.bf16.gmra.mxu0 %v3331
      %v3580 = vpop.f32.mrf.mxu0
      %v3581 = vadd.f32 0.0, %v3580
      %v3582 = vpop.f32.mrf.mxu0
      %v3583 = vadd.f32 0.0, %v3582
      %3584 = vmatmul.bf16.gmra.mxu0 %v3339
      %v3585 = vpop.f32.mrf.mxu0
      %v3586 = vadd.f32 0.0, %v3585
      %v3587 = vpop.f32.mrf.mxu0
      %v3588 = vadd.f32 0.0, %v3587
      %3589 = vmatmul.bf16.gmra.mxu0 %v3347
      %v3590 = vpop.f32.mrf.mxu0
      %v3591 = vadd.f32 0.0, %v3590
      %v3592 = vpop.f32.mrf.mxu0
      %v3593 = vadd.f32 0.0, %v3592
      %3594 = vmatmul.bf16.gmra.mxu0 %v3355
      %v3595 = vpop.f32.mrf.mxu0
      %v3596 = vadd.f32 0.0, %v3595
      %v3597 = vpop.f32.mrf.mxu0
      %v3598 = vadd.f32 0.0, %v3597
      %3599 = vmatmul.bf16.gmra.mxu0 %v3363
      %v3600 = vpop.f32.mrf.mxu0
      %v3601 = vadd.f32 0.0, %v3600
      %v3602 = vpop.f32.mrf.mxu0
      %v3603 = vadd.f32 0.0, %v3602
      %3604 = vmatmul.bf16.gmra.mxu0 %v3371
      %v3605 = vpop.f32.mrf.mxu0
      %v3606 = vadd.f32 0.0, %v3605
      %v3607 = vpop.f32.mrf.mxu0
      %v3608 = vadd.f32 0.0, %v3607
      %3609 = vmatmul.bf16.gmra.mxu0 %v3379
      %v3610 = vpop.f32.mrf.mxu0
      %v3611 = vadd.f32 0.0, %v3610
      %v3612 = vpop.f32.mrf.mxu0
      %v3613 = vadd.f32 0.0, %v3612
      %3614 = vmatmul.bf16.gmra.mxu0 %v3387
      %v3615 = vpop.f32.mrf.mxu0
      %v3616 = vadd.f32 0.0, %v3615
      %v3617 = vpop.f32.mrf.mxu0
      %v3618 = vadd.f32 0.0, %v3617
      %3619 = vmatmul.bf16.gmra.mxu0 %v3395
      %v3620 = vpop.f32.mrf.mxu0
      %v3621 = vadd.f32 0.0, %v3620
      %v3622 = vpop.f32.mrf.mxu0
      %v3623 = vadd.f32 0.0, %v3622
      %3624 = vmatmul.bf16.gmra.mxu0 %v3403
      %v3625 = vpop.f32.mrf.mxu0
      %v3626 = vadd.f32 0.0, %v3625
      %v3627 = vpop.f32.mrf.mxu0
      %v3628 = vadd.f32 0.0, %v3627
      %3629 = vmatmul.bf16.gmra.mxu0 %v3411
      %v3630 = vpop.f32.mrf.mxu0
      %v3631 = vadd.f32 0.0, %v3630
      %v3632 = vpop.f32.mrf.mxu0
      %v3633 = vadd.f32 0.0, %v3632
      %3634 = vmatmul.bf16.gmra.mxu0 %v3419
      %v3635 = vpop.f32.mrf.mxu0
      %v3636 = vadd.f32 0.0, %v3635
      %v3637 = vpop.f32.mrf.mxu0
      %v3638 = vadd.f32 0.0, %v3637
      %3639 = vmatmul.bf16.gmra.mxu0 %v3427
      %v3640 = vpop.f32.mrf.mxu0
      %v3641 = vadd.f32 0.0, %v3640
      %v3642 = vpop.f32.mrf.mxu0
      %v3643 = vadd.f32 0.0, %v3642
      %3644 = vmatmul.bf16.gmra.mxu0 %v3435
      %v3645 = vpop.f32.mrf.mxu0
      %v3646 = vadd.f32 0.0, %v3645
      %v3647 = vpop.f32.mrf.mxu0
      %v3648 = vadd.f32 0.0, %v3647
      %3649 = vmatmul.bf16.gmra.mxu0 %v3443
      %v3650 = vpop.f32.mrf.mxu0
      %v3651 = vadd.f32 0.0, %v3650
      %v3652 = vpop.f32.mrf.mxu0
      %v3653 = vadd.f32 0.0, %v3652
      %3654 = vmatmul.bf16.gmra.mxu0 %v3451
      %v3655 = vpop.f32.mrf.mxu0
      %v3656 = vadd.f32 0.0, %v3655
      %v3657 = vpop.f32.mrf.mxu0
      %v3658 = vadd.f32 0.0, %v3657
      %3659 = vmatmul.bf16.gmra.mxu0 %v3459
      %v3660 = vpop.f32.mrf.mxu0
      %v3661 = vadd.f32 0.0, %v3660
      %v3662 = vpop.f32.mrf.mxu0
      %v3663 = vadd.f32 0.0, %v3662
      %3664 = vmatmul.bf16.gmra.mxu0 %v3467
      %v3665 = vpop.f32.mrf.mxu0
      %v3666 = vadd.f32 0.0, %v3665
      %v3667 = vpop.f32.mrf.mxu0
      %v3668 = vadd.f32 0.0, %v3667
      %3669 = vmatmul.bf16.gmra.mxu0 %v3475
      %v3670 = vpop.f32.mrf.mxu0
      %v3671 = vadd.f32 0.0, %v3670
      %v3672 = vpop.f32.mrf.mxu0
      %v3673 = vadd.f32 0.0, %v3672
      %3674 = vmatmul.bf16.gmra.mxu0 %v3483
      %v3675 = vpop.f32.mrf.mxu0
      %v3676 = vadd.f32 0.0, %v3675
      %v3677 = vpop.f32.mrf.mxu0
      %v3678 = vadd.f32 0.0, %v3677
      %3679 = vmatmul.bf16.gmra.mxu0 %v3491
      %v3680 = vpop.f32.mrf.mxu0
      %v3681 = vadd.f32 0.0, %v3680
      %v3682 = vpop.f32.mrf.mxu0
      %v3683 = vadd.f32 0.0, %v3682
      %3684 = vmatmul.bf16.gmra.mxu0 %v3494
      %v3685 = vpop.f32.mrf.mxu0
      %v3686 = vadd.f32 0.0, %v3685
      %v3687 = vpop.f32.mrf.mxu0
      %3688 = vdwg.mxu0
      %v3689 = vadd.f32 %v3089, %v3576
      %v3690 = vadd.f32 %v3090, %v3578
      %v3691 = vadd.f32 %v3091, %v3581
      %v3692 = vadd.f32 %v3092, %v3583
      %v3693 = vadd.f32 %v3093, %v3586
      %v3694 = vadd.f32 %v3094, %v3588
      %v3695 = vadd.f32 %v3095, %v3591
      %v3696 = vadd.f32 %v3096, %v3593
      %v3697 = vadd.f32 %v3097, %v3596
      %v3698 = vadd.f32 %v3098, %v3598
      %v3699 = vadd.f32 %v3099, %v3601
      %v3700 = vadd.f32 %v3100, %v3603
      %v3701 = vadd.f32 %v3101, %v3606
      %v3702 = vadd.f32 %v3102, %v3608
      %v3703 = vadd.f32 %v3103, %v3611
      %v3704 = vadd.f32 %v3104, %v3613
      %v3705 = vadd.f32 %v3105, %v3616
      %v3706 = vadd.f32 %v3106, %v3618
      %v3707 = vadd.f32 %v3107, %v3621
      %v3708 = vadd.f32 %v3108, %v3623
      %v3709 = vadd.f32 %v3109, %v3626
      %v3710 = vadd.f32 %v3110, %v3628
      %v3711 = vadd.f32 %v3111, %v3631
      %v3712 = vadd.f32 %v3112, %v3633
      %v3713 = vadd.f32 %v3113, %v3636
      %v3714 = vadd.f32 %v3114, %v3638
      %v3715 = vadd.f32 %v3115, %v3641
      %v3716 = vadd.f32 %v3116, %v3643
      %v3717 = vadd.f32 %v3117, %v3646
      %v3718 = vadd.f32 %v3118, %v3648
      %v3719 = vadd.f32 %v3119, %v3651
      %v3720 = vadd.f32 %v3120, %v3653
      %v3721 = vadd.f32 %v3121, %v3656
      %v3722 = vadd.f32 %v3122, %v3658
      %v3723 = vadd.f32 %v3123, %v3661
      %v3724 = vadd.f32 %v3124, %v3663
      %v3725 = vadd.f32 %v3125, %v3666
      %v3726 = vadd.f32 %v3126, %v3668
      %v3727 = vadd.f32 %v3127, %v3671
      %v3728 = vadd.f32 %v3128, %v3673
      %v3729 = vadd.f32 %v3129, %v3676
      %v3730 = vadd.f32 %v3130, %v3678
      %v3731 = vadd.f32 %v3131, %v3681
      %v3732 = vadd.f32 %v3132, %v3683
      %v3733 = vadd.f32 %v3133, %v3686
      %v3734 = vld [vmem:[%s384 + $0x14] sm:$0xe]
      %s3735 = scalar_lea.vmem %s1, 512
      %v3736 = vld [vmem:[%s3735] sm:$0xf]
      %v3737 = vld [vmem:[%s3735 + $0x4] sm:$0xf]
      %v3738 = vld [vmem:[%s3735 + $0x8] sm:$0xf]
      %v3739 = vld [vmem:[%s3735 + $0xc] sm:$0xf]
      %v3740 = vld [vmem:[%s3735 + $0x10] sm:$0xf]
      %v3741 = vld [vmem:[%s3735 + $0x14] sm:$0xf]
      %v3742 = vld [vmem:[%s3735 + $0x18] sm:$0xf]
      %v3743 = vld [vmem:[%s3735 + $0x1c] sm:$0xf]
      %v3744 = vld [vmem:[%s3735 + $0x20] sm:$0xf]
      %v3745 = vld [vmem:[%s3735 + $0x24] sm:$0xf]
      %v3746 = vld [vmem:[%s3735 + $0x28] sm:$0xf]
      %v3747 = vld [vmem:[%s3735 + $0x2c] sm:$0xf]
      %v3748 = vld [vmem:[%s3735 + $0x30] sm:$0xf]
      %v3749 = vld [vmem:[%s3735 + $0x34] sm:$0xf]
      %v3750 = vld [vmem:[%s3735 + $0x38] sm:$0xf]
      %v3751 = vld [vmem:[%s3735 + $0x3c] sm:$0xf]
      %v3753 = vunpack.c.l.b16 %v3734
      %v3754 = vpack.c.b16 %v3244, %v3753
      %v3755 = vrot.slane %v3754, 1
      %v3756 = vrot.slane %v3290, 1
      %v3757 = vsel %vm1199, %v3755, %v3756
      %v3758 = vrot.slane %v3291, 1
      %v3759 = vsel %vm1199, %v3756, %v3758
      %v3760 = vrot.slane %v3292, 1
      %v3761 = vsel %vm1199, %v3758, %v3760
      %v3762 = vrot.slane %v3293, 1
      %v3763 = vsel %vm1199, %v3760, %v3762
      %v3764 = vrot.slane %v3294, 1
      %v3765 = vsel %vm1199, %v3762, %v3764
      %v3766 = vrot.slane %v3295, 1
      %v3767 = vsel %vm1199, %v3764, %v3766
      %v3768 = vrot.slane %v3296, 1
      %v3769 = vsel %vm1199, %v3766, %v3768
      %v3770 = vrot.slane %v3297, 1
      %v3771 = vsel %vm1199, %v3768, %v3770
      %v3772 = vrot.slane %v3298, 1
      %v3773 = vsel %vm1199, %v3770, %v3772
      %v3774 = vrot.slane %v3299, 1
      %v3775 = vsel %vm1199, %v3772, %v3774
      %v3776 = vrot.slane %v3300, 1
      %v3777 = vsel %vm1199, %v3774, %v3776
      %v3778 = vrot.slane %v3301, 1
      %v3779 = vsel %vm1199, %v3776, %v3778
      %v3780 = vrot.slane %v3302, 1
      %v3781 = vsel %vm1199, %v3778, %v3780
      %v3782 = vrot.slane %v3303, 1
      %v3783 = vsel %vm1199, %v3780, %v3782
      %v3784 = vrot.slane %v3304, 1
      %v3785 = vsel %vm1199, %v3782, %v3784
      %v3786 = vrot.slane %v3305, 1
      %v3787 = vsel %vm1199, %v3784, %v3786
      %v3788 = vrot.slane %v3306, 1
      %v3789 = vsel %vm1199, %v3786, %v3788
      %v3790 = vrot.slane %v3307, 1
      %v3791 = vsel %vm1199, %v3788, %v3790
      %v3792 = vrot.slane %v3308, 1
      %v3793 = vsel %vm1199, %v3790, %v3792
      %v3794 = vrot.slane %v3309, 1
      %v3795 = vsel %vm1199, %v3792, %v3794
      %v3796 = vrot.slane %v3310, 1
      %v3797 = vsel %vm1199, %v3794, %v3796
      %v3798 = vrot.slane %v3311, 1
      %v3799 = vsel %vm1199, %v3796, %v3798
      %v3839 = vunpack.c.l.b16 %v3736
      %v3840 = vunpack.c.l.b16 %v3737
      %v3841 = vunpack.c.l.b16 %v3738
      %v3842 = vunpack.c.l.b16 %v3739
      %v3843 = vunpack.c.l.b16 %v3740
      %v3844 = vunpack.c.l.b16 %v3741
      %v3845 = vunpack.c.l.b16 %v3742
      %v3846 = vunpack.c.l.b16 %v3743
      %v3847 = vunpack.c.l.b16 %v3744
      %v3848 = vunpack.c.l.b16 %v3745
      %v3849 = vunpack.c.l.b16 %v3746
      %v3850 = vunpack.c.l.b16 %v3747
      %v3851 = vunpack.c.l.b16 %v3748
      %v3852 = vunpack.c.l.b16 %v3749
      %v3853 = vunpack.c.l.b16 %v3750
      %v3854 = vunpack.c.l.b16 %v3751
      %v3855 = vpack.c.b16 %v3840, %v3839
      %v3856 = vpack.c.b16 %v3842, %v3841
      %v3857 = vpack.c.b16 %v3844, %v3843
      %v3858 = vpack.c.b16 %v3846, %v3845
      %v3859 = vpack.c.b16 %v3848, %v3847
      %v3860 = vpack.c.b16 %v3850, %v3849
      %v3861 = vpack.c.b16 %v3852, %v3851
      %v3862 = vpack.c.b16 %v3854, %v3853
      %3871 = vmatpush.bf16.msra.mxu0 %v3862
      %3872 = vmatpush.bf16.msra.mxu0 %v3861
      %3873 = vmatpush.bf16.msra.mxu0 %v3860
      %3874 = vmatpush.bf16.msra.mxu0 %v3859
      %3875 = vmatpush.bf16.msra.mxu0 %v3858
      %3876 = vmatpush.bf16.msra.mxu0 %v3857
      %3877 = vmatpush.bf16.msra.mxu0 %v3856
      %3878 = vmatpush.bf16.msra.mxu0 %v3855
      %3879 = vmatmul.bf16.gmra.mxu0 %v3757
      %v3880 = vpop.f32.mrf.mxu0
      %v3881 = vadd.f32 0.0, %v3880
      %v3882 = vpop.f32.mrf.mxu0
      %v3883 = vadd.f32 0.0, %v3882
      %3884 = vmatmul.bf16.gmra.mxu0 %v3759
      %v3885 = vpop.f32.mrf.mxu0
      %v3886 = vadd.f32 0.0, %v3885
      %v3887 = vpop.f32.mrf.mxu0
      %v3888 = vadd.f32 0.0, %v3887
      %3889 = vmatmul.bf16.gmra.mxu0 %v3761
      %v3890 = vpop.f32.mrf.mxu0
      %v3891 = vadd.f32 0.0, %v3890
      %v3892 = vpop.f32.mrf.mxu0
      %v3893 = vadd.f32 0.0, %v3892
      %3894 = vmatmul.bf16.gmra.mxu0 %v3763
      %v3895 = vpop.f32.mrf.mxu0
      %v3896 = vadd.f32 0.0, %v3895
      %v3897 = vpop.f32.mrf.mxu0
      %v3898 = vadd.f32 0.0, %v3897
      %3899 = vmatmul.bf16.gmra.mxu0 %v3765
      %v3900 = vpop.f32.mrf.mxu0
      %v3901 = vadd.f32 0.0, %v3900
      %v3902 = vpop.f32.mrf.mxu0
      %v3903 = vadd.f32 0.0, %v3902
      %3904 = vmatmul.bf16.gmra.mxu0 %v3767
      %v3905 = vpop.f32.mrf.mxu0
      %v3906 = vadd.f32 0.0, %v3905
      %v3907 = vpop.f32.mrf.mxu0
      %v3908 = vadd.f32 0.0, %v3907
      %3909 = vmatmul.bf16.gmra.mxu0 %v3769
      %v3910 = vpop.f32.mrf.mxu0
      %v3911 = vadd.f32 0.0, %v3910
      %v3912 = vpop.f32.mrf.mxu0
      %v3913 = vadd.f32 0.0, %v3912
      %3914 = vmatmul.bf16.gmra.mxu0 %v3771
      %v3915 = vpop.f32.mrf.mxu0
      %v3916 = vadd.f32 0.0, %v3915
      %v3917 = vpop.f32.mrf.mxu0
      %v3918 = vadd.f32 0.0, %v3917
      %3919 = vmatmul.bf16.gmra.mxu0 %v3773
      %v3920 = vpop.f32.mrf.mxu0
      %v3921 = vadd.f32 0.0, %v3920
      %v3922 = vpop.f32.mrf.mxu0
      %v3923 = vadd.f32 0.0, %v3922
      %3924 = vmatmul.bf16.gmra.mxu0 %v3775
      %v3925 = vpop.f32.mrf.mxu0
      %v3926 = vadd.f32 0.0, %v3925
      %v3927 = vpop.f32.mrf.mxu0
      %v3928 = vadd.f32 0.0, %v3927
      %3929 = vmatmul.bf16.gmra.mxu0 %v3777
      %v3930 = vpop.f32.mrf.mxu0
      %v3931 = vadd.f32 0.0, %v3930
      %v3932 = vpop.f32.mrf.mxu0
      %v3933 = vadd.f32 0.0, %v3932
      %3934 = vmatmul.bf16.gmra.mxu0 %v3779
      %v3935 = vpop.f32.mrf.mxu0
      %v3936 = vadd.f32 0.0, %v3935
      %v3937 = vpop.f32.mrf.mxu0
      %v3938 = vadd.f32 0.0, %v3937
      %3939 = vmatmul.bf16.gmra.mxu0 %v3781
      %v3940 = vpop.f32.mrf.mxu0
      %v3941 = vadd.f32 0.0, %v3940
      %v3942 = vpop.f32.mrf.mxu0
      %v3943 = vadd.f32 0.0, %v3942
      %3944 = vmatmul.bf16.gmra.mxu0 %v3783
      %v3945 = vpop.f32.mrf.mxu0
      %v3946 = vadd.f32 0.0, %v3945
      %v3947 = vpop.f32.mrf.mxu0
      %v3948 = vadd.f32 0.0, %v3947
      %3949 = vmatmul.bf16.gmra.mxu0 %v3785
      %v3950 = vpop.f32.mrf.mxu0
      %v3951 = vadd.f32 0.0, %v3950
      %v3952 = vpop.f32.mrf.mxu0
      %v3953 = vadd.f32 0.0, %v3952
      %3954 = vmatmul.bf16.gmra.mxu0 %v3787
      %v3955 = vpop.f32.mrf.mxu0
      %v3956 = vadd.f32 0.0, %v3955
      %v3957 = vpop.f32.mrf.mxu0
      %v3958 = vadd.f32 0.0, %v3957
      %3959 = vmatmul.bf16.gmra.mxu0 %v3789
      %v3960 = vpop.f32.mrf.mxu0
      %v3961 = vadd.f32 0.0, %v3960
      %v3962 = vpop.f32.mrf.mxu0
      %v3963 = vadd.f32 0.0, %v3962
      %3964 = vmatmul.bf16.gmra.mxu0 %v3791
      %v3965 = vpop.f32.mrf.mxu0
      %v3966 = vadd.f32 0.0, %v3965
      %v3967 = vpop.f32.mrf.mxu0
      %v3968 = vadd.f32 0.0, %v3967
      %3969 = vmatmul.bf16.gmra.mxu0 %v3793
      %v3970 = vpop.f32.mrf.mxu0
      %v3971 = vadd.f32 0.0, %v3970
      %v3972 = vpop.f32.mrf.mxu0
      %v3973 = vadd.f32 0.0, %v3972
      %3974 = vmatmul.bf16.gmra.mxu0 %v3795
      %v3975 = vpop.f32.mrf.mxu0
      %v3976 = vadd.f32 0.0, %v3975
      %v3977 = vpop.f32.mrf.mxu0
      %v3978 = vadd.f32 0.0, %v3977
      %3979 = vmatmul.bf16.gmra.mxu0 %v3797
      %v3980 = vpop.f32.mrf.mxu0
      %v3981 = vadd.f32 0.0, %v3980
      %v3982 = vpop.f32.mrf.mxu0
      %v3983 = vadd.f32 0.0, %v3982
      %3984 = vmatmul.bf16.gmra.mxu0 %v3799
      %v3985 = vpop.f32.mrf.mxu0
      %v3986 = vadd.f32 0.0, %v3985
      %v3987 = vpop.f32.mrf.mxu0
      %v3988 = vadd.f32 0.0, %v3987
      %3989 = vmatmul.bf16.gmra.mxu0 %v3798
      %v3990 = vpop.f32.mrf.mxu0
      %v3991 = vadd.f32 0.0, %v3990
      %v3992 = vpop.f32.mrf.mxu0
      %3993 = vdwg.mxu0
      %v3994 = vadd.f32 %v3689, %v3881
      %v3995 = vadd.f32 %v3690, %v3883
      %v3996 = vadd.f32 %v3691, %v3886
      %v3997 = vadd.f32 %v3692, %v3888
      %v3998 = vadd.f32 %v3693, %v3891
      %v3999 = vadd.f32 %v3694, %v3893
      %v4000 = vadd.f32 %v3695, %v3896
      %v4001 = vadd.f32 %v3696, %v3898
      %v4002 = vadd.f32 %v3697, %v3901
      %v4003 = vadd.f32 %v3698, %v3903
      %v4004 = vadd.f32 %v3699, %v3906
      %v4005 = vadd.f32 %v3700, %v3908
      %v4006 = vadd.f32 %v3701, %v3911
      %v4007 = vadd.f32 %v3702, %v3913
      %v4008 = vadd.f32 %v3703, %v3916
      %v4009 = vadd.f32 %v3704, %v3918
      %v4010 = vadd.f32 %v3705, %v3921
      %v4011 = vadd.f32 %v3706, %v3923
      %v4012 = vadd.f32 %v3707, %v3926
      %v4013 = vadd.f32 %v3708, %v3928
      %v4014 = vadd.f32 %v3709, %v3931
      %v4015 = vadd.f32 %v3710, %v3933
      %v4016 = vadd.f32 %v3711, %v3936
      %v4017 = vadd.f32 %v3712, %v3938
      %v4018 = vadd.f32 %v3713, %v3941
      %v4019 = vadd.f32 %v3714, %v3943
      %v4020 = vadd.f32 %v3715, %v3946
      %v4021 = vadd.f32 %v3716, %v3948
      %v4022 = vadd.f32 %v3717, %v3951
      %v4023 = vadd.f32 %v3718, %v3953
      %v4024 = vadd.f32 %v3719, %v3956
      %v4025 = vadd.f32 %v3720, %v3958
      %v4026 = vadd.f32 %v3721, %v3961
      %v4027 = vadd.f32 %v3722, %v3963
      %v4028 = vadd.f32 %v3723, %v3966
      %v4029 = vadd.f32 %v3724, %v3968
      %v4030 = vadd.f32 %v3725, %v3971
      %v4031 = vadd.f32 %v3726, %v3973
      %v4032 = vadd.f32 %v3727, %v3976
      %v4033 = vadd.f32 %v3728, %v3978
      %v4034 = vadd.f32 %v3729, %v3981
      %v4035 = vadd.f32 %v3730, %v3983
      %v4036 = vadd.f32 %v3731, %v3986
      %v4037 = vadd.f32 %v3732, %v3988
      %v4038 = vadd.f32 %v3733, %v3991
      %v4039 = vld [vmem:[%s2] sm:$0x1]
      %v4041 = vperm.slane %v4039, 0
      %v4043 = vadd.f32 %v3994, %v4041
      %v4044 = vadd.f32 %v3995, %v4041
      %v4045 = vadd.f32 %v3996, %v4041
      %v4046 = vadd.f32 %v3997, %v4041
      %v4047 = vadd.f32 %v3998, %v4041
      %v4048 = vadd.f32 %v3999, %v4041
      %v4049 = vadd.f32 %v4000, %v4041
      %v4050 = vadd.f32 %v4001, %v4041
      %v4051 = vadd.f32 %v4002, %v4041
      %v4052 = vadd.f32 %v4003, %v4041
      %v4053 = vadd.f32 %v4004, %v4041
      %v4054 = vadd.f32 %v4005, %v4041
      %v4055 = vadd.f32 %v4006, %v4041
      %v4056 = vadd.f32 %v4007, %v4041
      %v4057 = vadd.f32 %v4008, %v4041
      %v4058 = vadd.f32 %v4009, %v4041
      %v4059 = vadd.f32 %v4010, %v4041
      %v4060 = vadd.f32 %v4011, %v4041
      %v4061 = vadd.f32 %v4012, %v4041
      %v4062 = vadd.f32 %v4013, %v4041
      %v4063 = vadd.f32 %v4014, %v4041
      %v4064 = vadd.f32 %v4015, %v4041
      %v4065 = vadd.f32 %v4016, %v4041
      %v4066 = vadd.f32 %v4017, %v4041
      %v4067 = vadd.f32 %v4018, %v4041
      %v4068 = vadd.f32 %v4019, %v4041
      %v4069 = vadd.f32 %v4020, %v4041
      %v4070 = vadd.f32 %v4021, %v4041
      %v4071 = vadd.f32 %v4022, %v4041
      %v4072 = vadd.f32 %v4023, %v4041
      %v4073 = vadd.f32 %v4024, %v4041
      %v4074 = vadd.f32 %v4025, %v4041
      %v4075 = vadd.f32 %v4026, %v4041
      %v4076 = vadd.f32 %v4027, %v4041
      %v4077 = vadd.f32 %v4028, %v4041
      %v4078 = vadd.f32 %v4029, %v4041
      %v4079 = vadd.f32 %v4030, %v4041
      %v4080 = vadd.f32 %v4031, %v4041
      %v4081 = vadd.f32 %v4032, %v4041
      %v4082 = vadd.f32 %v4033, %v4041
      %v4083 = vadd.f32 %v4034, %v4041
      %v4084 = vadd.f32 %v4035, %v4041
      %v4085 = vadd.f32 %v4036, %v4041
      %v4086 = vadd.f32 %v4037, %v4041
      %v4087 = vadd.f32 %v4038, %v4041
      %vm4088 = vcmp.gt.f32.partialorder %v4043, 0.0
      %vm4089 = vcmp.gt.f32.partialorder %v4044, 0.0
      %vm4090 = vcmp.gt.f32.partialorder %v4045, 0.0
      %vm4091 = vcmp.gt.f32.partialorder %v4046, 0.0
      %vm4092 = vcmp.gt.f32.partialorder %v4047, 0.0
      %vm4093 = vcmp.gt.f32.partialorder %v4048, 0.0
      %vm4094 = vcmp.gt.f32.partialorder %v4049, 0.0
      %vm4095 = vcmp.gt.f32.partialorder %v4050, 0.0
      %vm4096 = vcmp.gt.f32.partialorder %v4051, 0.0
      %vm4097 = vcmp.gt.f32.partialorder %v4052, 0.0
      %vm4098 = vcmp.gt.f32.partialorder %v4053, 0.0
      %vm4099 = vcmp.gt.f32.partialorder %v4054, 0.0
      %vm4100 = vcmp.gt.f32.partialorder %v4055, 0.0
      %vm4101 = vcmp.gt.f32.partialorder %v4056, 0.0
      %vm4102 = vcmp.gt.f32.partialorder %v4057, 0.0
      %vm4103 = vcmp.gt.f32.partialorder %v4058, 0.0
      %vm4104 = vcmp.gt.f32.partialorder %v4059, 0.0
      %vm4105 = vcmp.gt.f32.partialorder %v4060, 0.0
      %vm4106 = vcmp.gt.f32.partialorder %v4061, 0.0
      %vm4107 = vcmp.gt.f32.partialorder %v4062, 0.0
      %vm4108 = vcmp.gt.f32.partialorder %v4063, 0.0
      %vm4109 = vcmp.gt.f32.partialorder %v4064, 0.0
      %vm4110 = vcmp.gt.f32.partialorder %v4065, 0.0
      %vm4111 = vcmp.gt.f32.partialorder %v4066, 0.0
      %vm4112 = vcmp.gt.f32.partialorder %v4067, 0.0
      %vm4113 = vcmp.gt.f32.partialorder %v4068, 0.0
      %vm4114 = vcmp.gt.f32.partialorder %v4069, 0.0
      %vm4115 = vcmp.gt.f32.partialorder %v4070, 0.0
      %vm4116 = vcmp.gt.f32.partialorder %v4071, 0.0
      %vm4117 = vcmp.gt.f32.partialorder %v4072, 0.0
      %vm4118 = vcmp.gt.f32.partialorder %v4073, 0.0
      %vm4119 = vcmp.gt.f32.partialorder %v4074, 0.0
      %vm4120 = vcmp.gt.f32.partialorder %v4075, 0.0
      %vm4121 = vcmp.gt.f32.partialorder %v4076, 0.0
      %vm4122 = vcmp.gt.f32.partialorder %v4077, 0.0
      %vm4123 = vcmp.gt.f32.partialorder %v4078, 0.0
      %vm4124 = vcmp.gt.f32.partialorder %v4079, 0.0
      %vm4125 = vcmp.gt.f32.partialorder %v4080, 0.0
      %vm4126 = vcmp.gt.f32.partialorder %v4081, 0.0
      %vm4127 = vcmp.gt.f32.partialorder %v4082, 0.0
      %vm4128 = vcmp.gt.f32.partialorder %v4083, 0.0
      %vm4129 = vcmp.gt.f32.partialorder %v4084, 0.0
      %vm4130 = vcmp.gt.f32.partialorder %v4085, 0.0
      %vm4131 = vcmp.gt.f32.partialorder %v4086, 0.0
      %vm4132 = vcmp.gt.f32.partialorder %v4087, 0.0
      %v4133 = vmul.f32 %v4043, 0.01
      %v4134 = vmul.f32 %v4044, 0.01
      %v4135 = vmul.f32 %v4045, 0.01
      %v4136 = vmul.f32 %v4046, 0.01
      %v4137 = vmul.f32 %v4047, 0.01
      %v4138 = vmul.f32 %v4048, 0.01
      %v4139 = vmul.f32 %v4049, 0.01
      %v4140 = vmul.f32 %v4050, 0.01
      %v4141 = vmul.f32 %v4051, 0.01
      %v4142 = vmul.f32 %v4052, 0.01
      %v4143 = vmul.f32 %v4053, 0.01
      %v4144 = vmul.f32 %v4054, 0.01
      %v4145 = vmul.f32 %v4055, 0.01
      %v4146 = vmul.f32 %v4056, 0.01
      %v4147 = vmul.f32 %v4057, 0.01
      %v4148 = vmul.f32 %v4058, 0.01
      %v4149 = vmul.f32 %v4059, 0.01
      %v4150 = vmul.f32 %v4060, 0.01
      %v4151 = vmul.f32 %v4061, 0.01
      %v4152 = vmul.f32 %v4062, 0.01
      %v4153 = vmul.f32 %v4063, 0.01
      %v4154 = vmul.f32 %v4064, 0.01
      %v4155 = vmul.f32 %v4065, 0.01
      %v4156 = vmul.f32 %v4066, 0.01
      %v4157 = vmul.f32 %v4067, 0.01
      %v4158 = vmul.f32 %v4068, 0.01
      %v4159 = vmul.f32 %v4069, 0.01
      %v4160 = vmul.f32 %v4070, 0.01
      %v4161 = vmul.f32 %v4071, 0.01
      %v4162 = vmul.f32 %v4072, 0.01
      %v4163 = vmul.f32 %v4073, 0.01
      %v4164 = vmul.f32 %v4074, 0.01
      %v4165 = vmul.f32 %v4075, 0.01
      %v4166 = vmul.f32 %v4076, 0.01
      %v4167 = vmul.f32 %v4077, 0.01
      %v4168 = vmul.f32 %v4078, 0.01
      %v4169 = vmul.f32 %v4079, 0.01
      %v4170 = vmul.f32 %v4080, 0.01
      %v4171 = vmul.f32 %v4081, 0.01
      %v4172 = vmul.f32 %v4082, 0.01
      %v4173 = vmul.f32 %v4083, 0.01
      %v4174 = vmul.f32 %v4084, 0.01
      %v4175 = vmul.f32 %v4085, 0.01
      %v4176 = vmul.f32 %v4086, 0.01
      %v4177 = vmul.f32 %v4087, 0.01
      %v4178 = vsel %vm4088, %v4043, %v4133
      %v4179 = vsel %vm4089, %v4044, %v4134
      %v4180 = vsel %vm4090, %v4045, %v4135
      %v4181 = vsel %vm4091, %v4046, %v4136
      %v4182 = vsel %vm4092, %v4047, %v4137
      %v4183 = vsel %vm4093, %v4048, %v4138
      %v4184 = vsel %vm4094, %v4049, %v4139
      %v4185 = vsel %vm4095, %v4050, %v4140
      %v4186 = vsel %vm4096, %v4051, %v4141
      %v4187 = vsel %vm4097, %v4052, %v4142
      %v4188 = vsel %vm4098, %v4053, %v4143
      %v4189 = vsel %vm4099, %v4054, %v4144
      %v4190 = vsel %vm4100, %v4055, %v4145
      %v4191 = vsel %vm4101, %v4056, %v4146
      %v4192 = vsel %vm4102, %v4057, %v4147
      %v4193 = vsel %vm4103, %v4058, %v4148
      %v4194 = vsel %vm4104, %v4059, %v4149
      %v4195 = vsel %vm4105, %v4060, %v4150
      %v4196 = vsel %vm4106, %v4061, %v4151
      %v4197 = vsel %vm4107, %v4062, %v4152
      %v4198 = vsel %vm4108, %v4063, %v4153
      %v4199 = vsel %vm4109, %v4064, %v4154
      %v4200 = vsel %vm4110, %v4065, %v4155
      %v4201 = vsel %vm4111, %v4066, %v4156
      %v4202 = vsel %vm4112, %v4067, %v4157
      %v4203 = vsel %vm4113, %v4068, %v4158
      %v4204 = vsel %vm4114, %v4069, %v4159
      %v4205 = vsel %vm4115, %v4070, %v4160
      %v4206 = vsel %vm4116, %v4071, %v4161
      %v4207 = vsel %vm4117, %v4072, %v4162
      %v4208 = vsel %vm4118, %v4073, %v4163
      %v4209 = vsel %vm4119, %v4074, %v4164
      %v4210 = vsel %vm4120, %v4075, %v4165
      %v4211 = vsel %vm4121, %v4076, %v4166
      %v4212 = vsel %vm4122, %v4077, %v4167
      %v4213 = vsel %vm4123, %v4078, %v4168
      %v4214 = vsel %vm4124, %v4079, %v4169
      %v4215 = vsel %vm4125, %v4080, %v4170
      %v4216 = vsel %vm4126, %v4081, %v4171
      %v4217 = vsel %vm4127, %v4082, %v4172
      %v4218 = vsel %vm4128, %v4083, %v4173
      %v4219 = vsel %vm4129, %v4084, %v4174
      %v4220 = vsel %vm4130, %v4085, %v4175
      %v4221 = vsel %vm4131, %v4086, %v4176
      %v4222 = vsel %vm4132, %v4087, %v4177
      %v4223 = vlaneseq
      %v4224 = vshrl.u32 %v4223, 7
      %v4225 = vadd.s32 %v4224, 8
      %v4226 = vadd.s32 %v4224, 16
      %v4227 = vadd.s32 %v4224, 24
      %v4228 = vadd.s32 %v4224, 32
      %v4229 = vadd.s32 %v4224, 40
      %v4230 = vadd.s32 %v4224, 48
      %v4231 = vadd.s32 %v4224, 56
      %v4232 = vadd.s32 %v4224, 64
      %v4233 = vadd.s32 %v4224, 72
      %v4234 = vadd.s32 %v4224, 80
      %v4235 = vadd.s32 %v4224, 88
      %v4236 = vadd.s32 %v4224, 96
      %v4237 = vadd.s32 %v4224, 104
      %v4238 = vadd.s32 %v4224, 112
      %v4239 = vadd.s32 %v4224, 120
      %v4240 = vadd.s32 %v4224, 128
      %v4241 = vadd.s32 %v4224, 136
      %v4242 = vadd.s32 %v4224, 144
      %v4243 = vadd.s32 %v4224, 152
      %v4244 = vadd.s32 %v4224, 160
      %v4245 = vadd.s32 %v4224, 168
      %v4246 = vadd.s32 %v4224, 176
      %v4247 = vadd.s32 %v4224, 184
      %v4248 = vadd.s32 %v4224, 192
      %v4249 = vadd.s32 %v4224, 200
      %v4250 = vadd.s32 %v4224, 208
      %v4251 = vadd.s32 %v4224, 216
      %v4252 = vadd.s32 %v4224, 224
      %v4253 = vadd.s32 %v4224, 232
      %v4254 = vadd.s32 %v4224, 240
      %v4255 = vadd.s32 %v4224, 248
      %v4256 = vadd.s32 %v4224, 256
      %v4257 = vadd.s32 %v4224, 264
      %v4258 = vadd.s32 %v4224, 272
      %v4259 = vadd.s32 %v4224, 280
      %v4260 = vadd.s32 %v4224, 288
      %v4261 = vadd.s32 %v4224, 296
      %v4262 = vadd.s32 %v4224, 304
      %v4263 = vadd.s32 %v4224, 312
      %v4264 = vadd.s32 %v4224, 320
      %v4265 = vadd.s32 %v4224, 328
      %v4266 = vadd.s32 %v4224, 336
      %v4267 = vadd.s32 %v4224, 344
      %v4268 = vadd.s32 %v4224, 352
      %vm4269 = vcmp.lt.s32.totalorder %v4224, 0
      %v4270 = vsub.s32 0, %v4224
      %v4271 = vsel %vm4269, %v4270, %v4224
      %v4272 = vand.u32 %v4271, 65535
      %v4273 = vshrl.u32 %v4271, 16
      %v4275 = vmul.u32 %v4272, 52429
      %v4276 = vmul.u32 %v4272, 52428
      %v4277 = vmul.u32 %v4273, 52429
      %v4278 = vmul.u32 %v4273, 52428
      %v4279 = vshll.u32 %v4276, 16
      %v4280 = vshrl.u32 %v4276, 16
      %v4281 = vshll.u32 %v4277, 16
      %v4282 = vshrl.u32 %v4277, 16
      %vm4283 = vc.u32 %v4275, %v4279
      %v4284 = vsel %vm4283, 1, 0
      %v4285 = vadd.s32 %v4275, %v4279
      %v4286 = vadd.s32 %v4278, %v4284
      %vm4287 = vc.u32 %v4285, %v4281
      %v4288 = vsel %vm4287, 1, 0
      %v4289 = vadd.s32 %v4285, %v4281
      %v4290 = vadd.s32 %v4286, %v4288
      %v4291 = vadd.s32 %v4290, %v4280
      %v4292 = vadd.s32 %v4291, %v4282
      %v4293 = vshrl.u32 %v4292, 4
      %v4294 = vmul.u32 %v4293, 20
      %v4295 = vsub.s32 %v4271, %v4294
      %v4296 = vsub.s32 0, %v4295
      %v4297 = vsel %vm4269, %v4296, %v4295
      %vm4298 = vcmp.lt.s32.totalorder %v4225, 0
      %v4299 = vsub.s32 0, %v4225
      %v4300 = vsel %vm4298, %v4299, %v4225
      %v4301 = vand.u32 %v4300, 65535
      %v4302 = vshrl.u32 %v4300, 16
      %v4304 = vmul.u32 %v4301, 52429
      %v4305 = vmul.u32 %v4301, 52428
      %v4306 = vmul.u32 %v4302, 52429
      %v4307 = vmul.u32 %v4302, 52428
      %v4308 = vshll.u32 %v4305, 16
      %v4309 = vshrl.u32 %v4305, 16
      %v4310 = vshll.u32 %v4306, 16
      %v4311 = vshrl.u32 %v4306, 16
      %vm4312 = vc.u32 %v4304, %v4308
      %v4313 = vsel %vm4312, 1, 0
      %v4314 = vadd.s32 %v4304, %v4308
      %v4315 = vadd.s32 %v4307, %v4313
      %vm4316 = vc.u32 %v4314, %v4310
      %v4317 = vsel %vm4316, 1, 0
      %v4318 = vadd.s32 %v4314, %v4310
      %v4319 = vadd.s32 %v4315, %v4317
      %v4320 = vadd.s32 %v4319, %v4309
      %v4321 = vadd.s32 %v4320, %v4311
      %v4322 = vshrl.u32 %v4321, 4
      %v4323 = vmul.u32 %v4322, 20
      %v4324 = vsub.s32 %v4300, %v4323
      %v4325 = vsub.s32 0, %v4324
      %v4326 = vsel %vm4298, %v4325, %v4324
      %vm4327 = vcmp.lt.s32.totalorder %v4226, 0
      %v4328 = vsub.s32 0, %v4226
      %v4329 = vsel %vm4327, %v4328, %v4226
      %v4330 = vand.u32 %v4329, 65535
      %v4331 = vshrl.u32 %v4329, 16
      %v4333 = vmul.u32 %v4330, 52429
      %v4334 = vmul.u32 %v4330, 52428
      %v4335 = vmul.u32 %v4331, 52429
      %v4336 = vmul.u32 %v4331, 52428
      %v4337 = vshll.u32 %v4334, 16
      %v4338 = vshrl.u32 %v4334, 16
      %v4339 = vshll.u32 %v4335, 16
      %v4340 = vshrl.u32 %v4335, 16
      %vm4341 = vc.u32 %v4333, %v4337
      %v4342 = vsel %vm4341, 1, 0
      %v4343 = vadd.s32 %v4333, %v4337
      %v4344 = vadd.s32 %v4336, %v4342
      %vm4345 = vc.u32 %v4343, %v4339
      %v4346 = vsel %vm4345, 1, 0
      %v4347 = vadd.s32 %v4343, %v4339
      %v4348 = vadd.s32 %v4344, %v4346
      %v4349 = vadd.s32 %v4348, %v4338
      %v4350 = vadd.s32 %v4349, %v4340
      %v4351 = vshrl.u32 %v4350, 4
      %v4352 = vmul.u32 %v4351, 20
      %v4353 = vsub.s32 %v4329, %v4352
      %v4354 = vsub.s32 0, %v4353
      %v4355 = vsel %vm4327, %v4354, %v4353
      %vm4356 = vcmp.lt.s32.totalorder %v4227, 0
      %v4357 = vsub.s32 0, %v4227
      %v4358 = vsel %vm4356, %v4357, %v4227
      %v4359 = vand.u32 %v4358, 65535
      %v4360 = vshrl.u32 %v4358, 16
      %v4362 = vmul.u32 %v4359, 52429
      %v4363 = vmul.u32 %v4359, 52428
      %v4364 = vmul.u32 %v4360, 52429
      %v4365 = vmul.u32 %v4360, 52428
      %v4366 = vshll.u32 %v4363, 16
      %v4367 = vshrl.u32 %v4363, 16
      %v4368 = vshll.u32 %v4364, 16
      %v4369 = vshrl.u32 %v4364, 16
      %vm4370 = vc.u32 %v4362, %v4366
      %v4371 = vsel %vm4370, 1, 0
      %v4372 = vadd.s32 %v4362, %v4366
      %v4373 = vadd.s32 %v4365, %v4371
      %vm4374 = vc.u32 %v4372, %v4368
      %v4375 = vsel %vm4374, 1, 0
      %v4376 = vadd.s32 %v4372, %v4368
      %v4377 = vadd.s32 %v4373, %v4375
      %v4378 = vadd.s32 %v4377, %v4367
      %v4379 = vadd.s32 %v4378, %v4369
      %v4380 = vshrl.u32 %v4379, 4
      %v4381 = vmul.u32 %v4380, 20
      %v4382 = vsub.s32 %v4358, %v4381
      %v4383 = vsub.s32 0, %v4382
      %v4384 = vsel %vm4356, %v4383, %v4382
      %vm4385 = vcmp.lt.s32.totalorder %v4228, 0
      %v4386 = vsub.s32 0, %v4228
      %v4387 = vsel %vm4385, %v4386, %v4228
      %v4388 = vand.u32 %v4387, 65535
      %v4389 = vshrl.u32 %v4387, 16
      %v4391 = vmul.u32 %v4388, 52429
      %v4392 = vmul.u32 %v4388, 52428
      %v4393 = vmul.u32 %v4389, 52429
      %v4394 = vmul.u32 %v4389, 52428
      %v4395 = vshll.u32 %v4392, 16
      %v4396 = vshrl.u32 %v4392, 16
      %v4397 = vshll.u32 %v4393, 16
      %v4398 = vshrl.u32 %v4393, 16
      %vm4399 = vc.u32 %v4391, %v4395
      %v4400 = vsel %vm4399, 1, 0
      %v4401 = vadd.s32 %v4391, %v4395
      %v4402 = vadd.s32 %v4394, %v4400
      %vm4403 = vc.u32 %v4401, %v4397
      %v4404 = vsel %vm4403, 1, 0
      %v4405 = vadd.s32 %v4401, %v4397
      %v4406 = vadd.s32 %v4402, %v4404
      %v4407 = vadd.s32 %v4406, %v4396
      %v4408 = vadd.s32 %v4407, %v4398
      %v4409 = vshrl.u32 %v4408, 4
      %v4410 = vmul.u32 %v4409, 20
      %v4411 = vsub.s32 %v4387, %v4410
      %v4412 = vsub.s32 0, %v4411
      %v4413 = vsel %vm4385, %v4412, %v4411
      %vm4414 = vcmp.lt.s32.totalorder %v4229, 0
      %v4415 = vsub.s32 0, %v4229
      %v4416 = vsel %vm4414, %v4415, %v4229
      %v4417 = vand.u32 %v4416, 65535
      %v4418 = vshrl.u32 %v4416, 16
      %v4420 = vmul.u32 %v4417, 52429
      %v4421 = vmul.u32 %v4417, 52428
      %v4422 = vmul.u32 %v4418, 52429
      %v4423 = vmul.u32 %v4418, 52428
      %v4424 = vshll.u32 %v4421, 16
      %v4425 = vshrl.u32 %v4421, 16
      %v4426 = vshll.u32 %v4422, 16
      %v4427 = vshrl.u32 %v4422, 16
      %vm4428 = vc.u32 %v4420, %v4424
      %v4429 = vsel %vm4428, 1, 0
      %v4430 = vadd.s32 %v4420, %v4424
      %v4431 = vadd.s32 %v4423, %v4429
      %vm4432 = vc.u32 %v4430, %v4426
      %v4433 = vsel %vm4432, 1, 0
      %v4434 = vadd.s32 %v4430, %v4426
      %v4435 = vadd.s32 %v4431, %v4433
      %v4436 = vadd.s32 %v4435, %v4425
      %v4437 = vadd.s32 %v4436, %v4427
      %v4438 = vshrl.u32 %v4437, 4
      %v4439 = vmul.u32 %v4438, 20
      %v4440 = vsub.s32 %v4416, %v4439
      %v4441 = vsub.s32 0, %v4440
      %v4442 = vsel %vm4414, %v4441, %v4440
      %vm4443 = vcmp.lt.s32.totalorder %v4230, 0
      %v4444 = vsub.s32 0, %v4230
      %v4445 = vsel %vm4443, %v4444, %v4230
      %v4446 = vand.u32 %v4445, 65535
      %v4447 = vshrl.u32 %v4445, 16
      %v4449 = vmul.u32 %v4446, 52429
      %v4450 = vmul.u32 %v4446, 52428
      %v4451 = vmul.u32 %v4447, 52429
      %v4452 = vmul.u32 %v4447, 52428
      %v4453 = vshll.u32 %v4450, 16
      %v4454 = vshrl.u32 %v4450, 16
      %v4455 = vshll.u32 %v4451, 16
      %v4456 = vshrl.u32 %v4451, 16
      %vm4457 = vc.u32 %v4449, %v4453
      %v4458 = vsel %vm4457, 1, 0
      %v4459 = vadd.s32 %v4449, %v4453
      %v4460 = vadd.s32 %v4452, %v4458
      %vm4461 = vc.u32 %v4459, %v4455
      %v4462 = vsel %vm4461, 1, 0
      %v4463 = vadd.s32 %v4459, %v4455
      %v4464 = vadd.s32 %v4460, %v4462
      %v4465 = vadd.s32 %v4464, %v4454
      %v4466 = vadd.s32 %v4465, %v4456
      %v4467 = vshrl.u32 %v4466, 4
      %v4468 = vmul.u32 %v4467, 20
      %v4469 = vsub.s32 %v4445, %v4468
      %v4470 = vsub.s32 0, %v4469
      %v4471 = vsel %vm4443, %v4470, %v4469
      %vm4472 = vcmp.lt.s32.totalorder %v4231, 0
      %v4473 = vsub.s32 0, %v4231
      %v4474 = vsel %vm4472, %v4473, %v4231
      %v4475 = vand.u32 %v4474, 65535
      %v4476 = vshrl.u32 %v4474, 16
      %v4478 = vmul.u32 %v4475, 52429
      %v4479 = vmul.u32 %v4475, 52428
      %v4480 = vmul.u32 %v4476, 52429
      %v4481 = vmul.u32 %v4476, 52428
      %v4482 = vshll.u32 %v4479, 16
      %v4483 = vshrl.u32 %v4479, 16
      %v4484 = vshll.u32 %v4480, 16
      %v4485 = vshrl.u32 %v4480, 16
      %vm4486 = vc.u32 %v4478, %v4482
      %v4487 = vsel %vm4486, 1, 0
      %v4488 = vadd.s32 %v4478, %v4482
      %v4489 = vadd.s32 %v4481, %v4487
      %vm4490 = vc.u32 %v4488, %v4484
      %v4491 = vsel %vm4490, 1, 0
      %v4492 = vadd.s32 %v4488, %v4484
      %v4493 = vadd.s32 %v4489, %v4491
      %v4494 = vadd.s32 %v4493, %v4483
      %v4495 = vadd.s32 %v4494, %v4485
      %v4496 = vshrl.u32 %v4495, 4
      %v4497 = vmul.u32 %v4496, 20
      %v4498 = vsub.s32 %v4474, %v4497
      %v4499 = vsub.s32 0, %v4498
      %v4500 = vsel %vm4472, %v4499, %v4498
      %vm4501 = vcmp.lt.s32.totalorder %v4232, 0
      %v4502 = vsub.s32 0, %v4232
      %v4503 = vsel %vm4501, %v4502, %v4232
      %v4504 = vand.u32 %v4503, 65535
      %v4505 = vshrl.u32 %v4503, 16
      %v4507 = vmul.u32 %v4504, 52429
      %v4508 = vmul.u32 %v4504, 52428
      %v4509 = vmul.u32 %v4505, 52429
      %v4510 = vmul.u32 %v4505, 52428
      %v4511 = vshll.u32 %v4508, 16
      %v4512 = vshrl.u32 %v4508, 16
      %v4513 = vshll.u32 %v4509, 16
      %v4514 = vshrl.u32 %v4509, 16
      %vm4515 = vc.u32 %v4507, %v4511
      %v4516 = vsel %vm4515, 1, 0
      %v4517 = vadd.s32 %v4507, %v4511
      %v4518 = vadd.s32 %v4510, %v4516
      %vm4519 = vc.u32 %v4517, %v4513
      %v4520 = vsel %vm4519, 1, 0
      %v4521 = vadd.s32 %v4517, %v4513
      %v4522 = vadd.s32 %v4518, %v4520
      %v4523 = vadd.s32 %v4522, %v4512
      %v4524 = vadd.s32 %v4523, %v4514
      %v4525 = vshrl.u32 %v4524, 4
      %v4526 = vmul.u32 %v4525, 20
      %v4527 = vsub.s32 %v4503, %v4526
      %v4528 = vsub.s32 0, %v4527
      %v4529 = vsel %vm4501, %v4528, %v4527
      %vm4530 = vcmp.lt.s32.totalorder %v4233, 0
      %v4531 = vsub.s32 0, %v4233
      %v4532 = vsel %vm4530, %v4531, %v4233
      %v4533 = vand.u32 %v4532, 65535
      %v4534 = vshrl.u32 %v4532, 16
      %v4536 = vmul.u32 %v4533, 52429
      %v4537 = vmul.u32 %v4533, 52428
      %v4538 = vmul.u32 %v4534, 52429
      %v4539 = vmul.u32 %v4534, 52428
      %v4540 = vshll.u32 %v4537, 16
      %v4541 = vshrl.u32 %v4537, 16
      %v4542 = vshll.u32 %v4538, 16
      %v4543 = vshrl.u32 %v4538, 16
      %vm4544 = vc.u32 %v4536, %v4540
      %v4545 = vsel %vm4544, 1, 0
      %v4546 = vadd.s32 %v4536, %v4540
      %v4547 = vadd.s32 %v4539, %v4545
      %vm4548 = vc.u32 %v4546, %v4542
      %v4549 = vsel %vm4548, 1, 0
      %v4550 = vadd.s32 %v4546, %v4542
      %v4551 = vadd.s32 %v4547, %v4549
      %v4552 = vadd.s32 %v4551, %v4541
      %v4553 = vadd.s32 %v4552, %v4543
      %v4554 = vshrl.u32 %v4553, 4
      %v4555 = vmul.u32 %v4554, 20
      %v4556 = vsub.s32 %v4532, %v4555
      %v4557 = vsub.s32 0, %v4556
      %v4558 = vsel %vm4530, %v4557, %v4556
      %vm4559 = vcmp.lt.s32.totalorder %v4234, 0
      %v4560 = vsub.s32 0, %v4234
      %v4561 = vsel %vm4559, %v4560, %v4234
      %v4562 = vand.u32 %v4561, 65535
      %v4563 = vshrl.u32 %v4561, 16
      %v4565 = vmul.u32 %v4562, 52429
      %v4566 = vmul.u32 %v4562, 52428
      %v4567 = vmul.u32 %v4563, 52429
      %v4568 = vmul.u32 %v4563, 52428
      %v4569 = vshll.u32 %v4566, 16
      %v4570 = vshrl.u32 %v4566, 16
      %v4571 = vshll.u32 %v4567, 16
      %v4572 = vshrl.u32 %v4567, 16
      %vm4573 = vc.u32 %v4565, %v4569
      %v4574 = vsel %vm4573, 1, 0
      %v4575 = vadd.s32 %v4565, %v4569
      %v4576 = vadd.s32 %v4568, %v4574
      %vm4577 = vc.u32 %v4575, %v4571
      %v4578 = vsel %vm4577, 1, 0
      %v4579 = vadd.s32 %v4575, %v4571
      %v4580 = vadd.s32 %v4576, %v4578
      %v4581 = vadd.s32 %v4580, %v4570
      %v4582 = vadd.s32 %v4581, %v4572
      %v4583 = vshrl.u32 %v4582, 4
      %v4584 = vmul.u32 %v4583, 20
      %v4585 = vsub.s32 %v4561, %v4584
      %v4586 = vsub.s32 0, %v4585
      %v4587 = vsel %vm4559, %v4586, %v4585
      %vm4588 = vcmp.lt.s32.totalorder %v4235, 0
      %v4589 = vsub.s32 0, %v4235
      %v4590 = vsel %vm4588, %v4589, %v4235
      %v4591 = vand.u32 %v4590, 65535
      %v4592 = vshrl.u32 %v4590, 16
      %v4594 = vmul.u32 %v4591, 52429
      %v4595 = vmul.u32 %v4591, 52428
      %v4596 = vmul.u32 %v4592, 52429
      %v4597 = vmul.u32 %v4592, 52428
      %v4598 = vshll.u32 %v4595, 16
      %v4599 = vshrl.u32 %v4595, 16
      %v4600 = vshll.u32 %v4596, 16
      %v4601 = vshrl.u32 %v4596, 16
      %vm4602 = vc.u32 %v4594, %v4598
      %v4603 = vsel %vm4602, 1, 0
      %v4604 = vadd.s32 %v4594, %v4598
      %v4605 = vadd.s32 %v4597, %v4603
      %vm4606 = vc.u32 %v4604, %v4600
      %v4607 = vsel %vm4606, 1, 0
      %v4608 = vadd.s32 %v4604, %v4600
      %v4609 = vadd.s32 %v4605, %v4607
      %v4610 = vadd.s32 %v4609, %v4599
      %v4611 = vadd.s32 %v4610, %v4601
      %v4612 = vshrl.u32 %v4611, 4
      %v4613 = vmul.u32 %v4612, 20
      %v4614 = vsub.s32 %v4590, %v4613
      %v4615 = vsub.s32 0, %v4614
      %v4616 = vsel %vm4588, %v4615, %v4614
      %vm4617 = vcmp.lt.s32.totalorder %v4236, 0
      %v4618 = vsub.s32 0, %v4236
      %v4619 = vsel %vm4617, %v4618, %v4236
      %v4620 = vand.u32 %v4619, 65535
      %v4621 = vshrl.u32 %v4619, 16
      %v4623 = vmul.u32 %v4620, 52429
      %v4624 = vmul.u32 %v4620, 52428
      %v4625 = vmul.u32 %v4621, 52429
      %v4626 = vmul.u32 %v4621, 52428
      %v4627 = vshll.u32 %v4624, 16
      %v4628 = vshrl.u32 %v4624, 16
      %v4629 = vshll.u32 %v4625, 16
      %v4630 = vshrl.u32 %v4625, 16
      %vm4631 = vc.u32 %v4623, %v4627
      %v4632 = vsel %vm4631, 1, 0
      %v4633 = vadd.s32 %v4623, %v4627
      %v4634 = vadd.s32 %v4626, %v4632
      %vm4635 = vc.u32 %v4633, %v4629
      %v4636 = vsel %vm4635, 1, 0
      %v4637 = vadd.s32 %v4633, %v4629
      %v4638 = vadd.s32 %v4634, %v4636
      %v4639 = vadd.s32 %v4638, %v4628
      %v4640 = vadd.s32 %v4639, %v4630
      %v4641 = vshrl.u32 %v4640, 4
      %v4642 = vmul.u32 %v4641, 20
      %v4643 = vsub.s32 %v4619, %v4642
      %v4644 = vsub.s32 0, %v4643
      %v4645 = vsel %vm4617, %v4644, %v4643
      %vm4646 = vcmp.lt.s32.totalorder %v4237, 0
      %v4647 = vsub.s32 0, %v4237
      %v4648 = vsel %vm4646, %v4647, %v4237
      %v4649 = vand.u32 %v4648, 65535
      %v4650 = vshrl.u32 %v4648, 16
      %v4652 = vmul.u32 %v4649, 52429
      %v4653 = vmul.u32 %v4649, 52428
      %v4654 = vmul.u32 %v4650, 52429
      %v4655 = vmul.u32 %v4650, 52428
      %v4656 = vshll.u32 %v4653, 16
      %v4657 = vshrl.u32 %v4653, 16
      %v4658 = vshll.u32 %v4654, 16
      %v4659 = vshrl.u32 %v4654, 16
      %vm4660 = vc.u32 %v4652, %v4656
      %v4661 = vsel %vm4660, 1, 0
      %v4662 = vadd.s32 %v4652, %v4656
      %v4663 = vadd.s32 %v4655, %v4661
      %vm4664 = vc.u32 %v4662, %v4658
      %v4665 = vsel %vm4664, 1, 0
      %v4666 = vadd.s32 %v4662, %v4658
      %v4667 = vadd.s32 %v4663, %v4665
      %v4668 = vadd.s32 %v4667, %v4657
      %v4669 = vadd.s32 %v4668, %v4659
      %v4670 = vshrl.u32 %v4669, 4
      %v4671 = vmul.u32 %v4670, 20
      %v4672 = vsub.s32 %v4648, %v4671
      %v4673 = vsub.s32 0, %v4672
      %v4674 = vsel %vm4646, %v4673, %v4672
      %vm4675 = vcmp.lt.s32.totalorder %v4238, 0
      %v4676 = vsub.s32 0, %v4238
      %v4677 = vsel %vm4675, %v4676, %v4238
      %v4678 = vand.u32 %v4677, 65535
      %v4679 = vshrl.u32 %v4677, 16
      %v4681 = vmul.u32 %v4678, 52429
      %v4682 = vmul.u32 %v4678, 52428
      %v4683 = vmul.u32 %v4679, 52429
      %v4684 = vmul.u32 %v4679, 52428
      %v4685 = vshll.u32 %v4682, 16
      %v4686 = vshrl.u32 %v4682, 16
      %v4687 = vshll.u32 %v4683, 16
      %v4688 = vshrl.u32 %v4683, 16
      %vm4689 = vc.u32 %v4681, %v4685
      %v4690 = vsel %vm4689, 1, 0
      %v4691 = vadd.s32 %v4681, %v4685
      %v4692 = vadd.s32 %v4684, %v4690
      %vm4693 = vc.u32 %v4691, %v4687
      %v4694 = vsel %vm4693, 1, 0
      %v4695 = vadd.s32 %v4691, %v4687
      %v4696 = vadd.s32 %v4692, %v4694
      %v4697 = vadd.s32 %v4696, %v4686
      %v4698 = vadd.s32 %v4697, %v4688
      %v4699 = vshrl.u32 %v4698, 4
      %v4700 = vmul.u32 %v4699, 20
      %v4701 = vsub.s32 %v4677, %v4700
      %v4702 = vsub.s32 0, %v4701
      %v4703 = vsel %vm4675, %v4702, %v4701
      %vm4704 = vcmp.lt.s32.totalorder %v4239, 0
      %v4705 = vsub.s32 0, %v4239
      %v4706 = vsel %vm4704, %v4705, %v4239
      %v4707 = vand.u32 %v4706, 65535
      %v4708 = vshrl.u32 %v4706, 16
      %v4710 = vmul.u32 %v4707, 52429
      %v4711 = vmul.u32 %v4707, 52428
      %v4712 = vmul.u32 %v4708, 52429
      %v4713 = vmul.u32 %v4708, 52428
      %v4714 = vshll.u32 %v4711, 16
      %v4715 = vshrl.u32 %v4711, 16
      %v4716 = vshll.u32 %v4712, 16
      %v4717 = vshrl.u32 %v4712, 16
      %vm4718 = vc.u32 %v4710, %v4714
      %v4719 = vsel %vm4718, 1, 0
      %v4720 = vadd.s32 %v4710, %v4714
      %v4721 = vadd.s32 %v4713, %v4719
      %vm4722 = vc.u32 %v4720, %v4716
      %v4723 = vsel %vm4722, 1, 0
      %v4724 = vadd.s32 %v4720, %v4716
      %v4725 = vadd.s32 %v4721, %v4723
      %v4726 = vadd.s32 %v4725, %v4715
      %v4727 = vadd.s32 %v4726, %v4717
      %v4728 = vshrl.u32 %v4727, 4
      %v4729 = vmul.u32 %v4728, 20
      %v4730 = vsub.s32 %v4706, %v4729
      %v4731 = vsub.s32 0, %v4730
      %v4732 = vsel %vm4704, %v4731, %v4730
      %vm4733 = vcmp.lt.s32.totalorder %v4240, 0
      %v4734 = vsub.s32 0, %v4240
      %v4735 = vsel %vm4733, %v4734, %v4240
      %v4736 = vand.u32 %v4735, 65535
      %v4737 = vshrl.u32 %v4735, 16
      %v4739 = vmul.u32 %v4736, 52429
      %v4740 = vmul.u32 %v4736, 52428
      %v4741 = vmul.u32 %v4737, 52429
      %v4742 = vmul.u32 %v4737, 52428
      %v4743 = vshll.u32 %v4740, 16
      %v4744 = vshrl.u32 %v4740, 16
      %v4745 = vshll.u32 %v4741, 16
      %v4746 = vshrl.u32 %v4741, 16
      %vm4747 = vc.u32 %v4739, %v4743
      %v4748 = vsel %vm4747, 1, 0
      %v4749 = vadd.s32 %v4739, %v4743
      %v4750 = vadd.s32 %v4742, %v4748
      %vm4751 = vc.u32 %v4749, %v4745
      %v4752 = vsel %vm4751, 1, 0
      %v4753 = vadd.s32 %v4749, %v4745
      %v4754 = vadd.s32 %v4750, %v4752
      %v4755 = vadd.s32 %v4754, %v4744
      %v4756 = vadd.s32 %v4755, %v4746
      %v4757 = vshrl.u32 %v4756, 4
      %v4758 = vmul.u32 %v4757, 20
      %v4759 = vsub.s32 %v4735, %v4758
      %v4760 = vsub.s32 0, %v4759
      %v4761 = vsel %vm4733, %v4760, %v4759
      %vm4762 = vcmp.lt.s32.totalorder %v4241, 0
      %v4763 = vsub.s32 0, %v4241
      %v4764 = vsel %vm4762, %v4763, %v4241
      %v4765 = vand.u32 %v4764, 65535
      %v4766 = vshrl.u32 %v4764, 16
      %v4768 = vmul.u32 %v4765, 52429
      %v4769 = vmul.u32 %v4765, 52428
      %v4770 = vmul.u32 %v4766, 52429
      %v4771 = vmul.u32 %v4766, 52428
      %v4772 = vshll.u32 %v4769, 16
      %v4773 = vshrl.u32 %v4769, 16
      %v4774 = vshll.u32 %v4770, 16
      %v4775 = vshrl.u32 %v4770, 16
      %vm4776 = vc.u32 %v4768, %v4772
      %v4777 = vsel %vm4776, 1, 0
      %v4778 = vadd.s32 %v4768, %v4772
      %v4779 = vadd.s32 %v4771, %v4777
      %vm4780 = vc.u32 %v4778, %v4774
      %v4781 = vsel %vm4780, 1, 0
      %v4782 = vadd.s32 %v4778, %v4774
      %v4783 = vadd.s32 %v4779, %v4781
      %v4784 = vadd.s32 %v4783, %v4773
      %v4785 = vadd.s32 %v4784, %v4775
      %v4786 = vshrl.u32 %v4785, 4
      %v4787 = vmul.u32 %v4786, 20
      %v4788 = vsub.s32 %v4764, %v4787
      %v4789 = vsub.s32 0, %v4788
      %v4790 = vsel %vm4762, %v4789, %v4788
      %vm4791 = vcmp.lt.s32.totalorder %v4242, 0
      %v4792 = vsub.s32 0, %v4242
      %v4793 = vsel %vm4791, %v4792, %v4242
      %v4794 = vand.u32 %v4793, 65535
      %v4795 = vshrl.u32 %v4793, 16
      %v4797 = vmul.u32 %v4794, 52429
      %v4798 = vmul.u32 %v4794, 52428
      %v4799 = vmul.u32 %v4795, 52429
      %v4800 = vmul.u32 %v4795, 52428
      %v4801 = vshll.u32 %v4798, 16
      %v4802 = vshrl.u32 %v4798, 16
      %v4803 = vshll.u32 %v4799, 16
      %v4804 = vshrl.u32 %v4799, 16
      %vm4805 = vc.u32 %v4797, %v4801
      %v4806 = vsel %vm4805, 1, 0
      %v4807 = vadd.s32 %v4797, %v4801
      %v4808 = vadd.s32 %v4800, %v4806
      %vm4809 = vc.u32 %v4807, %v4803
      %v4810 = vsel %vm4809, 1, 0
      %v4811 = vadd.s32 %v4807, %v4803
      %v4812 = vadd.s32 %v4808, %v4810
      %v4813 = vadd.s32 %v4812, %v4802
      %v4814 = vadd.s32 %v4813, %v4804
      %v4815 = vshrl.u32 %v4814, 4
      %v4816 = vmul.u32 %v4815, 20
      %v4817 = vsub.s32 %v4793, %v4816
      %v4818 = vsub.s32 0, %v4817
      %v4819 = vsel %vm4791, %v4818, %v4817
      %vm4820 = vcmp.lt.s32.totalorder %v4243, 0
      %v4821 = vsub.s32 0, %v4243
      %v4822 = vsel %vm4820, %v4821, %v4243
      %v4823 = vand.u32 %v4822, 65535
      %v4824 = vshrl.u32 %v4822, 16
      %v4826 = vmul.u32 %v4823, 52429
      %v4827 = vmul.u32 %v4823, 52428
      %v4828 = vmul.u32 %v4824, 52429
      %v4829 = vmul.u32 %v4824, 52428
      %v4830 = vshll.u32 %v4827, 16
      %v4831 = vshrl.u32 %v4827, 16
      %v4832 = vshll.u32 %v4828, 16
      %v4833 = vshrl.u32 %v4828, 16
      %vm4834 = vc.u32 %v4826, %v4830
      %v4835 = vsel %vm4834, 1, 0
      %v4836 = vadd.s32 %v4826, %v4830
      %v4837 = vadd.s32 %v4829, %v4835
      %vm4838 = vc.u32 %v4836, %v4832
      %v4839 = vsel %vm4838, 1, 0
      %v4840 = vadd.s32 %v4836, %v4832
      %v4841 = vadd.s32 %v4837, %v4839
      %v4842 = vadd.s32 %v4841, %v4831
      %v4843 = vadd.s32 %v4842, %v4833
      %v4844 = vshrl.u32 %v4843, 4
      %v4845 = vmul.u32 %v4844, 20
      %v4846 = vsub.s32 %v4822, %v4845
      %v4847 = vsub.s32 0, %v4846
      %v4848 = vsel %vm4820, %v4847, %v4846
      %vm4849 = vcmp.lt.s32.totalorder %v4244, 0
      %v4850 = vsub.s32 0, %v4244
      %v4851 = vsel %vm4849, %v4850, %v4244
      %v4852 = vand.u32 %v4851, 65535
      %v4853 = vshrl.u32 %v4851, 16
      %v4855 = vmul.u32 %v4852, 52429
      %v4856 = vmul.u32 %v4852, 52428
      %v4857 = vmul.u32 %v4853, 52429
      %v4858 = vmul.u32 %v4853, 52428
      %v4859 = vshll.u32 %v4856, 16
      %v4860 = vshrl.u32 %v4856, 16
      %v4861 = vshll.u32 %v4857, 16
      %v4862 = vshrl.u32 %v4857, 16
      %vm4863 = vc.u32 %v4855, %v4859
      %v4864 = vsel %vm4863, 1, 0
      %v4865 = vadd.s32 %v4855, %v4859
      %v4866 = vadd.s32 %v4858, %v4864
      %vm4867 = vc.u32 %v4865, %v4861
      %v4868 = vsel %vm4867, 1, 0
      %v4869 = vadd.s32 %v4865, %v4861
      %v4870 = vadd.s32 %v4866, %v4868
      %v4871 = vadd.s32 %v4870, %v4860
      %v4872 = vadd.s32 %v4871, %v4862
      %v4873 = vshrl.u32 %v4872, 4
      %v4874 = vmul.u32 %v4873, 20
      %v4875 = vsub.s32 %v4851, %v4874
      %v4876 = vsub.s32 0, %v4875
      %v4877 = vsel %vm4849, %v4876, %v4875
      %vm4878 = vcmp.lt.s32.totalorder %v4245, 0
      %v4879 = vsub.s32 0, %v4245
      %v4880 = vsel %vm4878, %v4879, %v4245
      %v4881 = vand.u32 %v4880, 65535
      %v4882 = vshrl.u32 %v4880, 16
      %v4884 = vmul.u32 %v4881, 52429
      %v4885 = vmul.u32 %v4881, 52428
      %v4886 = vmul.u32 %v4882, 52429
      %v4887 = vmul.u32 %v4882, 52428
      %v4888 = vshll.u32 %v4885, 16
      %v4889 = vshrl.u32 %v4885, 16
      %v4890 = vshll.u32 %v4886, 16
      %v4891 = vshrl.u32 %v4886, 16
      %vm4892 = vc.u32 %v4884, %v4888
      %v4893 = vsel %vm4892, 1, 0
      %v4894 = vadd.s32 %v4884, %v4888
      %v4895 = vadd.s32 %v4887, %v4893
      %vm4896 = vc.u32 %v4894, %v4890
      %v4897 = vsel %vm4896, 1, 0
      %v4898 = vadd.s32 %v4894, %v4890
      %v4899 = vadd.s32 %v4895, %v4897
      %v4900 = vadd.s32 %v4899, %v4889
      %v4901 = vadd.s32 %v4900, %v4891
      %v4902 = vshrl.u32 %v4901, 4
      %v4903 = vmul.u32 %v4902, 20
      %v4904 = vsub.s32 %v4880, %v4903
      %v4905 = vsub.s32 0, %v4904
      %v4906 = vsel %vm4878, %v4905, %v4904
      %vm4907 = vcmp.lt.s32.totalorder %v4246, 0
      %v4908 = vsub.s32 0, %v4246
      %v4909 = vsel %vm4907, %v4908, %v4246
      %v4910 = vand.u32 %v4909, 65535
      %v4911 = vshrl.u32 %v4909, 16
      %v4913 = vmul.u32 %v4910, 52429
      %v4914 = vmul.u32 %v4910, 52428
      %v4915 = vmul.u32 %v4911, 52429
      %v4916 = vmul.u32 %v4911, 52428
      %v4917 = vshll.u32 %v4914, 16
      %v4918 = vshrl.u32 %v4914, 16
      %v4919 = vshll.u32 %v4915, 16
      %v4920 = vshrl.u32 %v4915, 16
      %vm4921 = vc.u32 %v4913, %v4917
      %v4922 = vsel %vm4921, 1, 0
      %v4923 = vadd.s32 %v4913, %v4917
      %v4924 = vadd.s32 %v4916, %v4922
      %vm4925 = vc.u32 %v4923, %v4919
      %v4926 = vsel %vm4925, 1, 0
      %v4927 = vadd.s32 %v4923, %v4919
      %v4928 = vadd.s32 %v4924, %v4926
      %v4929 = vadd.s32 %v4928, %v4918
      %v4930 = vadd.s32 %v4929, %v4920
      %v4931 = vshrl.u32 %v4930, 4
      %v4932 = vmul.u32 %v4931, 20
      %v4933 = vsub.s32 %v4909, %v4932
      %v4934 = vsub.s32 0, %v4933
      %v4935 = vsel %vm4907, %v4934, %v4933
      %vm4936 = vcmp.lt.s32.totalorder %v4247, 0
      %v4937 = vsub.s32 0, %v4247
      %v4938 = vsel %vm4936, %v4937, %v4247
      %v4939 = vand.u32 %v4938, 65535
      %v4940 = vshrl.u32 %v4938, 16
      %v4942 = vmul.u32 %v4939, 52429
      %v4943 = vmul.u32 %v4939, 52428
      %v4944 = vmul.u32 %v4940, 52429
      %v4945 = vmul.u32 %v4940, 52428
      %v4946 = vshll.u32 %v4943, 16
      %v4947 = vshrl.u32 %v4943, 16
      %v4948 = vshll.u32 %v4944, 16
      %v4949 = vshrl.u32 %v4944, 16
      %vm4950 = vc.u32 %v4942, %v4946
      %v4951 = vsel %vm4950, 1, 0
      %v4952 = vadd.s32 %v4942, %v4946
      %v4953 = vadd.s32 %v4945, %v4951
      %vm4954 = vc.u32 %v4952, %v4948
      %v4955 = vsel %vm4954, 1, 0
      %v4956 = vadd.s32 %v4952, %v4948
      %v4957 = vadd.s32 %v4953, %v4955
      %v4958 = vadd.s32 %v4957, %v4947
      %v4959 = vadd.s32 %v4958, %v4949
      %v4960 = vshrl.u32 %v4959, 4
      %v4961 = vmul.u32 %v4960, 20
      %v4962 = vsub.s32 %v4938, %v4961
      %v4963 = vsub.s32 0, %v4962
      %v4964 = vsel %vm4936, %v4963, %v4962
      %vm4965 = vcmp.lt.s32.totalorder %v4248, 0
      %v4966 = vsub.s32 0, %v4248
      %v4967 = vsel %vm4965, %v4966, %v4248
      %v4968 = vand.u32 %v4967, 65535
      %v4969 = vshrl.u32 %v4967, 16
      %v4971 = vmul.u32 %v4968, 52429
      %v4972 = vmul.u32 %v4968, 52428
      %v4973 = vmul.u32 %v4969, 52429
      %v4974 = vmul.u32 %v4969, 52428
      %v4975 = vshll.u32 %v4972, 16
      %v4976 = vshrl.u32 %v4972, 16
      %v4977 = vshll.u32 %v4973, 16
      %v4978 = vshrl.u32 %v4973, 16
      %vm4979 = vc.u32 %v4971, %v4975
      %v4980 = vsel %vm4979, 1, 0
      %v4981 = vadd.s32 %v4971, %v4975
      %v4982 = vadd.s32 %v4974, %v4980
      %vm4983 = vc.u32 %v4981, %v4977
      %v4984 = vsel %vm4983, 1, 0
      %v4985 = vadd.s32 %v4981, %v4977
      %v4986 = vadd.s32 %v4982, %v4984
      %v4987 = vadd.s32 %v4986, %v4976
      %v4988 = vadd.s32 %v4987, %v4978
      %v4989 = vshrl.u32 %v4988, 4
      %v4990 = vmul.u32 %v4989, 20
      %v4991 = vsub.s32 %v4967, %v4990
      %v4992 = vsub.s32 0, %v4991
      %v4993 = vsel %vm4965, %v4992, %v4991
      %vm4994 = vcmp.lt.s32.totalorder %v4249, 0
      %v4995 = vsub.s32 0, %v4249
      %v4996 = vsel %vm4994, %v4995, %v4249
      %v4997 = vand.u32 %v4996, 65535
      %v4998 = vshrl.u32 %v4996, 16
      %v5000 = vmul.u32 %v4997, 52429
      %v5001 = vmul.u32 %v4997, 52428
      %v5002 = vmul.u32 %v4998, 52429
      %v5003 = vmul.u32 %v4998, 52428
      %v5004 = vshll.u32 %v5001, 16
      %v5005 = vshrl.u32 %v5001, 16
      %v5006 = vshll.u32 %v5002, 16
      %v5007 = vshrl.u32 %v5002, 16
      %vm5008 = vc.u32 %v5000, %v5004
      %v5009 = vsel %vm5008, 1, 0
      %v5010 = vadd.s32 %v5000, %v5004
      %v5011 = vadd.s32 %v5003, %v5009
      %vm5012 = vc.u32 %v5010, %v5006
      %v5013 = vsel %vm5012, 1, 0
      %v5014 = vadd.s32 %v5010, %v5006
      %v5015 = vadd.s32 %v5011, %v5013
      %v5016 = vadd.s32 %v5015, %v5005
      %v5017 = vadd.s32 %v5016, %v5007
      %v5018 = vshrl.u32 %v5017, 4
      %v5019 = vmul.u32 %v5018, 20
      %v5020 = vsub.s32 %v4996, %v5019
      %v5021 = vsub.s32 0, %v5020
      %v5022 = vsel %vm4994, %v5021, %v5020
      %vm5023 = vcmp.lt.s32.totalorder %v4250, 0
      %v5024 = vsub.s32 0, %v4250
      %v5025 = vsel %vm5023, %v5024, %v4250
      %v5026 = vand.u32 %v5025, 65535
      %v5027 = vshrl.u32 %v5025, 16
      %v5029 = vmul.u32 %v5026, 52429
      %v5030 = vmul.u32 %v5026, 52428
      %v5031 = vmul.u32 %v5027, 52429
      %v5032 = vmul.u32 %v5027, 52428
      %v5033 = vshll.u32 %v5030, 16
      %v5034 = vshrl.u32 %v5030, 16
      %v5035 = vshll.u32 %v5031, 16
      %v5036 = vshrl.u32 %v5031, 16
      %vm5037 = vc.u32 %v5029, %v5033
      %v5038 = vsel %vm5037, 1, 0
      %v5039 = vadd.s32 %v5029, %v5033
      %v5040 = vadd.s32 %v5032, %v5038
      %vm5041 = vc.u32 %v5039, %v5035
      %v5042 = vsel %vm5041, 1, 0
      %v5043 = vadd.s32 %v5039, %v5035
      %v5044 = vadd.s32 %v5040, %v5042
      %v5045 = vadd.s32 %v5044, %v5034
      %v5046 = vadd.s32 %v5045, %v5036
      %v5047 = vshrl.u32 %v5046, 4
      %v5048 = vmul.u32 %v5047, 20
      %v5049 = vsub.s32 %v5025, %v5048
      %v5050 = vsub.s32 0, %v5049
      %v5051 = vsel %vm5023, %v5050, %v5049
      %vm5052 = vcmp.lt.s32.totalorder %v4251, 0
      %v5053 = vsub.s32 0, %v4251
      %v5054 = vsel %vm5052, %v5053, %v4251
      %v5055 = vand.u32 %v5054, 65535
      %v5056 = vshrl.u32 %v5054, 16
      %v5058 = vmul.u32 %v5055, 52429
      %v5059 = vmul.u32 %v5055, 52428
      %v5060 = vmul.u32 %v5056, 52429
      %v5061 = vmul.u32 %v5056, 52428
      %v5062 = vshll.u32 %v5059, 16
      %v5063 = vshrl.u32 %v5059, 16
      %v5064 = vshll.u32 %v5060, 16
      %v5065 = vshrl.u32 %v5060, 16
      %vm5066 = vc.u32 %v5058, %v5062
      %v5067 = vsel %vm5066, 1, 0
      %v5068 = vadd.s32 %v5058, %v5062
      %v5069 = vadd.s32 %v5061, %v5067
      %vm5070 = vc.u32 %v5068, %v5064
      %v5071 = vsel %vm5070, 1, 0
      %v5072 = vadd.s32 %v5068, %v5064
      %v5073 = vadd.s32 %v5069, %v5071
      %v5074 = vadd.s32 %v5073, %v5063
      %v5075 = vadd.s32 %v5074, %v5065
      %v5076 = vshrl.u32 %v5075, 4
      %v5077 = vmul.u32 %v5076, 20
      %v5078 = vsub.s32 %v5054, %v5077
      %v5079 = vsub.s32 0, %v5078
      %v5080 = vsel %vm5052, %v5079, %v5078
      %vm5081 = vcmp.lt.s32.totalorder %v4252, 0
      %v5082 = vsub.s32 0, %v4252
      %v5083 = vsel %vm5081, %v5082, %v4252
      %v5084 = vand.u32 %v5083, 65535
      %v5085 = vshrl.u32 %v5083, 16
      %v5087 = vmul.u32 %v5084, 52429
      %v5088 = vmul.u32 %v5084, 52428
      %v5089 = vmul.u32 %v5085, 52429
      %v5090 = vmul.u32 %v5085, 52428
      %v5091 = vshll.u32 %v5088, 16
      %v5092 = vshrl.u32 %v5088, 16
      %v5093 = vshll.u32 %v5089, 16
      %v5094 = vshrl.u32 %v5089, 16
      %vm5095 = vc.u32 %v5087, %v5091
      %v5096 = vsel %vm5095, 1, 0
      %v5097 = vadd.s32 %v5087, %v5091
      %v5098 = vadd.s32 %v5090, %v5096
      %vm5099 = vc.u32 %v5097, %v5093
      %v5100 = vsel %vm5099, 1, 0
      %v5101 = vadd.s32 %v5097, %v5093
      %v5102 = vadd.s32 %v5098, %v5100
      %v5103 = vadd.s32 %v5102, %v5092
      %v5104 = vadd.s32 %v5103, %v5094
      %v5105 = vshrl.u32 %v5104, 4
      %v5106 = vmul.u32 %v5105, 20
      %v5107 = vsub.s32 %v5083, %v5106
      %v5108 = vsub.s32 0, %v5107
      %v5109 = vsel %vm5081, %v5108, %v5107
      %vm5110 = vcmp.lt.s32.totalorder %v4253, 0
      %v5111 = vsub.s32 0, %v4253
      %v5112 = vsel %vm5110, %v5111, %v4253
      %v5113 = vand.u32 %v5112, 65535
      %v5114 = vshrl.u32 %v5112, 16
      %v5116 = vmul.u32 %v5113, 52429
      %v5117 = vmul.u32 %v5113, 52428
      %v5118 = vmul.u32 %v5114, 52429
      %v5119 = vmul.u32 %v5114, 52428
      %v5120 = vshll.u32 %v5117, 16
      %v5121 = vshrl.u32 %v5117, 16
      %v5122 = vshll.u32 %v5118, 16
      %v5123 = vshrl.u32 %v5118, 16
      %vm5124 = vc.u32 %v5116, %v5120
      %v5125 = vsel %vm5124, 1, 0
      %v5126 = vadd.s32 %v5116, %v5120
      %v5127 = vadd.s32 %v5119, %v5125
      %vm5128 = vc.u32 %v5126, %v5122
      %v5129 = vsel %vm5128, 1, 0
      %v5130 = vadd.s32 %v5126, %v5122
      %v5131 = vadd.s32 %v5127, %v5129
      %v5132 = vadd.s32 %v5131, %v5121
      %v5133 = vadd.s32 %v5132, %v5123
      %v5134 = vshrl.u32 %v5133, 4
      %v5135 = vmul.u32 %v5134, 20
      %v5136 = vsub.s32 %v5112, %v5135
      %v5137 = vsub.s32 0, %v5136
      %v5138 = vsel %vm5110, %v5137, %v5136
      %vm5139 = vcmp.lt.s32.totalorder %v4254, 0
      %v5140 = vsub.s32 0, %v4254
      %v5141 = vsel %vm5139, %v5140, %v4254
      %v5142 = vand.u32 %v5141, 65535
      %v5143 = vshrl.u32 %v5141, 16
      %v5145 = vmul.u32 %v5142, 52429
      %v5146 = vmul.u32 %v5142, 52428
      %v5147 = vmul.u32 %v5143, 52429
      %v5148 = vmul.u32 %v5143, 52428
      %v5149 = vshll.u32 %v5146, 16
      %v5150 = vshrl.u32 %v5146, 16
      %v5151 = vshll.u32 %v5147, 16
      %v5152 = vshrl.u32 %v5147, 16
      %vm5153 = vc.u32 %v5145, %v5149
      %v5154 = vsel %vm5153, 1, 0
      %v5155 = vadd.s32 %v5145, %v5149
      %v5156 = vadd.s32 %v5148, %v5154
      %vm5157 = vc.u32 %v5155, %v5151
      %v5158 = vsel %vm5157, 1, 0
      %v5159 = vadd.s32 %v5155, %v5151
      %v5160 = vadd.s32 %v5156, %v5158
      %v5161 = vadd.s32 %v5160, %v5150
      %v5162 = vadd.s32 %v5161, %v5152
      %v5163 = vshrl.u32 %v5162, 4
      %v5164 = vmul.u32 %v5163, 20
      %v5165 = vsub.s32 %v5141, %v5164
      %v5166 = vsub.s32 0, %v5165
      %v5167 = vsel %vm5139, %v5166, %v5165
      %vm5168 = vcmp.lt.s32.totalorder %v4255, 0
      %v5169 = vsub.s32 0, %v4255
      %v5170 = vsel %vm5168, %v5169, %v4255
      %v5171 = vand.u32 %v5170, 65535
      %v5172 = vshrl.u32 %v5170, 16
      %v5174 = vmul.u32 %v5171, 52429
      %v5175 = vmul.u32 %v5171, 52428
      %v5176 = vmul.u32 %v5172, 52429
      %v5177 = vmul.u32 %v5172, 52428
      %v5178 = vshll.u32 %v5175, 16
      %v5179 = vshrl.u32 %v5175, 16
      %v5180 = vshll.u32 %v5176, 16
      %v5181 = vshrl.u32 %v5176, 16
      %vm5182 = vc.u32 %v5174, %v5178
      %v5183 = vsel %vm5182, 1, 0
      %v5184 = vadd.s32 %v5174, %v5178
      %v5185 = vadd.s32 %v5177, %v5183
      %vm5186 = vc.u32 %v5184, %v5180
      %v5187 = vsel %vm5186, 1, 0
      %v5188 = vadd.s32 %v5184, %v5180
      %v5189 = vadd.s32 %v5185, %v5187
      %v5190 = vadd.s32 %v5189, %v5179
      %v5191 = vadd.s32 %v5190, %v5181
      %v5192 = vshrl.u32 %v5191, 4
      %v5193 = vmul.u32 %v5192, 20
      %v5194 = vsub.s32 %v5170, %v5193
      %v5195 = vsub.s32 0, %v5194
      %v5196 = vsel %vm5168, %v5195, %v5194
      %vm5197 = vcmp.lt.s32.totalorder %v4256, 0
      %v5198 = vsub.s32 0, %v4256
      %v5199 = vsel %vm5197, %v5198, %v4256
      %v5200 = vand.u32 %v5199, 65535
      %v5201 = vshrl.u32 %v5199, 16
      %v5203 = vmul.u32 %v5200, 52429
      %v5204 = vmul.u32 %v5200, 52428
      %v5205 = vmul.u32 %v5201, 52429
      %v5206 = vmul.u32 %v5201, 52428
      %v5207 = vshll.u32 %v5204, 16
      %v5208 = vshrl.u32 %v5204, 16
      %v5209 = vshll.u32 %v5205, 16
      %v5210 = vshrl.u32 %v5205, 16
      %vm5211 = vc.u32 %v5203, %v5207
      %v5212 = vsel %vm5211, 1, 0
      %v5213 = vadd.s32 %v5203, %v5207
      %v5214 = vadd.s32 %v5206, %v5212
      %vm5215 = vc.u32 %v5213, %v5209
      %v5216 = vsel %vm5215, 1, 0
      %v5217 = vadd.s32 %v5213, %v5209
      %v5218 = vadd.s32 %v5214, %v5216
      %v5219 = vadd.s32 %v5218, %v5208
      %v5220 = vadd.s32 %v5219, %v5210
      %v5221 = vshrl.u32 %v5220, 4
      %v5222 = vmul.u32 %v5221, 20
      %v5223 = vsub.s32 %v5199, %v5222
      %v5224 = vsub.s32 0, %v5223
      %v5225 = vsel %vm5197, %v5224, %v5223
      %vm5226 = vcmp.lt.s32.totalorder %v4257, 0
      %v5227 = vsub.s32 0, %v4257
      %v5228 = vsel %vm5226, %v5227, %v4257
      %v5229 = vand.u32 %v5228, 65535
      %v5230 = vshrl.u32 %v5228, 16
      %v5232 = vmul.u32 %v5229, 52429
      %v5233 = vmul.u32 %v5229, 52428
      %v5234 = vmul.u32 %v5230, 52429
      %v5235 = vmul.u32 %v5230, 52428
      %v5236 = vshll.u32 %v5233, 16
      %v5237 = vshrl.u32 %v5233, 16
      %v5238 = vshll.u32 %v5234, 16
      %v5239 = vshrl.u32 %v5234, 16
      %vm5240 = vc.u32 %v5232, %v5236
      %v5241 = vsel %vm5240, 1, 0
      %v5242 = vadd.s32 %v5232, %v5236
      %v5243 = vadd.s32 %v5235, %v5241
      %vm5244 = vc.u32 %v5242, %v5238
      %v5245 = vsel %vm5244, 1, 0
      %v5246 = vadd.s32 %v5242, %v5238
      %v5247 = vadd.s32 %v5243, %v5245
      %v5248 = vadd.s32 %v5247, %v5237
      %v5249 = vadd.s32 %v5248, %v5239
      %v5250 = vshrl.u32 %v5249, 4
      %v5251 = vmul.u32 %v5250, 20
      %v5252 = vsub.s32 %v5228, %v5251
      %v5253 = vsub.s32 0, %v5252
      %v5254 = vsel %vm5226, %v5253, %v5252
      %vm5255 = vcmp.lt.s32.totalorder %v4258, 0
      %v5256 = vsub.s32 0, %v4258
      %v5257 = vsel %vm5255, %v5256, %v4258
      %v5258 = vand.u32 %v5257, 65535
      %v5259 = vshrl.u32 %v5257, 16
      %v5261 = vmul.u32 %v5258, 52429
      %v5262 = vmul.u32 %v5258, 52428
      %v5263 = vmul.u32 %v5259, 52429
      %v5264 = vmul.u32 %v5259, 52428
      %v5265 = vshll.u32 %v5262, 16
      %v5266 = vshrl.u32 %v5262, 16
      %v5267 = vshll.u32 %v5263, 16
      %v5268 = vshrl.u32 %v5263, 16
      %vm5269 = vc.u32 %v5261, %v5265
      %v5270 = vsel %vm5269, 1, 0
      %v5271 = vadd.s32 %v5261, %v5265
      %v5272 = vadd.s32 %v5264, %v5270
      %vm5273 = vc.u32 %v5271, %v5267
      %v5274 = vsel %vm5273, 1, 0
      %v5275 = vadd.s32 %v5271, %v5267
      %v5276 = vadd.s32 %v5272, %v5274
      %v5277 = vadd.s32 %v5276, %v5266
      %v5278 = vadd.s32 %v5277, %v5268
      %v5279 = vshrl.u32 %v5278, 4
      %v5280 = vmul.u32 %v5279, 20
      %v5281 = vsub.s32 %v5257, %v5280
      %v5282 = vsub.s32 0, %v5281
      %v5283 = vsel %vm5255, %v5282, %v5281
      %vm5284 = vcmp.lt.s32.totalorder %v4259, 0
      %v5285 = vsub.s32 0, %v4259
      %v5286 = vsel %vm5284, %v5285, %v4259
      %v5287 = vand.u32 %v5286, 65535
      %v5288 = vshrl.u32 %v5286, 16
      %v5290 = vmul.u32 %v5287, 52429
      %v5291 = vmul.u32 %v5287, 52428
      %v5292 = vmul.u32 %v5288, 52429
      %v5293 = vmul.u32 %v5288, 52428
      %v5294 = vshll.u32 %v5291, 16
      %v5295 = vshrl.u32 %v5291, 16
      %v5296 = vshll.u32 %v5292, 16
      %v5297 = vshrl.u32 %v5292, 16
      %vm5298 = vc.u32 %v5290, %v5294
      %v5299 = vsel %vm5298, 1, 0
      %v5300 = vadd.s32 %v5290, %v5294
      %v5301 = vadd.s32 %v5293, %v5299
      %vm5302 = vc.u32 %v5300, %v5296
      %v5303 = vsel %vm5302, 1, 0
      %v5304 = vadd.s32 %v5300, %v5296
      %v5305 = vadd.s32 %v5301, %v5303
      %v5306 = vadd.s32 %v5305, %v5295
      %v5307 = vadd.s32 %v5306, %v5297
      %v5308 = vshrl.u32 %v5307, 4
      %v5309 = vmul.u32 %v5308, 20
      %v5310 = vsub.s32 %v5286, %v5309
      %v5311 = vsub.s32 0, %v5310
      %v5312 = vsel %vm5284, %v5311, %v5310
      %vm5313 = vcmp.lt.s32.totalorder %v4260, 0
      %v5314 = vsub.s32 0, %v4260
      %v5315 = vsel %vm5313, %v5314, %v4260
      %v5316 = vand.u32 %v5315, 65535
      %v5317 = vshrl.u32 %v5315, 16
      %v5319 = vmul.u32 %v5316, 52429
      %v5320 = vmul.u32 %v5316, 52428
      %v5321 = vmul.u32 %v5317, 52429
      %v5322 = vmul.u32 %v5317, 52428
      %v5323 = vshll.u32 %v5320, 16
      %v5324 = vshrl.u32 %v5320, 16
      %v5325 = vshll.u32 %v5321, 16
      %v5326 = vshrl.u32 %v5321, 16
      %vm5327 = vc.u32 %v5319, %v5323
      %v5328 = vsel %vm5327, 1, 0
      %v5329 = vadd.s32 %v5319, %v5323
      %v5330 = vadd.s32 %v5322, %v5328
      %vm5331 = vc.u32 %v5329, %v5325
      %v5332 = vsel %vm5331, 1, 0
      %v5333 = vadd.s32 %v5329, %v5325
      %v5334 = vadd.s32 %v5330, %v5332
      %v5335 = vadd.s32 %v5334, %v5324
      %v5336 = vadd.s32 %v5335, %v5326
      %v5337 = vshrl.u32 %v5336, 4
      %v5338 = vmul.u32 %v5337, 20
      %v5339 = vsub.s32 %v5315, %v5338
      %v5340 = vsub.s32 0, %v5339
      %v5341 = vsel %vm5313, %v5340, %v5339
      %vm5342 = vcmp.lt.s32.totalorder %v4261, 0
      %v5343 = vsub.s32 0, %v4261
      %v5344 = vsel %vm5342, %v5343, %v4261
      %v5345 = vand.u32 %v5344, 65535
      %v5346 = vshrl.u32 %v5344, 16
      %v5348 = vmul.u32 %v5345, 52429
      %v5349 = vmul.u32 %v5345, 52428
      %v5350 = vmul.u32 %v5346, 52429
      %v5351 = vmul.u32 %v5346, 52428
      %v5352 = vshll.u32 %v5349, 16
      %v5353 = vshrl.u32 %v5349, 16
      %v5354 = vshll.u32 %v5350, 16
      %v5355 = vshrl.u32 %v5350, 16
      %vm5356 = vc.u32 %v5348, %v5352
      %v5357 = vsel %vm5356, 1, 0
      %v5358 = vadd.s32 %v5348, %v5352
      %v5359 = vadd.s32 %v5351, %v5357
      %vm5360 = vc.u32 %v5358, %v5354
      %v5361 = vsel %vm5360, 1, 0
      %v5362 = vadd.s32 %v5358, %v5354
      %v5363 = vadd.s32 %v5359, %v5361
      %v5364 = vadd.s32 %v5363, %v5353
      %v5365 = vadd.s32 %v5364, %v5355
      %v5366 = vshrl.u32 %v5365, 4
      %v5367 = vmul.u32 %v5366, 20
      %v5368 = vsub.s32 %v5344, %v5367
      %v5369 = vsub.s32 0, %v5368
      %v5370 = vsel %vm5342, %v5369, %v5368
      %vm5371 = vcmp.lt.s32.totalorder %v4262, 0
      %v5372 = vsub.s32 0, %v4262
      %v5373 = vsel %vm5371, %v5372, %v4262
      %v5374 = vand.u32 %v5373, 65535
      %v5375 = vshrl.u32 %v5373, 16
      %v5377 = vmul.u32 %v5374, 52429
      %v5378 = vmul.u32 %v5374, 52428
      %v5379 = vmul.u32 %v5375, 52429
      %v5380 = vmul.u32 %v5375, 52428
      %v5381 = vshll.u32 %v5378, 16
      %v5382 = vshrl.u32 %v5378, 16
      %v5383 = vshll.u32 %v5379, 16
      %v5384 = vshrl.u32 %v5379, 16
      %vm5385 = vc.u32 %v5377, %v5381
      %v5386 = vsel %vm5385, 1, 0
      %v5387 = vadd.s32 %v5377, %v5381
      %v5388 = vadd.s32 %v5380, %v5386
      %vm5389 = vc.u32 %v5387, %v5383
      %v5390 = vsel %vm5389, 1, 0
      %v5391 = vadd.s32 %v5387, %v5383
      %v5392 = vadd.s32 %v5388, %v5390
      %v5393 = vadd.s32 %v5392, %v5382
      %v5394 = vadd.s32 %v5393, %v5384
      %v5395 = vshrl.u32 %v5394, 4
      %v5396 = vmul.u32 %v5395, 20
      %v5397 = vsub.s32 %v5373, %v5396
      %v5398 = vsub.s32 0, %v5397
      %v5399 = vsel %vm5371, %v5398, %v5397
      %vm5400 = vcmp.lt.s32.totalorder %v4263, 0
      %v5401 = vsub.s32 0, %v4263
      %v5402 = vsel %vm5400, %v5401, %v4263
      %v5403 = vand.u32 %v5402, 65535
      %v5404 = vshrl.u32 %v5402, 16
      %v5406 = vmul.u32 %v5403, 52429
      %v5407 = vmul.u32 %v5403, 52428
      %v5408 = vmul.u32 %v5404, 52429
      %v5409 = vmul.u32 %v5404, 52428
      %v5410 = vshll.u32 %v5407, 16
      %v5411 = vshrl.u32 %v5407, 16
      %v5412 = vshll.u32 %v5408, 16
      %v5413 = vshrl.u32 %v5408, 16
      %vm5414 = vc.u32 %v5406, %v5410
      %v5415 = vsel %vm5414, 1, 0
      %v5416 = vadd.s32 %v5406, %v5410
      %v5417 = vadd.s32 %v5409, %v5415
      %vm5418 = vc.u32 %v5416, %v5412
      %v5419 = vsel %vm5418, 1, 0
      %v5420 = vadd.s32 %v5416, %v5412
      %v5421 = vadd.s32 %v5417, %v5419
      %v5422 = vadd.s32 %v5421, %v5411
      %v5423 = vadd.s32 %v5422, %v5413
      %v5424 = vshrl.u32 %v5423, 4
      %v5425 = vmul.u32 %v5424, 20
      %v5426 = vsub.s32 %v5402, %v5425
      %v5427 = vsub.s32 0, %v5426
      %v5428 = vsel %vm5400, %v5427, %v5426
      %vm5429 = vcmp.lt.s32.totalorder %v4264, 0
      %v5430 = vsub.s32 0, %v4264
      %v5431 = vsel %vm5429, %v5430, %v4264
      %v5432 = vand.u32 %v5431, 65535
      %v5433 = vshrl.u32 %v5431, 16
      %v5435 = vmul.u32 %v5432, 52429
      %v5436 = vmul.u32 %v5432, 52428
      %v5437 = vmul.u32 %v5433, 52429
      %v5438 = vmul.u32 %v5433, 52428
      %v5439 = vshll.u32 %v5436, 16
      %v5440 = vshrl.u32 %v5436, 16
      %v5441 = vshll.u32 %v5437, 16
      %v5442 = vshrl.u32 %v5437, 16
      %vm5443 = vc.u32 %v5435, %v5439
      %v5444 = vsel %vm5443, 1, 0
      %v5445 = vadd.s32 %v5435, %v5439
      %v5446 = vadd.s32 %v5438, %v5444
      %vm5447 = vc.u32 %v5445, %v5441
      %v5448 = vsel %vm5447, 1, 0
      %v5449 = vadd.s32 %v5445, %v5441
      %v5450 = vadd.s32 %v5446, %v5448
      %v5451 = vadd.s32 %v5450, %v5440
      %v5452 = vadd.s32 %v5451, %v5442
      %v5453 = vshrl.u32 %v5452, 4
      %v5454 = vmul.u32 %v5453, 20
      %v5455 = vsub.s32 %v5431, %v5454
      %v5456 = vsub.s32 0, %v5455
      %v5457 = vsel %vm5429, %v5456, %v5455
      %vm5458 = vcmp.lt.s32.totalorder %v4265, 0
      %v5459 = vsub.s32 0, %v4265
      %v5460 = vsel %vm5458, %v5459, %v4265
      %v5461 = vand.u32 %v5460, 65535
      %v5462 = vshrl.u32 %v5460, 16
      %v5464 = vmul.u32 %v5461, 52429
      %v5465 = vmul.u32 %v5461, 52428
      %v5466 = vmul.u32 %v5462, 52429
      %v5467 = vmul.u32 %v5462, 52428
      %v5468 = vshll.u32 %v5465, 16
      %v5469 = vshrl.u32 %v5465, 16
      %v5470 = vshll.u32 %v5466, 16
      %v5471 = vshrl.u32 %v5466, 16
      %vm5472 = vc.u32 %v5464, %v5468
      %v5473 = vsel %vm5472, 1, 0
      %v5474 = vadd.s32 %v5464, %v5468
      %v5475 = vadd.s32 %v5467, %v5473
      %vm5476 = vc.u32 %v5474, %v5470
      %v5477 = vsel %vm5476, 1, 0
      %v5478 = vadd.s32 %v5474, %v5470
      %v5479 = vadd.s32 %v5475, %v5477
      %v5480 = vadd.s32 %v5479, %v5469
      %v5481 = vadd.s32 %v5480, %v5471
      %v5482 = vshrl.u32 %v5481, 4
      %v5483 = vmul.u32 %v5482, 20
      %v5484 = vsub.s32 %v5460, %v5483
      %v5485 = vsub.s32 0, %v5484
      %v5486 = vsel %vm5458, %v5485, %v5484
      %vm5487 = vcmp.lt.s32.totalorder %v4266, 0
      %v5488 = vsub.s32 0, %v4266
      %v5489 = vsel %vm5487, %v5488, %v4266
      %v5490 = vand.u32 %v5489, 65535
      %v5491 = vshrl.u32 %v5489, 16
      %v5493 = vmul.u32 %v5490, 52429
      %v5494 = vmul.u32 %v5490, 52428
      %v5495 = vmul.u32 %v5491, 52429
      %v5496 = vmul.u32 %v5491, 52428
      %v5497 = vshll.u32 %v5494, 16
      %v5498 = vshrl.u32 %v5494, 16
      %v5499 = vshll.u32 %v5495, 16
      %v5500 = vshrl.u32 %v5495, 16
      %vm5501 = vc.u32 %v5493, %v5497
      %v5502 = vsel %vm5501, 1, 0
      %v5503 = vadd.s32 %v5493, %v5497
      %v5504 = vadd.s32 %v5496, %v5502
      %vm5505 = vc.u32 %v5503, %v5499
      %v5506 = vsel %vm5505, 1, 0
      %v5507 = vadd.s32 %v5503, %v5499
      %v5508 = vadd.s32 %v5504, %v5506
      %v5509 = vadd.s32 %v5508, %v5498
      %v5510 = vadd.s32 %v5509, %v5500
      %v5511 = vshrl.u32 %v5510, 4
      %v5512 = vmul.u32 %v5511, 20
      %v5513 = vsub.s32 %v5489, %v5512
      %v5514 = vsub.s32 0, %v5513
      %v5515 = vsel %vm5487, %v5514, %v5513
      %vm5516 = vcmp.lt.s32.totalorder %v4267, 0
      %v5517 = vsub.s32 0, %v4267
      %v5518 = vsel %vm5516, %v5517, %v4267
      %v5519 = vand.u32 %v5518, 65535
      %v5520 = vshrl.u32 %v5518, 16
      %v5522 = vmul.u32 %v5519, 52429
      %v5523 = vmul.u32 %v5519, 52428
      %v5524 = vmul.u32 %v5520, 52429
      %v5525 = vmul.u32 %v5520, 52428
      %v5526 = vshll.u32 %v5523, 16
      %v5527 = vshrl.u32 %v5523, 16
      %v5528 = vshll.u32 %v5524, 16
      %v5529 = vshrl.u32 %v5524, 16
      %vm5530 = vc.u32 %v5522, %v5526
      %v5531 = vsel %vm5530, 1, 0
      %v5532 = vadd.s32 %v5522, %v5526
      %v5533 = vadd.s32 %v5525, %v5531
      %vm5534 = vc.u32 %v5532, %v5528
      %v5535 = vsel %vm5534, 1, 0
      %v5536 = vadd.s32 %v5532, %v5528
      %v5537 = vadd.s32 %v5533, %v5535
      %v5538 = vadd.s32 %v5537, %v5527
      %v5539 = vadd.s32 %v5538, %v5529
      %v5540 = vshrl.u32 %v5539, 4
      %v5541 = vmul.u32 %v5540, 20
      %v5542 = vsub.s32 %v5518, %v5541
      %v5543 = vsub.s32 0, %v5542
      %v5544 = vsel %vm5516, %v5543, %v5542
      %vm5545 = vcmp.lt.s32.totalorder %v4268, 0
      %v5546 = vsub.s32 0, %v4268
      %v5547 = vsel %vm5545, %v5546, %v4268
      %v5548 = vand.u32 %v5547, 65535
      %v5549 = vshrl.u32 %v5547, 16
      %v5551 = vmul.u32 %v5548, 52429
      %v5552 = vmul.u32 %v5548, 52428
      %v5553 = vmul.u32 %v5549, 52429
      %v5554 = vmul.u32 %v5549, 52428
      %v5555 = vshll.u32 %v5552, 16
      %v5556 = vshrl.u32 %v5552, 16
      %v5557 = vshll.u32 %v5553, 16
      %v5558 = vshrl.u32 %v5553, 16
      %vm5559 = vc.u32 %v5551, %v5555
      %v5560 = vsel %vm5559, 1, 0
      %v5561 = vadd.s32 %v5551, %v5555
      %v5562 = vadd.s32 %v5554, %v5560
      %vm5563 = vc.u32 %v5561, %v5557
      %v5564 = vsel %vm5563, 1, 0
      %v5565 = vadd.s32 %v5561, %v5557
      %v5566 = vadd.s32 %v5562, %v5564
      %v5567 = vadd.s32 %v5566, %v5556
      %v5568 = vadd.s32 %v5567, %v5558
      %v5569 = vshrl.u32 %v5568, 4
      %v5570 = vmul.u32 %v5569, 20
      %v5571 = vsub.s32 %v5547, %v5570
      %v5572 = vsub.s32 0, %v5571
      %v5573 = vsel %vm5545, %v5572, %v5571
      %vm5574 = vcmp.ne.s32.totalorder %v4297, 0
      %vm5575 = vcmp.ne.s32.totalorder %v4326, 0
      %vm5576 = vcmp.ne.s32.totalorder %v4355, 0
      %vm5577 = vcmp.ne.s32.totalorder %v4384, 0
      %vm5578 = vcmp.ne.s32.totalorder %v4413, 0
      %vm5579 = vcmp.ne.s32.totalorder %v4442, 0
      %vm5580 = vcmp.ne.s32.totalorder %v4471, 0
      %vm5581 = vcmp.ne.s32.totalorder %v4500, 0
      %vm5582 = vcmp.ne.s32.totalorder %v4529, 0
      %vm5583 = vcmp.ne.s32.totalorder %v4558, 0
      %vm5584 = vcmp.ne.s32.totalorder %v4587, 0
      %vm5585 = vcmp.ne.s32.totalorder %v4616, 0
      %vm5586 = vcmp.ne.s32.totalorder %v4645, 0
      %vm5587 = vcmp.ne.s32.totalorder %v4674, 0
      %vm5588 = vcmp.ne.s32.totalorder %v4703, 0
      %vm5589 = vcmp.ne.s32.totalorder %v4732, 0
      %vm5590 = vcmp.ne.s32.totalorder %v4761, 0
      %vm5591 = vcmp.ne.s32.totalorder %v4790, 0
      %vm5592 = vcmp.ne.s32.totalorder %v4819, 0
      %vm5593 = vcmp.ne.s32.totalorder %v4848, 0
      %vm5594 = vcmp.ne.s32.totalorder %v4877, 0
      %vm5595 = vcmp.ne.s32.totalorder %v4906, 0
      %vm5596 = vcmp.ne.s32.totalorder %v4935, 0
      %vm5597 = vcmp.ne.s32.totalorder %v4964, 0
      %vm5598 = vcmp.ne.s32.totalorder %v4993, 0
      %vm5599 = vcmp.ne.s32.totalorder %v5022, 0
      %vm5600 = vcmp.ne.s32.totalorder %v5051, 0
      %vm5601 = vcmp.ne.s32.totalorder %v5080, 0
      %vm5602 = vcmp.ne.s32.totalorder %v5109, 0
      %vm5603 = vcmp.ne.s32.totalorder %v5138, 0
      %vm5604 = vcmp.ne.s32.totalorder %v5167, 0
      %vm5605 = vcmp.ne.s32.totalorder %v5196, 0
      %vm5606 = vcmp.ne.s32.totalorder %v5225, 0
      %vm5607 = vcmp.ne.s32.totalorder %v5254, 0
      %vm5608 = vcmp.ne.s32.totalorder %v5283, 0
      %vm5609 = vcmp.ne.s32.totalorder %v5312, 0
      %vm5610 = vcmp.ne.s32.totalorder %v5341, 0
      %vm5611 = vcmp.ne.s32.totalorder %v5370, 0
      %vm5612 = vcmp.ne.s32.totalorder %v5399, 0
      %vm5613 = vcmp.ne.s32.totalorder %v5428, 0
      %vm5614 = vcmp.ne.s32.totalorder %v5457, 0
      %vm5615 = vcmp.ne.s32.totalorder %v5486, 0
      %vm5616 = vcmp.ne.s32.totalorder %v5515, 0
      %vm5617 = vcmp.ne.s32.totalorder %v5544, 0
      %vm5618 = vcmp.ne.s32.totalorder %v5573, 0
      %vm5619 = vcmp.lt.s32.totalorder %v4297, 0
      %vm5620 = vcmp.lt.s32.totalorder %v4326, 0
      %vm5621 = vcmp.lt.s32.totalorder %v4355, 0
      %vm5622 = vcmp.lt.s32.totalorder %v4384, 0
      %vm5623 = vcmp.lt.s32.totalorder %v4413, 0
      %vm5624 = vcmp.lt.s32.totalorder %v4442, 0
      %vm5625 = vcmp.lt.s32.totalorder %v4471, 0
      %vm5626 = vcmp.lt.s32.totalorder %v4500, 0
      %vm5627 = vcmp.lt.s32.totalorder %v4529, 0
      %vm5628 = vcmp.lt.s32.totalorder %v4558, 0
      %vm5629 = vcmp.lt.s32.totalorder %v4587, 0
      %vm5630 = vcmp.lt.s32.totalorder %v4616, 0
      %vm5631 = vcmp.lt.s32.totalorder %v4645, 0
      %vm5632 = vcmp.lt.s32.totalorder %v4674, 0
      %vm5633 = vcmp.lt.s32.totalorder %v4703, 0
      %vm5634 = vcmp.lt.s32.totalorder %v4732, 0
      %vm5635 = vcmp.lt.s32.totalorder %v4761, 0
      %vm5636 = vcmp.lt.s32.totalorder %v4790, 0
      %vm5637 = vcmp.lt.s32.totalorder %v4819, 0
      %vm5638 = vcmp.lt.s32.totalorder %v4848, 0
      %vm5639 = vcmp.lt.s32.totalorder %v4877, 0
      %vm5640 = vcmp.lt.s32.totalorder %v4906, 0
      %vm5641 = vcmp.lt.s32.totalorder %v4935, 0
      %vm5642 = vcmp.lt.s32.totalorder %v4964, 0
      %vm5643 = vcmp.lt.s32.totalorder %v4993, 0
      %vm5644 = vcmp.lt.s32.totalorder %v5022, 0
      %vm5645 = vcmp.lt.s32.totalorder %v5051, 0
      %vm5646 = vcmp.lt.s32.totalorder %v5080, 0
      %vm5647 = vcmp.lt.s32.totalorder %v5109, 0
      %vm5648 = vcmp.lt.s32.totalorder %v5138, 0
      %vm5649 = vcmp.lt.s32.totalorder %v5167, 0
      %vm5650 = vcmp.lt.s32.totalorder %v5196, 0
      %vm5651 = vcmp.lt.s32.totalorder %v5225, 0
      %vm5652 = vcmp.lt.s32.totalorder %v5254, 0
      %vm5653 = vcmp.lt.s32.totalorder %v5283, 0
      %vm5654 = vcmp.lt.s32.totalorder %v5312, 0
      %vm5655 = vcmp.lt.s32.totalorder %v5341, 0
      %vm5656 = vcmp.lt.s32.totalorder %v5370, 0
      %vm5657 = vcmp.lt.s32.totalorder %v5399, 0
      %vm5658 = vcmp.lt.s32.totalorder %v5428, 0
      %vm5659 = vcmp.lt.s32.totalorder %v5457, 0
      %vm5660 = vcmp.lt.s32.totalorder %v5486, 0
      %vm5661 = vcmp.lt.s32.totalorder %v5515, 0
      %vm5662 = vcmp.lt.s32.totalorder %v5544, 0
      %vm5663 = vcmp.lt.s32.totalorder %v5573, 0
      %vm5664 = vmand %vm5619, %vm5574
      %vm5665 = vmand %vm5620, %vm5575
      %vm5666 = vmand %vm5621, %vm5576
      %vm5667 = vmand %vm5622, %vm5577
      %vm5668 = vmand %vm5623, %vm5578
      %vm5669 = vmand %vm5624, %vm5579
      %vm5670 = vmand %vm5625, %vm5580
      %vm5671 = vmand %vm5626, %vm5581
      %vm5672 = vmand %vm5627, %vm5582
      %vm5673 = vmand %vm5628, %vm5583
      %vm5674 = vmand %vm5629, %vm5584
      %vm5675 = vmand %vm5630, %vm5585
      %vm5676 = vmand %vm5631, %vm5586
      %vm5677 = vmand %vm5632, %vm5587
      %vm5678 = vmand %vm5633, %vm5588
      %vm5679 = vmand %vm5634, %vm5589
      %vm5680 = vmand %vm5635, %vm5590
      %vm5681 = vmand %vm5636, %vm5591
      %vm5682 = vmand %vm5637, %vm5592
      %vm5683 = vmand %vm5638, %vm5593
      %vm5684 = vmand %vm5639, %vm5594
      %vm5685 = vmand %vm5640, %vm5595
      %vm5686 = vmand %vm5641, %vm5596
      %vm5687 = vmand %vm5642, %vm5597
      %vm5688 = vmand %vm5643, %vm5598
      %vm5689 = vmand %vm5644, %vm5599
      %vm5690 = vmand %vm5645, %vm5600
      %vm5691 = vmand %vm5646, %vm5601
      %vm5692 = vmand %vm5647, %vm5602
      %vm5693 = vmand %vm5648, %vm5603
      %vm5694 = vmand %vm5649, %vm5604
      %vm5695 = vmand %vm5650, %vm5605
      %vm5696 = vmand %vm5651, %vm5606
      %vm5697 = vmand %vm5652, %vm5607
      %vm5698 = vmand %vm5653, %vm5608
      %vm5699 = vmand %vm5654, %vm5609
      %vm5700 = vmand %vm5655, %vm5610
      %vm5701 = vmand %vm5656, %vm5611
      %vm5702 = vmand %vm5657, %vm5612
      %vm5703 = vmand %vm5658, %vm5613
      %vm5704 = vmand %vm5659, %vm5614
      %vm5705 = vmand %vm5660, %vm5615
      %vm5706 = vmand %vm5661, %vm5616
      %vm5707 = vmand %vm5662, %vm5617
      %vm5708 = vmand %vm5663, %vm5618
      %v5709 = vadd.s32 %v4297, 20
      %v5710 = vadd.s32 %v4326, 20
      %v5711 = vadd.s32 %v4355, 20
      %v5712 = vadd.s32 %v4384, 20
      %v5713 = vadd.s32 %v4413, 20
      %v5714 = vadd.s32 %v4442, 20
      %v5715 = vadd.s32 %v4471, 20
      %v5716 = vadd.s32 %v4500, 20
      %v5717 = vadd.s32 %v4529, 20
      %v5718 = vadd.s32 %v4558, 20
      %v5719 = vadd.s32 %v4587, 20
      %v5720 = vadd.s32 %v4616, 20
      %v5721 = vadd.s32 %v4645, 20
      %v5722 = vadd.s32 %v4674, 20
      %v5723 = vadd.s32 %v4703, 20
      %v5724 = vadd.s32 %v4732, 20
      %v5725 = vadd.s32 %v4761, 20
      %v5726 = vadd.s32 %v4790, 20
      %v5727 = vadd.s32 %v4819, 20
      %v5728 = vadd.s32 %v4848, 20
      %v5729 = vadd.s32 %v4877, 20
      %v5730 = vadd.s32 %v4906, 20
      %v5731 = vadd.s32 %v4935, 20
      %v5732 = vadd.s32 %v4964, 20
      %v5733 = vadd.s32 %v4993, 20
      %v5734 = vadd.s32 %v5022, 20
      %v5735 = vadd.s32 %v5051, 20
      %v5736 = vadd.s32 %v5080, 20
      %v5737 = vadd.s32 %v5109, 20
      %v5738 = vadd.s32 %v5138, 20
      %v5739 = vadd.s32 %v5167, 20
      %v5740 = vadd.s32 %v5196, 20
      %v5741 = vadd.s32 %v5225, 20
      %v5742 = vadd.s32 %v5254, 20
      %v5743 = vadd.s32 %v5283, 20
      %v5744 = vadd.s32 %v5312, 20
      %v5745 = vadd.s32 %v5341, 20
      %v5746 = vadd.s32 %v5370, 20
      %v5747 = vadd.s32 %v5399, 20
      %v5748 = vadd.s32 %v5428, 20
      %v5749 = vadd.s32 %v5457, 20
      %v5750 = vadd.s32 %v5486, 20
      %v5751 = vadd.s32 %v5515, 20
      %v5752 = vadd.s32 %v5544, 20
      %v5753 = vadd.s32 %v5573, 20
      %v5754 = vsel %vm5664, %v5709, %v4297
      %v5755 = vsel %vm5665, %v5710, %v4326
      %v5756 = vsel %vm5666, %v5711, %v4355
      %v5757 = vsel %vm5667, %v5712, %v4384
      %v5758 = vsel %vm5668, %v5713, %v4413
      %v5759 = vsel %vm5669, %v5714, %v4442
      %v5760 = vsel %vm5670, %v5715, %v4471
      %v5761 = vsel %vm5671, %v5716, %v4500
      %v5762 = vsel %vm5672, %v5717, %v4529
      %v5763 = vsel %vm5673, %v5718, %v4558
      %v5764 = vsel %vm5674, %v5719, %v4587
      %v5765 = vsel %vm5675, %v5720, %v4616
      %v5766 = vsel %vm5676, %v5721, %v4645
      %v5767 = vsel %vm5677, %v5722, %v4674
      %v5768 = vsel %vm5678, %v5723, %v4703
      %v5769 = vsel %vm5679, %v5724, %v4732
      %v5770 = vsel %vm5680, %v5725, %v4761
      %v5771 = vsel %vm5681, %v5726, %v4790
      %v5772 = vsel %vm5682, %v5727, %v4819
      %v5773 = vsel %vm5683, %v5728, %v4848
      %v5774 = vsel %vm5684, %v5729, %v4877
      %v5775 = vsel %vm5685, %v5730, %v4906
      %v5776 = vsel %vm5686, %v5731, %v4935
      %v5777 = vsel %vm5687, %v5732, %v4964
      %v5778 = vsel %vm5688, %v5733, %v4993
      %v5779 = vsel %vm5689, %v5734, %v5022
      %v5780 = vsel %vm5690, %v5735, %v5051
      %v5781 = vsel %vm5691, %v5736, %v5080
      %v5782 = vsel %vm5692, %v5737, %v5109
      %v5783 = vsel %vm5693, %v5738, %v5138
      %v5784 = vsel %vm5694, %v5739, %v5167
      %v5785 = vsel %vm5695, %v5740, %v5196
      %v5786 = vsel %vm5696, %v5741, %v5225
      %v5787 = vsel %vm5697, %v5742, %v5254
      %v5788 = vsel %vm5698, %v5743, %v5283
      %v5789 = vsel %vm5699, %v5744, %v5312
      %v5790 = vsel %vm5700, %v5745, %v5341
      %v5791 = vsel %vm5701, %v5746, %v5370
      %v5792 = vsel %vm5702, %v5747, %v5399
      %v5793 = vsel %vm5703, %v5748, %v5428
      %v5794 = vsel %vm5704, %v5749, %v5457
      %v5795 = vsel %vm5705, %v5750, %v5486
      %v5796 = vsel %vm5706, %v5751, %v5515
      %v5797 = vsel %vm5707, %v5752, %v5544
      %v5798 = vsel %vm5708, %v5753, %v5573
      %vm5799 = vcmp.ge.s32.totalorder %v5754, 1
      %vm5800 = vcmp.ge.s32.totalorder %v5755, 1
      %vm5801 = vcmp.ge.s32.totalorder %v5756, 1
      %vm5802 = vcmp.ge.s32.totalorder %v5757, 1
      %vm5803 = vcmp.ge.s32.totalorder %v5758, 1
      %vm5804 = vcmp.ge.s32.totalorder %v5759, 1
      %vm5805 = vcmp.ge.s32.totalorder %v5760, 1
      %vm5806 = vcmp.ge.s32.totalorder %v5761, 1
      %vm5807 = vcmp.ge.s32.totalorder %v5762, 1
      %vm5808 = vcmp.ge.s32.totalorder %v5763, 1
      %vm5809 = vcmp.ge.s32.totalorder %v5764, 1
      %vm5810 = vcmp.ge.s32.totalorder %v5765, 1
      %vm5811 = vcmp.ge.s32.totalorder %v5766, 1
      %vm5812 = vcmp.ge.s32.totalorder %v5767, 1
      %vm5813 = vcmp.ge.s32.totalorder %v5768, 1
      %vm5814 = vcmp.ge.s32.totalorder %v5769, 1
      %vm5815 = vcmp.ge.s32.totalorder %v5770, 1
      %vm5816 = vcmp.ge.s32.totalorder %v5771, 1
      %vm5817 = vcmp.ge.s32.totalorder %v5772, 1
      %vm5818 = vcmp.ge.s32.totalorder %v5773, 1
      %vm5819 = vcmp.ge.s32.totalorder %v5774, 1
      %vm5820 = vcmp.ge.s32.totalorder %v5775, 1
      %vm5821 = vcmp.ge.s32.totalorder %v5776, 1
      %vm5822 = vcmp.ge.s32.totalorder %v5777, 1
      %vm5823 = vcmp.ge.s32.totalorder %v5778, 1
      %vm5824 = vcmp.ge.s32.totalorder %v5779, 1
      %vm5825 = vcmp.ge.s32.totalorder %v5780, 1
      %vm5826 = vcmp.ge.s32.totalorder %v5781, 1
      %vm5827 = vcmp.ge.s32.totalorder %v5782, 1
      %vm5828 = vcmp.ge.s32.totalorder %v5783, 1
      %vm5829 = vcmp.ge.s32.totalorder %v5784, 1
      %vm5830 = vcmp.ge.s32.totalorder %v5785, 1
      %vm5831 = vcmp.ge.s32.totalorder %v5786, 1
      %vm5832 = vcmp.ge.s32.totalorder %v5787, 1
      %vm5833 = vcmp.ge.s32.totalorder %v5788, 1
      %vm5834 = vcmp.ge.s32.totalorder %v5789, 1
      %vm5835 = vcmp.ge.s32.totalorder %v5790, 1
      %vm5836 = vcmp.ge.s32.totalorder %v5791, 1
      %vm5837 = vcmp.ge.s32.totalorder %v5792, 1
      %vm5838 = vcmp.ge.s32.totalorder %v5793, 1
      %vm5839 = vcmp.ge.s32.totalorder %v5794, 1
      %vm5840 = vcmp.ge.s32.totalorder %v5795, 1
      %vm5841 = vcmp.ge.s32.totalorder %v5796, 1
      %vm5842 = vcmp.ge.s32.totalorder %v5797, 1
      %vm5843 = vcmp.ge.s32.totalorder %v5798, 1
      %vm5844 = vcmp.le.s32.totalorder %v5754, 16
      %vm5845 = vcmp.le.s32.totalorder %v5755, 16
      %vm5846 = vcmp.le.s32.totalorder %v5756, 16
      %vm5847 = vcmp.le.s32.totalorder %v5757, 16
      %vm5848 = vcmp.le.s32.totalorder %v5758, 16
      %vm5849 = vcmp.le.s32.totalorder %v5759, 16
      %vm5850 = vcmp.le.s32.totalorder %v5760, 16
      %vm5851 = vcmp.le.s32.totalorder %v5761, 16
      %vm5852 = vcmp.le.s32.totalorder %v5762, 16
      %vm5853 = vcmp.le.s32.totalorder %v5763, 16
      %vm5854 = vcmp.le.s32.totalorder %v5764, 16
      %vm5855 = vcmp.le.s32.totalorder %v5765, 16
      %vm5856 = vcmp.le.s32.totalorder %v5766, 16
      %vm5857 = vcmp.le.s32.totalorder %v5767, 16
      %vm5858 = vcmp.le.s32.totalorder %v5768, 16
      %vm5859 = vcmp.le.s32.totalorder %v5769, 16
      %vm5860 = vcmp.le.s32.totalorder %v5770, 16
      %vm5861 = vcmp.le.s32.totalorder %v5771, 16
      %vm5862 = vcmp.le.s32.totalorder %v5772, 16
      %vm5863 = vcmp.le.s32.totalorder %v5773, 16
      %vm5864 = vcmp.le.s32.totalorder %v5774, 16
      %vm5865 = vcmp.le.s32.totalorder %v5775, 16
      %vm5866 = vcmp.le.s32.totalorder %v5776, 16
      %vm5867 = vcmp.le.s32.totalorder %v5777, 16
      %vm5868 = vcmp.le.s32.totalorder %v5778, 16
      %vm5869 = vcmp.le.s32.totalorder %v5779, 16
      %vm5870 = vcmp.le.s32.totalorder %v5780, 16
      %vm5871 = vcmp.le.s32.totalorder %v5781, 16
      %vm5872 = vcmp.le.s32.totalorder %v5782, 16
      %vm5873 = vcmp.le.s32.totalorder %v5783, 16
      %vm5874 = vcmp.le.s32.totalorder %v5784, 16
      %vm5875 = vcmp.le.s32.totalorder %v5785, 16
      %vm5876 = vcmp.le.s32.totalorder %v5786, 16
      %vm5877 = vcmp.le.s32.totalorder %v5787, 16
      %vm5878 = vcmp.le.s32.totalorder %v5788, 16
      %vm5879 = vcmp.le.s32.totalorder %v5789, 16
      %vm5880 = vcmp.le.s32.totalorder %v5790, 16
      %vm5881 = vcmp.le.s32.totalorder %v5791, 16
      %vm5882 = vcmp.le.s32.totalorder %v5792, 16
      %vm5883 = vcmp.le.s32.totalorder %v5793, 16
      %vm5884 = vcmp.le.s32.totalorder %v5794, 16
      %vm5885 = vcmp.le.s32.totalorder %v5795, 16
      %vm5886 = vcmp.le.s32.totalorder %v5796, 16
      %vm5887 = vcmp.le.s32.totalorder %v5797, 16
      %vm5888 = vcmp.le.s32.totalorder %v5798, 16
      %vm5889 = vmand %vm5799, %vm5844
      %vm5890 = vmand %vm5800, %vm5845
      %vm5891 = vmand %vm5801, %vm5846
      %vm5892 = vmand %vm5802, %vm5847
      %vm5893 = vmand %vm5803, %vm5848
      %vm5894 = vmand %vm5804, %vm5849
      %vm5895 = vmand %vm5805, %vm5850
      %vm5896 = vmand %vm5806, %vm5851
      %vm5897 = vmand %vm5807, %vm5852
      %vm5898 = vmand %vm5808, %vm5853
      %vm5899 = vmand %vm5809, %vm5854
      %vm5900 = vmand %vm5810, %vm5855
      %vm5901 = vmand %vm5811, %vm5856
      %vm5902 = vmand %vm5812, %vm5857
      %vm5903 = vmand %vm5813, %vm5858
      %vm5904 = vmand %vm5814, %vm5859
      %vm5905 = vmand %vm5815, %vm5860
      %vm5906 = vmand %vm5816, %vm5861
      %vm5907 = vmand %vm5817, %vm5862
      %vm5908 = vmand %vm5818, %vm5863
      %vm5909 = vmand %vm5819, %vm5864
      %vm5910 = vmand %vm5820, %vm5865
      %vm5911 = vmand %vm5821, %vm5866
      %vm5912 = vmand %vm5822, %vm5867
      %vm5913 = vmand %vm5823, %vm5868
      %vm5914 = vmand %vm5824, %vm5869
      %vm5915 = vmand %vm5825, %vm5870
      %vm5916 = vmand %vm5826, %vm5871
      %vm5917 = vmand %vm5827, %vm5872
      %vm5918 = vmand %vm5828, %vm5873
      %vm5919 = vmand %vm5829, %vm5874
      %vm5920 = vmand %vm5830, %vm5875
      %vm5921 = vmand %vm5831, %vm5876
      %vm5922 = vmand %vm5832, %vm5877
      %vm5923 = vmand %vm5833, %vm5878
      %vm5924 = vmand %vm5834, %vm5879
      %vm5925 = vmand %vm5835, %vm5880
      %vm5926 = vmand %vm5836, %vm5881
      %vm5927 = vmand %vm5837, %vm5882
      %vm5928 = vmand %vm5838, %vm5883
      %vm5929 = vmand %vm5839, %vm5884
      %vm5930 = vmand %vm5840, %vm5885
      %vm5931 = vmand %vm5841, %vm5886
      %vm5932 = vmand %vm5842, %vm5887
      %vm5933 = vmand %vm5843, %vm5888
      %v5934 = vsel %vm5889, 1, 0
      %v5935 = vsel %vm5890, 1, 0
      %v5936 = vsel %vm5891, 1, 0
      %v5937 = vsel %vm5892, 1, 0
      %v5938 = vsel %vm5893, 1, 0
      %v5939 = vsel %vm5894, 1, 0
      %v5940 = vsel %vm5895, 1, 0
      %v5941 = vsel %vm5896, 1, 0
      %v5942 = vsel %vm5897, 1, 0
      %v5943 = vsel %vm5898, 1, 0
      %v5944 = vsel %vm5899, 1, 0
      %v5945 = vsel %vm5900, 1, 0
      %v5946 = vsel %vm5901, 1, 0
      %v5947 = vsel %vm5902, 1, 0
      %v5948 = vsel %vm5903, 1, 0
      %v5949 = vsel %vm5904, 1, 0
      %v5950 = vsel %vm5905, 1, 0
      %v5951 = vsel %vm5906, 1, 0
      %v5952 = vsel %vm5907, 1, 0
      %v5953 = vsel %vm5908, 1, 0
      %v5954 = vsel %vm5909, 1, 0
      %v5955 = vsel %vm5910, 1, 0
      %v5956 = vsel %vm5911, 1, 0
      %v5957 = vsel %vm5912, 1, 0
      %v5958 = vsel %vm5913, 1, 0
      %v5959 = vsel %vm5914, 1, 0
      %v5960 = vsel %vm5915, 1, 0
      %v5961 = vsel %vm5916, 1, 0
      %v5962 = vsel %vm5917, 1, 0
      %v5963 = vsel %vm5918, 1, 0
      %v5964 = vsel %vm5919, 1, 0
      %v5965 = vsel %vm5920, 1, 0
      %v5966 = vsel %vm5921, 1, 0
      %v5967 = vsel %vm5922, 1, 0
      %v5968 = vsel %vm5923, 1, 0
      %v5969 = vsel %vm5924, 1, 0
      %v5970 = vsel %vm5925, 1, 0
      %v5971 = vsel %vm5926, 1, 0
      %v5972 = vsel %vm5927, 1, 0
      %v5973 = vsel %vm5928, 1, 0
      %v5974 = vsel %vm5929, 1, 0
      %v5975 = vsel %vm5930, 1, 0
      %v5976 = vsel %vm5931, 1, 0
      %v5977 = vsel %vm5932, 1, 0
      %v5978 = vsel %vm5933, 1, 0
      %vm5979 = vcmp.eq.s32.totalorder %v5934, 1
      %vm5980 = vcmp.eq.s32.totalorder %v5935, 1
      %vm5981 = vcmp.eq.s32.totalorder %v5936, 1
      %vm5982 = vcmp.eq.s32.totalorder %v5937, 1
      %vm5983 = vcmp.eq.s32.totalorder %v5938, 1
      %vm5984 = vcmp.eq.s32.totalorder %v5939, 1
      %vm5985 = vcmp.eq.s32.totalorder %v5940, 1
      %vm5986 = vcmp.eq.s32.totalorder %v5941, 1
      %vm5987 = vcmp.eq.s32.totalorder %v5942, 1
      %vm5988 = vcmp.eq.s32.totalorder %v5943, 1
      %vm5989 = vcmp.eq.s32.totalorder %v5944, 1
      %vm5990 = vcmp.eq.s32.totalorder %v5945, 1
      %vm5991 = vcmp.eq.s32.totalorder %v5946, 1
      %vm5992 = vcmp.eq.s32.totalorder %v5947, 1
      %vm5993 = vcmp.eq.s32.totalorder %v5948, 1
      %vm5994 = vcmp.eq.s32.totalorder %v5949, 1
      %vm5995 = vcmp.eq.s32.totalorder %v5950, 1
      %vm5996 = vcmp.eq.s32.totalorder %v5951, 1
      %vm5997 = vcmp.eq.s32.totalorder %v5952, 1
      %vm5998 = vcmp.eq.s32.totalorder %v5953, 1
      %vm5999 = vcmp.eq.s32.totalorder %v5954, 1
      %vm6000 = vcmp.eq.s32.totalorder %v5955, 1
      %vm6001 = vcmp.eq.s32.totalorder %v5956, 1
      %vm6002 = vcmp.eq.s32.totalorder %v5957, 1
      %vm6003 = vcmp.eq.s32.totalorder %v5958, 1
      %vm6004 = vcmp.eq.s32.totalorder %v5959, 1
      %vm6005 = vcmp.eq.s32.totalorder %v5960, 1
      %vm6006 = vcmp.eq.s32.totalorder %v5961, 1
      %vm6007 = vcmp.eq.s32.totalorder %v5962, 1
      %vm6008 = vcmp.eq.s32.totalorder %v5963, 1
      %vm6009 = vcmp.eq.s32.totalorder %v5964, 1
      %vm6010 = vcmp.eq.s32.totalorder %v5965, 1
      %vm6011 = vcmp.eq.s32.totalorder %v5966, 1
      %vm6012 = vcmp.eq.s32.totalorder %v5967, 1
      %vm6013 = vcmp.eq.s32.totalorder %v5968, 1
      %vm6014 = vcmp.eq.s32.totalorder %v5969, 1
      %vm6015 = vcmp.eq.s32.totalorder %v5970, 1
      %vm6016 = vcmp.eq.s32.totalorder %v5971, 1
      %vm6017 = vcmp.eq.s32.totalorder %v5972, 1
      %vm6018 = vcmp.eq.s32.totalorder %v5973, 1
      %vm6019 = vcmp.eq.s32.totalorder %v5974, 1
      %vm6020 = vcmp.eq.s32.totalorder %v5975, 1
      %vm6021 = vcmp.eq.s32.totalorder %v5976, 1
      %vm6022 = vcmp.eq.s32.totalorder %v5977, 1
      %vm6023 = vcmp.eq.s32.totalorder %v5978, 1
      %v6024 = vsel %vm5979, %v4178, 0.0
      %v6025 = vsel %vm5980, %v4179, 0.0
      %v6026 = vsel %vm5981, %v4180, 0.0
      %v6027 = vsel %vm5982, %v4181, 0.0
      %v6028 = vsel %vm5983, %v4182, 0.0
      %v6029 = vsel %vm5984, %v4183, 0.0
      %v6030 = vsel %vm5985, %v4184, 0.0
      %v6031 = vsel %vm5986, %v4185, 0.0
      %v6032 = vsel %vm5987, %v4186, 0.0
      %v6033 = vsel %vm5988, %v4187, 0.0
      %v6034 = vsel %vm5989, %v4188, 0.0
      %v6035 = vsel %vm5990, %v4189, 0.0
      %v6036 = vsel %vm5991, %v4190, 0.0
      %v6037 = vsel %vm5992, %v4191, 0.0
      %v6038 = vsel %vm5993, %v4192, 0.0
      %v6039 = vsel %vm5994, %v4193, 0.0
      %v6040 = vsel %vm5995, %v4194, 0.0
      %v6041 = vsel %vm5996, %v4195, 0.0
      %v6042 = vsel %vm5997, %v4196, 0.0
      %v6043 = vsel %vm5998, %v4197, 0.0
      %v6044 = vsel %vm5999, %v4198, 0.0
      %v6045 = vsel %vm6000, %v4199, 0.0
      %v6046 = vsel %vm6001, %v4200, 0.0
      %v6047 = vsel %vm6002, %v4201, 0.0
      %v6048 = vsel %vm6003, %v4202, 0.0
      %v6049 = vsel %vm6004, %v4203, 0.0
      %v6050 = vsel %vm6005, %v4204, 0.0
      %v6051 = vsel %vm6006, %v4205, 0.0
      %v6052 = vsel %vm6007, %v4206, 0.0
      %v6053 = vsel %vm6008, %v4207, 0.0
      %v6054 = vsel %vm6009, %v4208, 0.0
      %v6055 = vsel %vm6010, %v4209, 0.0
      %v6056 = vsel %vm6011, %v4210, 0.0
      %v6057 = vsel %vm6012, %v4211, 0.0
      %v6058 = vsel %vm6013, %v4212, 0.0
      %v6059 = vsel %vm6014, %v4213, 0.0
      %v6060 = vsel %vm6015, %v4214, 0.0
      %v6061 = vsel %vm6016, %v4215, 0.0
      %v6062 = vsel %vm6017, %v4216, 0.0
      %v6063 = vsel %vm6018, %v4217, 0.0
      %v6064 = vsel %vm6019, %v4218, 0.0
      %v6065 = vsel %vm6020, %v4219, 0.0
      %v6066 = vsel %vm6021, %v4220, 0.0
      %v6067 = vsel %vm6022, %v4221, 0.0
      %v6068 = vsel %vm6023, %v4222, 0.0
      %v6069 = vpack.c.bf16 %v6024, %v6024
      %v6070 = vpack.c.bf16 %v6025, %v6025
      %v6071 = vpack.c.bf16 %v6026, %v6026
      %v6072 = vpack.c.bf16 %v6027, %v6027
      %v6073 = vpack.c.bf16 %v6028, %v6028
      %v6074 = vpack.c.bf16 %v6029, %v6029
      %v6075 = vpack.c.bf16 %v6030, %v6030
      %v6076 = vpack.c.bf16 %v6031, %v6031
      %v6077 = vpack.c.bf16 %v6032, %v6032
      %v6078 = vpack.c.bf16 %v6033, %v6033
      %v6079 = vpack.c.bf16 %v6034, %v6034
      %v6080 = vpack.c.bf16 %v6035, %v6035
      %v6081 = vpack.c.bf16 %v6036, %v6036
      %v6082 = vpack.c.bf16 %v6037, %v6037
      %v6083 = vpack.c.bf16 %v6038, %v6038
      %v6084 = vpack.c.bf16 %v6039, %v6039
      %v6085 = vpack.c.bf16 %v6040, %v6040
      %v6086 = vpack.c.bf16 %v6041, %v6041
      %v6087 = vpack.c.bf16 %v6042, %v6042
      %v6088 = vpack.c.bf16 %v6043, %v6043
      %v6089 = vpack.c.bf16 %v6044, %v6044
      %v6090 = vpack.c.bf16 %v6045, %v6045
      %v6091 = vpack.c.bf16 %v6046, %v6046
      %v6092 = vpack.c.bf16 %v6047, %v6047
      %v6093 = vpack.c.bf16 %v6048, %v6048
      %v6094 = vpack.c.bf16 %v6049, %v6049
      %v6095 = vpack.c.bf16 %v6050, %v6050
      %v6096 = vpack.c.bf16 %v6051, %v6051
      %v6097 = vpack.c.bf16 %v6052, %v6052
      %v6098 = vpack.c.bf16 %v6053, %v6053
      %v6099 = vpack.c.bf16 %v6054, %v6054
      %v6100 = vpack.c.bf16 %v6055, %v6055
      %v6101 = vpack.c.bf16 %v6056, %v6056
      %v6102 = vpack.c.bf16 %v6057, %v6057
      %v6103 = vpack.c.bf16 %v6058, %v6058
      %v6104 = vpack.c.bf16 %v6059, %v6059
      %v6105 = vpack.c.bf16 %v6060, %v6060
      %v6106 = vpack.c.bf16 %v6061, %v6061
      %v6107 = vpack.c.bf16 %v6062, %v6062
      %v6108 = vpack.c.bf16 %v6063, %v6063
      %v6109 = vpack.c.bf16 %v6064, %v6064
      %v6110 = vpack.c.bf16 %v6065, %v6065
      %v6111 = vpack.c.bf16 %v6066, %v6066
      %v6112 = vpack.c.bf16 %v6067, %v6067
      %v6113 = vpack.c.bf16 %v6068, %v6068
      %6114 = vst [vmem:[#allocation2] sm:$0xf] %v6069
      %6115 = vst [vmem:[#allocation2 + $0x4] sm:$0xf] %v6070
      %6116 = vst [vmem:[#allocation2 + $0x8] sm:$0xf] %v6071
      %6117 = vst [vmem:[#allocation2 + $0xc] sm:$0xf] %v6072
      %6118 = vst [vmem:[#allocation2 + $0x10] sm:$0xf] %v6073
      %6119 = vst [vmem:[#allocation2 + $0x14] sm:$0xf] %v6074
      %6120 = vst [vmem:[#allocation2 + $0x18] sm:$0xf] %v6075
      %6121 = vst [vmem:[#allocation2 + $0x1c] sm:$0xf] %v6076
      %6122 = vst [vmem:[#allocation2 + $0x20] sm:$0xf] %v6077
      %6123 = vst [vmem:[#allocation2 + $0x24] sm:$0xf] %v6078
      %6124 = vst [vmem:[#allocation2 + $0x28] sm:$0xf] %v6079
      %6125 = vst [vmem:[#allocation2 + $0x2c] sm:$0xf] %v6080
      %6126 = vst [vmem:[#allocation2 + $0x30] sm:$0xf] %v6081
      %6127 = vst [vmem:[#allocation2 + $0x34] sm:$0xf] %v6082
      %6128 = vst [vmem:[#allocation2 + $0x38] sm:$0xf] %v6083
      %6129 = vst [vmem:[#allocation2 + $0x3c] sm:$0xf] %v6084
      %6130 = vst [vmem:[#allocation2 + $0x40] sm:$0xf] %v6085
      %6131 = vst [vmem:[#allocation2 + $0x44] sm:$0xf] %v6086
      %6132 = vst [vmem:[#allocation2 + $0x48] sm:$0xf] %v6087
      %6133 = vst [vmem:[#allocation2 + $0x4c] sm:$0xf] %v6088
      %6134 = vst [vmem:[#allocation2 + $0x50] sm:$0xf] %v6089
      %6135 = vst [vmem:[#allocation2 + $0x54] sm:$0xf] %v6090
      %6136 = vst [vmem:[#allocation2 + $0x58] sm:$0xf] %v6091
      %6137 = vst [vmem:[#allocation2 + $0x5c] sm:$0xf] %v6092
      %6138 = vst [vmem:[#allocation2 + $0x60] sm:$0xf] %v6093
      %6139 = vst [vmem:[#allocation2 + $0x64] sm:$0xf] %v6094
      %6140 = vst [vmem:[#allocation2 + $0x68] sm:$0xf] %v6095
      %6141 = vst [vmem:[#allocation2 + $0x6c] sm:$0xf] %v6096
      %6142 = vst [vmem:[#allocation2 + $0x70] sm:$0xf] %v6097
      %6143 = vst [vmem:[#allocation2 + $0x74] sm:$0xf] %v6098
      %6144 = vst [vmem:[#allocation2 + $0x78] sm:$0xf] %v6099
      %6145 = vst [vmem:[#allocation2 + $0x7c] sm:$0xf] %v6100
      %6146 = vst [vmem:[#allocation2 + $0x80] sm:$0xf] %v6101
      %6147 = vst [vmem:[#allocation2 + $0x84] sm:$0xf] %v6102
      %6148 = vst [vmem:[#allocation2 + $0x88] sm:$0xf] %v6103
      %6149 = vst [vmem:[#allocation2 + $0x8c] sm:$0xf] %v6104
      %6150 = vst [vmem:[#allocation2 + $0x90] sm:$0xf] %v6105
      %6151 = vst [vmem:[#allocation2 + $0x94] sm:$0xf] %v6106
      %6152 = vst [vmem:[#allocation2 + $0x98] sm:$0xf] %v6107
      %6153 = vst [vmem:[#allocation2 + $0x9c] sm:$0xf] %v6108
      %6154 = vst [vmem:[#allocation2 + $0xa0] sm:$0xf] %v6109
      %6155 = vst [vmem:[#allocation2 + $0xa4] sm:$0xf] %v6110
      %6156 = vst [vmem:[#allocation2 + $0xa8] sm:$0xf] %v6111
      %6157 = vst [vmem:[#allocation2 + $0xac] sm:$0xf] %v6112
      %6158 = vst [vmem:[#allocation2 + $0xb0] sm:$0xf] %v6113
      %6159 = vst [vmem:[#allocation2 + $0xb4] sm:$0xf] 0
      %p6160 = scmp.eq.s32.totalorder %s26, 0
      // Predicated region
      $region49: #{residual_block.2} parent=47 // pred_check
        %p6161 = pneg %p6160
      $region50: #{residual_block.2} parent=47 // pred_check_branch
        %6163 = sbr.rel (%p6161) target = $region52
      $region51: #{residual_block.2} parent=47 // pred_region
        %6164 = vst [vmem:[#allocation2] sm:$0xf] 0
        %6165 = vst [vmem:[#allocation2 + $0x4] sm:$0xf] 0
        %6166 = vst [vmem:[#allocation2 + $0x8] sm:$0x3] 0
        %6167 = vst [vmem:[#allocation2 + $0xa8] sm:$0xc] 0
        %6168 = vst [vmem:[#allocation2 + $0xac] sm:$0xf] 0
        %6169 = vst [vmem:[#allocation2 + $0xb0] sm:$0xf] 0
      $region52: #{residual_block.2} parent=47 // pred_fallthru
        _
      %v6170 = vld [vmem:[#allocation2] sm:$0xf]
      %v6171 = vld [vmem:[#allocation2 + $0x4] sm:$0xf]
      %v6172 = vld [vmem:[#allocation2 + $0x8] sm:$0xf]
      %v6173 = vld [vmem:[#allocation2 + $0xc] sm:$0xf]
      %v6174 = vld [vmem:[#allocation2 + $0x10] sm:$0xf]
      %v6175 = vld [vmem:[#allocation2 + $0x14] sm:$0xf]
      %v6176 = vld [vmem:[#allocation2 + $0x18] sm:$0xf]
      %v6177 = vld [vmem:[#allocation2 + $0x1c] sm:$0xf]
      %v6178 = vld [vmem:[#allocation2 + $0x20] sm:$0xf]
      %v6179 = vld [vmem:[#allocation2 + $0x24] sm:$0xf]
      %v6180 = vld [vmem:[#allocation2 + $0x28] sm:$0xf]
      %v6181 = vld [vmem:[#allocation2 + $0x2c] sm:$0xf]
      %v6182 = vld [vmem:[#allocation2 + $0x30] sm:$0xf]
      %v6183 = vld [vmem:[#allocation2 + $0x34] sm:$0xf]
      %v6184 = vld [vmem:[#allocation2 + $0x38] sm:$0xf]
      %v6185 = vld [vmem:[#allocation2 + $0x3c] sm:$0xf]
      %v6186 = vld [vmem:[#allocation2 + $0x40] sm:$0xf]
      %v6187 = vld [vmem:[#allocation2 + $0x44] sm:$0xf]
      %v6188 = vld [vmem:[#allocation2 + $0x48] sm:$0xf]
      %v6189 = vld [vmem:[#allocation2 + $0x4c] sm:$0xf]
      %v6190 = vld [vmem:[#allocation2 + $0x50] sm:$0xf]
      %v6191 = vld [vmem:[#allocation2 + $0x54] sm:$0xf]
      %v6192 = vld [vmem:[#allocation2 + $0x58] sm:$0xf]
      %v6193 = vld [vmem:[#allocation2 + $0x5c] sm:$0xf]
      %v6194 = vld [vmem:[#allocation2 + $0x60] sm:$0xf]
      %v6195 = vld [vmem:[#allocation2 + $0x64] sm:$0xf]
      %v6196 = vld [vmem:[#allocation2 + $0x68] sm:$0xf]
      %v6197 = vld [vmem:[#allocation2 + $0x6c] sm:$0xf]
      %v6198 = vld [vmem:[#allocation2 + $0x70] sm:$0xf]
      %v6199 = vld [vmem:[#allocation2 + $0x74] sm:$0xf]
      %v6200 = vld [vmem:[#allocation2 + $0x78] sm:$0xf]
      %v6201 = vld [vmem:[#allocation2 + $0x7c] sm:$0xf]
      %v6202 = vld [vmem:[#allocation2 + $0x80] sm:$0xf]
      %v6203 = vld [vmem:[#allocation2 + $0x84] sm:$0xf]
      %v6204 = vld [vmem:[#allocation2 + $0x88] sm:$0xf]
      %v6205 = vld [vmem:[#allocation2 + $0x8c] sm:$0xf]
      %v6206 = vld [vmem:[#allocation2 + $0x90] sm:$0xf]
      %v6207 = vld [vmem:[#allocation2 + $0x94] sm:$0xf]
      %v6208 = vld [vmem:[#allocation2 + $0x98] sm:$0xf]
      %v6209 = vld [vmem:[#allocation2 + $0x9c] sm:$0xf]
      %v6210 = vld [vmem:[%s3] sm:$0xf]
      %v6211 = vld [vmem:[%s3 + $0x4] sm:$0xf]
      %v6212 = vld [vmem:[%s3 + $0x8] sm:$0xf]
      %v6213 = vld [vmem:[%s3 + $0xc] sm:$0xf]
      %v6214 = vld [vmem:[%s3 + $0x10] sm:$0xf]
      %v6215 = vld [vmem:[%s3 + $0x14] sm:$0xf]
      %v6216 = vld [vmem:[%s3 + $0x18] sm:$0xf]
      %v6217 = vld [vmem:[%s3 + $0x1c] sm:$0xf]
      %v6218 = vld [vmem:[%s3 + $0x20] sm:$0xf]
      %v6219 = vld [vmem:[%s3 + $0x24] sm:$0xf]
      %v6220 = vld [vmem:[%s3 + $0x28] sm:$0xf]
      %v6221 = vld [vmem:[%s3 + $0x2c] sm:$0xf]
      %v6222 = vld [vmem:[%s3 + $0x30] sm:$0xf]
      %v6223 = vld [vmem:[%s3 + $0x34] sm:$0xf]
      %v6224 = vld [vmem:[%s3 + $0x38] sm:$0xf]
      %v6225 = vld [vmem:[%s3 + $0x3c] sm:$0xf]
      %v6226 = vld [vmem:[#allocation2 + $0xa0] sm:$0x1]
      %s6227 = scalar_lea.vmem %s3, 64
      %v6228 = vld [vmem:[%s6227] sm:$0xf]
      %v6229 = vld [vmem:[%s6227 + $0x4] sm:$0xf]
      %v6230 = vld [vmem:[%s6227 + $0x8] sm:$0xf]
      %v6231 = vld [vmem:[%s6227 + $0xc] sm:$0xf]
      %v6232 = vld [vmem:[%s6227 + $0x10] sm:$0xf]
      %v6233 = vld [vmem:[%s6227 + $0x14] sm:$0xf]
      %v6234 = vld [vmem:[%s6227 + $0x18] sm:$0xf]
      %v6235 = vld [vmem:[%s6227 + $0x1c] sm:$0xf]
      %v6236 = vld [vmem:[%s6227 + $0x20] sm:$0xf]
      %v6237 = vld [vmem:[%s6227 + $0x24] sm:$0xf]
      %v6238 = vld [vmem:[%s6227 + $0x28] sm:$0xf]
      %v6239 = vld [vmem:[%s6227 + $0x2c] sm:$0xf]
      %v6240 = vld [vmem:[%s6227 + $0x30] sm:$0xf]
      %v6241 = vld [vmem:[%s6227 + $0x34] sm:$0xf]
      %v6242 = vld [vmem:[%s6227 + $0x38] sm:$0xf]
      %v6243 = vld [vmem:[%s6227 + $0x3c] sm:$0xf]
      %v6285 = vunpack.c.l.b16 %v6170
      %v6286 = vunpack.c.l.b16 %v6171
      %v6287 = vunpack.c.l.b16 %v6172
      %v6288 = vunpack.c.l.b16 %v6173
      %v6289 = vunpack.c.l.b16 %v6174
      %v6290 = vunpack.c.l.b16 %v6175
      %v6291 = vunpack.c.l.b16 %v6176
      %v6292 = vunpack.c.l.b16 %v6177
      %v6293 = vunpack.c.l.b16 %v6178
      %v6294 = vunpack.c.l.b16 %v6179
      %v6295 = vunpack.c.l.b16 %v6180
      %v6296 = vunpack.c.l.b16 %v6181
      %v6297 = vunpack.c.l.b16 %v6182
      %v6298 = vunpack.c.l.b16 %v6183
      %v6299 = vunpack.c.l.b16 %v6184
      %v6300 = vunpack.c.l.b16 %v6185
      %v6301 = vunpack.c.l.b16 %v6186
      %v6302 = vunpack.c.l.b16 %v6187
      %v6303 = vunpack.c.l.b16 %v6188
      %v6304 = vunpack.c.l.b16 %v6189
      %v6305 = vunpack.c.l.b16 %v6190
      %v6306 = vunpack.c.l.b16 %v6191
      %v6307 = vunpack.c.l.b16 %v6192
      %v6308 = vunpack.c.l.b16 %v6193
      %v6309 = vunpack.c.l.b16 %v6194
      %v6310 = vunpack.c.l.b16 %v6195
      %v6311 = vunpack.c.l.b16 %v6196
      %v6312 = vunpack.c.l.b16 %v6197
      %v6313 = vunpack.c.l.b16 %v6198
      %v6314 = vunpack.c.l.b16 %v6199
      %v6315 = vunpack.c.l.b16 %v6200
      %v6316 = vunpack.c.l.b16 %v6201
      %v6317 = vunpack.c.l.b16 %v6202
      %v6318 = vunpack.c.l.b16 %v6203
      %v6319 = vunpack.c.l.b16 %v6204
      %v6320 = vunpack.c.l.b16 %v6205
      %v6321 = vunpack.c.l.b16 %v6206
      %v6322 = vunpack.c.l.b16 %v6207
      %v6323 = vunpack.c.l.b16 %v6208
      %v6324 = vunpack.c.l.b16 %v6209
      %v6325 = vunpack.c.l.b16 %v6226
      %v6326 = vpack.c.b16 %v6286, %v6285
      %v6327 = vpack.c.b16 %v6288, %v6287
      %v6328 = vpack.c.b16 %v6290, %v6289
      %v6329 = vpack.c.b16 %v6292, %v6291
      %v6330 = vpack.c.b16 %v6294, %v6293
      %v6331 = vpack.c.b16 %v6296, %v6295
      %v6332 = vpack.c.b16 %v6298, %v6297
      %v6333 = vpack.c.b16 %v6300, %v6299
      %v6334 = vpack.c.b16 %v6302, %v6301
      %v6335 = vpack.c.b16 %v6304, %v6303
      %v6336 = vpack.c.b16 %v6306, %v6305
      %v6337 = vpack.c.b16 %v6308, %v6307
      %v6338 = vpack.c.b16 %v6310, %v6309
      %v6339 = vpack.c.b16 %v6312, %v6311
      %v6340 = vpack.c.b16 %v6314, %v6313
      %v6341 = vpack.c.b16 %v6316, %v6315
      %v6342 = vpack.c.b16 %v6318, %v6317
      %v6343 = vpack.c.b16 %v6320, %v6319
      %v6344 = vpack.c.b16 %v6322, %v6321
      %v6345 = vpack.c.b16 %v6324, %v6323
      %v6346 = vpack.c.b16 %v6325, %v6325
      %v6348 = vshrl.u32 %v6326, 16
      %v6350 = vshll.u32 %v6326, 16
      %v6352 = vrot.slane %v6350, 1
      %v6353 = vor.u32 %v6348, %v6352
      %v6355 = vshll.u32 %v6327, 16
      %v6357 = vrot.slane %v6355, 1
      %v6358 = vsel %vm605, %v6353, %v6357
      %v6359 = vshrl.u32 %v6327, 16
      %v6361 = vor.u32 %v6359, %v6357
      %v6363 = vshll.u32 %v6328, 16
      %v6365 = vrot.slane %v6363, 1
      %v6366 = vsel %vm605, %v6361, %v6365
      %v6367 = vshrl.u32 %v6328, 16
      %v6369 = vor.u32 %v6367, %v6365
      %v6371 = vshll.u32 %v6329, 16
      %v6373 = vrot.slane %v6371, 1
      %v6374 = vsel %vm605, %v6369, %v6373
      %v6375 = vshrl.u32 %v6329, 16
      %v6377 = vor.u32 %v6375, %v6373
      %v6379 = vshll.u32 %v6330, 16
      %v6381 = vrot.slane %v6379, 1
      %v6382 = vsel %vm605, %v6377, %v6381
      %v6383 = vshrl.u32 %v6330, 16
      %v6385 = vor.u32 %v6383, %v6381
      %v6387 = vshll.u32 %v6331, 16
      %v6389 = vrot.slane %v6387, 1
      %v6390 = vsel %vm605, %v6385, %v6389
      %v6391 = vshrl.u32 %v6331, 16
      %v6393 = vor.u32 %v6391, %v6389
      %v6395 = vshll.u32 %v6332, 16
      %v6397 = vrot.slane %v6395, 1
      %v6398 = vsel %vm605, %v6393, %v6397
      %v6399 = vshrl.u32 %v6332, 16
      %v6401 = vor.u32 %v6399, %v6397
      %v6403 = vshll.u32 %v6333, 16
      %v6405 = vrot.slane %v6403, 1
      %v6406 = vsel %vm605, %v6401, %v6405
      %v6407 = vshrl.u32 %v6333, 16
      %v6409 = vor.u32 %v6407, %v6405
      %v6411 = vshll.u32 %v6334, 16
      %v6413 = vrot.slane %v6411, 1
      %v6414 = vsel %vm605, %v6409, %v6413
      %v6415 = vshrl.u32 %v6334, 16
      %v6417 = vor.u32 %v6415, %v6413
      %v6419 = vshll.u32 %v6335, 16
      %v6421 = vrot.slane %v6419, 1
      %v6422 = vsel %vm605, %v6417, %v6421
      %v6423 = vshrl.u32 %v6335, 16
      %v6425 = vor.u32 %v6423, %v6421
      %v6427 = vshll.u32 %v6336, 16
      %v6429 = vrot.slane %v6427, 1
      %v6430 = vsel %vm605, %v6425, %v6429
      %v6431 = vshrl.u32 %v6336, 16
      %v6433 = vor.u32 %v6431, %v6429
      %v6435 = vshll.u32 %v6337, 16
      %v6437 = vrot.slane %v6435, 1
      %v6438 = vsel %vm605, %v6433, %v6437
      %v6439 = vshrl.u32 %v6337, 16
      %v6441 = vor.u32 %v6439, %v6437
      %v6443 = vshll.u32 %v6338, 16
      %v6445 = vrot.slane %v6443, 1
      %v6446 = vsel %vm605, %v6441, %v6445
      %v6447 = vshrl.u32 %v6338, 16
      %v6449 = vor.u32 %v6447, %v6445
      %v6451 = vshll.u32 %v6339, 16
      %v6453 = vrot.slane %v6451, 1
      %v6454 = vsel %vm605, %v6449, %v6453
      %v6455 = vshrl.u32 %v6339, 16
      %v6457 = vor.u32 %v6455, %v6453
      %v6459 = vshll.u32 %v6340, 16
      %v6461 = vrot.slane %v6459, 1
      %v6462 = vsel %vm605, %v6457, %v6461
      %v6463 = vshrl.u32 %v6340, 16
      %v6465 = vor.u32 %v6463, %v6461
      %v6467 = vshll.u32 %v6341, 16
      %v6469 = vrot.slane %v6467, 1
      %v6470 = vsel %vm605, %v6465, %v6469
      %v6471 = vshrl.u32 %v6341, 16
      %v6473 = vor.u32 %v6471, %v6469
      %v6475 = vshll.u32 %v6342, 16
      %v6477 = vrot.slane %v6475, 1
      %v6478 = vsel %vm605, %v6473, %v6477
      %v6479 = vshrl.u32 %v6342, 16
      %v6481 = vor.u32 %v6479, %v6477
      %v6483 = vshll.u32 %v6343, 16
      %v6485 = vrot.slane %v6483, 1
      %v6486 = vsel %vm605, %v6481, %v6485
      %v6487 = vshrl.u32 %v6343, 16
      %v6489 = vor.u32 %v6487, %v6485
      %v6491 = vshll.u32 %v6344, 16
      %v6493 = vrot.slane %v6491, 1
      %v6494 = vsel %vm605, %v6489, %v6493
      %v6495 = vshrl.u32 %v6344, 16
      %v6497 = vor.u32 %v6495, %v6493
      %v6499 = vshll.u32 %v6345, 16
      %v6501 = vrot.slane %v6499, 1
      %v6502 = vsel %vm605, %v6497, %v6501
      %v6503 = vshrl.u32 %v6345, 16
      %v6505 = vor.u32 %v6503, %v6501
      %v6507 = vshll.u32 %v6346, 16
      %v6509 = vrot.slane %v6507, 1
      %v6510 = vsel %vm605, %v6505, %v6509
      %v6547 = vunpack.c.l.b16 %v6228
      %v6548 = vunpack.c.l.b16 %v6229
      %v6549 = vunpack.c.l.b16 %v6230
      %v6550 = vunpack.c.l.b16 %v6231
      %v6551 = vunpack.c.l.b16 %v6232
      %v6552 = vunpack.c.l.b16 %v6233
      %v6553 = vunpack.c.l.b16 %v6234
      %v6554 = vunpack.c.l.b16 %v6235
      %v6555 = vunpack.c.l.b16 %v6236
      %v6556 = vunpack.c.l.b16 %v6237
      %v6557 = vunpack.c.l.b16 %v6238
      %v6558 = vunpack.c.l.b16 %v6239
      %v6559 = vunpack.c.l.b16 %v6240
      %v6560 = vunpack.c.l.b16 %v6241
      %v6561 = vunpack.c.l.b16 %v6242
      %v6562 = vunpack.c.l.b16 %v6243
      %v6563 = vpack.c.b16 %v6548, %v6547
      %v6564 = vpack.c.b16 %v6550, %v6549
      %v6565 = vpack.c.b16 %v6552, %v6551
      %v6566 = vpack.c.b16 %v6554, %v6553
      %v6567 = vpack.c.b16 %v6556, %v6555
      %v6568 = vpack.c.b16 %v6558, %v6557
      %v6569 = vpack.c.b16 %v6560, %v6559
      %v6570 = vpack.c.b16 %v6562, %v6561
      %6579 = vmatpush.bf16.msra.mxu0 %v6570
      %6580 = vmatpush.bf16.msra.mxu0 %v6569
      %6581 = vmatpush.bf16.msra.mxu0 %v6568
      %6582 = vmatpush.bf16.msra.mxu0 %v6567
      %6583 = vmatpush.bf16.msra.mxu0 %v6566
      %6584 = vmatpush.bf16.msra.mxu0 %v6565
      %6585 = vmatpush.bf16.msra.mxu0 %v6564
      %6586 = vmatpush.bf16.msra.mxu0 %v6563
      %6587 = vmatmul.bf16.gmra.mxu0 %v6358
      %v6588 = vpop.f32.mrf.mxu0
      %v6589 = vadd.f32 0.0, %v6588
      %v6590 = vpop.f32.mrf.mxu0
      %v6591 = vadd.f32 0.0, %v6590
      %6592 = vmatmul.bf16.gmra.mxu0 %v6366
      %v6593 = vpop.f32.mrf.mxu0
      %v6594 = vadd.f32 0.0, %v6593
      %v6595 = vpop.f32.mrf.mxu0
      %v6596 = vadd.f32 0.0, %v6595
      %6597 = vmatmul.bf16.gmra.mxu0 %v6374
      %v6598 = vpop.f32.mrf.mxu0
      %v6599 = vadd.f32 0.0, %v6598
      %v6600 = vpop.f32.mrf.mxu0
      %v6601 = vadd.f32 0.0, %v6600
      %6602 = vmatmul.bf16.gmra.mxu0 %v6382
      %v6603 = vpop.f32.mrf.mxu0
      %v6604 = vadd.f32 0.0, %v6603
      %v6605 = vpop.f32.mrf.mxu0
      %v6606 = vadd.f32 0.0, %v6605
      %6607 = vmatmul.bf16.gmra.mxu0 %v6390
      %v6608 = vpop.f32.mrf.mxu0
      %v6609 = vadd.f32 0.0, %v6608
      %v6610 = vpop.f32.mrf.mxu0
      %v6611 = vadd.f32 0.0, %v6610
      %6612 = vmatmul.bf16.gmra.mxu0 %v6398
      %v6613 = vpop.f32.mrf.mxu0
      %v6614 = vadd.f32 0.0, %v6613
      %v6615 = vpop.f32.mrf.mxu0
      %v6616 = vadd.f32 0.0, %v6615
      %6617 = vmatmul.bf16.gmra.mxu0 %v6406
      %v6618 = vpop.f32.mrf.mxu0
      %v6619 = vadd.f32 0.0, %v6618
      %v6620 = vpop.f32.mrf.mxu0
      %v6621 = vadd.f32 0.0, %v6620
      %6622 = vmatmul.bf16.gmra.mxu0 %v6414
      %v6623 = vpop.f32.mrf.mxu0
      %v6624 = vadd.f32 0.0, %v6623
      %v6625 = vpop.f32.mrf.mxu0
      %v6626 = vadd.f32 0.0, %v6625
      %6627 = vmatmul.bf16.gmra.mxu0 %v6422
      %v6628 = vpop.f32.mrf.mxu0
      %v6629 = vadd.f32 0.0, %v6628
      %v6630 = vpop.f32.mrf.mxu0
      %v6631 = vadd.f32 0.0, %v6630
      %6632 = vmatmul.bf16.gmra.mxu0 %v6430
      %v6633 = vpop.f32.mrf.mxu0
      %v6634 = vadd.f32 0.0, %v6633
      %v6635 = vpop.f32.mrf.mxu0
      %v6636 = vadd.f32 0.0, %v6635
      %6637 = vmatmul.bf16.gmra.mxu0 %v6438
      %v6638 = vpop.f32.mrf.mxu0
      %v6639 = vadd.f32 0.0, %v6638
      %v6640 = vpop.f32.mrf.mxu0
      %v6641 = vadd.f32 0.0, %v6640
      %6642 = vmatmul.bf16.gmra.mxu0 %v6446
      %v6643 = vpop.f32.mrf.mxu0
      %v6644 = vadd.f32 0.0, %v6643
      %v6645 = vpop.f32.mrf.mxu0
      %v6646 = vadd.f32 0.0, %v6645
      %6647 = vmatmul.bf16.gmra.mxu0 %v6454
      %v6648 = vpop.f32.mrf.mxu0
      %v6649 = vadd.f32 0.0, %v6648
      %v6650 = vpop.f32.mrf.mxu0
      %v6651 = vadd.f32 0.0, %v6650
      %6652 = vmatmul.bf16.gmra.mxu0 %v6462
      %v6653 = vpop.f32.mrf.mxu0
      %v6654 = vadd.f32 0.0, %v6653
      %v6655 = vpop.f32.mrf.mxu0
      %v6656 = vadd.f32 0.0, %v6655
      %6657 = vmatmul.bf16.gmra.mxu0 %v6470
      %v6658 = vpop.f32.mrf.mxu0
      %v6659 = vadd.f32 0.0, %v6658
      %v6660 = vpop.f32.mrf.mxu0
      %v6661 = vadd.f32 0.0, %v6660
      %6662 = vmatmul.bf16.gmra.mxu0 %v6478
      %v6663 = vpop.f32.mrf.mxu0
      %v6664 = vadd.f32 0.0, %v6663
      %v6665 = vpop.f32.mrf.mxu0
      %v6666 = vadd.f32 0.0, %v6665
      %6667 = vmatmul.bf16.gmra.mxu0 %v6486
      %v6668 = vpop.f32.mrf.mxu0
      %v6669 = vadd.f32 0.0, %v6668
      %v6670 = vpop.f32.mrf.mxu0
      %v6671 = vadd.f32 0.0, %v6670
      %6672 = vmatmul.bf16.gmra.mxu0 %v6494
      %v6673 = vpop.f32.mrf.mxu0
      %v6674 = vadd.f32 0.0, %v6673
      %v6675 = vpop.f32.mrf.mxu0
      %v6676 = vadd.f32 0.0, %v6675
      %6677 = vmatmul.bf16.gmra.mxu0 %v6502
      %v6678 = vpop.f32.mrf.mxu0
      %v6679 = vadd.f32 0.0, %v6678
      %v6680 = vpop.f32.mrf.mxu0
      %v6681 = vadd.f32 0.0, %v6680
      %6682 = vmatmul.bf16.gmra.mxu0 %v6510
      %v6683 = vpop.f32.mrf.mxu0
      %v6684 = vadd.f32 0.0, %v6683
      %v6685 = vpop.f32.mrf.mxu0
      %v6686 = vadd.f32 0.0, %v6685
      %6687 = vdwg.mxu0
      %v6724 = vunpack.c.l.b16 %v6210
      %v6725 = vunpack.c.l.b16 %v6211
      %v6726 = vunpack.c.l.b16 %v6212
      %v6727 = vunpack.c.l.b16 %v6213
      %v6728 = vunpack.c.l.b16 %v6214
      %v6729 = vunpack.c.l.b16 %v6215
      %v6730 = vunpack.c.l.b16 %v6216
      %v6731 = vunpack.c.l.b16 %v6217
      %v6732 = vunpack.c.l.b16 %v6218
      %v6733 = vunpack.c.l.b16 %v6219
      %v6734 = vunpack.c.l.b16 %v6220
      %v6735 = vunpack.c.l.b16 %v6221
      %v6736 = vunpack.c.l.b16 %v6222
      %v6737 = vunpack.c.l.b16 %v6223
      %v6738 = vunpack.c.l.b16 %v6224
      %v6739 = vunpack.c.l.b16 %v6225
      %v6740 = vpack.c.b16 %v6725, %v6724
      %v6741 = vpack.c.b16 %v6727, %v6726
      %v6742 = vpack.c.b16 %v6729, %v6728
      %v6743 = vpack.c.b16 %v6731, %v6730
      %v6744 = vpack.c.b16 %v6733, %v6732
      %v6745 = vpack.c.b16 %v6735, %v6734
      %v6746 = vpack.c.b16 %v6737, %v6736
      %v6747 = vpack.c.b16 %v6739, %v6738
      %6756 = vmatpush.bf16.msra.mxu0 %v6747
      %6757 = vmatpush.bf16.msra.mxu0 %v6746
      %6758 = vmatpush.bf16.msra.mxu0 %v6745
      %6759 = vmatpush.bf16.msra.mxu0 %v6744
      %6760 = vmatpush.bf16.msra.mxu0 %v6743
      %6761 = vmatpush.bf16.msra.mxu0 %v6742
      %6762 = vmatpush.bf16.msra.mxu0 %v6741
      %6763 = vmatpush.bf16.msra.mxu0 %v6740
      %6764 = vmatmul.bf16.gmra.mxu0 %v6326
      %v6765 = vpop.f32.mrf.mxu0
      %v6766 = vadd.f32 %v6589, %v6765
      %v6767 = vpop.f32.mrf.mxu0
      %v6768 = vadd.f32 %v6591, %v6767
      %6769 = vmatmul.bf16.gmra.mxu0 %v6327
      %v6770 = vpop.f32.mrf.mxu0
      %v6771 = vadd.f32 %v6594, %v6770
      %v6772 = vpop.f32.mrf.mxu0
      %v6773 = vadd.f32 %v6596, %v6772
      %6774 = vmatmul.bf16.gmra.mxu0 %v6328
      %v6775 = vpop.f32.mrf.mxu0
      %v6776 = vadd.f32 %v6599, %v6775
      %v6777 = vpop.f32.mrf.mxu0
      %v6778 = vadd.f32 %v6601, %v6777
      %6779 = vmatmul.bf16.gmra.mxu0 %v6329
      %v6780 = vpop.f32.mrf.mxu0
      %v6781 = vadd.f32 %v6604, %v6780
      %v6782 = vpop.f32.mrf.mxu0
      %v6783 = vadd.f32 %v6606, %v6782
      %6784 = vmatmul.bf16.gmra.mxu0 %v6330
      %v6785 = vpop.f32.mrf.mxu0
      %v6786 = vadd.f32 %v6609, %v6785
      %v6787 = vpop.f32.mrf.mxu0
      %v6788 = vadd.f32 %v6611, %v6787
      %6789 = vmatmul.bf16.gmra.mxu0 %v6331
      %v6790 = vpop.f32.mrf.mxu0
      %v6791 = vadd.f32 %v6614, %v6790
      %v6792 = vpop.f32.mrf.mxu0
      %v6793 = vadd.f32 %v6616, %v6792
      %6794 = vmatmul.bf16.gmra.mxu0 %v6332
      %v6795 = vpop.f32.mrf.mxu0
      %v6796 = vadd.f32 %v6619, %v6795
      %v6797 = vpop.f32.mrf.mxu0
      %v6798 = vadd.f32 %v6621, %v6797
      %6799 = vmatmul.bf16.gmra.mxu0 %v6333
      %v6800 = vpop.f32.mrf.mxu0
      %v6801 = vadd.f32 %v6624, %v6800
      %v6802 = vpop.f32.mrf.mxu0
      %v6803 = vadd.f32 %v6626, %v6802
      %6804 = vmatmul.bf16.gmra.mxu0 %v6334
      %v6805 = vpop.f32.mrf.mxu0
      %v6806 = vadd.f32 %v6629, %v6805
      %v6807 = vpop.f32.mrf.mxu0
      %v6808 = vadd.f32 %v6631, %v6807
      %6809 = vmatmul.bf16.gmra.mxu0 %v6335
      %v6810 = vpop.f32.mrf.mxu0
      %v6811 = vadd.f32 %v6634, %v6810
      %v6812 = vpop.f32.mrf.mxu0
      %v6813 = vadd.f32 %v6636, %v6812
      %6814 = vmatmul.bf16.gmra.mxu0 %v6336
      %v6815 = vpop.f32.mrf.mxu0
      %v6816 = vadd.f32 %v6639, %v6815
      %v6817 = vpop.f32.mrf.mxu0
      %v6818 = vadd.f32 %v6641, %v6817
      %6819 = vmatmul.bf16.gmra.mxu0 %v6337
      %v6820 = vpop.f32.mrf.mxu0
      %v6821 = vadd.f32 %v6644, %v6820
      %v6822 = vpop.f32.mrf.mxu0
      %v6823 = vadd.f32 %v6646, %v6822
      %6824 = vmatmul.bf16.gmra.mxu0 %v6338
      %v6825 = vpop.f32.mrf.mxu0
      %v6826 = vadd.f32 %v6649, %v6825
      %v6827 = vpop.f32.mrf.mxu0
      %v6828 = vadd.f32 %v6651, %v6827
      %6829 = vmatmul.bf16.gmra.mxu0 %v6339
      %v6830 = vpop.f32.mrf.mxu0
      %v6831 = vadd.f32 %v6654, %v6830
      %v6832 = vpop.f32.mrf.mxu0
      %v6833 = vadd.f32 %v6656, %v6832
      %6834 = vmatmul.bf16.gmra.mxu0 %v6340
      %v6835 = vpop.f32.mrf.mxu0
      %v6836 = vadd.f32 %v6659, %v6835
      %v6837 = vpop.f32.mrf.mxu0
      %v6838 = vadd.f32 %v6661, %v6837
      %6839 = vmatmul.bf16.gmra.mxu0 %v6341
      %v6840 = vpop.f32.mrf.mxu0
      %v6841 = vadd.f32 %v6664, %v6840
      %v6842 = vpop.f32.mrf.mxu0
      %v6843 = vadd.f32 %v6666, %v6842
      %6844 = vmatmul.bf16.gmra.mxu0 %v6342
      %v6845 = vpop.f32.mrf.mxu0
      %v6846 = vadd.f32 %v6669, %v6845
      %v6847 = vpop.f32.mrf.mxu0
      %v6848 = vadd.f32 %v6671, %v6847
      %6849 = vmatmul.bf16.gmra.mxu0 %v6343
      %v6850 = vpop.f32.mrf.mxu0
      %v6851 = vadd.f32 %v6674, %v6850
      %v6852 = vpop.f32.mrf.mxu0
      %v6853 = vadd.f32 %v6676, %v6852
      %6854 = vmatmul.bf16.gmra.mxu0 %v6344
      %v6855 = vpop.f32.mrf.mxu0
      %v6856 = vadd.f32 %v6679, %v6855
      %v6857 = vpop.f32.mrf.mxu0
      %v6858 = vadd.f32 %v6681, %v6857
      %6859 = vmatmul.bf16.gmra.mxu0 %v6345
      %v6860 = vpop.f32.mrf.mxu0
      %v6861 = vadd.f32 %v6684, %v6860
      %v6862 = vpop.f32.mrf.mxu0
      %v6863 = vadd.f32 %v6686, %v6862
      %6864 = vdwg.mxu0
      %v6865 = vld [vmem:[#allocation2] sm:$0xe]
      %s6866 = scalar_lea.vmem %s3, 128
      %v6867 = vld [vmem:[%s6866] sm:$0xf]
      %v6868 = vld [vmem:[%s6866 + $0x4] sm:$0xf]
      %v6869 = vld [vmem:[%s6866 + $0x8] sm:$0xf]
      %v6870 = vld [vmem:[%s6866 + $0xc] sm:$0xf]
      %v6871 = vld [vmem:[%s6866 + $0x10] sm:$0xf]
      %v6872 = vld [vmem:[%s6866 + $0x14] sm:$0xf]
      %v6873 = vld [vmem:[%s6866 + $0x18] sm:$0xf]
      %v6874 = vld [vmem:[%s6866 + $0x1c] sm:$0xf]
      %v6875 = vld [vmem:[%s6866 + $0x20] sm:$0xf]
      %v6876 = vld [vmem:[%s6866 + $0x24] sm:$0xf]
      %v6877 = vld [vmem:[%s6866 + $0x28] sm:$0xf]
      %v6878 = vld [vmem:[%s6866 + $0x2c] sm:$0xf]
      %v6879 = vld [vmem:[%s6866 + $0x30] sm:$0xf]
      %v6880 = vld [vmem:[%s6866 + $0x34] sm:$0xf]
      %v6881 = vld [vmem:[%s6866 + $0x38] sm:$0xf]
      %v6882 = vld [vmem:[%s6866 + $0x3c] sm:$0xf]
      %v6884 = vunpack.c.l.b16 %v6865
      %v6885 = vpack.c.b16 %v6286, %v6884
      %v6886 = vrot.slane %v6885, 1
      %v6887 = vrot.slane %v6327, 1
      %v6888 = vsel %vm1199, %v6886, %v6887
      %v6889 = vrot.slane %v6328, 1
      %v6890 = vsel %vm1199, %v6887, %v6889
      %v6891 = vrot.slane %v6329, 1
      %v6892 = vsel %vm1199, %v6889, %v6891
      %v6893 = vrot.slane %v6330, 1
      %v6894 = vsel %vm1199, %v6891, %v6893
      %v6895 = vrot.slane %v6331, 1
      %v6896 = vsel %vm1199, %v6893, %v6895
      %v6897 = vrot.slane %v6332, 1
      %v6898 = vsel %vm1199, %v6895, %v6897
      %v6899 = vrot.slane %v6333, 1
      %v6900 = vsel %vm1199, %v6897, %v6899
      %v6901 = vrot.slane %v6334, 1
      %v6902 = vsel %vm1199, %v6899, %v6901
      %v6903 = vrot.slane %v6335, 1
      %v6904 = vsel %vm1199, %v6901, %v6903
      %v6905 = vrot.slane %v6336, 1
      %v6906 = vsel %vm1199, %v6903, %v6905
      %v6907 = vrot.slane %v6337, 1
      %v6908 = vsel %vm1199, %v6905, %v6907
      %v6909 = vrot.slane %v6338, 1
      %v6910 = vsel %vm1199, %v6907, %v6909
      %v6911 = vrot.slane %v6339, 1
      %v6912 = vsel %vm1199, %v6909, %v6911
      %v6913 = vrot.slane %v6340, 1
      %v6914 = vsel %vm1199, %v6911, %v6913
      %v6915 = vrot.slane %v6341, 1
      %v6916 = vsel %vm1199, %v6913, %v6915
      %v6917 = vrot.slane %v6342, 1
      %v6918 = vsel %vm1199, %v6915, %v6917
      %v6919 = vrot.slane %v6343, 1
      %v6920 = vsel %vm1199, %v6917, %v6919
      %v6921 = vrot.slane %v6344, 1
      %v6922 = vsel %vm1199, %v6919, %v6921
      %v6923 = vrot.slane %v6345, 1
      %v6924 = vsel %vm1199, %v6921, %v6923
      %v6925 = vrot.slane %v6346, 1
      %v6926 = vsel %vm1199, %v6923, %v6925
      %v6963 = vunpack.c.l.b16 %v6867
      %v6964 = vunpack.c.l.b16 %v6868
      %v6965 = vunpack.c.l.b16 %v6869
      %v6966 = vunpack.c.l.b16 %v6870
      %v6967 = vunpack.c.l.b16 %v6871
      %v6968 = vunpack.c.l.b16 %v6872
      %v6969 = vunpack.c.l.b16 %v6873
      %v6970 = vunpack.c.l.b16 %v6874
      %v6971 = vunpack.c.l.b16 %v6875
      %v6972 = vunpack.c.l.b16 %v6876
      %v6973 = vunpack.c.l.b16 %v6877
      %v6974 = vunpack.c.l.b16 %v6878
      %v6975 = vunpack.c.l.b16 %v6879
      %v6976 = vunpack.c.l.b16 %v6880
      %v6977 = vunpack.c.l.b16 %v6881
      %v6978 = vunpack.c.l.b16 %v6882
      %v6979 = vpack.c.b16 %v6964, %v6963
      %v6980 = vpack.c.b16 %v6966, %v6965
      %v6981 = vpack.c.b16 %v6968, %v6967
      %v6982 = vpack.c.b16 %v6970, %v6969
      %v6983 = vpack.c.b16 %v6972, %v6971
      %v6984 = vpack.c.b16 %v6974, %v6973
      %v6985 = vpack.c.b16 %v6976, %v6975
      %v6986 = vpack.c.b16 %v6978, %v6977
      %6995 = vmatpush.bf16.msra.mxu0 %v6986
      %6996 = vmatpush.bf16.msra.mxu0 %v6985
      %6997 = vmatpush.bf16.msra.mxu0 %v6984
      %6998 = vmatpush.bf16.msra.mxu0 %v6983
      %6999 = vmatpush.bf16.msra.mxu0 %v6982
      %7000 = vmatpush.bf16.msra.mxu0 %v6981
      %7001 = vmatpush.bf16.msra.mxu0 %v6980
      %7002 = vmatpush.bf16.msra.mxu0 %v6979
      %7003 = vmatmul.bf16.gmra.mxu0 %v6888
      %v7004 = vpop.f32.mrf.mxu0
      %v7005 = vadd.f32 0.0, %v7004
      %v7006 = vpop.f32.mrf.mxu0
      %v7007 = vadd.f32 0.0, %v7006
      %7008 = vmatmul.bf16.gmra.mxu0 %v6890
      %v7009 = vpop.f32.mrf.mxu0
      %v7010 = vadd.f32 0.0, %v7009
      %v7011 = vpop.f32.mrf.mxu0
      %v7012 = vadd.f32 0.0, %v7011
      %7013 = vmatmul.bf16.gmra.mxu0 %v6892
      %v7014 = vpop.f32.mrf.mxu0
      %v7015 = vadd.f32 0.0, %v7014
      %v7016 = vpop.f32.mrf.mxu0
      %v7017 = vadd.f32 0.0, %v7016
      %7018 = vmatmul.bf16.gmra.mxu0 %v6894
      %v7019 = vpop.f32.mrf.mxu0
      %v7020 = vadd.f32 0.0, %v7019
      %v7021 = vpop.f32.mrf.mxu0
      %v7022 = vadd.f32 0.0, %v7021
      %7023 = vmatmul.bf16.gmra.mxu0 %v6896
      %v7024 = vpop.f32.mrf.mxu0
      %v7025 = vadd.f32 0.0, %v7024
      %v7026 = vpop.f32.mrf.mxu0
      %v7027 = vadd.f32 0.0, %v7026
      %7028 = vmatmul.bf16.gmra.mxu0 %v6898
      %v7029 = vpop.f32.mrf.mxu0
      %v7030 = vadd.f32 0.0, %v7029
      %v7031 = vpop.f32.mrf.mxu0
      %v7032 = vadd.f32 0.0, %v7031
      %7033 = vmatmul.bf16.gmra.mxu0 %v6900
      %v7034 = vpop.f32.mrf.mxu0
      %v7035 = vadd.f32 0.0, %v7034
      %v7036 = vpop.f32.mrf.mxu0
      %v7037 = vadd.f32 0.0, %v7036
      %7038 = vmatmul.bf16.gmra.mxu0 %v6902
      %v7039 = vpop.f32.mrf.mxu0
      %v7040 = vadd.f32 0.0, %v7039
      %v7041 = vpop.f32.mrf.mxu0
      %v7042 = vadd.f32 0.0, %v7041
      %7043 = vmatmul.bf16.gmra.mxu0 %v6904
      %v7044 = vpop.f32.mrf.mxu0
      %v7045 = vadd.f32 0.0, %v7044
      %v7046 = vpop.f32.mrf.mxu0
      %v7047 = vadd.f32 0.0, %v7046
      %7048 = vmatmul.bf16.gmra.mxu0 %v6906
      %v7049 = vpop.f32.mrf.mxu0
      %v7050 = vadd.f32 0.0, %v7049
      %v7051 = vpop.f32.mrf.mxu0
      %v7052 = vadd.f32 0.0, %v7051
      %7053 = vmatmul.bf16.gmra.mxu0 %v6908
      %v7054 = vpop.f32.mrf.mxu0
      %v7055 = vadd.f32 0.0, %v7054
      %v7056 = vpop.f32.mrf.mxu0
      %v7057 = vadd.f32 0.0, %v7056
      %7058 = vmatmul.bf16.gmra.mxu0 %v6910
      %v7059 = vpop.f32.mrf.mxu0
      %v7060 = vadd.f32 0.0, %v7059
      %v7061 = vpop.f32.mrf.mxu0
      %v7062 = vadd.f32 0.0, %v7061
      %7063 = vmatmul.bf16.gmra.mxu0 %v6912
      %v7064 = vpop.f32.mrf.mxu0
      %v7065 = vadd.f32 0.0, %v7064
      %v7066 = vpop.f32.mrf.mxu0
      %v7067 = vadd.f32 0.0, %v7066
      %7068 = vmatmul.bf16.gmra.mxu0 %v6914
      %v7069 = vpop.f32.mrf.mxu0
      %v7070 = vadd.f32 0.0, %v7069
      %v7071 = vpop.f32.mrf.mxu0
      %v7072 = vadd.f32 0.0, %v7071
      %7073 = vmatmul.bf16.gmra.mxu0 %v6916
      %v7074 = vpop.f32.mrf.mxu0
      %v7075 = vadd.f32 0.0, %v7074
      %v7076 = vpop.f32.mrf.mxu0
      %v7077 = vadd.f32 0.0, %v7076
      %7078 = vmatmul.bf16.gmra.mxu0 %v6918
      %v7079 = vpop.f32.mrf.mxu0
      %v7080 = vadd.f32 0.0, %v7079
      %v7081 = vpop.f32.mrf.mxu0
      %v7082 = vadd.f32 0.0, %v7081
      %7083 = vmatmul.bf16.gmra.mxu0 %v6920
      %v7084 = vpop.f32.mrf.mxu0
      %v7085 = vadd.f32 0.0, %v7084
      %v7086 = vpop.f32.mrf.mxu0
      %v7087 = vadd.f32 0.0, %v7086
      %7088 = vmatmul.bf16.gmra.mxu0 %v6922
      %v7089 = vpop.f32.mrf.mxu0
      %v7090 = vadd.f32 0.0, %v7089
      %v7091 = vpop.f32.mrf.mxu0
      %v7092 = vadd.f32 0.0, %v7091
      %7093 = vmatmul.bf16.gmra.mxu0 %v6924
      %v7094 = vpop.f32.mrf.mxu0
      %v7095 = vadd.f32 0.0, %v7094
      %v7096 = vpop.f32.mrf.mxu0
      %v7097 = vadd.f32 0.0, %v7096
      %7098 = vmatmul.bf16.gmra.mxu0 %v6926
      %v7099 = vpop.f32.mrf.mxu0
      %v7100 = vadd.f32 0.0, %v7099
      %v7101 = vpop.f32.mrf.mxu0
      %v7102 = vadd.f32 0.0, %v7101
      %7103 = vdwg.mxu0
      %v7104 = vadd.f32 %v6766, %v7005
      %v7105 = vadd.f32 %v6768, %v7007
      %v7106 = vadd.f32 %v6771, %v7010
      %v7107 = vadd.f32 %v6773, %v7012
      %v7108 = vadd.f32 %v6776, %v7015
      %v7109 = vadd.f32 %v6778, %v7017
      %v7110 = vadd.f32 %v6781, %v7020
      %v7111 = vadd.f32 %v6783, %v7022
      %v7112 = vadd.f32 %v6786, %v7025
      %v7113 = vadd.f32 %v6788, %v7027
      %v7114 = vadd.f32 %v6791, %v7030
      %v7115 = vadd.f32 %v6793, %v7032
      %v7116 = vadd.f32 %v6796, %v7035
      %v7117 = vadd.f32 %v6798, %v7037
      %v7118 = vadd.f32 %v6801, %v7040
      %v7119 = vadd.f32 %v6803, %v7042
      %v7120 = vadd.f32 %v6806, %v7045
      %v7121 = vadd.f32 %v6808, %v7047
      %v7122 = vadd.f32 %v6811, %v7050
      %v7123 = vadd.f32 %v6813, %v7052
      %v7124 = vadd.f32 %v6816, %v7055
      %v7125 = vadd.f32 %v6818, %v7057
      %v7126 = vadd.f32 %v6821, %v7060
      %v7127 = vadd.f32 %v6823, %v7062
      %v7128 = vadd.f32 %v6826, %v7065
      %v7129 = vadd.f32 %v6828, %v7067
      %v7130 = vadd.f32 %v6831, %v7070
      %v7131 = vadd.f32 %v6833, %v7072
      %v7132 = vadd.f32 %v6836, %v7075
      %v7133 = vadd.f32 %v6838, %v7077
      %v7134 = vadd.f32 %v6841, %v7080
      %v7135 = vadd.f32 %v6843, %v7082
      %v7136 = vadd.f32 %v6846, %v7085
      %v7137 = vadd.f32 %v6848, %v7087
      %v7138 = vadd.f32 %v6851, %v7090
      %v7139 = vadd.f32 %v6853, %v7092
      %v7140 = vadd.f32 %v6856, %v7095
      %v7141 = vadd.f32 %v6858, %v7097
      %v7142 = vadd.f32 %v6861, %v7100
      %v7143 = vadd.f32 %v6863, %v7102
      %v7144 = vld [vmem:[#allocation2 + $0x8] sm:$0xc]
      %v7145 = vld [vmem:[#allocation2 + $0xc] sm:$0xf]
      %v7146 = vld [vmem:[#allocation2 + $0x10] sm:$0xf]
      %v7147 = vld [vmem:[#allocation2 + $0x14] sm:$0xf]
      %v7148 = vld [vmem:[#allocation2 + $0x18] sm:$0xf]
      %v7149 = vld [vmem:[#allocation2 + $0x1c] sm:$0xf]
      %v7150 = vld [vmem:[#allocation2 + $0x20] sm:$0xf]
      %v7151 = vld [vmem:[#allocation2 + $0x24] sm:$0xf]
      %v7152 = vld [vmem:[#allocation2 + $0x28] sm:$0xf]
      %v7153 = vld [vmem:[#allocation2 + $0x2c] sm:$0xf]
      %v7154 = vld [vmem:[#allocation2 + $0x30] sm:$0xf]
      %v7155 = vld [vmem:[#allocation2 + $0x34] sm:$0xf]
      %v7156 = vld [vmem:[#allocation2 + $0x38] sm:$0xf]
      %v7157 = vld [vmem:[#allocation2 + $0x3c] sm:$0xf]
      %v7158 = vld [vmem:[#allocation2 + $0x40] sm:$0xf]
      %v7159 = vld [vmem:[#allocation2 + $0x44] sm:$0xf]
      %v7160 = vld [vmem:[#allocation2 + $0x48] sm:$0xf]
      %v7161 = vld [vmem:[#allocation2 + $0x4c] sm:$0xf]
      %v7162 = vld [vmem:[#allocation2 + $0x50] sm:$0xf]
      %v7163 = vld [vmem:[#allocation2 + $0x54] sm:$0xf]
      %v7164 = vld [vmem:[#allocation2 + $0x58] sm:$0xf]
      %v7165 = vld [vmem:[#allocation2 + $0x5c] sm:$0xf]
      %v7166 = vld [vmem:[#allocation2 + $0x60] sm:$0xf]
      %v7167 = vld [vmem:[#allocation2 + $0x64] sm:$0xf]
      %v7168 = vld [vmem:[#allocation2 + $0x68] sm:$0xf]
      %v7169 = vld [vmem:[#allocation2 + $0x6c] sm:$0xf]
      %v7170 = vld [vmem:[#allocation2 + $0x70] sm:$0xf]
      %v7171 = vld [vmem:[#allocation2 + $0x74] sm:$0xf]
      %v7172 = vld [vmem:[#allocation2 + $0x78] sm:$0xf]
      %v7173 = vld [vmem:[#allocation2 + $0x7c] sm:$0xf]
      %v7174 = vld [vmem:[#allocation2 + $0x80] sm:$0xf]
      %v7175 = vld [vmem:[#allocation2 + $0x84] sm:$0xf]
      %v7176 = vld [vmem:[#allocation2 + $0x88] sm:$0xf]
      %v7177 = vld [vmem:[#allocation2 + $0x8c] sm:$0xf]
      %v7178 = vld [vmem:[#allocation2 + $0x90] sm:$0xf]
      %v7179 = vld [vmem:[#allocation2 + $0x94] sm:$0xf]
      %v7180 = vld [vmem:[#allocation2 + $0x98] sm:$0xf]
      %v7181 = vld [vmem:[#allocation2 + $0x9c] sm:$0xf]
      %v7182 = vld [vmem:[#allocation2 + $0xa0] sm:$0xf]
      %v7183 = vld [vmem:[#allocation2 + $0xa4] sm:$0xf]
      %v7184 = vld [vmem:[#allocation2 + $0xa8] sm:$0x3]
      %s7185 = scalar_lea.vmem %s3, 192
      %v7186 = vld [vmem:[%s7185] sm:$0xf]
      %v7187 = vld [vmem:[%s7185 + $0x4] sm:$0xf]
      %v7188 = vld [vmem:[%s7185 + $0x8] sm:$0xf]
      %v7189 = vld [vmem:[%s7185 + $0xc] sm:$0xf]
      %v7190 = vld [vmem:[%s7185 + $0x10] sm:$0xf]
      %v7191 = vld [vmem:[%s7185 + $0x14] sm:$0xf]
      %v7192 = vld [vmem:[%s7185 + $0x18] sm:$0xf]
      %v7193 = vld [vmem:[%s7185 + $0x1c] sm:$0xf]
      %v7194 = vld [vmem:[%s7185 + $0x20] sm:$0xf]
      %v7195 = vld [vmem:[%s7185 + $0x24] sm:$0xf]
      %v7196 = vld [vmem:[%s7185 + $0x28] sm:$0xf]
      %v7197 = vld [vmem:[%s7185 + $0x2c] sm:$0xf]
      %v7198 = vld [vmem:[%s7185 + $0x30] sm:$0xf]
      %v7199 = vld [vmem:[%s7185 + $0x34] sm:$0xf]
      %v7200 = vld [vmem:[%s7185 + $0x38] sm:$0xf]
      %v7201 = vld [vmem:[%s7185 + $0x3c] sm:$0xf]
      %v7243 = vunpack.c.l.b16 %v7144
      %v7244 = vunpack.c.l.b16 %v7145
      %v7245 = vunpack.c.l.b16 %v7146
      %v7246 = vunpack.c.l.b16 %v7147
      %v7247 = vunpack.c.l.b16 %v7148
      %v7248 = vunpack.c.l.b16 %v7149
      %v7249 = vunpack.c.l.b16 %v7150
      %v7250 = vunpack.c.l.b16 %v7151
      %v7251 = vunpack.c.l.b16 %v7152
      %v7252 = vunpack.c.l.b16 %v7153
      %v7253 = vunpack.c.l.b16 %v7154
      %v7254 = vunpack.c.l.b16 %v7155
      %v7255 = vunpack.c.l.b16 %v7156
      %v7256 = vunpack.c.l.b16 %v7157
      %v7257 = vunpack.c.l.b16 %v7158
      %v7258 = vunpack.c.l.b16 %v7159
      %v7259 = vunpack.c.l.b16 %v7160
      %v7260 = vunpack.c.l.b16 %v7161
      %v7261 = vunpack.c.l.b16 %v7162
      %v7262 = vunpack.c.l.b16 %v7163
      %v7263 = vunpack.c.l.b16 %v7164
      %v7264 = vunpack.c.l.b16 %v7165
      %v7265 = vunpack.c.l.b16 %v7166
      %v7266 = vunpack.c.l.b16 %v7167
      %v7267 = vunpack.c.l.b16 %v7168
      %v7268 = vunpack.c.l.b16 %v7169
      %v7269 = vunpack.c.l.b16 %v7170
      %v7270 = vunpack.c.l.b16 %v7171
      %v7271 = vunpack.c.l.b16 %v7172
      %v7272 = vunpack.c.l.b16 %v7173
      %v7273 = vunpack.c.l.b16 %v7174
      %v7274 = vunpack.c.l.b16 %v7175
      %v7275 = vunpack.c.l.b16 %v7176
      %v7276 = vunpack.c.l.b16 %v7177
      %v7277 = vunpack.c.l.b16 %v7178
      %v7278 = vunpack.c.l.b16 %v7179
      %v7279 = vunpack.c.l.b16 %v7180
      %v7280 = vunpack.c.l.b16 %v7181
      %v7281 = vunpack.c.l.b16 %v7182
      %v7282 = vunpack.c.l.b16 %v7183
      %v7283 = vunpack.c.l.b16 %v7184
      %v7284 = vpack.c.b16 %v7244, %v7243
      %v7285 = vpack.c.b16 %v7246, %v7245
      %v7286 = vpack.c.b16 %v7248, %v7247
      %v7287 = vpack.c.b16 %v7250, %v7249
      %v7288 = vpack.c.b16 %v7252, %v7251
      %v7289 = vpack.c.b16 %v7254, %v7253
      %v7290 = vpack.c.b16 %v7256, %v7255
      %v7291 = vpack.c.b16 %v7258, %v7257
      %v7292 = vpack.c.b16 %v7260, %v7259
      %v7293 = vpack.c.b16 %v7262, %v7261
      %v7294 = vpack.c.b16 %v7264, %v7263
      %v7295 = vpack.c.b16 %v7266, %v7265
      %v7296 = vpack.c.b16 %v7268, %v7267
      %v7297 = vpack.c.b16 %v7270, %v7269
      %v7298 = vpack.c.b16 %v7272, %v7271
      %v7299 = vpack.c.b16 %v7274, %v7273
      %v7300 = vpack.c.b16 %v7276, %v7275
      %v7301 = vpack.c.b16 %v7278, %v7277
      %v7302 = vpack.c.b16 %v7280, %v7279
      %v7303 = vpack.c.b16 %v7282, %v7281
      %v7304 = vpack.c.b16 %v7283, %v7283
      %v7305 = vrot.slane %v7284, 2
      %v7306 = vrot.slane %v7285, 2
      %v7307 = vsel %vm1662, %v7305, %v7306
      %v7308 = vrot.slane %v7286, 2
      %v7309 = vsel %vm1662, %v7306, %v7308
      %v7310 = vrot.slane %v7287, 2
      %v7311 = vsel %vm1662, %v7308, %v7310
      %v7312 = vrot.slane %v7288, 2
      %v7313 = vsel %vm1662, %v7310, %v7312
      %v7314 = vrot.slane %v7289, 2
      %v7315 = vsel %vm1662, %v7312, %v7314
      %v7316 = vrot.slane %v7290, 2
      %v7317 = vsel %vm1662, %v7314, %v7316
      %v7318 = vrot.slane %v7291, 2
      %v7319 = vsel %vm1662, %v7316, %v7318
      %v7320 = vrot.slane %v7292, 2
      %v7321 = vsel %vm1662, %v7318, %v7320
      %v7322 = vrot.slane %v7293, 2
      %v7323 = vsel %vm1662, %v7320, %v7322
      %v7324 = vrot.slane %v7294, 2
      %v7325 = vsel %vm1662, %v7322, %v7324
      %v7326 = vrot.slane %v7295, 2
      %v7327 = vsel %vm1662, %v7324, %v7326
      %v7328 = vrot.slane %v7296, 2
      %v7329 = vsel %vm1662, %v7326, %v7328
      %v7330 = vrot.slane %v7297, 2
      %v7331 = vsel %vm1662, %v7328, %v7330
      %v7332 = vrot.slane %v7298, 2
      %v7333 = vsel %vm1662, %v7330, %v7332
      %v7334 = vrot.slane %v7299, 2
      %v7335 = vsel %vm1662, %v7332, %v7334
      %v7336 = vrot.slane %v7300, 2
      %v7337 = vsel %vm1662, %v7334, %v7336
      %v7338 = vrot.slane %v7301, 2
      %v7339 = vsel %vm1662, %v7336, %v7338
      %v7340 = vrot.slane %v7302, 2
      %v7341 = vsel %vm1662, %v7338, %v7340
      %v7342 = vrot.slane %v7303, 2
      %v7343 = vsel %vm1662, %v7340, %v7342
      %v7344 = vrot.slane %v7304, 2
      %v7345 = vsel %vm1662, %v7342, %v7344
      %v7382 = vunpack.c.l.b16 %v7186
      %v7383 = vunpack.c.l.b16 %v7187
      %v7384 = vunpack.c.l.b16 %v7188
      %v7385 = vunpack.c.l.b16 %v7189
      %v7386 = vunpack.c.l.b16 %v7190
      %v7387 = vunpack.c.l.b16 %v7191
      %v7388 = vunpack.c.l.b16 %v7192
      %v7389 = vunpack.c.l.b16 %v7193
      %v7390 = vunpack.c.l.b16 %v7194
      %v7391 = vunpack.c.l.b16 %v7195
      %v7392 = vunpack.c.l.b16 %v7196
      %v7393 = vunpack.c.l.b16 %v7197
      %v7394 = vunpack.c.l.b16 %v7198
      %v7395 = vunpack.c.l.b16 %v7199
      %v7396 = vunpack.c.l.b16 %v7200
      %v7397 = vunpack.c.l.b16 %v7201
      %v7398 = vpack.c.b16 %v7383, %v7382
      %v7399 = vpack.c.b16 %v7385, %v7384
      %v7400 = vpack.c.b16 %v7387, %v7386
      %v7401 = vpack.c.b16 %v7389, %v7388
      %v7402 = vpack.c.b16 %v7391, %v7390
      %v7403 = vpack.c.b16 %v7393, %v7392
      %v7404 = vpack.c.b16 %v7395, %v7394
      %v7405 = vpack.c.b16 %v7397, %v7396
      %7414 = vmatpush.bf16.msra.mxu0 %v7405
      %7415 = vmatpush.bf16.msra.mxu0 %v7404
      %7416 = vmatpush.bf16.msra.mxu0 %v7403
      %7417 = vmatpush.bf16.msra.mxu0 %v7402
      %7418 = vmatpush.bf16.msra.mxu0 %v7401
      %7419 = vmatpush.bf16.msra.mxu0 %v7400
      %7420 = vmatpush.bf16.msra.mxu0 %v7399
      %7421 = vmatpush.bf16.msra.mxu0 %v7398
      %7422 = vmatmul.bf16.gmra.mxu0 %v7307
      %v7423 = vpop.f32.mrf.mxu0
      %v7424 = vadd.f32 0.0, %v7423
      %v7425 = vpop.f32.mrf.mxu0
      %v7426 = vadd.f32 0.0, %v7425
      %7427 = vmatmul.bf16.gmra.mxu0 %v7309
      %v7428 = vpop.f32.mrf.mxu0
      %v7429 = vadd.f32 0.0, %v7428
      %v7430 = vpop.f32.mrf.mxu0
      %v7431 = vadd.f32 0.0, %v7430
      %7432 = vmatmul.bf16.gmra.mxu0 %v7311
      %v7433 = vpop.f32.mrf.mxu0
      %v7434 = vadd.f32 0.0, %v7433
      %v7435 = vpop.f32.mrf.mxu0
      %v7436 = vadd.f32 0.0, %v7435
      %7437 = vmatmul.bf16.gmra.mxu0 %v7313
      %v7438 = vpop.f32.mrf.mxu0
      %v7439 = vadd.f32 0.0, %v7438
      %v7440 = vpop.f32.mrf.mxu0
      %v7441 = vadd.f32 0.0, %v7440
      %7442 = vmatmul.bf16.gmra.mxu0 %v7315
      %v7443 = vpop.f32.mrf.mxu0
      %v7444 = vadd.f32 0.0, %v7443
      %v7445 = vpop.f32.mrf.mxu0
      %v7446 = vadd.f32 0.0, %v7445
      %7447 = vmatmul.bf16.gmra.mxu0 %v7317
      %v7448 = vpop.f32.mrf.mxu0
      %v7449 = vadd.f32 0.0, %v7448
      %v7450 = vpop.f32.mrf.mxu0
      %v7451 = vadd.f32 0.0, %v7450
      %7452 = vmatmul.bf16.gmra.mxu0 %v7319
      %v7453 = vpop.f32.mrf.mxu0
      %v7454 = vadd.f32 0.0, %v7453
      %v7455 = vpop.f32.mrf.mxu0
      %v7456 = vadd.f32 0.0, %v7455
      %7457 = vmatmul.bf16.gmra.mxu0 %v7321
      %v7458 = vpop.f32.mrf.mxu0
      %v7459 = vadd.f32 0.0, %v7458
      %v7460 = vpop.f32.mrf.mxu0
      %v7461 = vadd.f32 0.0, %v7460
      %7462 = vmatmul.bf16.gmra.mxu0 %v7323
      %v7463 = vpop.f32.mrf.mxu0
      %v7464 = vadd.f32 0.0, %v7463
      %v7465 = vpop.f32.mrf.mxu0
      %v7466 = vadd.f32 0.0, %v7465
      %7467 = vmatmul.bf16.gmra.mxu0 %v7325
      %v7468 = vpop.f32.mrf.mxu0
      %v7469 = vadd.f32 0.0, %v7468
      %v7470 = vpop.f32.mrf.mxu0
      %v7471 = vadd.f32 0.0, %v7470
      %7472 = vmatmul.bf16.gmra.mxu0 %v7327
      %v7473 = vpop.f32.mrf.mxu0
      %v7474 = vadd.f32 0.0, %v7473
      %v7475 = vpop.f32.mrf.mxu0
      %v7476 = vadd.f32 0.0, %v7475
      %7477 = vmatmul.bf16.gmra.mxu0 %v7329
      %v7478 = vpop.f32.mrf.mxu0
      %v7479 = vadd.f32 0.0, %v7478
      %v7480 = vpop.f32.mrf.mxu0
      %v7481 = vadd.f32 0.0, %v7480
      %7482 = vmatmul.bf16.gmra.mxu0 %v7331
      %v7483 = vpop.f32.mrf.mxu0
      %v7484 = vadd.f32 0.0, %v7483
      %v7485 = vpop.f32.mrf.mxu0
      %v7486 = vadd.f32 0.0, %v7485
      %7487 = vmatmul.bf16.gmra.mxu0 %v7333
      %v7488 = vpop.f32.mrf.mxu0
      %v7489 = vadd.f32 0.0, %v7488
      %v7490 = vpop.f32.mrf.mxu0
      %v7491 = vadd.f32 0.0, %v7490
      %7492 = vmatmul.bf16.gmra.mxu0 %v7335
      %v7493 = vpop.f32.mrf.mxu0
      %v7494 = vadd.f32 0.0, %v7493
      %v7495 = vpop.f32.mrf.mxu0
      %v7496 = vadd.f32 0.0, %v7495
      %7497 = vmatmul.bf16.gmra.mxu0 %v7337
      %v7498 = vpop.f32.mrf.mxu0
      %v7499 = vadd.f32 0.0, %v7498
      %v7500 = vpop.f32.mrf.mxu0
      %v7501 = vadd.f32 0.0, %v7500
      %7502 = vmatmul.bf16.gmra.mxu0 %v7339
      %v7503 = vpop.f32.mrf.mxu0
      %v7504 = vadd.f32 0.0, %v7503
      %v7505 = vpop.f32.mrf.mxu0
      %v7506 = vadd.f32 0.0, %v7505
      %7507 = vmatmul.bf16.gmra.mxu0 %v7341
      %v7508 = vpop.f32.mrf.mxu0
      %v7509 = vadd.f32 0.0, %v7508
      %v7510 = vpop.f32.mrf.mxu0
      %v7511 = vadd.f32 0.0, %v7510
      %7512 = vmatmul.bf16.gmra.mxu0 %v7343
      %v7513 = vpop.f32.mrf.mxu0
      %v7514 = vadd.f32 0.0, %v7513
      %v7515 = vpop.f32.mrf.mxu0
      %v7516 = vadd.f32 0.0, %v7515
      %7517 = vmatmul.bf16.gmra.mxu0 %v7345
      %v7518 = vpop.f32.mrf.mxu0
      %v7519 = vadd.f32 0.0, %v7518
      %v7520 = vpop.f32.mrf.mxu0
      %v7521 = vadd.f32 0.0, %v7520
      %7522 = vdwg.mxu0
      %v7523 = vadd.f32 %v7104, %v7424
      %v7524 = vadd.f32 %v7105, %v7426
      %v7525 = vadd.f32 %v7106, %v7429
      %v7526 = vadd.f32 %v7107, %v7431
      %v7527 = vadd.f32 %v7108, %v7434
      %v7528 = vadd.f32 %v7109, %v7436
      %v7529 = vadd.f32 %v7110, %v7439
      %v7530 = vadd.f32 %v7111, %v7441
      %v7531 = vadd.f32 %v7112, %v7444
      %v7532 = vadd.f32 %v7113, %v7446
      %v7533 = vadd.f32 %v7114, %v7449
      %v7534 = vadd.f32 %v7115, %v7451
      %v7535 = vadd.f32 %v7116, %v7454
      %v7536 = vadd.f32 %v7117, %v7456
      %v7537 = vadd.f32 %v7118, %v7459
      %v7538 = vadd.f32 %v7119, %v7461
      %v7539 = vadd.f32 %v7120, %v7464
      %v7540 = vadd.f32 %v7121, %v7466
      %v7541 = vadd.f32 %v7122, %v7469
      %v7542 = vadd.f32 %v7123, %v7471
      %v7543 = vadd.f32 %v7124, %v7474
      %v7544 = vadd.f32 %v7125, %v7476
      %v7545 = vadd.f32 %v7126, %v7479
      %v7546 = vadd.f32 %v7127, %v7481
      %v7547 = vadd.f32 %v7128, %v7484
      %v7548 = vadd.f32 %v7129, %v7486
      %v7549 = vadd.f32 %v7130, %v7489
      %v7550 = vadd.f32 %v7131, %v7491
      %v7551 = vadd.f32 %v7132, %v7494
      %v7552 = vadd.f32 %v7133, %v7496
      %v7553 = vadd.f32 %v7134, %v7499
      %v7554 = vadd.f32 %v7135, %v7501
      %v7555 = vadd.f32 %v7136, %v7504
      %v7556 = vadd.f32 %v7137, %v7506
      %v7557 = vadd.f32 %v7138, %v7509
      %v7558 = vadd.f32 %v7139, %v7511
      %v7559 = vadd.f32 %v7140, %v7514
      %v7560 = vadd.f32 %v7141, %v7516
      %v7561 = vadd.f32 %v7142, %v7519
      %v7562 = vadd.f32 %v7143, %v7521
      %v7563 = vld [vmem:[#allocation2 + $0xa8] sm:$0x7]
      %s7564 = scalar_lea.vmem %s3, 256
      %v7565 = vld [vmem:[%s7564] sm:$0xf]
      %v7566 = vld [vmem:[%s7564 + $0x4] sm:$0xf]
      %v7567 = vld [vmem:[%s7564 + $0x8] sm:$0xf]
      %v7568 = vld [vmem:[%s7564 + $0xc] sm:$0xf]
      %v7569 = vld [vmem:[%s7564 + $0x10] sm:$0xf]
      %v7570 = vld [vmem:[%s7564 + $0x14] sm:$0xf]
      %v7571 = vld [vmem:[%s7564 + $0x18] sm:$0xf]
      %v7572 = vld [vmem:[%s7564 + $0x1c] sm:$0xf]
      %v7573 = vld [vmem:[%s7564 + $0x20] sm:$0xf]
      %v7574 = vld [vmem:[%s7564 + $0x24] sm:$0xf]
      %v7575 = vld [vmem:[%s7564 + $0x28] sm:$0xf]
      %v7576 = vld [vmem:[%s7564 + $0x2c] sm:$0xf]
      %v7577 = vld [vmem:[%s7564 + $0x30] sm:$0xf]
      %v7578 = vld [vmem:[%s7564 + $0x34] sm:$0xf]
      %v7579 = vld [vmem:[%s7564 + $0x38] sm:$0xf]
      %v7580 = vld [vmem:[%s7564 + $0x3c] sm:$0xf]
      %v7582 = vunpack.c.l.b16 %v7563
      %v7583 = vpack.c.b16 %v7582, %v7582
      %v7585 = vshrl.u32 %v7284, 16
      %v7587 = vrot.slane %v7585, 2
      %v7588 = vshll.u32 %v7284, 16
      %v7590 = vrot.slane %v7588, 3
      %v7591 = vor.u32 %v7587, %v7590
      %v7593 = vshrl.u32 %v7285, 16
      %v7595 = vrot.slane %v7593, 2
      %v7596 = vshll.u32 %v7285, 16
      %v7598 = vrot.slane %v7596, 3
      %v7599 = vor.u32 %v7595, %v7598
      %v7600 = vsel %vm1968, %v7591, %v7599
      %v7602 = vshrl.u32 %v7286, 16
      %v7604 = vrot.slane %v7602, 2
      %v7605 = vshll.u32 %v7286, 16
      %v7607 = vrot.slane %v7605, 3
      %v7608 = vor.u32 %v7604, %v7607
      %v7609 = vsel %vm1968, %v7599, %v7608
      %v7611 = vshrl.u32 %v7287, 16
      %v7613 = vrot.slane %v7611, 2
      %v7614 = vshll.u32 %v7287, 16
      %v7616 = vrot.slane %v7614, 3
      %v7617 = vor.u32 %v7613, %v7616
      %v7618 = vsel %vm1968, %v7608, %v7617
      %v7620 = vshrl.u32 %v7288, 16
      %v7622 = vrot.slane %v7620, 2
      %v7623 = vshll.u32 %v7288, 16
      %v7625 = vrot.slane %v7623, 3
      %v7626 = vor.u32 %v7622, %v7625
      %v7627 = vsel %vm1968, %v7617, %v7626
      %v7629 = vshrl.u32 %v7289, 16
      %v7631 = vrot.slane %v7629, 2
      %v7632 = vshll.u32 %v7289, 16
      %v7634 = vrot.slane %v7632, 3
      %v7635 = vor.u32 %v7631, %v7634
      %v7636 = vsel %vm1968, %v7626, %v7635
      %v7638 = vshrl.u32 %v7290, 16
      %v7640 = vrot.slane %v7638, 2
      %v7641 = vshll.u32 %v7290, 16
      %v7643 = vrot.slane %v7641, 3
      %v7644 = vor.u32 %v7640, %v7643
      %v7645 = vsel %vm1968, %v7635, %v7644
      %v7647 = vshrl.u32 %v7291, 16
      %v7649 = vrot.slane %v7647, 2
      %v7650 = vshll.u32 %v7291, 16
      %v7652 = vrot.slane %v7650, 3
      %v7653 = vor.u32 %v7649, %v7652
      %v7654 = vsel %vm1968, %v7644, %v7653
      %v7656 = vshrl.u32 %v7292, 16
      %v7658 = vrot.slane %v7656, 2
      %v7659 = vshll.u32 %v7292, 16
      %v7661 = vrot.slane %v7659, 3
      %v7662 = vor.u32 %v7658, %v7661
      %v7663 = vsel %vm1968, %v7653, %v7662
      %v7665 = vshrl.u32 %v7293, 16
      %v7667 = vrot.slane %v7665, 2
      %v7668 = vshll.u32 %v7293, 16
      %v7670 = vrot.slane %v7668, 3
      %v7671 = vor.u32 %v7667, %v7670
      %v7672 = vsel %vm1968, %v7662, %v7671
      %v7674 = vshrl.u32 %v7294, 16
      %v7676 = vrot.slane %v7674, 2
      %v7677 = vshll.u32 %v7294, 16
      %v7679 = vrot.slane %v7677, 3
      %v7680 = vor.u32 %v7676, %v7679
      %v7681 = vsel %vm1968, %v7671, %v7680
      %v7683 = vshrl.u32 %v7295, 16
      %v7685 = vrot.slane %v7683, 2
      %v7686 = vshll.u32 %v7295, 16
      %v7688 = vrot.slane %v7686, 3
      %v7689 = vor.u32 %v7685, %v7688
      %v7690 = vsel %vm1968, %v7680, %v7689
      %v7692 = vshrl.u32 %v7296, 16
      %v7694 = vrot.slane %v7692, 2
      %v7695 = vshll.u32 %v7296, 16
      %v7697 = vrot.slane %v7695, 3
      %v7698 = vor.u32 %v7694, %v7697
      %v7699 = vsel %vm1968, %v7689, %v7698
      %v7701 = vshrl.u32 %v7297, 16
      %v7703 = vrot.slane %v7701, 2
      %v7704 = vshll.u32 %v7297, 16
      %v7706 = vrot.slane %v7704, 3
      %v7707 = vor.u32 %v7703, %v7706
      %v7708 = vsel %vm1968, %v7698, %v7707
      %v7710 = vshrl.u32 %v7298, 16
      %v7712 = vrot.slane %v7710, 2
      %v7713 = vshll.u32 %v7298, 16
      %v7715 = vrot.slane %v7713, 3
      %v7716 = vor.u32 %v7712, %v7715
      %v7717 = vsel %vm1968, %v7707, %v7716
      %v7719 = vshrl.u32 %v7299, 16
      %v7721 = vrot.slane %v7719, 2
      %v7722 = vshll.u32 %v7299, 16
      %v7724 = vrot.slane %v7722, 3
      %v7725 = vor.u32 %v7721, %v7724
      %v7726 = vsel %vm1968, %v7716, %v7725
      %v7728 = vshrl.u32 %v7300, 16
      %v7730 = vrot.slane %v7728, 2
      %v7731 = vshll.u32 %v7300, 16
      %v7733 = vrot.slane %v7731, 3
      %v7734 = vor.u32 %v7730, %v7733
      %v7735 = vsel %vm1968, %v7725, %v7734
      %v7737 = vshrl.u32 %v7301, 16
      %v7739 = vrot.slane %v7737, 2
      %v7740 = vshll.u32 %v7301, 16
      %v7742 = vrot.slane %v7740, 3
      %v7743 = vor.u32 %v7739, %v7742
      %v7744 = vsel %vm1968, %v7734, %v7743
      %v7746 = vshrl.u32 %v7302, 16
      %v7748 = vrot.slane %v7746, 2
      %v7749 = vshll.u32 %v7302, 16
      %v7751 = vrot.slane %v7749, 3
      %v7752 = vor.u32 %v7748, %v7751
      %v7753 = vsel %vm1968, %v7743, %v7752
      %v7755 = vshrl.u32 %v7303, 16
      %v7757 = vrot.slane %v7755, 2
      %v7758 = vshll.u32 %v7303, 16
      %v7760 = vrot.slane %v7758, 3
      %v7761 = vor.u32 %v7757, %v7760
      %v7762 = vsel %vm1968, %v7752, %v7761
      %v7764 = vshrl.u32 %v7583, 16
      %v7766 = vrot.slane %v7764, 2
      %v7767 = vshll.u32 %v7583, 16
      %v7769 = vrot.slane %v7767, 3
      %v7770 = vor.u32 %v7766, %v7769
      %v7771 = vsel %vm1968, %v7761, %v7770
      %v7808 = vunpack.c.l.b16 %v7565
      %v7809 = vunpack.c.l.b16 %v7566
      %v7810 = vunpack.c.l.b16 %v7567
      %v7811 = vunpack.c.l.b16 %v7568
      %v7812 = vunpack.c.l.b16 %v7569
      %v7813 = vunpack.c.l.b16 %v7570
      %v7814 = vunpack.c.l.b16 %v7571
      %v7815 = vunpack.c.l.b16 %v7572
      %v7816 = vunpack.c.l.b16 %v7573
      %v7817 = vunpack.c.l.b16 %v7574
      %v7818 = vunpack.c.l.b16 %v7575
      %v7819 = vunpack.c.l.b16 %v7576
      %v7820 = vunpack.c.l.b16 %v7577
      %v7821 = vunpack.c.l.b16 %v7578
      %v7822 = vunpack.c.l.b16 %v7579
      %v7823 = vunpack.c.l.b16 %v7580
      %v7824 = vpack.c.b16 %v7809, %v7808
      %v7825 = vpack.c.b16 %v7811, %v7810
      %v7826 = vpack.c.b16 %v7813, %v7812
      %v7827 = vpack.c.b16 %v7815, %v7814
      %v7828 = vpack.c.b16 %v7817, %v7816
      %v7829 = vpack.c.b16 %v7819, %v7818
      %v7830 = vpack.c.b16 %v7821, %v7820
      %v7831 = vpack.c.b16 %v7823, %v7822
      %7840 = vmatpush.bf16.msra.mxu0 %v7831
      %7841 = vmatpush.bf16.msra.mxu0 %v7830
      %7842 = vmatpush.bf16.msra.mxu0 %v7829
      %7843 = vmatpush.bf16.msra.mxu0 %v7828
      %7844 = vmatpush.bf16.msra.mxu0 %v7827
      %7845 = vmatpush.bf16.msra.mxu0 %v7826
      %7846 = vmatpush.bf16.msra.mxu0 %v7825
      %7847 = vmatpush.bf16.msra.mxu0 %v7824
      %7848 = vmatmul.bf16.gmra.mxu0 %v7600
      %v7849 = vpop.f32.mrf.mxu0
      %v7850 = vadd.f32 0.0, %v7849
      %v7851 = vpop.f32.mrf.mxu0
      %v7852 = vadd.f32 0.0, %v7851
      %7853 = vmatmul.bf16.gmra.mxu0 %v7609
      %v7854 = vpop.f32.mrf.mxu0
      %v7855 = vadd.f32 0.0, %v7854
      %v7856 = vpop.f32.mrf.mxu0
      %v7857 = vadd.f32 0.0, %v7856
      %7858 = vmatmul.bf16.gmra.mxu0 %v7618
      %v7859 = vpop.f32.mrf.mxu0
      %v7860 = vadd.f32 0.0, %v7859
      %v7861 = vpop.f32.mrf.mxu0
      %v7862 = vadd.f32 0.0, %v7861
      %7863 = vmatmul.bf16.gmra.mxu0 %v7627
      %v7864 = vpop.f32.mrf.mxu0
      %v7865 = vadd.f32 0.0, %v7864
      %v7866 = vpop.f32.mrf.mxu0
      %v7867 = vadd.f32 0.0, %v7866
      %7868 = vmatmul.bf16.gmra.mxu0 %v7636
      %v7869 = vpop.f32.mrf.mxu0
      %v7870 = vadd.f32 0.0, %v7869
      %v7871 = vpop.f32.mrf.mxu0
      %v7872 = vadd.f32 0.0, %v7871
      %7873 = vmatmul.bf16.gmra.mxu0 %v7645
      %v7874 = vpop.f32.mrf.mxu0
      %v7875 = vadd.f32 0.0, %v7874
      %v7876 = vpop.f32.mrf.mxu0
      %v7877 = vadd.f32 0.0, %v7876
      %7878 = vmatmul.bf16.gmra.mxu0 %v7654
      %v7879 = vpop.f32.mrf.mxu0
      %v7880 = vadd.f32 0.0, %v7879
      %v7881 = vpop.f32.mrf.mxu0
      %v7882 = vadd.f32 0.0, %v7881
      %7883 = vmatmul.bf16.gmra.mxu0 %v7663
      %v7884 = vpop.f32.mrf.mxu0
      %v7885 = vadd.f32 0.0, %v7884
      %v7886 = vpop.f32.mrf.mxu0
      %v7887 = vadd.f32 0.0, %v7886
      %7888 = vmatmul.bf16.gmra.mxu0 %v7672
      %v7889 = vpop.f32.mrf.mxu0
      %v7890 = vadd.f32 0.0, %v7889
      %v7891 = vpop.f32.mrf.mxu0
      %v7892 = vadd.f32 0.0, %v7891
      %7893 = vmatmul.bf16.gmra.mxu0 %v7681
      %v7894 = vpop.f32.mrf.mxu0
      %v7895 = vadd.f32 0.0, %v7894
      %v7896 = vpop.f32.mrf.mxu0
      %v7897 = vadd.f32 0.0, %v7896
      %7898 = vmatmul.bf16.gmra.mxu0 %v7690
      %v7899 = vpop.f32.mrf.mxu0
      %v7900 = vadd.f32 0.0, %v7899
      %v7901 = vpop.f32.mrf.mxu0
      %v7902 = vadd.f32 0.0, %v7901
      %7903 = vmatmul.bf16.gmra.mxu0 %v7699
      %v7904 = vpop.f32.mrf.mxu0
      %v7905 = vadd.f32 0.0, %v7904
      %v7906 = vpop.f32.mrf.mxu0
      %v7907 = vadd.f32 0.0, %v7906
      %7908 = vmatmul.bf16.gmra.mxu0 %v7708
      %v7909 = vpop.f32.mrf.mxu0
      %v7910 = vadd.f32 0.0, %v7909
      %v7911 = vpop.f32.mrf.mxu0
      %v7912 = vadd.f32 0.0, %v7911
      %7913 = vmatmul.bf16.gmra.mxu0 %v7717
      %v7914 = vpop.f32.mrf.mxu0
      %v7915 = vadd.f32 0.0, %v7914
      %v7916 = vpop.f32.mrf.mxu0
      %v7917 = vadd.f32 0.0, %v7916
      %7918 = vmatmul.bf16.gmra.mxu0 %v7726
      %v7919 = vpop.f32.mrf.mxu0
      %v7920 = vadd.f32 0.0, %v7919
      %v7921 = vpop.f32.mrf.mxu0
      %v7922 = vadd.f32 0.0, %v7921
      %7923 = vmatmul.bf16.gmra.mxu0 %v7735
      %v7924 = vpop.f32.mrf.mxu0
      %v7925 = vadd.f32 0.0, %v7924
      %v7926 = vpop.f32.mrf.mxu0
      %v7927 = vadd.f32 0.0, %v7926
      %7928 = vmatmul.bf16.gmra.mxu0 %v7744
      %v7929 = vpop.f32.mrf.mxu0
      %v7930 = vadd.f32 0.0, %v7929
      %v7931 = vpop.f32.mrf.mxu0
      %v7932 = vadd.f32 0.0, %v7931
      %7933 = vmatmul.bf16.gmra.mxu0 %v7753
      %v7934 = vpop.f32.mrf.mxu0
      %v7935 = vadd.f32 0.0, %v7934
      %v7936 = vpop.f32.mrf.mxu0
      %v7937 = vadd.f32 0.0, %v7936
      %7938 = vmatmul.bf16.gmra.mxu0 %v7762
      %v7939 = vpop.f32.mrf.mxu0
      %v7940 = vadd.f32 0.0, %v7939
      %v7941 = vpop.f32.mrf.mxu0
      %v7942 = vadd.f32 0.0, %v7941
      %7943 = vmatmul.bf16.gmra.mxu0 %v7771
      %v7944 = vpop.f32.mrf.mxu0
      %v7945 = vadd.f32 0.0, %v7944
      %v7946 = vpop.f32.mrf.mxu0
      %v7947 = vadd.f32 0.0, %v7946
      %7948 = vdwg.mxu0
      %v7949 = vadd.f32 %v7523, %v7850
      %v7950 = vadd.f32 %v7524, %v7852
      %v7951 = vadd.f32 %v7525, %v7855
      %v7952 = vadd.f32 %v7526, %v7857
      %v7953 = vadd.f32 %v7527, %v7860
      %v7954 = vadd.f32 %v7528, %v7862
      %v7955 = vadd.f32 %v7529, %v7865
      %v7956 = vadd.f32 %v7530, %v7867
      %v7957 = vadd.f32 %v7531, %v7870
      %v7958 = vadd.f32 %v7532, %v7872
      %v7959 = vadd.f32 %v7533, %v7875
      %v7960 = vadd.f32 %v7534, %v7877
      %v7961 = vadd.f32 %v7535, %v7880
      %v7962 = vadd.f32 %v7536, %v7882
      %v7963 = vadd.f32 %v7537, %v7885
      %v7964 = vadd.f32 %v7538, %v7887
      %v7965 = vadd.f32 %v7539, %v7890
      %v7966 = vadd.f32 %v7540, %v7892
      %v7967 = vadd.f32 %v7541, %v7895
      %v7968 = vadd.f32 %v7542, %v7897
      %v7969 = vadd.f32 %v7543, %v7900
      %v7970 = vadd.f32 %v7544, %v7902
      %v7971 = vadd.f32 %v7545, %v7905
      %v7972 = vadd.f32 %v7546, %v7907
      %v7973 = vadd.f32 %v7547, %v7910
      %v7974 = vadd.f32 %v7548, %v7912
      %v7975 = vadd.f32 %v7549, %v7915
      %v7976 = vadd.f32 %v7550, %v7917
      %v7977 = vadd.f32 %v7551, %v7920
      %v7978 = vadd.f32 %v7552, %v7922
      %v7979 = vadd.f32 %v7553, %v7925
      %v7980 = vadd.f32 %v7554, %v7927
      %v7981 = vadd.f32 %v7555, %v7930
      %v7982 = vadd.f32 %v7556, %v7932
      %v7983 = vadd.f32 %v7557, %v7935
      %v7984 = vadd.f32 %v7558, %v7937
      %v7985 = vadd.f32 %v7559, %v7940
      %v7986 = vadd.f32 %v7560, %v7942
      %v7987 = vadd.f32 %v7561, %v7945
      %v7988 = vadd.f32 %v7562, %v7947
      %v7989 = vld [vmem:[#allocation2 + $0x8] sm:$0x8]
      %s7990 = scalar_lea.vmem %s3, 320
      %v7991 = vld [vmem:[%s7990] sm:$0xf]
      %v7992 = vld [vmem:[%s7990 + $0x4] sm:$0xf]
      %v7993 = vld [vmem:[%s7990 + $0x8] sm:$0xf]
      %v7994 = vld [vmem:[%s7990 + $0xc] sm:$0xf]
      %v7995 = vld [vmem:[%s7990 + $0x10] sm:$0xf]
      %v7996 = vld [vmem:[%s7990 + $0x14] sm:$0xf]
      %v7997 = vld [vmem:[%s7990 + $0x18] sm:$0xf]
      %v7998 = vld [vmem:[%s7990 + $0x1c] sm:$0xf]
      %v7999 = vld [vmem:[%s7990 + $0x20] sm:$0xf]
      %v8000 = vld [vmem:[%s7990 + $0x24] sm:$0xf]
      %v8001 = vld [vmem:[%s7990 + $0x28] sm:$0xf]
      %v8002 = vld [vmem:[%s7990 + $0x2c] sm:$0xf]
      %v8003 = vld [vmem:[%s7990 + $0x30] sm:$0xf]
      %v8004 = vld [vmem:[%s7990 + $0x34] sm:$0xf]
      %v8005 = vld [vmem:[%s7990 + $0x38] sm:$0xf]
      %v8006 = vld [vmem:[%s7990 + $0x3c] sm:$0xf]
      %v8008 = vunpack.c.l.b16 %v7989
      %v8009 = vpack.c.b16 %v7244, %v8008
      %v8010 = vrot.slane %v8009, 3
      %v8011 = vrot.slane %v7285, 3
      %v8012 = vsel %vm2435, %v8010, %v8011
      %v8013 = vrot.slane %v7286, 3
      %v8014 = vsel %vm2435, %v8011, %v8013
      %v8015 = vrot.slane %v7287, 3
      %v8016 = vsel %vm2435, %v8013, %v8015
      %v8017 = vrot.slane %v7288, 3
      %v8018 = vsel %vm2435, %v8015, %v8017
      %v8019 = vrot.slane %v7289, 3
      %v8020 = vsel %vm2435, %v8017, %v8019
      %v8021 = vrot.slane %v7290, 3
      %v8022 = vsel %vm2435, %v8019, %v8021
      %v8023 = vrot.slane %v7291, 3
      %v8024 = vsel %vm2435, %v8021, %v8023
      %v8025 = vrot.slane %v7292, 3
      %v8026 = vsel %vm2435, %v8023, %v8025
      %v8027 = vrot.slane %v7293, 3
      %v8028 = vsel %vm2435, %v8025, %v8027
      %v8029 = vrot.slane %v7294, 3
      %v8030 = vsel %vm2435, %v8027, %v8029
      %v8031 = vrot.slane %v7295, 3
      %v8032 = vsel %vm2435, %v8029, %v8031
      %v8033 = vrot.slane %v7296, 3
      %v8034 = vsel %vm2435, %v8031, %v8033
      %v8035 = vrot.slane %v7297, 3
      %v8036 = vsel %vm2435, %v8033, %v8035
      %v8037 = vrot.slane %v7298, 3
      %v8038 = vsel %vm2435, %v8035, %v8037
      %v8039 = vrot.slane %v7299, 3
      %v8040 = vsel %vm2435, %v8037, %v8039
      %v8041 = vrot.slane %v7300, 3
      %v8042 = vsel %vm2435, %v8039, %v8041
      %v8043 = vrot.slane %v7301, 3
      %v8044 = vsel %vm2435, %v8041, %v8043
      %v8045 = vrot.slane %v7302, 3
      %v8046 = vsel %vm2435, %v8043, %v8045
      %v8047 = vrot.slane %v7303, 3
      %v8048 = vsel %vm2435, %v8045, %v8047
      %v8049 = vrot.slane %v7583, 3
      %v8050 = vsel %vm2435, %v8047, %v8049
      %v8087 = vunpack.c.l.b16 %v7991
      %v8088 = vunpack.c.l.b16 %v7992
      %v8089 = vunpack.c.l.b16 %v7993
      %v8090 = vunpack.c.l.b16 %v7994
      %v8091 = vunpack.c.l.b16 %v7995
      %v8092 = vunpack.c.l.b16 %v7996
      %v8093 = vunpack.c.l.b16 %v7997
      %v8094 = vunpack.c.l.b16 %v7998
      %v8095 = vunpack.c.l.b16 %v7999
      %v8096 = vunpack.c.l.b16 %v8000
      %v8097 = vunpack.c.l.b16 %v8001
      %v8098 = vunpack.c.l.b16 %v8002
      %v8099 = vunpack.c.l.b16 %v8003
      %v8100 = vunpack.c.l.b16 %v8004
      %v8101 = vunpack.c.l.b16 %v8005
      %v8102 = vunpack.c.l.b16 %v8006
      %v8103 = vpack.c.b16 %v8088, %v8087
      %v8104 = vpack.c.b16 %v8090, %v8089
      %v8105 = vpack.c.b16 %v8092, %v8091
      %v8106 = vpack.c.b16 %v8094, %v8093
      %v8107 = vpack.c.b16 %v8096, %v8095
      %v8108 = vpack.c.b16 %v8098, %v8097
      %v8109 = vpack.c.b16 %v8100, %v8099
      %v8110 = vpack.c.b16 %v8102, %v8101
      %8119 = vmatpush.bf16.msra.mxu0 %v8110
      %8120 = vmatpush.bf16.msra.mxu0 %v8109
      %8121 = vmatpush.bf16.msra.mxu0 %v8108
      %8122 = vmatpush.bf16.msra.mxu0 %v8107
      %8123 = vmatpush.bf16.msra.mxu0 %v8106
      %8124 = vmatpush.bf16.msra.mxu0 %v8105
      %8125 = vmatpush.bf16.msra.mxu0 %v8104
      %8126 = vmatpush.bf16.msra.mxu0 %v8103
      %8127 = vmatmul.bf16.gmra.mxu0 %v8012
      %v8128 = vpop.f32.mrf.mxu0
      %v8129 = vadd.f32 0.0, %v8128
      %v8130 = vpop.f32.mrf.mxu0
      %v8131 = vadd.f32 0.0, %v8130
      %8132 = vmatmul.bf16.gmra.mxu0 %v8014
      %v8133 = vpop.f32.mrf.mxu0
      %v8134 = vadd.f32 0.0, %v8133
      %v8135 = vpop.f32.mrf.mxu0
      %v8136 = vadd.f32 0.0, %v8135
      %8137 = vmatmul.bf16.gmra.mxu0 %v8016
      %v8138 = vpop.f32.mrf.mxu0
      %v8139 = vadd.f32 0.0, %v8138
      %v8140 = vpop.f32.mrf.mxu0
      %v8141 = vadd.f32 0.0, %v8140
      %8142 = vmatmul.bf16.gmra.mxu0 %v8018
      %v8143 = vpop.f32.mrf.mxu0
      %v8144 = vadd.f32 0.0, %v8143
      %v8145 = vpop.f32.mrf.mxu0
      %v8146 = vadd.f32 0.0, %v8145
      %8147 = vmatmul.bf16.gmra.mxu0 %v8020
      %v8148 = vpop.f32.mrf.mxu0
      %v8149 = vadd.f32 0.0, %v8148
      %v8150 = vpop.f32.mrf.mxu0
      %v8151 = vadd.f32 0.0, %v8150
      %8152 = vmatmul.bf16.gmra.mxu0 %v8022
      %v8153 = vpop.f32.mrf.mxu0
      %v8154 = vadd.f32 0.0, %v8153
      %v8155 = vpop.f32.mrf.mxu0
      %v8156 = vadd.f32 0.0, %v8155
      %8157 = vmatmul.bf16.gmra.mxu0 %v8024
      %v8158 = vpop.f32.mrf.mxu0
      %v8159 = vadd.f32 0.0, %v8158
      %v8160 = vpop.f32.mrf.mxu0
      %v8161 = vadd.f32 0.0, %v8160
      %8162 = vmatmul.bf16.gmra.mxu0 %v8026
      %v8163 = vpop.f32.mrf.mxu0
      %v8164 = vadd.f32 0.0, %v8163
      %v8165 = vpop.f32.mrf.mxu0
      %v8166 = vadd.f32 0.0, %v8165
      %8167 = vmatmul.bf16.gmra.mxu0 %v8028
      %v8168 = vpop.f32.mrf.mxu0
      %v8169 = vadd.f32 0.0, %v8168
      %v8170 = vpop.f32.mrf.mxu0
      %v8171 = vadd.f32 0.0, %v8170
      %8172 = vmatmul.bf16.gmra.mxu0 %v8030
      %v8173 = vpop.f32.mrf.mxu0
      %v8174 = vadd.f32 0.0, %v8173
      %v8175 = vpop.f32.mrf.mxu0
      %v8176 = vadd.f32 0.0, %v8175
      %8177 = vmatmul.bf16.gmra.mxu0 %v8032
      %v8178 = vpop.f32.mrf.mxu0
      %v8179 = vadd.f32 0.0, %v8178
      %v8180 = vpop.f32.mrf.mxu0
      %v8181 = vadd.f32 0.0, %v8180
      %8182 = vmatmul.bf16.gmra.mxu0 %v8034
      %v8183 = vpop.f32.mrf.mxu0
      %v8184 = vadd.f32 0.0, %v8183
      %v8185 = vpop.f32.mrf.mxu0
      %v8186 = vadd.f32 0.0, %v8185
      %8187 = vmatmul.bf16.gmra.mxu0 %v8036
      %v8188 = vpop.f32.mrf.mxu0
      %v8189 = vadd.f32 0.0, %v8188
      %v8190 = vpop.f32.mrf.mxu0
      %v8191 = vadd.f32 0.0, %v8190
      %8192 = vmatmul.bf16.gmra.mxu0 %v8038
      %v8193 = vpop.f32.mrf.mxu0
      %v8194 = vadd.f32 0.0, %v8193
      %v8195 = vpop.f32.mrf.mxu0
      %v8196 = vadd.f32 0.0, %v8195
      %8197 = vmatmul.bf16.gmra.mxu0 %v8040
      %v8198 = vpop.f32.mrf.mxu0
      %v8199 = vadd.f32 0.0, %v8198
      %v8200 = vpop.f32.mrf.mxu0
      %v8201 = vadd.f32 0.0, %v8200
      %8202 = vmatmul.bf16.gmra.mxu0 %v8042
      %v8203 = vpop.f32.mrf.mxu0
      %v8204 = vadd.f32 0.0, %v8203
      %v8205 = vpop.f32.mrf.mxu0
      %v8206 = vadd.f32 0.0, %v8205
      %8207 = vmatmul.bf16.gmra.mxu0 %v8044
      %v8208 = vpop.f32.mrf.mxu0
      %v8209 = vadd.f32 0.0, %v8208
      %v8210 = vpop.f32.mrf.mxu0
      %v8211 = vadd.f32 0.0, %v8210
      %8212 = vmatmul.bf16.gmra.mxu0 %v8046
      %v8213 = vpop.f32.mrf.mxu0
      %v8214 = vadd.f32 0.0, %v8213
      %v8215 = vpop.f32.mrf.mxu0
      %v8216 = vadd.f32 0.0, %v8215
      %8217 = vmatmul.bf16.gmra.mxu0 %v8048
      %v8218 = vpop.f32.mrf.mxu0
      %v8219 = vadd.f32 0.0, %v8218
      %v8220 = vpop.f32.mrf.mxu0
      %v8221 = vadd.f32 0.0, %v8220
      %8222 = vmatmul.bf16.gmra.mxu0 %v8050
      %v8223 = vpop.f32.mrf.mxu0
      %v8224 = vadd.f32 0.0, %v8223
      %v8225 = vpop.f32.mrf.mxu0
      %v8226 = vadd.f32 0.0, %v8225
      %8227 = vdwg.mxu0
      %v8228 = vadd.f32 %v7949, %v8129
      %v8229 = vadd.f32 %v7950, %v8131
      %v8230 = vadd.f32 %v7951, %v8134
      %v8231 = vadd.f32 %v7952, %v8136
      %v8232 = vadd.f32 %v7953, %v8139
      %v8233 = vadd.f32 %v7954, %v8141
      %v8234 = vadd.f32 %v7955, %v8144
      %v8235 = vadd.f32 %v7956, %v8146
      %v8236 = vadd.f32 %v7957, %v8149
      %v8237 = vadd.f32 %v7958, %v8151
      %v8238 = vadd.f32 %v7959, %v8154
      %v8239 = vadd.f32 %v7960, %v8156
      %v8240 = vadd.f32 %v7961, %v8159
      %v8241 = vadd.f32 %v7962, %v8161
      %v8242 = vadd.f32 %v7963, %v8164
      %v8243 = vadd.f32 %v7964, %v8166
      %v8244 = vadd.f32 %v7965, %v8169
      %v8245 = vadd.f32 %v7966, %v8171
      %v8246 = vadd.f32 %v7967, %v8174
      %v8247 = vadd.f32 %v7968, %v8176
      %v8248 = vadd.f32 %v7969, %v8179
      %v8249 = vadd.f32 %v7970, %v8181
      %v8250 = vadd.f32 %v7971, %v8184
      %v8251 = vadd.f32 %v7972, %v8186
      %v8252 = vadd.f32 %v7973, %v8189
      %v8253 = vadd.f32 %v7974, %v8191
      %v8254 = vadd.f32 %v7975, %v8194
      %v8255 = vadd.f32 %v7976, %v8196
      %v8256 = vadd.f32 %v7977, %v8199
      %v8257 = vadd.f32 %v7978, %v8201
      %v8258 = vadd.f32 %v7979, %v8204
      %v8259 = vadd.f32 %v7980, %v8206
      %v8260 = vadd.f32 %v7981, %v8209
      %v8261 = vadd.f32 %v7982, %v8211
      %v8262 = vadd.f32 %v7983, %v8214
      %v8263 = vadd.f32 %v7984, %v8216
      %v8264 = vadd.f32 %v7985, %v8219
      %v8265 = vadd.f32 %v7986, %v8221
      %v8266 = vadd.f32 %v7987, %v8224
      %v8267 = vadd.f32 %v7988, %v8226
      %v8268 = vld [vmem:[#allocation2 + $0x14] sm:$0xf]
      %v8269 = vld [vmem:[#allocation2 + $0x18] sm:$0xf]
      %v8270 = vld [vmem:[#allocation2 + $0x1c] sm:$0xf]
      %v8271 = vld [vmem:[#allocation2 + $0x20] sm:$0xf]
      %v8272 = vld [vmem:[#allocation2 + $0x24] sm:$0xf]
      %v8273 = vld [vmem:[#allocation2 + $0x28] sm:$0xf]
      %v8274 = vld [vmem:[#allocation2 + $0x2c] sm:$0xf]
      %v8275 = vld [vmem:[#allocation2 + $0x30] sm:$0xf]
      %v8276 = vld [vmem:[#allocation2 + $0x34] sm:$0xf]
      %v8277 = vld [vmem:[#allocation2 + $0x38] sm:$0xf]
      %v8278 = vld [vmem:[#allocation2 + $0x3c] sm:$0xf]
      %v8279 = vld [vmem:[#allocation2 + $0x40] sm:$0xf]
      %v8280 = vld [vmem:[#allocation2 + $0x44] sm:$0xf]
      %v8281 = vld [vmem:[#allocation2 + $0x48] sm:$0xf]
      %v8282 = vld [vmem:[#allocation2 + $0x4c] sm:$0xf]
      %v8283 = vld [vmem:[#allocation2 + $0x50] sm:$0xf]
      %v8284 = vld [vmem:[#allocation2 + $0x54] sm:$0xf]
      %v8285 = vld [vmem:[#allocation2 + $0x58] sm:$0xf]
      %v8286 = vld [vmem:[#allocation2 + $0x5c] sm:$0xf]
      %v8287 = vld [vmem:[#allocation2 + $0x60] sm:$0xf]
      %v8288 = vld [vmem:[#allocation2 + $0x64] sm:$0xf]
      %v8289 = vld [vmem:[#allocation2 + $0x68] sm:$0xf]
      %v8290 = vld [vmem:[#allocation2 + $0x6c] sm:$0xf]
      %v8291 = vld [vmem:[#allocation2 + $0x70] sm:$0xf]
      %v8292 = vld [vmem:[#allocation2 + $0x74] sm:$0xf]
      %v8293 = vld [vmem:[#allocation2 + $0x78] sm:$0xf]
      %v8294 = vld [vmem:[#allocation2 + $0x7c] sm:$0xf]
      %v8295 = vld [vmem:[#allocation2 + $0x80] sm:$0xf]
      %v8296 = vld [vmem:[#allocation2 + $0x84] sm:$0xf]
      %v8297 = vld [vmem:[#allocation2 + $0x88] sm:$0xf]
      %v8298 = vld [vmem:[#allocation2 + $0x8c] sm:$0xf]
      %v8299 = vld [vmem:[#allocation2 + $0x90] sm:$0xf]
      %v8300 = vld [vmem:[#allocation2 + $0x94] sm:$0xf]
      %v8301 = vld [vmem:[#allocation2 + $0x98] sm:$0xf]
      %v8302 = vld [vmem:[#allocation2 + $0x9c] sm:$0xf]
      %v8303 = vld [vmem:[#allocation2 + $0xa0] sm:$0xf]
      %v8304 = vld [vmem:[#allocation2 + $0xa4] sm:$0xf]
      %v8305 = vld [vmem:[#allocation2 + $0xa8] sm:$0xf]
      %v8306 = vld [vmem:[#allocation2 + $0xac] sm:$0xf]
      %v8307 = vld [vmem:[#allocation2 + $0xb0] sm:$0xf]
      %s8308 = scalar_lea.vmem %s3, 384
      %v8309 = vld [vmem:[%s8308] sm:$0xf]
      %v8310 = vld [vmem:[%s8308 + $0x4] sm:$0xf]
      %v8311 = vld [vmem:[%s8308 + $0x8] sm:$0xf]
      %v8312 = vld [vmem:[%s8308 + $0xc] sm:$0xf]
      %v8313 = vld [vmem:[%s8308 + $0x10] sm:$0xf]
      %v8314 = vld [vmem:[%s8308 + $0x14] sm:$0xf]
      %v8315 = vld [vmem:[%s8308 + $0x18] sm:$0xf]
      %v8316 = vld [vmem:[%s8308 + $0x1c] sm:$0xf]
      %v8317 = vld [vmem:[%s8308 + $0x20] sm:$0xf]
      %v8318 = vld [vmem:[%s8308 + $0x24] sm:$0xf]
      %v8319 = vld [vmem:[%s8308 + $0x28] sm:$0xf]
      %v8320 = vld [vmem:[%s8308 + $0x2c] sm:$0xf]
      %v8321 = vld [vmem:[%s8308 + $0x30] sm:$0xf]
      %v8322 = vld [vmem:[%s8308 + $0x34] sm:$0xf]
      %v8323 = vld [vmem:[%s8308 + $0x38] sm:$0xf]
      %v8324 = vld [vmem:[%s8308 + $0x3c] sm:$0xf]
      %v8365 = vunpack.c.l.b16 %v8268
      %v8366 = vunpack.c.l.b16 %v8269
      %v8367 = vunpack.c.l.b16 %v8270
      %v8368 = vunpack.c.l.b16 %v8271
      %v8369 = vunpack.c.l.b16 %v8272
      %v8370 = vunpack.c.l.b16 %v8273
      %v8371 = vunpack.c.l.b16 %v8274
      %v8372 = vunpack.c.l.b16 %v8275
      %v8373 = vunpack.c.l.b16 %v8276
      %v8374 = vunpack.c.l.b16 %v8277
      %v8375 = vunpack.c.l.b16 %v8278
      %v8376 = vunpack.c.l.b16 %v8279
      %v8377 = vunpack.c.l.b16 %v8280
      %v8378 = vunpack.c.l.b16 %v8281
      %v8379 = vunpack.c.l.b16 %v8282
      %v8380 = vunpack.c.l.b16 %v8283
      %v8381 = vunpack.c.l.b16 %v8284
      %v8382 = vunpack.c.l.b16 %v8285
      %v8383 = vunpack.c.l.b16 %v8286
      %v8384 = vunpack.c.l.b16 %v8287
      %v8385 = vunpack.c.l.b16 %v8288
      %v8386 = vunpack.c.l.b16 %v8289
      %v8387 = vunpack.c.l.b16 %v8290
      %v8388 = vunpack.c.l.b16 %v8291
      %v8389 = vunpack.c.l.b16 %v8292
      %v8390 = vunpack.c.l.b16 %v8293
      %v8391 = vunpack.c.l.b16 %v8294
      %v8392 = vunpack.c.l.b16 %v8295
      %v8393 = vunpack.c.l.b16 %v8296
      %v8394 = vunpack.c.l.b16 %v8297
      %v8395 = vunpack.c.l.b16 %v8298
      %v8396 = vunpack.c.l.b16 %v8299
      %v8397 = vunpack.c.l.b16 %v8300
      %v8398 = vunpack.c.l.b16 %v8301
      %v8399 = vunpack.c.l.b16 %v8302
      %v8400 = vunpack.c.l.b16 %v8303
      %v8401 = vunpack.c.l.b16 %v8304
      %v8402 = vunpack.c.l.b16 %v8305
      %v8403 = vunpack.c.l.b16 %v8306
      %v8404 = vunpack.c.l.b16 %v8307
      %v8405 = vpack.c.b16 %v8366, %v8365
      %v8406 = vpack.c.b16 %v8368, %v8367
      %v8407 = vpack.c.b16 %v8370, %v8369
      %v8408 = vpack.c.b16 %v8372, %v8371
      %v8409 = vpack.c.b16 %v8374, %v8373
      %v8410 = vpack.c.b16 %v8376, %v8375
      %v8411 = vpack.c.b16 %v8378, %v8377
      %v8412 = vpack.c.b16 %v8380, %v8379
      %v8413 = vpack.c.b16 %v8382, %v8381
      %v8414 = vpack.c.b16 %v8384, %v8383
      %v8415 = vpack.c.b16 %v8386, %v8385
      %v8416 = vpack.c.b16 %v8388, %v8387
      %v8417 = vpack.c.b16 %v8390, %v8389
      %v8418 = vpack.c.b16 %v8392, %v8391
      %v8419 = vpack.c.b16 %v8394, %v8393
      %v8420 = vpack.c.b16 %v8396, %v8395
      %v8421 = vpack.c.b16 %v8398, %v8397
      %v8422 = vpack.c.b16 %v8400, %v8399
      %v8423 = vpack.c.b16 %v8402, %v8401
      %v8424 = vpack.c.b16 %v8404, %v8403
      %v8461 = vunpack.c.l.b16 %v8309
      %v8462 = vunpack.c.l.b16 %v8310
      %v8463 = vunpack.c.l.b16 %v8311
      %v8464 = vunpack.c.l.b16 %v8312
      %v8465 = vunpack.c.l.b16 %v8313
      %v8466 = vunpack.c.l.b16 %v8314
      %v8467 = vunpack.c.l.b16 %v8315
      %v8468 = vunpack.c.l.b16 %v8316
      %v8469 = vunpack.c.l.b16 %v8317
      %v8470 = vunpack.c.l.b16 %v8318
      %v8471 = vunpack.c.l.b16 %v8319
      %v8472 = vunpack.c.l.b16 %v8320
      %v8473 = vunpack.c.l.b16 %v8321
      %v8474 = vunpack.c.l.b16 %v8322
      %v8475 = vunpack.c.l.b16 %v8323
      %v8476 = vunpack.c.l.b16 %v8324
      %v8477 = vpack.c.b16 %v8462, %v8461
      %v8478 = vpack.c.b16 %v8464, %v8463
      %v8479 = vpack.c.b16 %v8466, %v8465
      %v8480 = vpack.c.b16 %v8468, %v8467
      %v8481 = vpack.c.b16 %v8470, %v8469
      %v8482 = vpack.c.b16 %v8472, %v8471
      %v8483 = vpack.c.b16 %v8474, %v8473
      %v8484 = vpack.c.b16 %v8476, %v8475
      %8493 = vmatpush.bf16.msra.mxu0 %v8484
      %8494 = vmatpush.bf16.msra.mxu0 %v8483
      %8495 = vmatpush.bf16.msra.mxu0 %v8482
      %8496 = vmatpush.bf16.msra.mxu0 %v8481
      %8497 = vmatpush.bf16.msra.mxu0 %v8480
      %8498 = vmatpush.bf16.msra.mxu0 %v8479
      %8499 = vmatpush.bf16.msra.mxu0 %v8478
      %8500 = vmatpush.bf16.msra.mxu0 %v8477
      %8501 = vmatmul.bf16.gmra.mxu0 %v8405
      %v8502 = vpop.f32.mrf.mxu0
      %v8503 = vadd.f32 0.0, %v8502
      %v8504 = vpop.f32.mrf.mxu0
      %v8505 = vadd.f32 0.0, %v8504
      %8506 = vmatmul.bf16.gmra.mxu0 %v8406
      %v8507 = vpop.f32.mrf.mxu0
      %v8508 = vadd.f32 0.0, %v8507
      %v8509 = vpop.f32.mrf.mxu0
      %v8510 = vadd.f32 0.0, %v8509
      %8511 = vmatmul.bf16.gmra.mxu0 %v8407
      %v8512 = vpop.f32.mrf.mxu0
      %v8513 = vadd.f32 0.0, %v8512
      %v8514 = vpop.f32.mrf.mxu0
      %v8515 = vadd.f32 0.0, %v8514
      %8516 = vmatmul.bf16.gmra.mxu0 %v8408
      %v8517 = vpop.f32.mrf.mxu0
      %v8518 = vadd.f32 0.0, %v8517
      %v8519 = vpop.f32.mrf.mxu0
      %v8520 = vadd.f32 0.0, %v8519
      %8521 = vmatmul.bf16.gmra.mxu0 %v8409
      %v8522 = vpop.f32.mrf.mxu0
      %v8523 = vadd.f32 0.0, %v8522
      %v8524 = vpop.f32.mrf.mxu0
      %v8525 = vadd.f32 0.0, %v8524
      %8526 = vmatmul.bf16.gmra.mxu0 %v8410
      %v8527 = vpop.f32.mrf.mxu0
      %v8528 = vadd.f32 0.0, %v8527
      %v8529 = vpop.f32.mrf.mxu0
      %v8530 = vadd.f32 0.0, %v8529
      %8531 = vmatmul.bf16.gmra.mxu0 %v8411
      %v8532 = vpop.f32.mrf.mxu0
      %v8533 = vadd.f32 0.0, %v8532
      %v8534 = vpop.f32.mrf.mxu0
      %v8535 = vadd.f32 0.0, %v8534
      %8536 = vmatmul.bf16.gmra.mxu0 %v8412
      %v8537 = vpop.f32.mrf.mxu0
      %v8538 = vadd.f32 0.0, %v8537
      %v8539 = vpop.f32.mrf.mxu0
      %v8540 = vadd.f32 0.0, %v8539
      %8541 = vmatmul.bf16.gmra.mxu0 %v8413
      %v8542 = vpop.f32.mrf.mxu0
      %v8543 = vadd.f32 0.0, %v8542
      %v8544 = vpop.f32.mrf.mxu0
      %v8545 = vadd.f32 0.0, %v8544
      %8546 = vmatmul.bf16.gmra.mxu0 %v8414
      %v8547 = vpop.f32.mrf.mxu0
      %v8548 = vadd.f32 0.0, %v8547
      %v8549 = vpop.f32.mrf.mxu0
      %v8550 = vadd.f32 0.0, %v8549
      %8551 = vmatmul.bf16.gmra.mxu0 %v8415
      %v8552 = vpop.f32.mrf.mxu0
      %v8553 = vadd.f32 0.0, %v8552
      %v8554 = vpop.f32.mrf.mxu0
      %v8555 = vadd.f32 0.0, %v8554
      %8556 = vmatmul.bf16.gmra.mxu0 %v8416
      %v8557 = vpop.f32.mrf.mxu0
      %v8558 = vadd.f32 0.0, %v8557
      %v8559 = vpop.f32.mrf.mxu0
      %v8560 = vadd.f32 0.0, %v8559
      %8561 = vmatmul.bf16.gmra.mxu0 %v8417
      %v8562 = vpop.f32.mrf.mxu0
      %v8563 = vadd.f32 0.0, %v8562
      %v8564 = vpop.f32.mrf.mxu0
      %v8565 = vadd.f32 0.0, %v8564
      %8566 = vmatmul.bf16.gmra.mxu0 %v8418
      %v8567 = vpop.f32.mrf.mxu0
      %v8568 = vadd.f32 0.0, %v8567
      %v8569 = vpop.f32.mrf.mxu0
      %v8570 = vadd.f32 0.0, %v8569
      %8571 = vmatmul.bf16.gmra.mxu0 %v8419
      %v8572 = vpop.f32.mrf.mxu0
      %v8573 = vadd.f32 0.0, %v8572
      %v8574 = vpop.f32.mrf.mxu0
      %v8575 = vadd.f32 0.0, %v8574
      %8576 = vmatmul.bf16.gmra.mxu0 %v8420
      %v8577 = vpop.f32.mrf.mxu0
      %v8578 = vadd.f32 0.0, %v8577
      %v8579 = vpop.f32.mrf.mxu0
      %v8580 = vadd.f32 0.0, %v8579
      %8581 = vmatmul.bf16.gmra.mxu0 %v8421
      %v8582 = vpop.f32.mrf.mxu0
      %v8583 = vadd.f32 0.0, %v8582
      %v8584 = vpop.f32.mrf.mxu0
      %v8585 = vadd.f32 0.0, %v8584
      %8586 = vmatmul.bf16.gmra.mxu0 %v8422
      %v8587 = vpop.f32.mrf.mxu0
      %v8588 = vadd.f32 0.0, %v8587
      %v8589 = vpop.f32.mrf.mxu0
      %v8590 = vadd.f32 0.0, %v8589
      %8591 = vmatmul.bf16.gmra.mxu0 %v8423
      %v8592 = vpop.f32.mrf.mxu0
      %v8593 = vadd.f32 0.0, %v8592
      %v8594 = vpop.f32.mrf.mxu0
      %v8595 = vadd.f32 0.0, %v8594
      %8596 = vmatmul.bf16.gmra.mxu0 %v8424
      %v8597 = vpop.f32.mrf.mxu0
      %v8598 = vadd.f32 0.0, %v8597
      %v8599 = vpop.f32.mrf.mxu0
      %v8600 = vadd.f32 0.0, %v8599
      %8601 = vdwg.mxu0
      %v8602 = vadd.f32 %v8228, %v8503
      %v8603 = vadd.f32 %v8229, %v8505
      %v8604 = vadd.f32 %v8230, %v8508
      %v8605 = vadd.f32 %v8231, %v8510
      %v8606 = vadd.f32 %v8232, %v8513
      %v8607 = vadd.f32 %v8233, %v8515
      %v8608 = vadd.f32 %v8234, %v8518
      %v8609 = vadd.f32 %v8235, %v8520
      %v8610 = vadd.f32 %v8236, %v8523
      %v8611 = vadd.f32 %v8237, %v8525
      %v8612 = vadd.f32 %v8238, %v8528
      %v8613 = vadd.f32 %v8239, %v8530
      %v8614 = vadd.f32 %v8240, %v8533
      %v8615 = vadd.f32 %v8241, %v8535
      %v8616 = vadd.f32 %v8242, %v8538
      %v8617 = vadd.f32 %v8243, %v8540
      %v8618 = vadd.f32 %v8244, %v8543
      %v8619 = vadd.f32 %v8245, %v8545
      %v8620 = vadd.f32 %v8246, %v8548
      %v8621 = vadd.f32 %v8247, %v8550
      %v8622 = vadd.f32 %v8248, %v8553
      %v8623 = vadd.f32 %v8249, %v8555
      %v8624 = vadd.f32 %v8250, %v8558
      %v8625 = vadd.f32 %v8251, %v8560
      %v8626 = vadd.f32 %v8252, %v8563
      %v8627 = vadd.f32 %v8253, %v8565
      %v8628 = vadd.f32 %v8254, %v8568
      %v8629 = vadd.f32 %v8255, %v8570
      %v8630 = vadd.f32 %v8256, %v8573
      %v8631 = vadd.f32 %v8257, %v8575
      %v8632 = vadd.f32 %v8258, %v8578
      %v8633 = vadd.f32 %v8259, %v8580
      %v8634 = vadd.f32 %v8260, %v8583
      %v8635 = vadd.f32 %v8261, %v8585
      %v8636 = vadd.f32 %v8262, %v8588
      %v8637 = vadd.f32 %v8263, %v8590
      %v8638 = vadd.f32 %v8264, %v8593
      %v8639 = vadd.f32 %v8265, %v8595
      %v8640 = vadd.f32 %v8266, %v8598
      %v8641 = vadd.f32 %v8267, %v8600
      %v8642 = vld [vmem:[#allocation2 + $0x14] sm:$0xf]
      %v8643 = vld [vmem:[#allocation2 + $0x18] sm:$0xf]
      %v8644 = vld [vmem:[#allocation2 + $0x1c] sm:$0xf]
      %v8645 = vld [vmem:[#allocation2 + $0x20] sm:$0xf]
      %v8646 = vld [vmem:[#allocation2 + $0x24] sm:$0xf]
      %v8647 = vld [vmem:[#allocation2 + $0x28] sm:$0xf]
      %v8648 = vld [vmem:[#allocation2 + $0x2c] sm:$0xf]
      %v8649 = vld [vmem:[#allocation2 + $0x30] sm:$0xf]
      %v8650 = vld [vmem:[#allocation2 + $0x34] sm:$0xf]
      %v8651 = vld [vmem:[#allocation2 + $0x38] sm:$0xf]
      %v8652 = vld [vmem:[#allocation2 + $0x3c] sm:$0xf]
      %v8653 = vld [vmem:[#allocation2 + $0x40] sm:$0xf]
      %v8654 = vld [vmem:[#allocation2 + $0x44] sm:$0xf]
      %v8655 = vld [vmem:[#allocation2 + $0x48] sm:$0xf]
      %v8656 = vld [vmem:[#allocation2 + $0x4c] sm:$0xf]
      %v8657 = vld [vmem:[#allocation2 + $0x50] sm:$0xf]
      %v8658 = vld [vmem:[#allocation2 + $0x54] sm:$0xf]
      %v8659 = vld [vmem:[#allocation2 + $0x58] sm:$0xf]
      %v8660 = vld [vmem:[#allocation2 + $0x5c] sm:$0xf]
      %v8661 = vld [vmem:[#allocation2 + $0x60] sm:$0xf]
      %v8662 = vld [vmem:[#allocation2 + $0x64] sm:$0xf]
      %v8663 = vld [vmem:[#allocation2 + $0x68] sm:$0xf]
      %v8664 = vld [vmem:[#allocation2 + $0x6c] sm:$0xf]
      %v8665 = vld [vmem:[#allocation2 + $0x70] sm:$0xf]
      %v8666 = vld [vmem:[#allocation2 + $0x74] sm:$0xf]
      %v8667 = vld [vmem:[#allocation2 + $0x78] sm:$0xf]
      %v8668 = vld [vmem:[#allocation2 + $0x7c] sm:$0xf]
      %v8669 = vld [vmem:[#allocation2 + $0x80] sm:$0xf]
      %v8670 = vld [vmem:[#allocation2 + $0x84] sm:$0xf]
      %v8671 = vld [vmem:[#allocation2 + $0x88] sm:$0xf]
      %v8672 = vld [vmem:[#allocation2 + $0x8c] sm:$0xf]
      %v8673 = vld [vmem:[#allocation2 + $0x90] sm:$0xf]
      %v8674 = vld [vmem:[#allocation2 + $0x94] sm:$0xf]
      %v8675 = vld [vmem:[#allocation2 + $0x98] sm:$0xf]
      %v8676 = vld [vmem:[#allocation2 + $0x9c] sm:$0xf]
      %v8677 = vld [vmem:[#allocation2 + $0xa0] sm:$0xf]
      %v8678 = vld [vmem:[#allocation2 + $0xa4] sm:$0xf]
      %v8679 = vld [vmem:[#allocation2 + $0xa8] sm:$0xf]
      %v8680 = vld [vmem:[#allocation2 + $0xac] sm:$0xf]
      %v8681 = vld [vmem:[#allocation2 + $0xb0] sm:$0xf]
      %v8682 = vld [vmem:[#allocation2 + $0xb4] sm:$0x1]
      %s8683 = scalar_lea.vmem %s3, 448
      %v8684 = vld [vmem:[%s8683] sm:$0xf]
      %v8685 = vld [vmem:[%s8683 + $0x4] sm:$0xf]
      %v8686 = vld [vmem:[%s8683 + $0x8] sm:$0xf]
      %v8687 = vld [vmem:[%s8683 + $0xc] sm:$0xf]
      %v8688 = vld [vmem:[%s8683 + $0x10] sm:$0xf]
      %v8689 = vld [vmem:[%s8683 + $0x14] sm:$0xf]
      %v8690 = vld [vmem:[%s8683 + $0x18] sm:$0xf]
      %v8691 = vld [vmem:[%s8683 + $0x1c] sm:$0xf]
      %v8692 = vld [vmem:[%s8683 + $0x20] sm:$0xf]
      %v8693 = vld [vmem:[%s8683 + $0x24] sm:$0xf]
      %v8694 = vld [vmem:[%s8683 + $0x28] sm:$0xf]
      %v8695 = vld [vmem:[%s8683 + $0x2c] sm:$0xf]
      %v8696 = vld [vmem:[%s8683 + $0x30] sm:$0xf]
      %v8697 = vld [vmem:[%s8683 + $0x34] sm:$0xf]
      %v8698 = vld [vmem:[%s8683 + $0x38] sm:$0xf]
      %v8699 = vld [vmem:[%s8683 + $0x3c] sm:$0xf]
      %v8741 = vunpack.c.l.b16 %v8642
      %v8742 = vunpack.c.l.b16 %v8643
      %v8743 = vunpack.c.l.b16 %v8644
      %v8744 = vunpack.c.l.b16 %v8645
      %v8745 = vunpack.c.l.b16 %v8646
      %v8746 = vunpack.c.l.b16 %v8647
      %v8747 = vunpack.c.l.b16 %v8648
      %v8748 = vunpack.c.l.b16 %v8649
      %v8749 = vunpack.c.l.b16 %v8650
      %v8750 = vunpack.c.l.b16 %v8651
      %v8751 = vunpack.c.l.b16 %v8652
      %v8752 = vunpack.c.l.b16 %v8653
      %v8753 = vunpack.c.l.b16 %v8654
      %v8754 = vunpack.c.l.b16 %v8655
      %v8755 = vunpack.c.l.b16 %v8656
      %v8756 = vunpack.c.l.b16 %v8657
      %v8757 = vunpack.c.l.b16 %v8658
      %v8758 = vunpack.c.l.b16 %v8659
      %v8759 = vunpack.c.l.b16 %v8660
      %v8760 = vunpack.c.l.b16 %v8661
      %v8761 = vunpack.c.l.b16 %v8662
      %v8762 = vunpack.c.l.b16 %v8663
      %v8763 = vunpack.c.l.b16 %v8664
      %v8764 = vunpack.c.l.b16 %v8665
      %v8765 = vunpack.c.l.b16 %v8666
      %v8766 = vunpack.c.l.b16 %v8667
      %v8767 = vunpack.c.l.b16 %v8668
      %v8768 = vunpack.c.l.b16 %v8669
      %v8769 = vunpack.c.l.b16 %v8670
      %v8770 = vunpack.c.l.b16 %v8671
      %v8771 = vunpack.c.l.b16 %v8672
      %v8772 = vunpack.c.l.b16 %v8673
      %v8773 = vunpack.c.l.b16 %v8674
      %v8774 = vunpack.c.l.b16 %v8675
      %v8775 = vunpack.c.l.b16 %v8676
      %v8776 = vunpack.c.l.b16 %v8677
      %v8777 = vunpack.c.l.b16 %v8678
      %v8778 = vunpack.c.l.b16 %v8679
      %v8779 = vunpack.c.l.b16 %v8680
      %v8780 = vunpack.c.l.b16 %v8681
      %v8781 = vunpack.c.l.b16 %v8682
      %v8782 = vpack.c.b16 %v8742, %v8741
      %v8783 = vpack.c.b16 %v8744, %v8743
      %v8784 = vpack.c.b16 %v8746, %v8745
      %v8785 = vpack.c.b16 %v8748, %v8747
      %v8786 = vpack.c.b16 %v8750, %v8749
      %v8787 = vpack.c.b16 %v8752, %v8751
      %v8788 = vpack.c.b16 %v8754, %v8753
      %v8789 = vpack.c.b16 %v8756, %v8755
      %v8790 = vpack.c.b16 %v8758, %v8757
      %v8791 = vpack.c.b16 %v8760, %v8759
      %v8792 = vpack.c.b16 %v8762, %v8761
      %v8793 = vpack.c.b16 %v8764, %v8763
      %v8794 = vpack.c.b16 %v8766, %v8765
      %v8795 = vpack.c.b16 %v8768, %v8767
      %v8796 = vpack.c.b16 %v8770, %v8769
      %v8797 = vpack.c.b16 %v8772, %v8771
      %v8798 = vpack.c.b16 %v8774, %v8773
      %v8799 = vpack.c.b16 %v8776, %v8775
      %v8800 = vpack.c.b16 %v8778, %v8777
      %v8801 = vpack.c.b16 %v8780, %v8779
      %v8802 = vpack.c.b16 %v8781, %v8781
      %v8804 = vshrl.u32 %v8782, 16
      %v8806 = vshll.u32 %v8782, 16
      %v8808 = vrot.slane %v8806, 1
      %v8809 = vor.u32 %v8804, %v8808
      %v8811 = vshll.u32 %v8783, 16
      %v8813 = vrot.slane %v8811, 1
      %v8814 = vsel %vm605, %v8809, %v8813
      %v8815 = vshrl.u32 %v8783, 16
      %v8817 = vor.u32 %v8815, %v8813
      %v8819 = vshll.u32 %v8784, 16
      %v8821 = vrot.slane %v8819, 1
      %v8822 = vsel %vm605, %v8817, %v8821
      %v8823 = vshrl.u32 %v8784, 16
      %v8825 = vor.u32 %v8823, %v8821
      %v8827 = vshll.u32 %v8785, 16
      %v8829 = vrot.slane %v8827, 1
      %v8830 = vsel %vm605, %v8825, %v8829
      %v8831 = vshrl.u32 %v8785, 16
      %v8833 = vor.u32 %v8831, %v8829
      %v8835 = vshll.u32 %v8786, 16
      %v8837 = vrot.slane %v8835, 1
      %v8838 = vsel %vm605, %v8833, %v8837
      %v8839 = vshrl.u32 %v8786, 16
      %v8841 = vor.u32 %v8839, %v8837
      %v8843 = vshll.u32 %v8787, 16
      %v8845 = vrot.slane %v8843, 1
      %v8846 = vsel %vm605, %v8841, %v8845
      %v8847 = vshrl.u32 %v8787, 16
      %v8849 = vor.u32 %v8847, %v8845
      %v8851 = vshll.u32 %v8788, 16
      %v8853 = vrot.slane %v8851, 1
      %v8854 = vsel %vm605, %v8849, %v8853
      %v8855 = vshrl.u32 %v8788, 16
      %v8857 = vor.u32 %v8855, %v8853
      %v8859 = vshll.u32 %v8789, 16
      %v8861 = vrot.slane %v8859, 1
      %v8862 = vsel %vm605, %v8857, %v8861
      %v8863 = vshrl.u32 %v8789, 16
      %v8865 = vor.u32 %v8863, %v8861
      %v8867 = vshll.u32 %v8790, 16
      %v8869 = vrot.slane %v8867, 1
      %v8870 = vsel %vm605, %v8865, %v8869
      %v8871 = vshrl.u32 %v8790, 16
      %v8873 = vor.u32 %v8871, %v8869
      %v8875 = vshll.u32 %v8791, 16
      %v8877 = vrot.slane %v8875, 1
      %v8878 = vsel %vm605, %v8873, %v8877
      %v8879 = vshrl.u32 %v8791, 16
      %v8881 = vor.u32 %v8879, %v8877
      %v8883 = vshll.u32 %v8792, 16
      %v8885 = vrot.slane %v8883, 1
      %v8886 = vsel %vm605, %v8881, %v8885
      %v8887 = vshrl.u32 %v8792, 16
      %v8889 = vor.u32 %v8887, %v8885
      %v8891 = vshll.u32 %v8793, 16
      %v8893 = vrot.slane %v8891, 1
      %v8894 = vsel %vm605, %v8889, %v8893
      %v8895 = vshrl.u32 %v8793, 16
      %v8897 = vor.u32 %v8895, %v8893
      %v8899 = vshll.u32 %v8794, 16
      %v8901 = vrot.slane %v8899, 1
      %v8902 = vsel %vm605, %v8897, %v8901
      %v8903 = vshrl.u32 %v8794, 16
      %v8905 = vor.u32 %v8903, %v8901
      %v8907 = vshll.u32 %v8795, 16
      %v8909 = vrot.slane %v8907, 1
      %v8910 = vsel %vm605, %v8905, %v8909
      %v8911 = vshrl.u32 %v8795, 16
      %v8913 = vor.u32 %v8911, %v8909
      %v8915 = vshll.u32 %v8796, 16
      %v8917 = vrot.slane %v8915, 1
      %v8918 = vsel %vm605, %v8913, %v8917
      %v8919 = vshrl.u32 %v8796, 16
      %v8921 = vor.u32 %v8919, %v8917
      %v8923 = vshll.u32 %v8797, 16
      %v8925 = vrot.slane %v8923, 1
      %v8926 = vsel %vm605, %v8921, %v8925
      %v8927 = vshrl.u32 %v8797, 16
      %v8929 = vor.u32 %v8927, %v8925
      %v8931 = vshll.u32 %v8798, 16
      %v8933 = vrot.slane %v8931, 1
      %v8934 = vsel %vm605, %v8929, %v8933
      %v8935 = vshrl.u32 %v8798, 16
      %v8937 = vor.u32 %v8935, %v8933
      %v8939 = vshll.u32 %v8799, 16
      %v8941 = vrot.slane %v8939, 1
      %v8942 = vsel %vm605, %v8937, %v8941
      %v8943 = vshrl.u32 %v8799, 16
      %v8945 = vor.u32 %v8943, %v8941
      %v8947 = vshll.u32 %v8800, 16
      %v8949 = vrot.slane %v8947, 1
      %v8950 = vsel %vm605, %v8945, %v8949
      %v8951 = vshrl.u32 %v8800, 16
      %v8953 = vor.u32 %v8951, %v8949
      %v8955 = vshll.u32 %v8801, 16
      %v8957 = vrot.slane %v8955, 1
      %v8958 = vsel %vm605, %v8953, %v8957
      %v8959 = vshrl.u32 %v8801, 16
      %v8961 = vor.u32 %v8959, %v8957
      %v8963 = vshll.u32 %v8802, 16
      %v8965 = vrot.slane %v8963, 1
      %v8966 = vsel %vm605, %v8961, %v8965
      %v9003 = vunpack.c.l.b16 %v8684
      %v9004 = vunpack.c.l.b16 %v8685
      %v9005 = vunpack.c.l.b16 %v8686
      %v9006 = vunpack.c.l.b16 %v8687
      %v9007 = vunpack.c.l.b16 %v8688
      %v9008 = vunpack.c.l.b16 %v8689
      %v9009 = vunpack.c.l.b16 %v8690
      %v9010 = vunpack.c.l.b16 %v8691
      %v9011 = vunpack.c.l.b16 %v8692
      %v9012 = vunpack.c.l.b16 %v8693
      %v9013 = vunpack.c.l.b16 %v8694
      %v9014 = vunpack.c.l.b16 %v8695
      %v9015 = vunpack.c.l.b16 %v8696
      %v9016 = vunpack.c.l.b16 %v8697
      %v9017 = vunpack.c.l.b16 %v8698
      %v9018 = vunpack.c.l.b16 %v8699
      %v9019 = vpack.c.b16 %v9004, %v9003
      %v9020 = vpack.c.b16 %v9006, %v9005
      %v9021 = vpack.c.b16 %v9008, %v9007
      %v9022 = vpack.c.b16 %v9010, %v9009
      %v9023 = vpack.c.b16 %v9012, %v9011
      %v9024 = vpack.c.b16 %v9014, %v9013
      %v9025 = vpack.c.b16 %v9016, %v9015
      %v9026 = vpack.c.b16 %v9018, %v9017
      %9035 = vmatpush.bf16.msra.mxu0 %v9026
      %9036 = vmatpush.bf16.msra.mxu0 %v9025
      %9037 = vmatpush.bf16.msra.mxu0 %v9024
      %9038 = vmatpush.bf16.msra.mxu0 %v9023
      %9039 = vmatpush.bf16.msra.mxu0 %v9022
      %9040 = vmatpush.bf16.msra.mxu0 %v9021
      %9041 = vmatpush.bf16.msra.mxu0 %v9020
      %9042 = vmatpush.bf16.msra.mxu0 %v9019
      %9043 = vmatmul.bf16.gmra.mxu0 %v8814
      %v9044 = vpop.f32.mrf.mxu0
      %v9045 = vadd.f32 0.0, %v9044
      %v9046 = vpop.f32.mrf.mxu0
      %v9047 = vadd.f32 0.0, %v9046
      %9048 = vmatmul.bf16.gmra.mxu0 %v8822
      %v9049 = vpop.f32.mrf.mxu0
      %v9050 = vadd.f32 0.0, %v9049
      %v9051 = vpop.f32.mrf.mxu0
      %v9052 = vadd.f32 0.0, %v9051
      %9053 = vmatmul.bf16.gmra.mxu0 %v8830
      %v9054 = vpop.f32.mrf.mxu0
      %v9055 = vadd.f32 0.0, %v9054
      %v9056 = vpop.f32.mrf.mxu0
      %v9057 = vadd.f32 0.0, %v9056
      %9058 = vmatmul.bf16.gmra.mxu0 %v8838
      %v9059 = vpop.f32.mrf.mxu0
      %v9060 = vadd.f32 0.0, %v9059
      %v9061 = vpop.f32.mrf.mxu0
      %v9062 = vadd.f32 0.0, %v9061
      %9063 = vmatmul.bf16.gmra.mxu0 %v8846
      %v9064 = vpop.f32.mrf.mxu0
      %v9065 = vadd.f32 0.0, %v9064
      %v9066 = vpop.f32.mrf.mxu0
      %v9067 = vadd.f32 0.0, %v9066
      %9068 = vmatmul.bf16.gmra.mxu0 %v8854
      %v9069 = vpop.f32.mrf.mxu0
      %v9070 = vadd.f32 0.0, %v9069
      %v9071 = vpop.f32.mrf.mxu0
      %v9072 = vadd.f32 0.0, %v9071
      %9073 = vmatmul.bf16.gmra.mxu0 %v8862
      %v9074 = vpop.f32.mrf.mxu0
      %v9075 = vadd.f32 0.0, %v9074
      %v9076 = vpop.f32.mrf.mxu0
      %v9077 = vadd.f32 0.0, %v9076
      %9078 = vmatmul.bf16.gmra.mxu0 %v8870
      %v9079 = vpop.f32.mrf.mxu0
      %v9080 = vadd.f32 0.0, %v9079
      %v9081 = vpop.f32.mrf.mxu0
      %v9082 = vadd.f32 0.0, %v9081
      %9083 = vmatmul.bf16.gmra.mxu0 %v8878
      %v9084 = vpop.f32.mrf.mxu0
      %v9085 = vadd.f32 0.0, %v9084
      %v9086 = vpop.f32.mrf.mxu0
      %v9087 = vadd.f32 0.0, %v9086
      %9088 = vmatmul.bf16.gmra.mxu0 %v8886
      %v9089 = vpop.f32.mrf.mxu0
      %v9090 = vadd.f32 0.0, %v9089
      %v9091 = vpop.f32.mrf.mxu0
      %v9092 = vadd.f32 0.0, %v9091
      %9093 = vmatmul.bf16.gmra.mxu0 %v8894
      %v9094 = vpop.f32.mrf.mxu0
      %v9095 = vadd.f32 0.0, %v9094
      %v9096 = vpop.f32.mrf.mxu0
      %v9097 = vadd.f32 0.0, %v9096
      %9098 = vmatmul.bf16.gmra.mxu0 %v8902
      %v9099 = vpop.f32.mrf.mxu0
      %v9100 = vadd.f32 0.0, %v9099
      %v9101 = vpop.f32.mrf.mxu0
      %v9102 = vadd.f32 0.0, %v9101
      %9103 = vmatmul.bf16.gmra.mxu0 %v8910
      %v9104 = vpop.f32.mrf.mxu0
      %v9105 = vadd.f32 0.0, %v9104
      %v9106 = vpop.f32.mrf.mxu0
      %v9107 = vadd.f32 0.0, %v9106
      %9108 = vmatmul.bf16.gmra.mxu0 %v8918
      %v9109 = vpop.f32.mrf.mxu0
      %v9110 = vadd.f32 0.0, %v9109
      %v9111 = vpop.f32.mrf.mxu0
      %v9112 = vadd.f32 0.0, %v9111
      %9113 = vmatmul.bf16.gmra.mxu0 %v8926
      %v9114 = vpop.f32.mrf.mxu0
      %v9115 = vadd.f32 0.0, %v9114
      %v9116 = vpop.f32.mrf.mxu0
      %v9117 = vadd.f32 0.0, %v9116
      %9118 = vmatmul.bf16.gmra.mxu0 %v8934
      %v9119 = vpop.f32.mrf.mxu0
      %v9120 = vadd.f32 0.0, %v9119
      %v9121 = vpop.f32.mrf.mxu0
      %v9122 = vadd.f32 0.0, %v9121
      %9123 = vmatmul.bf16.gmra.mxu0 %v8942
      %v9124 = vpop.f32.mrf.mxu0
      %v9125 = vadd.f32 0.0, %v9124
      %v9126 = vpop.f32.mrf.mxu0
      %v9127 = vadd.f32 0.0, %v9126
      %9128 = vmatmul.bf16.gmra.mxu0 %v8950
      %v9129 = vpop.f32.mrf.mxu0
      %v9130 = vadd.f32 0.0, %v9129
      %v9131 = vpop.f32.mrf.mxu0
      %v9132 = vadd.f32 0.0, %v9131
      %9133 = vmatmul.bf16.gmra.mxu0 %v8958
      %v9134 = vpop.f32.mrf.mxu0
      %v9135 = vadd.f32 0.0, %v9134
      %v9136 = vpop.f32.mrf.mxu0
      %v9137 = vadd.f32 0.0, %v9136
      %9138 = vmatmul.bf16.gmra.mxu0 %v8966
      %v9139 = vpop.f32.mrf.mxu0
      %v9140 = vadd.f32 0.0, %v9139
      %v9141 = vpop.f32.mrf.mxu0
      %v9142 = vadd.f32 0.0, %v9141
      %9143 = vdwg.mxu0
      %v9144 = vadd.f32 %v8602, %v9045
      %v9145 = vadd.f32 %v8603, %v9047
      %v9146 = vadd.f32 %v8604, %v9050
      %v9147 = vadd.f32 %v8605, %v9052
      %v9148 = vadd.f32 %v8606, %v9055
      %v9149 = vadd.f32 %v8607, %v9057
      %v9150 = vadd.f32 %v8608, %v9060
      %v9151 = vadd.f32 %v8609, %v9062
      %v9152 = vadd.f32 %v8610, %v9065
      %v9153 = vadd.f32 %v8611, %v9067
      %v9154 = vadd.f32 %v8612, %v9070
      %v9155 = vadd.f32 %v8613, %v9072
      %v9156 = vadd.f32 %v8614, %v9075
      %v9157 = vadd.f32 %v8615, %v9077
      %v9158 = vadd.f32 %v8616, %v9080
      %v9159 = vadd.f32 %v8617, %v9082
      %v9160 = vadd.f32 %v8618, %v9085
      %v9161 = vadd.f32 %v8619, %v9087
      %v9162 = vadd.f32 %v8620, %v9090
      %v9163 = vadd.f32 %v8621, %v9092
      %v9164 = vadd.f32 %v8622, %v9095
      %v9165 = vadd.f32 %v8623, %v9097
      %v9166 = vadd.f32 %v8624, %v9100
      %v9167 = vadd.f32 %v8625, %v9102
      %v9168 = vadd.f32 %v8626, %v9105
      %v9169 = vadd.f32 %v8627, %v9107
      %v9170 = vadd.f32 %v8628, %v9110
      %v9171 = vadd.f32 %v8629, %v9112
      %v9172 = vadd.f32 %v8630, %v9115
      %v9173 = vadd.f32 %v8631, %v9117
      %v9174 = vadd.f32 %v8632, %v9120
      %v9175 = vadd.f32 %v8633, %v9122
      %v9176 = vadd.f32 %v8634, %v9125
      %v9177 = vadd.f32 %v8635, %v9127
      %v9178 = vadd.f32 %v8636, %v9130
      %v9179 = vadd.f32 %v8637, %v9132
      %v9180 = vadd.f32 %v8638, %v9135
      %v9181 = vadd.f32 %v8639, %v9137
      %v9182 = vadd.f32 %v8640, %v9140
      %v9183 = vadd.f32 %v8641, %v9142
      %v9184 = vld [vmem:[#allocation2 + $0x14] sm:$0xe]
      %s9185 = scalar_lea.vmem %s3, 512
      %v9186 = vld [vmem:[%s9185] sm:$0xf]
      %v9187 = vld [vmem:[%s9185 + $0x4] sm:$0xf]
      %v9188 = vld [vmem:[%s9185 + $0x8] sm:$0xf]
      %v9189 = vld [vmem:[%s9185 + $0xc] sm:$0xf]
      %v9190 = vld [vmem:[%s9185 + $0x10] sm:$0xf]
      %v9191 = vld [vmem:[%s9185 + $0x14] sm:$0xf]
      %v9192 = vld [vmem:[%s9185 + $0x18] sm:$0xf]
      %v9193 = vld [vmem:[%s9185 + $0x1c] sm:$0xf]
      %v9194 = vld [vmem:[%s9185 + $0x20] sm:$0xf]
      %v9195 = vld [vmem:[%s9185 + $0x24] sm:$0xf]
      %v9196 = vld [vmem:[%s9185 + $0x28] sm:$0xf]
      %v9197 = vld [vmem:[%s9185 + $0x2c] sm:$0xf]
      %v9198 = vld [vmem:[%s9185 + $0x30] sm:$0xf]
      %v9199 = vld [vmem:[%s9185 + $0x34] sm:$0xf]
      %v9200 = vld [vmem:[%s9185 + $0x38] sm:$0xf]
      %v9201 = vld [vmem:[%s9185 + $0x3c] sm:$0xf]
      %v9203 = vunpack.c.l.b16 %v9184
      %v9204 = vpack.c.b16 %v8742, %v9203
      %v9205 = vrot.slane %v9204, 1
      %v9206 = vrot.slane %v8783, 1
      %v9207 = vsel %vm1199, %v9205, %v9206
      %v9208 = vrot.slane %v8784, 1
      %v9209 = vsel %vm1199, %v9206, %v9208
      %v9210 = vrot.slane %v8785, 1
      %v9211 = vsel %vm1199, %v9208, %v9210
      %v9212 = vrot.slane %v8786, 1
      %v9213 = vsel %vm1199, %v9210, %v9212
      %v9214 = vrot.slane %v8787, 1
      %v9215 = vsel %vm1199, %v9212, %v9214
      %v9216 = vrot.slane %v8788, 1
      %v9217 = vsel %vm1199, %v9214, %v9216
      %v9218 = vrot.slane %v8789, 1
      %v9219 = vsel %vm1199, %v9216, %v9218
      %v9220 = vrot.slane %v8790, 1
      %v9221 = vsel %vm1199, %v9218, %v9220
      %v9222 = vrot.slane %v8791, 1
      %v9223 = vsel %vm1199, %v9220, %v9222
      %v9224 = vrot.slane %v8792, 1
      %v9225 = vsel %vm1199, %v9222, %v9224
      %v9226 = vrot.slane %v8793, 1
      %v9227 = vsel %vm1199, %v9224, %v9226
      %v9228 = vrot.slane %v8794, 1
      %v9229 = vsel %vm1199, %v9226, %v9228
      %v9230 = vrot.slane %v8795, 1
      %v9231 = vsel %vm1199, %v9228, %v9230
      %v9232 = vrot.slane %v8796, 1
      %v9233 = vsel %vm1199, %v9230, %v9232
      %v9234 = vrot.slane %v8797, 1
      %v9235 = vsel %vm1199, %v9232, %v9234
      %v9236 = vrot.slane %v8798, 1
      %v9237 = vsel %vm1199, %v9234, %v9236
      %v9238 = vrot.slane %v8799, 1
      %v9239 = vsel %vm1199, %v9236, %v9238
      %v9240 = vrot.slane %v8800, 1
      %v9241 = vsel %vm1199, %v9238, %v9240
      %v9242 = vrot.slane %v8801, 1
      %v9243 = vsel %vm1199, %v9240, %v9242
      %v9244 = vrot.slane %v8802, 1
      %v9245 = vsel %vm1199, %v9242, %v9244
      %v9282 = vunpack.c.l.b16 %v9186
      %v9283 = vunpack.c.l.b16 %v9187
      %v9284 = vunpack.c.l.b16 %v9188
      %v9285 = vunpack.c.l.b16 %v9189
      %v9286 = vunpack.c.l.b16 %v9190
      %v9287 = vunpack.c.l.b16 %v9191
      %v9288 = vunpack.c.l.b16 %v9192
      %v9289 = vunpack.c.l.b16 %v9193
      %v9290 = vunpack.c.l.b16 %v9194
      %v9291 = vunpack.c.l.b16 %v9195
      %v9292 = vunpack.c.l.b16 %v9196
      %v9293 = vunpack.c.l.b16 %v9197
      %v9294 = vunpack.c.l.b16 %v9198
      %v9295 = vunpack.c.l.b16 %v9199
      %v9296 = vunpack.c.l.b16 %v9200
      %v9297 = vunpack.c.l.b16 %v9201
      %v9298 = vpack.c.b16 %v9283, %v9282
      %v9299 = vpack.c.b16 %v9285, %v9284
      %v9300 = vpack.c.b16 %v9287, %v9286
      %v9301 = vpack.c.b16 %v9289, %v9288
      %v9302 = vpack.c.b16 %v9291, %v9290
      %v9303 = vpack.c.b16 %v9293, %v9292
      %v9304 = vpack.c.b16 %v9295, %v9294
      %v9305 = vpack.c.b16 %v9297, %v9296
      %9314 = vmatpush.bf16.msra.mxu0 %v9305
      %9315 = vmatpush.bf16.msra.mxu0 %v9304
      %9316 = vmatpush.bf16.msra.mxu0 %v9303
      %9317 = vmatpush.bf16.msra.mxu0 %v9302
      %9318 = vmatpush.bf16.msra.mxu0 %v9301
      %9319 = vmatpush.bf16.msra.mxu0 %v9300
      %9320 = vmatpush.bf16.msra.mxu0 %v9299
      %9321 = vmatpush.bf16.msra.mxu0 %v9298
      %9322 = vmatmul.bf16.gmra.mxu0 %v9207
      %v9323 = vpop.f32.mrf.mxu0
      %v9324 = vadd.f32 0.0, %v9323
      %v9325 = vpop.f32.mrf.mxu0
      %v9326 = vadd.f32 0.0, %v9325
      %9327 = vmatmul.bf16.gmra.mxu0 %v9209
      %v9328 = vpop.f32.mrf.mxu0
      %v9329 = vadd.f32 0.0, %v9328
      %v9330 = vpop.f32.mrf.mxu0
      %v9331 = vadd.f32 0.0, %v9330
      %9332 = vmatmul.bf16.gmra.mxu0 %v9211
      %v9333 = vpop.f32.mrf.mxu0
      %v9334 = vadd.f32 0.0, %v9333
      %v9335 = vpop.f32.mrf.mxu0
      %v9336 = vadd.f32 0.0, %v9335
      %9337 = vmatmul.bf16.gmra.mxu0 %v9213
      %v9338 = vpop.f32.mrf.mxu0
      %v9339 = vadd.f32 0.0, %v9338
      %v9340 = vpop.f32.mrf.mxu0
      %v9341 = vadd.f32 0.0, %v9340
      %9342 = vmatmul.bf16.gmra.mxu0 %v9215
      %v9343 = vpop.f32.mrf.mxu0
      %v9344 = vadd.f32 0.0, %v9343
      %v9345 = vpop.f32.mrf.mxu0
      %v9346 = vadd.f32 0.0, %v9345
      %9347 = vmatmul.bf16.gmra.mxu0 %v9217
      %v9348 = vpop.f32.mrf.mxu0
      %v9349 = vadd.f32 0.0, %v9348
      %v9350 = vpop.f32.mrf.mxu0
      %v9351 = vadd.f32 0.0, %v9350
      %9352 = vmatmul.bf16.gmra.mxu0 %v9219
      %v9353 = vpop.f32.mrf.mxu0
      %v9354 = vadd.f32 0.0, %v9353
      %v9355 = vpop.f32.mrf.mxu0
      %v9356 = vadd.f32 0.0, %v9355
      %9357 = vmatmul.bf16.gmra.mxu0 %v9221
      %v9358 = vpop.f32.mrf.mxu0
      %v9359 = vadd.f32 0.0, %v9358
      %v9360 = vpop.f32.mrf.mxu0
      %v9361 = vadd.f32 0.0, %v9360
      %9362 = vmatmul.bf16.gmra.mxu0 %v9223
      %v9363 = vpop.f32.mrf.mxu0
      %v9364 = vadd.f32 0.0, %v9363
      %v9365 = vpop.f32.mrf.mxu0
      %v9366 = vadd.f32 0.0, %v9365
      %9367 = vmatmul.bf16.gmra.mxu0 %v9225
      %v9368 = vpop.f32.mrf.mxu0
      %v9369 = vadd.f32 0.0, %v9368
      %v9370 = vpop.f32.mrf.mxu0
      %v9371 = vadd.f32 0.0, %v9370
      %9372 = vmatmul.bf16.gmra.mxu0 %v9227
      %v9373 = vpop.f32.mrf.mxu0
      %v9374 = vadd.f32 0.0, %v9373
      %v9375 = vpop.f32.mrf.mxu0
      %v9376 = vadd.f32 0.0, %v9375
      %9377 = vmatmul.bf16.gmra.mxu0 %v9229
      %v9378 = vpop.f32.mrf.mxu0
      %v9379 = vadd.f32 0.0, %v9378
      %v9380 = vpop.f32.mrf.mxu0
      %v9381 = vadd.f32 0.0, %v9380
      %9382 = vmatmul.bf16.gmra.mxu0 %v9231
      %v9383 = vpop.f32.mrf.mxu0
      %v9384 = vadd.f32 0.0, %v9383
      %v9385 = vpop.f32.mrf.mxu0
      %v9386 = vadd.f32 0.0, %v9385
      %9387 = vmatmul.bf16.gmra.mxu0 %v9233
      %v9388 = vpop.f32.mrf.mxu0
      %v9389 = vadd.f32 0.0, %v9388
      %v9390 = vpop.f32.mrf.mxu0
      %v9391 = vadd.f32 0.0, %v9390
      %9392 = vmatmul.bf16.gmra.mxu0 %v9235
      %v9393 = vpop.f32.mrf.mxu0
      %v9394 = vadd.f32 0.0, %v9393
      %v9395 = vpop.f32.mrf.mxu0
      %v9396 = vadd.f32 0.0, %v9395
      %9397 = vmatmul.bf16.gmra.mxu0 %v9237
      %v9398 = vpop.f32.mrf.mxu0
      %v9399 = vadd.f32 0.0, %v9398
      %v9400 = vpop.f32.mrf.mxu0
      %v9401 = vadd.f32 0.0, %v9400
      %9402 = vmatmul.bf16.gmra.mxu0 %v9239
      %v9403 = vpop.f32.mrf.mxu0
      %v9404 = vadd.f32 0.0, %v9403
      %v9405 = vpop.f32.mrf.mxu0
      %v9406 = vadd.f32 0.0, %v9405
      %9407 = vmatmul.bf16.gmra.mxu0 %v9241
      %v9408 = vpop.f32.mrf.mxu0
      %v9409 = vadd.f32 0.0, %v9408
      %v9410 = vpop.f32.mrf.mxu0
      %v9411 = vadd.f32 0.0, %v9410
      %9412 = vmatmul.bf16.gmra.mxu0 %v9243
      %v9413 = vpop.f32.mrf.mxu0
      %v9414 = vadd.f32 0.0, %v9413
      %v9415 = vpop.f32.mrf.mxu0
      %v9416 = vadd.f32 0.0, %v9415
      %9417 = vmatmul.bf16.gmra.mxu0 %v9245
      %v9418 = vpop.f32.mrf.mxu0
      %v9419 = vadd.f32 0.0, %v9418
      %v9420 = vpop.f32.mrf.mxu0
      %v9421 = vadd.f32 0.0, %v9420
      %9422 = vdwg.mxu0
      %v9423 = vadd.f32 %v9144, %v9324
      %v9424 = vadd.f32 %v9145, %v9326
      %v9425 = vadd.f32 %v9146, %v9329
      %v9426 = vadd.f32 %v9147, %v9331
      %v9427 = vadd.f32 %v9148, %v9334
      %v9428 = vadd.f32 %v9149, %v9336
      %v9429 = vadd.f32 %v9150, %v9339
      %v9430 = vadd.f32 %v9151, %v9341
      %v9431 = vadd.f32 %v9152, %v9344
      %v9432 = vadd.f32 %v9153, %v9346
      %v9433 = vadd.f32 %v9154, %v9349
      %v9434 = vadd.f32 %v9155, %v9351
      %v9435 = vadd.f32 %v9156, %v9354
      %v9436 = vadd.f32 %v9157, %v9356
      %v9437 = vadd.f32 %v9158, %v9359
      %v9438 = vadd.f32 %v9159, %v9361
      %v9439 = vadd.f32 %v9160, %v9364
      %v9440 = vadd.f32 %v9161, %v9366
      %v9441 = vadd.f32 %v9162, %v9369
      %v9442 = vadd.f32 %v9163, %v9371
      %v9443 = vadd.f32 %v9164, %v9374
      %v9444 = vadd.f32 %v9165, %v9376
      %v9445 = vadd.f32 %v9166, %v9379
      %v9446 = vadd.f32 %v9167, %v9381
      %v9447 = vadd.f32 %v9168, %v9384
      %v9448 = vadd.f32 %v9169, %v9386
      %v9449 = vadd.f32 %v9170, %v9389
      %v9450 = vadd.f32 %v9171, %v9391
      %v9451 = vadd.f32 %v9172, %v9394
      %v9452 = vadd.f32 %v9173, %v9396
      %v9453 = vadd.f32 %v9174, %v9399
      %v9454 = vadd.f32 %v9175, %v9401
      %v9455 = vadd.f32 %v9176, %v9404
      %v9456 = vadd.f32 %v9177, %v9406
      %v9457 = vadd.f32 %v9178, %v9409
      %v9458 = vadd.f32 %v9179, %v9411
      %v9459 = vadd.f32 %v9180, %v9414
      %v9460 = vadd.f32 %v9181, %v9416
      %v9461 = vadd.f32 %v9182, %v9419
      %v9462 = vadd.f32 %v9183, %v9421
      %v9463 = vld [vmem:[%s4] sm:$0x1]
      %v9465 = vperm.slane %v9463, 0
      %v9467 = vadd.f32 %v9423, %v9465
      %v9468 = vadd.f32 %v9424, %v9465
      %v9469 = vadd.f32 %v9425, %v9465
      %v9470 = vadd.f32 %v9426, %v9465
      %v9471 = vadd.f32 %v9427, %v9465
      %v9472 = vadd.f32 %v9428, %v9465
      %v9473 = vadd.f32 %v9429, %v9465
      %v9474 = vadd.f32 %v9430, %v9465
      %v9475 = vadd.f32 %v9431, %v9465
      %v9476 = vadd.f32 %v9432, %v9465
      %v9477 = vadd.f32 %v9433, %v9465
      %v9478 = vadd.f32 %v9434, %v9465
      %v9479 = vadd.f32 %v9435, %v9465
      %v9480 = vadd.f32 %v9436, %v9465
      %v9481 = vadd.f32 %v9437, %v9465
      %v9482 = vadd.f32 %v9438, %v9465
      %v9483 = vadd.f32 %v9439, %v9465
      %v9484 = vadd.f32 %v9440, %v9465
      %v9485 = vadd.f32 %v9441, %v9465
      %v9486 = vadd.f32 %v9442, %v9465
      %v9487 = vadd.f32 %v9443, %v9465
      %v9488 = vadd.f32 %v9444, %v9465
      %v9489 = vadd.f32 %v9445, %v9465
      %v9490 = vadd.f32 %v9446, %v9465
      %v9491 = vadd.f32 %v9447, %v9465
      %v9492 = vadd.f32 %v9448, %v9465
      %v9493 = vadd.f32 %v9449, %v9465
      %v9494 = vadd.f32 %v9450, %v9465
      %v9495 = vadd.f32 %v9451, %v9465
      %v9496 = vadd.f32 %v9452, %v9465
      %v9497 = vadd.f32 %v9453, %v9465
      %v9498 = vadd.f32 %v9454, %v9465
      %v9499 = vadd.f32 %v9455, %v9465
      %v9500 = vadd.f32 %v9456, %v9465
      %v9501 = vadd.f32 %v9457, %v9465
      %v9502 = vadd.f32 %v9458, %v9465
      %v9503 = vadd.f32 %v9459, %v9465
      %v9504 = vadd.f32 %v9460, %v9465
      %v9505 = vadd.f32 %v9461, %v9465
      %v9506 = vadd.f32 %v9462, %v9465
      %v9507 = vpack.c.bf16 %v9467, %v9467
      %v9508 = vpack.c.bf16 %v9468, %v9468
      %v9509 = vpack.c.bf16 %v9469, %v9469
      %v9510 = vpack.c.bf16 %v9470, %v9470
      %v9511 = vpack.c.bf16 %v9471, %v9471
      %v9512 = vpack.c.bf16 %v9472, %v9472
      %v9513 = vpack.c.bf16 %v9473, %v9473
      %v9514 = vpack.c.bf16 %v9474, %v9474
      %v9515 = vpack.c.bf16 %v9475, %v9475
      %v9516 = vpack.c.bf16 %v9476, %v9476
      %v9517 = vpack.c.bf16 %v9477, %v9477
      %v9518 = vpack.c.bf16 %v9478, %v9478
      %v9519 = vpack.c.bf16 %v9479, %v9479
      %v9520 = vpack.c.bf16 %v9480, %v9480
      %v9521 = vpack.c.bf16 %v9481, %v9481
      %v9522 = vpack.c.bf16 %v9482, %v9482
      %v9523 = vpack.c.bf16 %v9483, %v9483
      %v9524 = vpack.c.bf16 %v9484, %v9484
      %v9525 = vpack.c.bf16 %v9485, %v9485
      %v9526 = vpack.c.bf16 %v9486, %v9486
      %v9527 = vpack.c.bf16 %v9487, %v9487
      %v9528 = vpack.c.bf16 %v9488, %v9488
      %v9529 = vpack.c.bf16 %v9489, %v9489
      %v9530 = vpack.c.bf16 %v9490, %v9490
      %v9531 = vpack.c.bf16 %v9491, %v9491
      %v9532 = vpack.c.bf16 %v9492, %v9492
      %v9533 = vpack.c.bf16 %v9493, %v9493
      %v9534 = vpack.c.bf16 %v9494, %v9494
      %v9535 = vpack.c.bf16 %v9495, %v9495
      %v9536 = vpack.c.bf16 %v9496, %v9496
      %v9537 = vpack.c.bf16 %v9497, %v9497
      %v9538 = vpack.c.bf16 %v9498, %v9498
      %v9539 = vpack.c.bf16 %v9499, %v9499
      %v9540 = vpack.c.bf16 %v9500, %v9500
      %v9541 = vpack.c.bf16 %v9501, %v9501
      %v9542 = vpack.c.bf16 %v9502, %v9502
      %v9543 = vpack.c.bf16 %v9503, %v9503
      %v9544 = vpack.c.bf16 %v9504, %v9504
      %v9545 = vpack.c.bf16 %v9505, %v9505
      %v9546 = vpack.c.bf16 %v9506, %v9506
      %9547 = vst [vmem:[%s393] sm:$0xf] %v9507
      %9548 = vst [vmem:[%s393 + $0x4] sm:$0xf] %v9508
      %9549 = vst [vmem:[%s393 + $0x8] sm:$0xf] %v9509
      %9550 = vst [vmem:[%s393 + $0xc] sm:$0xf] %v9510
      %9551 = vst [vmem:[%s393 + $0x10] sm:$0xf] %v9511
      %9552 = vst [vmem:[%s393 + $0x14] sm:$0xf] %v9512
      %9553 = vst [vmem:[%s393 + $0x18] sm:$0xf] %v9513
      %9554 = vst [vmem:[%s393 + $0x1c] sm:$0xf] %v9514
      %9555 = vst [vmem:[%s393 + $0x20] sm:$0xf] %v9515
      %9556 = vst [vmem:[%s393 + $0x24] sm:$0xf] %v9516
      %9557 = vst [vmem:[%s393 + $0x28] sm:$0xf] %v9517
      %9558 = vst [vmem:[%s393 + $0x2c] sm:$0xf] %v9518
      %9559 = vst [vmem:[%s393 + $0x30] sm:$0xf] %v9519
      %9560 = vst [vmem:[%s393 + $0x34] sm:$0xf] %v9520
      %9561 = vst [vmem:[%s393 + $0x38] sm:$0xf] %v9521
      %9562 = vst [vmem:[%s393 + $0x3c] sm:$0xf] %v9522
      %9563 = vst [vmem:[%s393 + $0x40] sm:$0xf] %v9523
      %9564 = vst [vmem:[%s393 + $0x44] sm:$0xf] %v9524
      %9565 = vst [vmem:[%s393 + $0x48] sm:$0xf] %v9525
      %9566 = vst [vmem:[%s393 + $0x4c] sm:$0xf] %v9526
      %9567 = vst [vmem:[%s393 + $0x50] sm:$0xf] %v9527
      %9568 = vst [vmem:[%s393 + $0x54] sm:$0xf] %v9528
      %9569 = vst [vmem:[%s393 + $0x58] sm:$0xf] %v9529
      %9570 = vst [vmem:[%s393 + $0x5c] sm:$0xf] %v9530
      %9571 = vst [vmem:[%s393 + $0x60] sm:$0xf] %v9531
      %9572 = vst [vmem:[%s393 + $0x64] sm:$0xf] %v9532
      %9573 = vst [vmem:[%s393 + $0x68] sm:$0xf] %v9533
      %9574 = vst [vmem:[%s393 + $0x6c] sm:$0xf] %v9534
      %9575 = vst [vmem:[%s393 + $0x70] sm:$0xf] %v9535
      %9576 = vst [vmem:[%s393 + $0x74] sm:$0xf] %v9536
      %9577 = vst [vmem:[%s393 + $0x78] sm:$0xf] %v9537
      %9578 = vst [vmem:[%s393 + $0x7c] sm:$0xf] %v9538
      %9579 = vst [vmem:[%s393 + $0x80] sm:$0xf] %v9539
      %9580 = vst [vmem:[%s393 + $0x84] sm:$0xf] %v9540
      %9581 = vst [vmem:[%s393 + $0x88] sm:$0xf] %v9541
      %9582 = vst [vmem:[%s393 + $0x8c] sm:$0xf] %v9542
      %9583 = vst [vmem:[%s393 + $0x90] sm:$0xf] %v9543
      %9584 = vst [vmem:[%s393 + $0x94] sm:$0xf] %v9544
      %9585 = vst [vmem:[%s393 + $0x98] sm:$0xf] %v9545
      %9586 = vst [vmem:[%s393 + $0x9c] sm:$0xf] %v9546
      %v9587 = vld [vmem:[%s384 + $0x14] sm:$0xe]
      %v9588 = vld [vmem:[%s384 + $0x18] sm:$0xf]
      %v9589 = vld [vmem:[%s384 + $0x1c] sm:$0xf]
      %v9590 = vld [vmem:[%s384 + $0x20] sm:$0xf]
      %v9591 = vld [vmem:[%s384 + $0x24] sm:$0xf]
      %v9592 = vld [vmem:[%s384 + $0x28] sm:$0xf]
      %v9593 = vld [vmem:[%s384 + $0x2c] sm:$0xf]
      %v9594 = vld [vmem:[%s384 + $0x30] sm:$0xf]
      %v9595 = vld [vmem:[%s384 + $0x34] sm:$0xf]
      %v9596 = vld [vmem:[%s384 + $0x38] sm:$0xf]
      %v9597 = vld [vmem:[%s384 + $0x3c] sm:$0xf]
      %v9598 = vld [vmem:[%s384 + $0x40] sm:$0xf]
      %v9599 = vld [vmem:[%s384 + $0x44] sm:$0xf]
      %v9600 = vld [vmem:[%s384 + $0x48] sm:$0xf]
      %v9601 = vld [vmem:[%s384 + $0x4c] sm:$0xf]
      %v9602 = vld [vmem:[%s384 + $0x50] sm:$0xf]
      %v9603 = vld [vmem:[%s384 + $0x54] sm:$0xf]
      %v9604 = vld [vmem:[%s384 + $0x58] sm:$0xf]
      %v9605 = vld [vmem:[%s384 + $0x5c] sm:$0xf]
      %v9606 = vld [vmem:[%s384 + $0x60] sm:$0xf]
      %v9607 = vld [vmem:[%s384 + $0x64] sm:$0xf]
      %v9608 = vld [vmem:[%s384 + $0x68] sm:$0xf]
      %v9609 = vld [vmem:[%s384 + $0x6c] sm:$0xf]
      %v9610 = vld [vmem:[%s384 + $0x70] sm:$0xf]
      %v9611 = vld [vmem:[%s384 + $0x74] sm:$0xf]
      %v9612 = vld [vmem:[%s384 + $0x78] sm:$0xf]
      %v9613 = vld [vmem:[%s384 + $0x7c] sm:$0xf]
      %v9614 = vld [vmem:[%s384 + $0x80] sm:$0xf]
      %v9615 = vld [vmem:[%s384 + $0x84] sm:$0xf]
      %v9616 = vld [vmem:[%s384 + $0x88] sm:$0xf]
      %v9617 = vld [vmem:[%s384 + $0x8c] sm:$0xf]
      %v9618 = vld [vmem:[%s384 + $0x90] sm:$0xf]
      %v9619 = vld [vmem:[%s384 + $0x94] sm:$0xf]
      %v9620 = vld [vmem:[%s384 + $0x98] sm:$0xf]
      %v9621 = vld [vmem:[%s384 + $0x9c] sm:$0xf]
      %v9622 = vld [vmem:[%s384 + $0xa0] sm:$0xf]
      %v9623 = vld [vmem:[%s384 + $0xa4] sm:$0xf]
      %v9624 = vld [vmem:[%s384 + $0xa8] sm:$0xf]
      %v9625 = vld [vmem:[%s384 + $0xac] sm:$0xf]
      %v9626 = vld [vmem:[%s384 + $0xb0] sm:$0xf]
      %v9627 = vld [vmem:[%s384 + $0xb4] sm:$0x1]
      %v9628 = vld [vmem:[%s5] sm:$0xf]
      %v9629 = vld [vmem:[%s5 + $0x4] sm:$0xf]
      %v9630 = vld [vmem:[%s5 + $0x8] sm:$0xf]
      %v9631 = vld [vmem:[%s5 + $0xc] sm:$0xf]
      %v9632 = vld [vmem:[%s5 + $0x10] sm:$0xf]
      %v9633 = vld [vmem:[%s5 + $0x14] sm:$0xf]
      %v9634 = vld [vmem:[%s5 + $0x18] sm:$0xf]
      %v9635 = vld [vmem:[%s5 + $0x1c] sm:$0xf]
      %v9636 = vld [vmem:[%s5 + $0x20] sm:$0xf]
      %v9637 = vld [vmem:[%s5 + $0x24] sm:$0xf]
      %v9638 = vld [vmem:[%s5 + $0x28] sm:$0xf]
      %v9639 = vld [vmem:[%s5 + $0x2c] sm:$0xf]
      %v9640 = vld [vmem:[%s5 + $0x30] sm:$0xf]
      %v9641 = vld [vmem:[%s5 + $0x34] sm:$0xf]
      %v9642 = vld [vmem:[%s5 + $0x38] sm:$0xf]
      %v9643 = vld [vmem:[%s5 + $0x3c] sm:$0xf]
      %v9644 = vld [vmem:[%s6] sm:$0x1]
      %v9646 = vperm.slane %v9644, 0
      %v9689 = vunpack.c.l.b16 %v9587
      %v9690 = vunpack.c.l.b16 %v9588
      %v9691 = vunpack.c.l.b16 %v9589
      %v9692 = vunpack.c.l.b16 %v9590
      %v9693 = vunpack.c.l.b16 %v9591
      %v9694 = vunpack.c.l.b16 %v9592
      %v9695 = vunpack.c.l.b16 %v9593
      %v9696 = vunpack.c.l.b16 %v9594
      %v9697 = vunpack.c.l.b16 %v9595
      %v9698 = vunpack.c.l.b16 %v9596
      %v9699 = vunpack.c.l.b16 %v9597
      %v9700 = vunpack.c.l.b16 %v9598
      %v9701 = vunpack.c.l.b16 %v9599
      %v9702 = vunpack.c.l.b16 %v9600
      %v9703 = vunpack.c.l.b16 %v9601
      %v9704 = vunpack.c.l.b16 %v9602
      %v9705 = vunpack.c.l.b16 %v9603
      %v9706 = vunpack.c.l.b16 %v9604
      %v9707 = vunpack.c.l.b16 %v9605
      %v9708 = vunpack.c.l.b16 %v9606
      %v9709 = vunpack.c.l.b16 %v9607
      %v9710 = vunpack.c.l.b16 %v9608
      %v9711 = vunpack.c.l.b16 %v9609
      %v9712 = vunpack.c.l.b16 %v9610
      %v9713 = vunpack.c.l.b16 %v9611
      %v9714 = vunpack.c.l.b16 %v9612
      %v9715 = vunpack.c.l.b16 %v9613
      %v9716 = vunpack.c.l.b16 %v9614
      %v9717 = vunpack.c.l.b16 %v9615
      %v9718 = vunpack.c.l.b16 %v9616
      %v9719 = vunpack.c.l.b16 %v9617
      %v9720 = vunpack.c.l.b16 %v9618
      %v9721 = vunpack.c.l.b16 %v9619
      %v9722 = vunpack.c.l.b16 %v9620
      %v9723 = vunpack.c.l.b16 %v9621
      %v9724 = vunpack.c.l.b16 %v9622
      %v9725 = vunpack.c.l.b16 %v9623
      %v9726 = vunpack.c.l.b16 %v9624
      %v9727 = vunpack.c.l.b16 %v9625
      %v9728 = vunpack.c.l.b16 %v9626
      %v9729 = vunpack.c.l.b16 %v9627
      %v9730 = vpack.c.b16 %v9690, %v9689
      %v9731 = vpack.c.b16 %v9692, %v9691
      %v9732 = vpack.c.b16 %v9694, %v9693
      %v9733 = vpack.c.b16 %v9696, %v9695
      %v9734 = vpack.c.b16 %v9698, %v9697
      %v9735 = vpack.c.b16 %v9700, %v9699
      %v9736 = vpack.c.b16 %v9702, %v9701
      %v9737 = vpack.c.b16 %v9704, %v9703
      %v9738 = vpack.c.b16 %v9706, %v9705
      %v9739 = vpack.c.b16 %v9708, %v9707
      %v9740 = vpack.c.b16 %v9710, %v9709
      %v9741 = vpack.c.b16 %v9712, %v9711
      %v9742 = vpack.c.b16 %v9714, %v9713
      %v9743 = vpack.c.b16 %v9716, %v9715
      %v9744 = vpack.c.b16 %v9718, %v9717
      %v9745 = vpack.c.b16 %v9720, %v9719
      %v9746 = vpack.c.b16 %v9722, %v9721
      %v9747 = vpack.c.b16 %v9724, %v9723
      %v9748 = vpack.c.b16 %v9726, %v9725
      %v9749 = vpack.c.b16 %v9728, %v9727
      %v9750 = vpack.c.b16 %v9729, %v9729
      %v9751 = vrot.slane %v9730, 1
      %v9752 = vrot.slane %v9731, 1
      %v9753 = vsel %vm1199, %v9751, %v9752
      %v9754 = vrot.slane %v9732, 1
      %v9755 = vsel %vm1199, %v9752, %v9754
      %v9756 = vrot.slane %v9733, 1
      %v9757 = vsel %vm1199, %v9754, %v9756
      %v9758 = vrot.slane %v9734, 1
      %v9759 = vsel %vm1199, %v9756, %v9758
      %v9760 = vrot.slane %v9735, 1
      %v9761 = vsel %vm1199, %v9758, %v9760
      %v9762 = vrot.slane %v9736, 1
      %v9763 = vsel %vm1199, %v9760, %v9762
      %v9764 = vrot.slane %v9737, 1
      %v9765 = vsel %vm1199, %v9762, %v9764
      %v9766 = vrot.slane %v9738, 1
      %v9767 = vsel %vm1199, %v9764, %v9766
      %v9768 = vrot.slane %v9739, 1
      %v9769 = vsel %vm1199, %v9766, %v9768
      %v9770 = vrot.slane %v9740, 1
      %v9771 = vsel %vm1199, %v9768, %v9770
      %v9772 = vrot.slane %v9741, 1
      %v9773 = vsel %vm1199, %v9770, %v9772
      %v9774 = vrot.slane %v9742, 1
      %v9775 = vsel %vm1199, %v9772, %v9774
      %v9776 = vrot.slane %v9743, 1
      %v9777 = vsel %vm1199, %v9774, %v9776
      %v9778 = vrot.slane %v9744, 1
      %v9779 = vsel %vm1199, %v9776, %v9778
      %v9780 = vrot.slane %v9745, 1
      %v9781 = vsel %vm1199, %v9778, %v9780
      %v9782 = vrot.slane %v9746, 1
      %v9783 = vsel %vm1199, %v9780, %v9782
      %v9784 = vrot.slane %v9747, 1
      %v9785 = vsel %vm1199, %v9782, %v9784
      %v9786 = vrot.slane %v9748, 1
      %v9787 = vsel %vm1199, %v9784, %v9786
      %v9788 = vrot.slane %v9749, 1
      %v9789 = vsel %vm1199, %v9786, %v9788
      %v9790 = vrot.slane %v9750, 1
      %v9791 = vsel %vm1199, %v9788, %v9790
      %v9828 = vunpack.c.l.b16 %v9628
      %v9829 = vunpack.c.l.b16 %v9629
      %v9830 = vunpack.c.l.b16 %v9630
      %v9831 = vunpack.c.l.b16 %v9631
      %v9832 = vunpack.c.l.b16 %v9632
      %v9833 = vunpack.c.l.b16 %v9633
      %v9834 = vunpack.c.l.b16 %v9634
      %v9835 = vunpack.c.l.b16 %v9635
      %v9836 = vunpack.c.l.b16 %v9636
      %v9837 = vunpack.c.l.b16 %v9637
      %v9838 = vunpack.c.l.b16 %v9638
      %v9839 = vunpack.c.l.b16 %v9639
      %v9840 = vunpack.c.l.b16 %v9640
      %v9841 = vunpack.c.l.b16 %v9641
      %v9842 = vunpack.c.l.b16 %v9642
      %v9843 = vunpack.c.l.b16 %v9643
      %v9844 = vpack.c.b16 %v9829, %v9828
      %v9845 = vpack.c.b16 %v9831, %v9830
      %v9846 = vpack.c.b16 %v9833, %v9832
      %v9847 = vpack.c.b16 %v9835, %v9834
      %v9848 = vpack.c.b16 %v9837, %v9836
      %v9849 = vpack.c.b16 %v9839, %v9838
      %v9850 = vpack.c.b16 %v9841, %v9840
      %v9851 = vpack.c.b16 %v9843, %v9842
      %9860 = vmatpush.bf16.msra.mxu0 %v9851
      %9861 = vmatpush.bf16.msra.mxu0 %v9850
      %9862 = vmatpush.bf16.msra.mxu0 %v9849
      %9863 = vmatpush.bf16.msra.mxu0 %v9848
      %9864 = vmatpush.bf16.msra.mxu0 %v9847
      %9865 = vmatpush.bf16.msra.mxu0 %v9846
      %9866 = vmatpush.bf16.msra.mxu0 %v9845
      %9867 = vmatpush.bf16.msra.mxu0 %v9844
      %9868 = vmatmul.bf16.gmra.mxu0 %v9753
      %v9869 = vpop.f32.mrf.mxu0
      %v9870 = vadd.f32 %v9646, %v9869
      %v9871 = vpop.f32.mrf.mxu0
      %v9872 = vadd.f32 %v9646, %v9871
      %9873 = vmatmul.bf16.gmra.mxu0 %v9755
      %v9874 = vpop.f32.mrf.mxu0
      %v9875 = vadd.f32 %v9646, %v9874
      %v9876 = vpop.f32.mrf.mxu0
      %v9877 = vadd.f32 %v9646, %v9876
      %9878 = vmatmul.bf16.gmra.mxu0 %v9757
      %v9879 = vpop.f32.mrf.mxu0
      %v9880 = vadd.f32 %v9646, %v9879
      %v9881 = vpop.f32.mrf.mxu0
      %v9882 = vadd.f32 %v9646, %v9881
      %9883 = vmatmul.bf16.gmra.mxu0 %v9759
      %v9884 = vpop.f32.mrf.mxu0
      %v9885 = vadd.f32 %v9646, %v9884
      %v9886 = vpop.f32.mrf.mxu0
      %v9887 = vadd.f32 %v9646, %v9886
      %9888 = vmatmul.bf16.gmra.mxu0 %v9761
      %v9889 = vpop.f32.mrf.mxu0
      %v9890 = vadd.f32 %v9646, %v9889
      %v9891 = vpop.f32.mrf.mxu0
      %v9892 = vadd.f32 %v9646, %v9891
      %9893 = vmatmul.bf16.gmra.mxu0 %v9763
      %v9894 = vpop.f32.mrf.mxu0
      %v9895 = vadd.f32 %v9646, %v9894
      %v9896 = vpop.f32.mrf.mxu0
      %v9897 = vadd.f32 %v9646, %v9896
      %9898 = vmatmul.bf16.gmra.mxu0 %v9765
      %v9899 = vpop.f32.mrf.mxu0
      %v9900 = vadd.f32 %v9646, %v9899
      %v9901 = vpop.f32.mrf.mxu0
      %v9902 = vadd.f32 %v9646, %v9901
      %9903 = vmatmul.bf16.gmra.mxu0 %v9767
      %v9904 = vpop.f32.mrf.mxu0
      %v9905 = vadd.f32 %v9646, %v9904
      %v9906 = vpop.f32.mrf.mxu0
      %v9907 = vadd.f32 %v9646, %v9906
      %9908 = vmatmul.bf16.gmra.mxu0 %v9769
      %v9909 = vpop.f32.mrf.mxu0
      %v9910 = vadd.f32 %v9646, %v9909
      %v9911 = vpop.f32.mrf.mxu0
      %v9912 = vadd.f32 %v9646, %v9911
      %9913 = vmatmul.bf16.gmra.mxu0 %v9771
      %v9914 = vpop.f32.mrf.mxu0
      %v9915 = vadd.f32 %v9646, %v9914
      %v9916 = vpop.f32.mrf.mxu0
      %v9917 = vadd.f32 %v9646, %v9916
      %9918 = vmatmul.bf16.gmra.mxu0 %v9773
      %v9919 = vpop.f32.mrf.mxu0
      %v9920 = vadd.f32 %v9646, %v9919
      %v9921 = vpop.f32.mrf.mxu0
      %v9922 = vadd.f32 %v9646, %v9921
      %9923 = vmatmul.bf16.gmra.mxu0 %v9775
      %v9924 = vpop.f32.mrf.mxu0
      %v9925 = vadd.f32 %v9646, %v9924
      %v9926 = vpop.f32.mrf.mxu0
      %v9927 = vadd.f32 %v9646, %v9926
      %9928 = vmatmul.bf16.gmra.mxu0 %v9777
      %v9929 = vpop.f32.mrf.mxu0
      %v9930 = vadd.f32 %v9646, %v9929
      %v9931 = vpop.f32.mrf.mxu0
      %v9932 = vadd.f32 %v9646, %v9931
      %9933 = vmatmul.bf16.gmra.mxu0 %v9779
      %v9934 = vpop.f32.mrf.mxu0
      %v9935 = vadd.f32 %v9646, %v9934
      %v9936 = vpop.f32.mrf.mxu0
      %v9937 = vadd.f32 %v9646, %v9936
      %9938 = vmatmul.bf16.gmra.mxu0 %v9781
      %v9939 = vpop.f32.mrf.mxu0
      %v9940 = vadd.f32 %v9646, %v9939
      %v9941 = vpop.f32.mrf.mxu0
      %v9942 = vadd.f32 %v9646, %v9941
      %9943 = vmatmul.bf16.gmra.mxu0 %v9783
      %v9944 = vpop.f32.mrf.mxu0
      %v9945 = vadd.f32 %v9646, %v9944
      %v9946 = vpop.f32.mrf.mxu0
      %v9947 = vadd.f32 %v9646, %v9946
      %9948 = vmatmul.bf16.gmra.mxu0 %v9785
      %v9949 = vpop.f32.mrf.mxu0
      %v9950 = vadd.f32 %v9646, %v9949
      %v9951 = vpop.f32.mrf.mxu0
      %v9952 = vadd.f32 %v9646, %v9951
      %9953 = vmatmul.bf16.gmra.mxu0 %v9787
      %v9954 = vpop.f32.mrf.mxu0
      %v9955 = vadd.f32 %v9646, %v9954
      %v9956 = vpop.f32.mrf.mxu0
      %v9957 = vadd.f32 %v9646, %v9956
      %9958 = vmatmul.bf16.gmra.mxu0 %v9789
      %v9959 = vpop.f32.mrf.mxu0
      %v9960 = vadd.f32 %v9646, %v9959
      %v9961 = vpop.f32.mrf.mxu0
      %v9962 = vadd.f32 %v9646, %v9961
      %9963 = vmatmul.bf16.gmra.mxu0 %v9791
      %v9964 = vpop.f32.mrf.mxu0
      %v9965 = vadd.f32 %v9646, %v9964
      %v9966 = vpop.f32.mrf.mxu0
      %v9967 = vadd.f32 %v9646, %v9966
      %9968 = vdwg.mxu0
      %v9969 = vpack.c.bf16 %v9870, %v9870
      %v9970 = vpack.c.bf16 %v9872, %v9872
      %v9971 = vpack.c.bf16 %v9875, %v9875
      %v9972 = vpack.c.bf16 %v9877, %v9877
      %v9973 = vpack.c.bf16 %v9880, %v9880
      %v9974 = vpack.c.bf16 %v9882, %v9882
      %v9975 = vpack.c.bf16 %v9885, %v9885
      %v9976 = vpack.c.bf16 %v9887, %v9887
      %v9977 = vpack.c.bf16 %v9890, %v9890
      %v9978 = vpack.c.bf16 %v9892, %v9892
      %v9979 = vpack.c.bf16 %v9895, %v9895
      %v9980 = vpack.c.bf16 %v9897, %v9897
      %v9981 = vpack.c.bf16 %v9900, %v9900
      %v9982 = vpack.c.bf16 %v9902, %v9902
      %v9983 = vpack.c.bf16 %v9905, %v9905
      %v9984 = vpack.c.bf16 %v9907, %v9907
      %v9985 = vpack.c.bf16 %v9910, %v9910
      %v9986 = vpack.c.bf16 %v9912, %v9912
      %v9987 = vpack.c.bf16 %v9915, %v9915
      %v9988 = vpack.c.bf16 %v9917, %v9917
      %v9989 = vpack.c.bf16 %v9920, %v9920
      %v9990 = vpack.c.bf16 %v9922, %v9922
      %v9991 = vpack.c.bf16 %v9925, %v9925
      %v9992 = vpack.c.bf16 %v9927, %v9927
      %v9993 = vpack.c.bf16 %v9930, %v9930
      %v9994 = vpack.c.bf16 %v9932, %v9932
      %v9995 = vpack.c.bf16 %v9935, %v9935
      %v9996 = vpack.c.bf16 %v9937, %v9937
      %v9997 = vpack.c.bf16 %v9940, %v9940
      %v9998 = vpack.c.bf16 %v9942, %v9942
      %v9999 = vpack.c.bf16 %v9945, %v9945
      %v10000 = vpack.c.bf16 %v9947, %v9947
      %v10001 = vpack.c.bf16 %v9950, %v9950
      %v10002 = vpack.c.bf16 %v9952, %v9952
      %v10003 = vpack.c.bf16 %v9955, %v9955
      %v10004 = vpack.c.bf16 %v9957, %v9957
      %v10005 = vpack.c.bf16 %v9960, %v9960
      %v10006 = vpack.c.bf16 %v9962, %v9962
      %v10007 = vpack.c.bf16 %v9965, %v9965
      %v10008 = vpack.c.bf16 %v9967, %v9967
      %10009 = vst [vmem:[%s402] sm:$0xf] %v9969
      %10010 = vst [vmem:[%s402 + $0x4] sm:$0xf] %v9970
      %10011 = vst [vmem:[%s402 + $0x8] sm:$0xf] %v9971
      %10012 = vst [vmem:[%s402 + $0xc] sm:$0xf] %v9972
      %10013 = vst [vmem:[%s402 + $0x10] sm:$0xf] %v9973
      %10014 = vst [vmem:[%s402 + $0x14] sm:$0xf] %v9974
      %10015 = vst [vmem:[%s402 + $0x18] sm:$0xf] %v9975
      %10016 = vst [vmem:[%s402 + $0x1c] sm:$0xf] %v9976
      %10017 = vst [vmem:[%s402 + $0x20] sm:$0xf] %v9977
      %10018 = vst [vmem:[%s402 + $0x24] sm:$0xf] %v9978
      %10019 = vst [vmem:[%s402 + $0x28] sm:$0xf] %v9979
      %10020 = vst [vmem:[%s402 + $0x2c] sm:$0xf] %v9980
      %10021 = vst [vmem:[%s402 + $0x30] sm:$0xf] %v9981
      %10022 = vst [vmem:[%s402 + $0x34] sm:$0xf] %v9982
      %10023 = vst [vmem:[%s402 + $0x38] sm:$0xf] %v9983
      %10024 = vst [vmem:[%s402 + $0x3c] sm:$0xf] %v9984
      %10025 = vst [vmem:[%s402 + $0x40] sm:$0xf] %v9985
      %10026 = vst [vmem:[%s402 + $0x44] sm:$0xf] %v9986
      %10027 = vst [vmem:[%s402 + $0x48] sm:$0xf] %v9987
      %10028 = vst [vmem:[%s402 + $0x4c] sm:$0xf] %v9988
      %10029 = vst [vmem:[%s402 + $0x50] sm:$0xf] %v9989
      %10030 = vst [vmem:[%s402 + $0x54] sm:$0xf] %v9990
      %10031 = vst [vmem:[%s402 + $0x58] sm:$0xf] %v9991
      %10032 = vst [vmem:[%s402 + $0x5c] sm:$0xf] %v9992
      %10033 = vst [vmem:[%s402 + $0x60] sm:$0xf] %v9993
      %10034 = vst [vmem:[%s402 + $0x64] sm:$0xf] %v9994
      %10035 = vst [vmem:[%s402 + $0x68] sm:$0xf] %v9995
      %10036 = vst [vmem:[%s402 + $0x6c] sm:$0xf] %v9996
      %10037 = vst [vmem:[%s402 + $0x70] sm:$0xf] %v9997
      %10038 = vst [vmem:[%s402 + $0x74] sm:$0xf] %v9998
      %10039 = vst [vmem:[%s402 + $0x78] sm:$0xf] %v9999
      %10040 = vst [vmem:[%s402 + $0x7c] sm:$0xf] %v10000
      %10041 = vst [vmem:[%s402 + $0x80] sm:$0xf] %v10001
      %10042 = vst [vmem:[%s402 + $0x84] sm:$0xf] %v10002
      %10043 = vst [vmem:[%s402 + $0x88] sm:$0xf] %v10003
      %10044 = vst [vmem:[%s402 + $0x8c] sm:$0xf] %v10004
      %10045 = vst [vmem:[%s402 + $0x90] sm:$0xf] %v10005
      %10046 = vst [vmem:[%s402 + $0x94] sm:$0xf] %v10006
      %10047 = vst [vmem:[%s402 + $0x98] sm:$0xf] %v10007
      %10048 = vst [vmem:[%s402 + $0x9c] sm:$0xf] %v10008
      %vm10049 = vcmp.lt.s32.totalorder %v5754, 16
      %vm10050 = vcmp.lt.s32.totalorder %v5755, 16
      %vm10051 = vcmp.lt.s32.totalorder %v5756, 16
      %vm10052 = vcmp.lt.s32.totalorder %v5757, 16
      %vm10053 = vcmp.lt.s32.totalorder %v5758, 16
      %vm10054 = vcmp.lt.s32.totalorder %v5759, 16
      %vm10055 = vcmp.lt.s32.totalorder %v5760, 16
      %vm10056 = vcmp.lt.s32.totalorder %v5761, 16
      %vm10057 = vcmp.lt.s32.totalorder %v5762, 16
      %vm10058 = vcmp.lt.s32.totalorder %v5763, 16
      %vm10059 = vcmp.lt.s32.totalorder %v5764, 16
      %vm10060 = vcmp.lt.s32.totalorder %v5765, 16
      %vm10061 = vcmp.lt.s32.totalorder %v5766, 16
      %vm10062 = vcmp.lt.s32.totalorder %v5767, 16
      %vm10063 = vcmp.lt.s32.totalorder %v5768, 16
      %vm10064 = vcmp.lt.s32.totalorder %v5769, 16
      %vm10065 = vcmp.lt.s32.totalorder %v5770, 16
      %vm10066 = vcmp.lt.s32.totalorder %v5771, 16
      %vm10067 = vcmp.lt.s32.totalorder %v5772, 16
      %vm10068 = vcmp.lt.s32.totalorder %v5773, 16
      %vm10069 = vcmp.lt.s32.totalorder %v5774, 16
      %vm10070 = vcmp.lt.s32.totalorder %v5775, 16
      %vm10071 = vcmp.lt.s32.totalorder %v5776, 16
      %vm10072 = vcmp.lt.s32.totalorder %v5777, 16
      %vm10073 = vcmp.lt.s32.totalorder %v5778, 16
      %vm10074 = vcmp.lt.s32.totalorder %v5779, 16
      %vm10075 = vcmp.lt.s32.totalorder %v5780, 16
      %vm10076 = vcmp.lt.s32.totalorder %v5781, 16
      %vm10077 = vcmp.lt.s32.totalorder %v5782, 16
      %vm10078 = vcmp.lt.s32.totalorder %v5783, 16
      %vm10079 = vcmp.lt.s32.totalorder %v5784, 16
      %vm10080 = vcmp.lt.s32.totalorder %v5785, 16
      %vm10081 = vcmp.lt.s32.totalorder %v5786, 16
      %vm10082 = vcmp.lt.s32.totalorder %v5787, 16
      %vm10083 = vcmp.lt.s32.totalorder %v5788, 16
      %vm10084 = vcmp.lt.s32.totalorder %v5789, 16
      %vm10085 = vcmp.lt.s32.totalorder %v5790, 16
      %vm10086 = vcmp.lt.s32.totalorder %v5791, 16
      %vm10087 = vcmp.lt.s32.totalorder %v5792, 16
      %vm10088 = vcmp.lt.s32.totalorder %v5793, 16
      %v10089 = vsel %vm10049, 1, 0
      %v10090 = vsel %vm10050, 1, 0
      %v10091 = vsel %vm10051, 1, 0
      %v10092 = vsel %vm10052, 1, 0
      %v10093 = vsel %vm10053, 1, 0
      %v10094 = vsel %vm10054, 1, 0
      %v10095 = vsel %vm10055, 1, 0
      %v10096 = vsel %vm10056, 1, 0
      %v10097 = vsel %vm10057, 1, 0
      %v10098 = vsel %vm10058, 1, 0
      %v10099 = vsel %vm10059, 1, 0
      %v10100 = vsel %vm10060, 1, 0
      %v10101 = vsel %vm10061, 1, 0
      %v10102 = vsel %vm10062, 1, 0
      %v10103 = vsel %vm10063, 1, 0
      %v10104 = vsel %vm10064, 1, 0
      %v10105 = vsel %vm10065, 1, 0
      %v10106 = vsel %vm10066, 1, 0
      %v10107 = vsel %vm10067, 1, 0
      %v10108 = vsel %vm10068, 1, 0
      %v10109 = vsel %vm10069, 1, 0
      %v10110 = vsel %vm10070, 1, 0
      %v10111 = vsel %vm10071, 1, 0
      %v10112 = vsel %vm10072, 1, 0
      %v10113 = vsel %vm10073, 1, 0
      %v10114 = vsel %vm10074, 1, 0
      %v10115 = vsel %vm10075, 1, 0
      %v10116 = vsel %vm10076, 1, 0
      %v10117 = vsel %vm10077, 1, 0
      %v10118 = vsel %vm10078, 1, 0
      %v10119 = vsel %vm10079, 1, 0
      %v10120 = vsel %vm10080, 1, 0
      %v10121 = vsel %vm10081, 1, 0
      %v10122 = vsel %vm10082, 1, 0
      %v10123 = vsel %vm10083, 1, 0
      %v10124 = vsel %vm10084, 1, 0
      %v10125 = vsel %vm10085, 1, 0
      %v10126 = vsel %vm10086, 1, 0
      %v10127 = vsel %vm10087, 1, 0
      %v10128 = vsel %vm10088, 1, 0
      %vm10129 = vcmp.eq.s32.totalorder %v10089, 1
      %vm10130 = vcmp.eq.s32.totalorder %v10090, 1
      %vm10131 = vcmp.eq.s32.totalorder %v10091, 1
      %vm10132 = vcmp.eq.s32.totalorder %v10092, 1
      %vm10133 = vcmp.eq.s32.totalorder %v10093, 1
      %vm10134 = vcmp.eq.s32.totalorder %v10094, 1
      %vm10135 = vcmp.eq.s32.totalorder %v10095, 1
      %vm10136 = vcmp.eq.s32.totalorder %v10096, 1
      %vm10137 = vcmp.eq.s32.totalorder %v10097, 1
      %vm10138 = vcmp.eq.s32.totalorder %v10098, 1
      %vm10139 = vcmp.eq.s32.totalorder %v10099, 1
      %vm10140 = vcmp.eq.s32.totalorder %v10100, 1
      %vm10141 = vcmp.eq.s32.totalorder %v10101, 1
      %vm10142 = vcmp.eq.s32.totalorder %v10102, 1
      %vm10143 = vcmp.eq.s32.totalorder %v10103, 1
      %vm10144 = vcmp.eq.s32.totalorder %v10104, 1
      %vm10145 = vcmp.eq.s32.totalorder %v10105, 1
      %vm10146 = vcmp.eq.s32.totalorder %v10106, 1
      %vm10147 = vcmp.eq.s32.totalorder %v10107, 1
      %vm10148 = vcmp.eq.s32.totalorder %v10108, 1
      %vm10149 = vcmp.eq.s32.totalorder %v10109, 1
      %vm10150 = vcmp.eq.s32.totalorder %v10110, 1
      %vm10151 = vcmp.eq.s32.totalorder %v10111, 1
      %vm10152 = vcmp.eq.s32.totalorder %v10112, 1
      %vm10153 = vcmp.eq.s32.totalorder %v10113, 1
      %vm10154 = vcmp.eq.s32.totalorder %v10114, 1
      %vm10155 = vcmp.eq.s32.totalorder %v10115, 1
      %vm10156 = vcmp.eq.s32.totalorder %v10116, 1
      %vm10157 = vcmp.eq.s32.totalorder %v10117, 1
      %vm10158 = vcmp.eq.s32.totalorder %v10118, 1
      %vm10159 = vcmp.eq.s32.totalorder %v10119, 1
      %vm10160 = vcmp.eq.s32.totalorder %v10120, 1
      %vm10161 = vcmp.eq.s32.totalorder %v10121, 1
      %vm10162 = vcmp.eq.s32.totalorder %v10122, 1
      %vm10163 = vcmp.eq.s32.totalorder %v10123, 1
      %vm10164 = vcmp.eq.s32.totalorder %v10124, 1
      %vm10165 = vcmp.eq.s32.totalorder %v10125, 1
      %vm10166 = vcmp.eq.s32.totalorder %v10126, 1
      %vm10167 = vcmp.eq.s32.totalorder %v10127, 1
      %vm10168 = vcmp.eq.s32.totalorder %v10128, 1
      %v10169 = vsel %vm10129, %v9467, 0.0
      %v10170 = vsel %vm10130, %v9468, 0.0
      %v10171 = vsel %vm10131, %v9469, 0.0
      %v10172 = vsel %vm10132, %v9470, 0.0
      %v10173 = vsel %vm10133, %v9471, 0.0
      %v10174 = vsel %vm10134, %v9472, 0.0
      %v10175 = vsel %vm10135, %v9473, 0.0
      %v10176 = vsel %vm10136, %v9474, 0.0
      %v10177 = vsel %vm10137, %v9475, 0.0
      %v10178 = vsel %vm10138, %v9476, 0.0
      %v10179 = vsel %vm10139, %v9477, 0.0
      %v10180 = vsel %vm10140, %v9478, 0.0
      %v10181 = vsel %vm10141, %v9479, 0.0
      %v10182 = vsel %vm10142, %v9480, 0.0
      %v10183 = vsel %vm10143, %v9481, 0.0
      %v10184 = vsel %vm10144, %v9482, 0.0
      %v10185 = vsel %vm10145, %v9483, 0.0
      %v10186 = vsel %vm10146, %v9484, 0.0
      %v10187 = vsel %vm10147, %v9485, 0.0
      %v10188 = vsel %vm10148, %v9486, 0.0
      %v10189 = vsel %vm10149, %v9487, 0.0
      %v10190 = vsel %vm10150, %v9488, 0.0
      %v10191 = vsel %vm10151, %v9489, 0.0
      %v10192 = vsel %vm10152, %v9490, 0.0
      %v10193 = vsel %vm10153, %v9491, 0.0
      %v10194 = vsel %vm10154, %v9492, 0.0
      %v10195 = vsel %vm10155, %v9493, 0.0
      %v10196 = vsel %vm10156, %v9494, 0.0
      %v10197 = vsel %vm10157, %v9495, 0.0
      %v10198 = vsel %vm10158, %v9496, 0.0
      %v10199 = vsel %vm10159, %v9497, 0.0
      %v10200 = vsel %vm10160, %v9498, 0.0
      %v10201 = vsel %vm10161, %v9499, 0.0
      %v10202 = vsel %vm10162, %v9500, 0.0
      %v10203 = vsel %vm10163, %v9501, 0.0
      %v10204 = vsel %vm10164, %v9502, 0.0
      %v10205 = vsel %vm10165, %v9503, 0.0
      %v10206 = vsel %vm10166, %v9504, 0.0
      %v10207 = vsel %vm10167, %v9505, 0.0
      %v10208 = vsel %vm10168, %v9506, 0.0
      %v10209 = vadd.f32 %v10169, %v10170
      %v10210 = vadd.f32 %v10209, %v10171
      %v10211 = vadd.f32 %v10210, %v10172
      %v10212 = vadd.f32 %v10211, %v10173
      %v10213 = vadd.f32 %v10212, %v10174
      %v10214 = vadd.f32 %v10213, %v10175
      %v10215 = vadd.f32 %v10214, %v10176
      %v10216 = vadd.f32 %v10215, %v10177
      %v10217 = vadd.f32 %v10216, %v10178
      %v10218 = vadd.f32 %v10217, %v10179
      %v10219 = vadd.f32 %v10218, %v10180
      %v10220 = vadd.f32 %v10219, %v10181
      %v10221 = vadd.f32 %v10220, %v10182
      %v10222 = vadd.f32 %v10221, %v10183
      %v10223 = vadd.f32 %v10222, %v10184
      %v10224 = vadd.f32 %v10223, %v10185
      %v10225 = vadd.f32 %v10224, %v10186
      %v10226 = vadd.f32 %v10225, %v10187
      %v10227 = vadd.f32 %v10226, %v10188
      %v10228 = vadd.f32 %v10227, %v10189
      %v10229 = vadd.f32 %v10228, %v10190
      %v10230 = vadd.f32 %v10229, %v10191
      %v10231 = vadd.f32 %v10230, %v10192
      %v10232 = vadd.f32 %v10231, %v10193
      %v10233 = vadd.f32 %v10232, %v10194
      %v10234 = vadd.f32 %v10233, %v10195
      %v10235 = vadd.f32 %v10234, %v10196
      %v10236 = vadd.f32 %v10235, %v10197
      %v10237 = vadd.f32 %v10236, %v10198
      %v10238 = vadd.f32 %v10237, %v10199
      %v10239 = vadd.f32 %v10238, %v10200
      %v10240 = vadd.f32 %v10239, %v10201
      %v10241 = vadd.f32 %v10240, %v10202
      %v10242 = vadd.f32 %v10241, %v10203
      %v10243 = vadd.f32 %v10242, %v10204
      %v10244 = vadd.f32 %v10243, %v10205
      %v10245 = vadd.f32 %v10244, %v10206
      %v10246 = vadd.f32 %v10245, %v10207
      %v10247 = vadd.f32 %v10246, %v10208
      %v10248 = vrot.slane %v10247, 4
      %v10249 = vadd.f32 %v10247, %v10248
      %v10250 = vrot.slane %v10249, 2
      %v10251 = vadd.f32 %v10249, %v10250
      %v10252 = vrot.slane %v10251, 1
      %v10253 = vadd.f32 %v10251, %v10252
      %v10254 = vmul.f32 %v10253, 0.00390625
      %v10255 = vsub.f32 %v9467, %v10254
      %v10256 = vsub.f32 %v9468, %v10254
      %v10257 = vsub.f32 %v9469, %v10254
      %v10258 = vsub.f32 %v9470, %v10254
      %v10259 = vsub.f32 %v9471, %v10254
      %v10260 = vsub.f32 %v9472, %v10254
      %v10261 = vsub.f32 %v9473, %v10254
      %v10262 = vsub.f32 %v9474, %v10254
      %v10263 = vsub.f32 %v9475, %v10254
      %v10264 = vsub.f32 %v9476, %v10254
      %v10265 = vsub.f32 %v9477, %v10254
      %v10266 = vsub.f32 %v9478, %v10254
      %v10267 = vsub.f32 %v9479, %v10254
      %v10268 = vsub.f32 %v9480, %v10254
      %v10269 = vsub.f32 %v9481, %v10254
      %v10270 = vsub.f32 %v9482, %v10254
      %v10271 = vsub.f32 %v9483, %v10254
      %v10272 = vsub.f32 %v9484, %v10254
      %v10273 = vsub.f32 %v9485, %v10254
      %v10274 = vsub.f32 %v9486, %v10254
      %v10275 = vsub.f32 %v9487, %v10254
      %v10276 = vsub.f32 %v9488, %v10254
      %v10277 = vsub.f32 %v9489, %v10254
      %v10278 = vsub.f32 %v9490, %v10254
      %v10279 = vsub.f32 %v9491, %v10254
      %v10280 = vsub.f32 %v9492, %v10254
      %v10281 = vsub.f32 %v9493, %v10254
      %v10282 = vsub.f32 %v9494, %v10254
      %v10283 = vsub.f32 %v9495, %v10254
      %v10284 = vsub.f32 %v9496, %v10254
      %v10285 = vsub.f32 %v9497, %v10254
      %v10286 = vsub.f32 %v9498, %v10254
      %v10287 = vsub.f32 %v9499, %v10254
      %v10288 = vsub.f32 %v9500, %v10254
      %v10289 = vsub.f32 %v9501, %v10254
      %v10290 = vsub.f32 %v9502, %v10254
      %v10291 = vsub.f32 %v9503, %v10254
      %v10292 = vsub.f32 %v9504, %v10254
      %v10293 = vsub.f32 %v9505, %v10254
      %v10294 = vsub.f32 %v9506, %v10254
      %v10295 = vsel %vm10129, %v10255, 0.0
      %v10296 = vsel %vm10130, %v10256, 0.0
      %v10297 = vsel %vm10131, %v10257, 0.0
      %v10298 = vsel %vm10132, %v10258, 0.0
      %v10299 = vsel %vm10133, %v10259, 0.0
      %v10300 = vsel %vm10134, %v10260, 0.0
      %v10301 = vsel %vm10135, %v10261, 0.0
      %v10302 = vsel %vm10136, %v10262, 0.0
      %v10303 = vsel %vm10137, %v10263, 0.0
      %v10304 = vsel %vm10138, %v10264, 0.0
      %v10305 = vsel %vm10139, %v10265, 0.0
      %v10306 = vsel %vm10140, %v10266, 0.0
      %v10307 = vsel %vm10141, %v10267, 0.0
      %v10308 = vsel %vm10142, %v10268, 0.0
      %v10309 = vsel %vm10143, %v10269, 0.0
      %v10310 = vsel %vm10144, %v10270, 0.0
      %v10311 = vsel %vm10145, %v10271, 0.0
      %v10312 = vsel %vm10146, %v10272, 0.0
      %v10313 = vsel %vm10147, %v10273, 0.0
      %v10314 = vsel %vm10148, %v10274, 0.0
      %v10315 = vsel %vm10149, %v10275, 0.0
      %v10316 = vsel %vm10150, %v10276, 0.0
      %v10317 = vsel %vm10151, %v10277, 0.0
      %v10318 = vsel %vm10152, %v10278, 0.0
      %v10319 = vsel %vm10153, %v10279, 0.0
      %v10320 = vsel %vm10154, %v10280, 0.0
      %v10321 = vsel %vm10155, %v10281, 0.0
      %v10322 = vsel %vm10156, %v10282, 0.0
      %v10323 = vsel %vm10157, %v10283, 0.0
      %v10324 = vsel %vm10158, %v10284, 0.0
      %v10325 = vsel %vm10159, %v10285, 0.0
      %v10326 = vsel %vm10160, %v10286, 0.0
      %v10327 = vsel %vm10161, %v10287, 0.0
      %v10328 = vsel %vm10162, %v10288, 0.0
      %v10329 = vsel %vm10163, %v10289, 0.0
      %v10330 = vsel %vm10164, %v10290, 0.0
      %v10331 = vsel %vm10165, %v10291, 0.0
      %v10332 = vsel %vm10166, %v10292, 0.0
      %v10333 = vsel %vm10167, %v10293, 0.0
      %v10334 = vsel %vm10168, %v10294, 0.0
      %v10335 = vmul.f32 %v10295, %v10295
      %v10336 = vmul.f32 %v10296, %v10296
      %v10337 = vmul.f32 %v10297, %v10297
      %v10338 = vmul.f32 %v10298, %v10298
      %v10339 = vmul.f32 %v10299, %v10299
      %v10340 = vmul.f32 %v10300, %v10300
      %v10341 = vmul.f32 %v10301, %v10301
      %v10342 = vmul.f32 %v10302, %v10302
      %v10343 = vmul.f32 %v10303, %v10303
      %v10344 = vmul.f32 %v10304, %v10304
      %v10345 = vmul.f32 %v10305, %v10305
      %v10346 = vmul.f32 %v10306, %v10306
      %v10347 = vmul.f32 %v10307, %v10307
      %v10348 = vmul.f32 %v10308, %v10308
      %v10349 = vmul.f32 %v10309, %v10309
      %v10350 = vmul.f32 %v10310, %v10310
      %v10351 = vmul.f32 %v10311, %v10311
      %v10352 = vmul.f32 %v10312, %v10312
      %v10353 = vmul.f32 %v10313, %v10313
      %v10354 = vmul.f32 %v10314, %v10314
      %v10355 = vmul.f32 %v10315, %v10315
      %v10356 = vmul.f32 %v10316, %v10316
      %v10357 = vmul.f32 %v10317, %v10317
      %v10358 = vmul.f32 %v10318, %v10318
      %v10359 = vmul.f32 %v10319, %v10319
      %v10360 = vmul.f32 %v10320, %v10320
      %v10361 = vmul.f32 %v10321, %v10321
      %v10362 = vmul.f32 %v10322, %v10322
      %v10363 = vmul.f32 %v10323, %v10323
      %v10364 = vmul.f32 %v10324, %v10324
      %v10365 = vmul.f32 %v10325, %v10325
      %v10366 = vmul.f32 %v10326, %v10326
      %v10367 = vmul.f32 %v10327, %v10327
      %v10368 = vmul.f32 %v10328, %v10328
      %v10369 = vmul.f32 %v10329, %v10329
      %v10370 = vmul.f32 %v10330, %v10330
      %v10371 = vmul.f32 %v10331, %v10331
      %v10372 = vmul.f32 %v10332, %v10332
      %v10373 = vmul.f32 %v10333, %v10333
      %v10374 = vmul.f32 %v10334, %v10334
      %v10375 = vadd.f32 %v10335, %v10336
      %v10376 = vadd.f32 %v10375, %v10337
      %v10377 = vadd.f32 %v10376, %v10338
      %v10378 = vadd.f32 %v10377, %v10339
      %v10379 = vadd.f32 %v10378, %v10340
      %v10380 = vadd.f32 %v10379, %v10341
      %v10381 = vadd.f32 %v10380, %v10342
      %v10382 = vadd.f32 %v10381, %v10343
      %v10383 = vadd.f32 %v10382, %v10344
      %v10384 = vadd.f32 %v10383, %v10345
      %v10385 = vadd.f32 %v10384, %v10346
      %v10386 = vadd.f32 %v10385, %v10347
      %v10387 = vadd.f32 %v10386, %v10348
      %v10388 = vadd.f32 %v10387, %v10349
      %v10389 = vadd.f32 %v10388, %v10350
      %v10390 = vadd.f32 %v10389, %v10351
      %v10391 = vadd.f32 %v10390, %v10352
      %v10392 = vadd.f32 %v10391, %v10353
      %v10393 = vadd.f32 %v10392, %v10354
      %v10394 = vadd.f32 %v10393, %v10355
      %v10395 = vadd.f32 %v10394, %v10356
      %v10396 = vadd.f32 %v10395, %v10357
      %v10397 = vadd.f32 %v10396, %v10358
      %v10398 = vadd.f32 %v10397, %v10359
      %v10399 = vadd.f32 %v10398, %v10360
      %v10400 = vadd.f32 %v10399, %v10361
      %v10401 = vadd.f32 %v10400, %v10362
      %v10402 = vadd.f32 %v10401, %v10363
      %v10403 = vadd.f32 %v10402, %v10364
      %v10404 = vadd.f32 %v10403, %v10365
      %v10405 = vadd.f32 %v10404, %v10366
      %v10406 = vadd.f32 %v10405, %v10367
      %v10407 = vadd.f32 %v10406, %v10368
      %v10408 = vadd.f32 %v10407, %v10369
      %v10409 = vadd.f32 %v10408, %v10370
      %v10410 = vadd.f32 %v10409, %v10371
      %v10411 = vadd.f32 %v10410, %v10372
      %v10412 = vadd.f32 %v10411, %v10373
      %v10413 = vadd.f32 %v10412, %v10374
      %v10414 = vrot.slane %v10413, 4
      %v10415 = vadd.f32 %v10413, %v10414
      %v10416 = vrot.slane %v10415, 2
      %v10417 = vadd.f32 %v10415, %v10416
      %v10418 = vrot.slane %v10417, 1
      %v10419 = vadd.f32 %v10417, %v10418
      %10420 = vst [vmem:[%s409] sm:$0x1] %v10253
      %10421 = vst [vmem:[%s409 + $0x1] sm:$0x1] %v10419
      %p10422 = scmp.lt.s32.totalorder %s25, 1
      %s10423 = scalar_select %p10422, %s25, 1
      %p10424 = scmp.lt.s32.totalorder %s26, 0
      %s10425 = scalar_select %p10424, %s26, 0
      %s10426 = smul.addr %s10425, 40
      %s10427 = smul.addr %s10423, 40
      %s10428 = sadd.s32 %s10426, %s10427
      %s10429 = smul.addr %s10428, 4
      %s10430 = scalar_lea.vmem %s7, %s10429
      %p10431 = scmp.lt.s32.totalorder %s25, 1
      %s10432 = scalar_select %p10431, %s25, 1
      %p10433 = scmp.lt.s32.totalorder %s26, 0
      %s10434 = scalar_select %p10433, %s26, 0
      %s10435 = smul.addr %s10434, 40
      %s10436 = smul.addr %s10432, 40
      %s10437 = sadd.s32 %s10435, %s10436
      %s10438 = smul.addr %s10437, 4
      %s10439 = scalar_lea.vmem %s8, %s10438
      %p10440 = scmp.lt.s32.totalorder %s25, 1
      %s10441 = scalar_select %p10440, %s25, 1
      %p10442 = scmp.lt.s32.totalorder %s26, 0
      %s10443 = scalar_select %p10442, %s26, 0
      %s10444 = sadd.s32 %s10443, %s10441
      %s10445 = smul.addr %s10444, 2
      %s10446 = scalar_lea.vmem %s9, %s10445
      // Predicated region
      $region53: #{residual_block.2} parent=47 // pred_check
        %p10447 = pneg %p207
      $region54: #{residual_block.2} parent=47 // pred_check_branch
        %10449 = sbr.rel (%p10447) target = $region56
      $region55: #{residual_block.2} parent=47 // pred_region
        _
      $region56: #{residual_block.2} parent=47 // pred_fallthru
        _
      // Predicated region
      $region57: #{residual_block.2} parent=47 // pred_check
        %p10450 = pneg %p235
      $region58: #{residual_block.2} parent=47 // pred_check_branch
        %10452 = sbr.rel (%p10450) target = $region60
      $region59: #{residual_block.2} parent=47 // pred_region
        _
      $region60: #{residual_block.2} parent=47 // pred_fallthru
        _
      // Predicated region
      $region61: #{residual_block.2} parent=47 // pred_check
        %p10453 = pneg %p263
      $region62: #{residual_block.2} parent=47 // pred_check_branch
        %10455 = sbr.rel (%p10453) target = $region64
      $region63: #{residual_block.2} parent=47 // pred_region
        _
      $region64: #{residual_block.2} parent=47 // pred_fallthru
        _
    $region48: #{residual_block.2} parent=5 // pred_fallthru
      _
    %p10456 = scmp.le.s32.totalorder 2, %s16
    // Predicated region
    $region65: #{residual_block.2} parent=5 // pred_check
      %p10457 = pneg %p10456
    $region66: #{residual_block.2} parent=5 // pred_check_branch
      %10459 = sbr.rel (%p10457) target = $region68
    $region67: #{residual_block.2} parent=5 // pred_region
      %s10460 = ssub.s32 %s16, 2
      // Predicated region
      $region69: #{residual_block.2} parent=67 // pred_check
        %p10461 = pneg %p213
      $region70: #{residual_block.2} parent=67 // pred_check_branch
        %10463 = sbr.rel (%p10461) target = $region72
      $region71: #{residual_block.2} parent=67 // pred_region
        %p10464 = scmp.lt.s32.totalorder %s27, 1
        %s10465 = scalar_select %p10464, %s27, 1
        %p10466 = scmp.lt.s32.totalorder %s28, 0
        %s10467 = scalar_select %p10466, %s28, 0
        %s10468 = smul.addr %s10467, 40
        %s10469 = smul.addr %s10465, 40
        %s10470 = sadd.s32 %s10468, %s10469
        %s10471 = smul.addr %s10470, 4
        %s10472 = scalar_lea.vmem %s7, %s10471
      $region72: #{residual_block.2} parent=67 // pred_fallthru
        _
      // Predicated region
      $region73: #{residual_block.2} parent=67 // pred_check
        %p10473 = pneg %p241
      $region74: #{residual_block.2} parent=67 // pred_check_branch
        %10475 = sbr.rel (%p10473) target = $region76
      $region75: #{residual_block.2} parent=67 // pred_region
        %p10476 = scmp.lt.s32.totalorder %s27, 1
        %s10477 = scalar_select %p10476, %s27, 1
        %p10478 = scmp.lt.s32.totalorder %s28, 0
        %s10479 = scalar_select %p10478, %s28, 0
        %s10480 = smul.addr %s10479, 40
        %s10481 = smul.addr %s10477, 40
        %s10482 = sadd.s32 %s10480, %s10481
        %s10483 = smul.addr %s10482, 4
        %s10484 = scalar_lea.vmem %s8, %s10483
      $region76: #{residual_block.2} parent=67 // pred_fallthru
        _
      // Predicated region
      $region77: #{residual_block.2} parent=67 // pred_check
        %p10485 = pneg %p269
      $region78: #{residual_block.2} parent=67 // pred_check_branch
        %10487 = sbr.rel (%p10485) target = $region80
      $region79: #{residual_block.2} parent=67 // pred_region
        %p10488 = scmp.lt.s32.totalorder %s27, 1
        %s10489 = scalar_select %p10488, %s27, 1
        %p10490 = scmp.lt.s32.totalorder %s28, 0
        %s10491 = scalar_select %p10490, %s28, 0
        %s10492 = sadd.s32 %s10491, %s10489
        %s10493 = smul.addr %s10492, 2
        %s10494 = scalar_lea.vmem %s9, %s10493
      $region80: #{residual_block.2} parent=67 // pred_fallthru
        _
    $region68: #{residual_block.2} parent=5 // pred_fallthru
      _
  $region6: #{residual_block.2} parent=0 // loop_footer
    %s20 = sadd.s32 1, %s16
  $region7: #{residual_block.2} parent=0 // loop_footer_branch
    %15 = sbr.rel target = $region3
  $region8: #{residual_block.2} parent=0 // loop_exit
    _

</llo_original>
